<compile_context>
chip_gen: v7x
topology: tpu7x:2x2x1
jax: 0.10.0
libtpu: 0.0.40
codegen_flags: <defaults>
</compile_context>

<pallas_src>
import functools

import numpy as np
import jax
import jax.numpy as jnp
from jax import lax
from jax.experimental import pallas as pl
from jax.experimental.pallas import tpu as pltpu


# Generation-portable VMEM plan: steady-state blocks under ~24 MiB (fits v7x's
# 64 MiB physical VMEM with double-buffering + compiler scratch headroom, and
# is big enough to sit near the HBM roofline on v5e/v6e), scoped limit raised
# above the 16/32 MiB defaults.
_BLOCK_BUDGET_BYTES = 24 * 1024 * 1024
_VMEM_LIMIT_BYTES = 48 * 1024 * 1024


def _bins(in_size, out_size):
    """PyTorch adaptive pooling bins: start=floor(i*I/O), end=ceil((i+1)*I/O)."""
    return [
        ((i * in_size) // out_size, ((i + 1) * in_size + out_size - 1) // out_size)
        for i in range(out_size)
    ]


def _pooling_matrix_t(in_dhw, out_dhw, k_rows, dtype):
    """Constant (k_rows, OD*OH*OW) matrix P^T with 1/count weights per adaptive
    bin.  k_rows >= D*H*W; extra rows (K-padding for the tiled contraction)
    stay exactly zero."""
    D, H, W = in_dhw
    OD, OH, OW = out_dhw
    dbins, hbins, wbins = _bins(D, OD), _bins(H, OH), _bins(W, OW)
    PT = np.zeros((k_rows, OD * OH * OW), dtype=np.float32)
    for od, (d0, d1) in enumerate(dbins):
        for oh, (h0, h1) in enumerate(hbins):
            for ow, (w0, w1) in enumerate(wbins):
                b = (od * OH + oh) * OW + ow
                inv = 1.0 / float((d1 - d0) * (h1 - h0) * (w1 - w0))
                for d in range(d0, d1):
                    for h in range(h0, h1):
                        base = (d * H + h) * W
                        PT[base + w0:base + w1, b] = inv
    return jnp.asarray(PT, dtype=dtype)


def _channel_tile_candidates(C, lane_aligned):
    """Descending channel-tile candidates.  lane_aligned=True when the channel
    tile sits on the 128-lane axis (avg+max channel-last blocks): it must then
    be a multiple of 128 or the full C.  Otherwise multiples of 8 are legal."""
    cands = [c for c in (1024, 512, 256, 128) if C % c == 0]
    if not lane_aligned and not cands:
        cands = [c for c in (512, 256, 128, 64, 32, 16, 8) if C % c == 0]
    if not cands:
        cands = [C]
    return cands


def _choose_channel_tile(C, N, per_channel_bytes, budget=_BLOCK_BUDGET_BYTES):
    """Largest legal channel tile for the avg+max path that fits the budget.
    Prefers a split (>=2 grid steps) when N == 1 so megacore/pipelining stay
    active."""
    cands = _channel_tile_candidates(C, lane_aligned=True)
    fitting = [c for c in cands if c * per_channel_bytes <= budget]
    if not fitting:
        # TODO(synk): add OD-bin spatial tiling (scalar-prefetched bin tables)
        # for very large D*H*W where even the smallest lane-aligned channel
        # tile overflows VMEM.
        return cands[-1]
    if N == 1:
        split = [c for c in fitting if C // c >= 2]
        if split:
            return split[0]
    return fitting[0]


def _choose_avg_tiles(C, N, DHW, NB, x_itemsize, p_itemsize,
                      budget=_BLOCK_BUDGET_BYTES):
    """Pick (Ct, TK) for the avg matmul path.  Prefers the un-tiled contraction
    (TK = DHW); falls back to K-tiling (TK multiple of 128) when the blocks
    (double-buffered x and P^T, output, accumulator) exceed the VMEM budget."""
    cands = _channel_tile_candidates(C, lane_aligned=False)

    def bytes_used(ct, tk):
        return (2 * ct * tk * x_itemsize      # double-buffered x block
                + 2 * tk * NB * p_itemsize    # double-buffered P^T block
                + 2 * ct * NB * x_itemsize    # double-buffered output block
                + ct * NB * 4)                # f32 accumulator scratch

    fitting = [c for c in cands if bytes_used(c, DHW) <= budget]
    if fitting:
        ct = fitting[0]
        if N == 1:
            split = [c for c in fitting if C // c >= 2]
            if split:
                ct = split[0]
        return ct, DHW
    # K-tile the contraction (large D*H*W, e.g. 16x56x56 pooling matrices that
    # would otherwise exceed v7x's 64 MiB VMEM).
    ct = cands[-1]
    tk = max(128, (DHW // 128) * 128)
    while tk > 128 and bytes_used(ct, tk) > budget:
        tk = max(128, ((tk // 2) // 128) * 128)
    return ct, tk


# ---------------------------------------------------------------------------
# 'avg' path: adaptive_avg_pool3d == x_blk @ P^T on the MXU (transpose-free).
# ---------------------------------------------------------------------------
def _make_avg_kernel_single(prec):
    def kernel(x_ref, pT_ref, o_ref):
        # x_ref: (Ct, DHW) native dtype; pT_ref: (DHW, NB); o_ref: (Ct, NB)
        o_ref[...] = jnp.dot(
            x_ref[...], pT_ref[...],
            preferred_element_type=jnp.float32,
            precision=prec,
        ).astype(o_ref.dtype)
    return kernel


def _make_avg_kernel_ktiled(DHW, TK, n_k, prec):
    needs_mask = (n_k * TK) != DHW  # final K block reads past DHW -> mask it

    def kernel(x_ref, pT_ref, o_ref, acc_ref):
        k = pl.program_id(2)

        @pl.when(k == 0)
        def _():
            acc_ref[...] = jnp.zeros_like(acc_ref)

        x = x_ref[...]                                    # (Ct, TK)
        if needs_mask:
            col = lax.broadcasted_iota(jnp.int32, x.shape, 1) + k * TK
            x = jnp.where(col < DHW, x, jnp.zeros_like(x))
        acc_ref[...] += jnp.dot(
            x, pT_ref[...],
            preferred_element_type=jnp.float32,
            precision=prec,
        )

        @pl.when(k == n_k - 1)
        def _():
            o_ref[...] = acc_ref[...].astype(o_ref.dtype)

    return kernel


# ---------------------------------------------------------------------------
# 'max' / 'avg+max' path: avg_pool + max_pool via a staged separable reduction
# in channel-last layout (C on the 128-lane axis).
# ---------------------------------------------------------------------------
def _make_avgmax_kernel(spatial, out_size):
    D, H, W = spatial
    OD, OH, OW = out_size
    dbins, hbins, wbins = _bins(D, OD), _bins(H, OH), _bins(W, OW)

    def kernel(x_ref, o_ref, wsum_ref, wmax_ref):
        # x_ref: (D, H, W, Ct); o_ref: (OD, OH, OW, Ct)
        # wsum_ref: (D, H, OW, Ct) f32; wmax_ref: (D, H, OW, Ct) input dtype.
        #
        # Stage 1: collapse W into OW adaptive bins (each input element is
        # touched ~once; max stays in the input dtype, only the sum is f32).
        for ow, (w0, w1) in enumerate(wbins):
            win = x_ref[:, :, w0:w1, :]                          # single load
            inv_w = 1.0 / float(w1 - w0)
            wsum_ref[:, :, ow:ow + 1, :] = (
                jnp.sum(win.astype(jnp.float32), axis=2, keepdims=True) * inv_w)
            wmax_ref[:, :, ow:ow + 1, :] = jnp.max(win, axis=2, keepdims=True)

        # Stage 2+3: collapse H and D bins over the small (D, H, OW, Ct)
        # partials and store one lane-dense (OW, Ct) row per (od, oh).
        # TODO(synk): for very large OD*OH (e.g. 7x7x7 outputs with huge C)
        # switch these trace-time loops to lax.fori_loop with SMEM bin tables.
        for od, (d0, d1) in enumerate(dbins):
            for oh, (h0, h1) in enumerate(hbins):
                inv_dh = 1.0 / float((d1 - d0) * (h1 - h0))
                s = wsum_ref[d0:d1, h0:h1, :, :]
                m = wmax_ref[d0:d1, h0:h1, :, :]
                avg = jnp.sum(s, axis=0, keepdims=True)
                avg = jnp.sum(avg, axis=1, keepdims=True) * inv_dh
                mx = jnp.max(m, axis=0, keepdims=True)
                mx = jnp.max(mx, axis=1, keepdims=True).astype(jnp.float32)
                o_ref[od:od + 1, oh:oh + 1, :, :] = (avg + mx).astype(o_ref.dtype)

    return kernel


# ---------------------------------------------------------------------------
# Public wrapper (NCDHW in / NCDHW out, like the PyTorch module).
# ---------------------------------------------------------------------------
@functools.partial(jax.jit,
                   static_argnames=("output_size", "method", "_avg_tiles"))
def adaptive_pool3d(x, output_size, method="avg", _avg_tiles=None):
    assert method in ("avg", "max", "avg+max")
    if isinstance(output_size, int):
        output_size = (output_size,) * 3
    OD, OH, OW = output_size
    N, C, D, H, W = x.shape
    DHW = D * H * W
    NB = OD * OH * OW
    need_max = method != "avg"   # module's duplicated-'avg' branch: 'max' -> avg+max
    itemsize = jnp.dtype(x.dtype).itemsize

    if not need_max:
        # adaptive_avg_pool3d(x) == x(N, C, DHW) @ P^T, no transposes anywhere.
        p_dtype = jnp.bfloat16 if x.dtype == jnp.bfloat16 else jnp.float32
        prec = lax.Precision.HIGHEST if x.dtype == jnp.float32 else None
        if _avg_tiles is not None:
            Ct, TK = _avg_tiles
            assert TK == DHW or TK % 128 == 0
        else:
            Ct, TK = _choose_avg_tiles(C, N, DHW, NB, itemsize,
                                       jnp.dtype(p_dtype).itemsize)
        assert C % Ct == 0
        n_ct = C // Ct
        n_k = -(-DHW // TK)
        if n_k == 1:
            TK = DHW
        PT = _pooling_matrix_t((D, H, W), (OD, OH, OW), n_k * TK, p_dtype)
        x_flat = x.reshape(N, C, DHW)                       # free reshape

        if n_k == 1:
            out = pl.pallas_call(
                _make_avg_kernel_single(prec),
                out_shape=jax.ShapeDtypeStruct((N, C, NB), x.dtype),
                grid=(N, n_ct),
                in_specs=[
                    pl.BlockSpec((None, Ct, DHW), lambda n, c: (n, c, 0)),
                    pl.BlockSpec((DHW, NB), lambda n, c: (0, 0)),
                ],
                out_specs=pl.BlockSpec((None, Ct, NB), lambda n, c: (n, c, 0)),
                compiler_params=pltpu.CompilerParams(
                    dimension_semantics=("parallel", "parallel"),
                    vmem_limit_bytes=_VMEM_LIMIT_BYTES),
            )(x_flat, PT)
        else:
            out = pl.pallas_call(
                _make_avg_kernel_ktiled(DHW, TK, n_k, prec),
                out_shape=jax.ShapeDtypeStruct((N, C, NB), x.dtype),
                grid=(N, n_ct, n_k),
                in_specs=[
                    pl.BlockSpec((None, Ct, TK), lambda n, c, k: (n, c, k)),
                    pl.BlockSpec((TK, NB), lambda n, c, k: (k, 0)),
                ],
                out_specs=pl.BlockSpec((None, Ct, NB), lambda n, c, k: (n, c, 0)),
                scratch_shapes=[pltpu.VMEM((Ct, NB), jnp.float32)],
                compiler_params=pltpu.CompilerParams(
                    dimension_semantics=("parallel", "parallel", "arbitrary"),
                    vmem_limit_bytes=_VMEM_LIMIT_BYTES),
            )(x_flat, PT)
        return out.reshape(N, C, OD, OH, OW)                # free reshape

    # avg_pool + max_pool ('max' and 'avg+max' both resolve here).
    per_channel = (2 * DHW * itemsize          # double-buffered input block
                   + 2 * NB * itemsize         # double-buffered output block
                   + D * H * OW * (4 + itemsize))  # stage-1 sum/max scratch
    Ct = _choose_channel_tile(C, N, per_channel)
    n_ct = C // Ct
    x_cl = jnp.transpose(x, (0, 2, 3, 4, 1))   # NDHWC: channels on the 128 lanes
    out = pl.pallas_call(
        _make_avgmax_kernel((D, H, W), (OD, OH, OW)),
        out_shape=jax.ShapeDtypeStruct((N, OD, OH, OW, C), x.dtype),
        grid=(N, n_ct),
        in_specs=[pl.BlockSpec((None, D, H, W, Ct),
                               lambda n, c: (n, 0, 0, 0, c))],
        out_specs=pl.BlockSpec((None, OD, OH, OW, Ct),
                               lambda n, c: (n, 0, 0, 0, c)),
        scratch_shapes=[pltpu.VMEM((D, H, OW, Ct), jnp.float32),
                        pltpu.VMEM((D, H, OW, Ct), x.dtype)],
        compiler_params=pltpu.CompilerParams(
            dimension_semantics=("parallel", "parallel"),
            vmem_limit_bytes=_VMEM_LIMIT_BYTES),
    )(x_cl)
    return jnp.transpose(out, (0, 4, 1, 2, 3))


# ---------------------------------------------------------------------------
# Pure-JAX reference with identical bin math (for the correctness check).
# ---------------------------------------------------------------------------
def adaptive_pool3d_ref(x, output_size, method="avg"):
    assert method in ("avg", "max", "avg+max")
    if isinstance(output_size, int):
        output_size = (output_size,) * 3
    OD, OH, OW = output_size
    N, C, D, H, W = x.shape
    dbins, hbins, wbins = _bins(D, OD), _bins(H, OH), _bins(W, OW)
    need_max = method != "avg"

    rows_d = []
    for d0, d1 in dbins:
        rows_h = []
        for h0, h1 in hbins:
            rows_w = []
            for w0, w1 in wbins:
                win = x[:, :, d0:d1, h0:h1, w0:w1]
                val = jnp.mean(win, axis=(2, 3, 4))
                if need_max:
                    val = val + jnp.max(win, axis=(2, 3, 4))
                rows_w.append(val)
            rows_h.append(jnp.stack(rows_w, axis=-1))
        rows_d.append(jnp.stack(rows_h, axis=-2))
    return jnp.stack(rows_d, axis=-3)


if __name__ == "__main__":
    key = jax.random.PRNGKey(0)
    # Small NCDHW input with dims that do NOT divide the output sizes evenly,
    # so the adaptive (variable/overlapping window) bin logic is exercised.
    x = jax.random.normal(key, (2, 4, 7, 10, 16), dtype=jnp.float32)
    output_size = (3, 4, 5)

    # method='avg+max' path (staged separable avg_pool + max_pool)
    out = jax.block_until_ready(adaptive_pool3d(x, output_size, method="avg+max"))
    ref = adaptive_pool3d_ref(x, output_size, "avg+max")
    assert out.shape == (2, 4, 3, 4, 5), out.shape
    assert out.dtype == x.dtype
    assert jnp.allclose(out, ref, atol=1e-5, rtol=1e-5)

    # method='avg' path (transpose-free x @ P^T MXU formulation)
    out_avg = jax.block_until_ready(adaptive_pool3d(x, output_size, method="avg"))
    ref_avg = adaptive_pool3d_ref(x, output_size, "avg")
    assert jnp.allclose(out_avg, ref_avg, atol=1e-5, rtol=1e-5)

    # 'avg' with the K-tiled contraction forced: exercises the accumulator +
    # OOB-tail masking path used when D*H*W is too large for one VMEM block
    # (the v7x 64 MiB case), at a small shape.
    x3 = jax.random.normal(jax.random.PRNGKey(2), (2, 8, 7, 10, 16),
                           dtype=jnp.float32)
    out_kt = jax.block_until_ready(
        adaptive_pool3d(x3, output_size, method="avg", _avg_tiles=(8, 128)))
    ref_kt = adaptive_pool3d_ref(x3, output_size, "avg")
    assert jnp.allclose(out_kt, ref_kt, atol=1e-5, rtol=1e-5)

    # Lane-aligned channel count + bf16 (native bf16 MXU / VPU paths,
    # channel split so the N==1 grid still has >= 2 steps).
    x2 = jax.random.normal(jax.random.PRNGKey(1), (1, 256, 4, 6, 8),
                           dtype=jnp.bfloat16)
    out2 = jax.block_until_ready(adaptive_pool3d(x2, (2, 2, 2), method="avg+max"))
    ref2 = adaptive_pool3d_ref(x2.astype(jnp.float32), (2, 2, 2), "avg+max")
    assert out2.shape == (1, 256, 2, 2, 2), out2.shape
    assert out2.dtype == x2.dtype
    assert jnp.allclose(out2.astype(jnp.float32), ref2, atol=2e-2, rtol=2e-2)

    out2a = jax.block_until_ready(adaptive_pool3d(x2, (2, 2, 2), method="avg"))
    ref2a = adaptive_pool3d_ref(x2.astype(jnp.float32), (2, 2, 2), "avg")
    assert jnp.allclose(out2a.astype(jnp.float32), ref2a, atol=2e-2, rtol=2e-2)

    print("KERNEL_OK")
</pallas_src>

<mosaic_0001>
module attributes {stable_mosaic.version = 11 : i64} {
  func.func @kernel(%arg0: i32, %arg1: i32, %arg2: memref<1x7x10x16x4xf32, #tpu.memory_space<vmem>>, %arg3: memref<1x3x4x5x4xf32, #tpu.memory_space<vmem>>, %arg4: memref<7x10x5x4xf32, #tpu.memory_space<vmem>>, %arg5: memref<7x10x5x4xf32, #tpu.memory_space<vmem>>) attributes {dimension_semantics = [#tpu.dimension_semantics<parallel>, #tpu.dimension_semantics<parallel>], iteration_bounds = array<i64: 2, 1>, scalar_prefetch = 0 : i64, scratch_operands = 2 : i64, tpu.core_type = #tpu.core_type<tc>, window_params = [{transform_indices = @transform_0, window_bounds = array<i64: 1, 7, 10, 16, 4>}, {transform_indices = @transform_1, window_bounds = array<i64: 1, 3, 4, 5, 4>}]} {
    %c0 = arith.constant 0 : index
    %c0_0 = arith.constant 0 : index
    %c0_1 = arith.constant 0 : index
    %c0_2 = arith.constant 0 : index
    %c0_3 = arith.constant 0 : index
    %0 = vector.load %arg2[%c0, %c0_0, %c0_1, %c0_2, %c0_3] : memref<1x7x10x16x4xf32, #tpu.memory_space<vmem>>, vector<1x7x10x4x4xf32>
    %1 = vector.shape_cast %0 : vector<1x7x10x4x4xf32> to vector<7x10x4x4xf32>
    %cst = arith.constant dense<0.000000e+00> : vector<7x10x4xf32>
    %2 = vector.multi_reduction <add>, %1, %cst [2] : vector<7x10x4x4xf32> to vector<7x10x4xf32>
    %3 = vector.shape_cast %2 : vector<7x10x4xf32> to vector<7x10x1x4xf32>
    %cst_4 = arith.constant 2.500000e-01 : f32
    %4 = vector.broadcast %cst_4 : f32 to vector<7x10x1x4xf32>
    %5 = arith.mulf %3, %4 : vector<7x10x1x4xf32>
    %c0_5 = arith.constant 0 : index
    %c0_6 = arith.constant 0 : index
    %c0_7 = arith.constant 0 : index
    %c0_8 = arith.constant 0 : index
    %6 = vector.load %arg4[%c0_5, %c0_6, %c0_7, %c0_8] : memref<7x10x5x4xf32, #tpu.memory_space<vmem>>, vector<7x10x1x4xf32>
    tpu.vector_store %arg4[%c0_5, %c0_6, %c0_7, %c0_8], %5 {strides = array<i32>} : memref<7x10x5x4xf32, #tpu.memory_space<vmem>>, vector<7x10x1x4xf32>,
    %cst_9 = arith.constant dense<0xFF800000> : vector<7x10x4xf32>
    %7 = vector.multi_reduction <maximumf>, %1, %cst_9 [2] : vector<7x10x4x4xf32> to vector<7x10x4xf32>
    %8 = vector.shape_cast %7 : vector<7x10x4xf32> to vector<7x10x1x4xf32>
    %c0_10 = arith.constant 0 : index
    %c0_11 = arith.constant 0 : index
    %c0_12 = arith.constant 0 : index
    %c0_13 = arith.constant 0 : index
    %9 = vector.load %arg5[%c0_10, %c0_11, %c0_12, %c0_13] : memref<7x10x5x4xf32, #tpu.memory_space<vmem>>, vector<7x10x1x4xf32>
    tpu.vector_store %arg5[%c0_10, %c0_11, %c0_12, %c0_13], %8 {strides = array<i32>} : memref<7x10x5x4xf32, #tpu.memory_space<vmem>>, vector<7x10x1x4xf32>,
    %c0_14 = arith.constant 0 : index
    %c0_15 = arith.constant 0 : index
    %c0_16 = arith.constant 0 : index
    %c3 = arith.constant 3 : index
    %c0_17 = arith.constant 0 : index
    %10 = vector.load %arg2[%c0_14, %c0_15, %c0_16, %c3, %c0_17] : memref<1x7x10x16x4xf32, #tpu.memory_space<vmem>>, vector<1x7x10x4x4xf32>
    %11 = vector.shape_cast %10 : vector<1x7x10x4x4xf32> to vector<7x10x4x4xf32>
    %cst_18 = arith.constant dense<0.000000e+00> : vector<7x10x4xf32>
    %12 = vector.multi_reduction <add>, %11, %cst_18 [2] : vector<7x10x4x4xf32> to vector<7x10x4xf32>
    %13 = vector.shape_cast %12 : vector<7x10x4xf32> to vector<7x10x1x4xf32>
    %cst_19 = arith.constant 2.500000e-01 : f32
    %14 = vector.broadcast %cst_19 : f32 to vector<7x10x1x4xf32>
    %15 = arith.mulf %13, %14 : vector<7x10x1x4xf32>
    %c0_20 = arith.constant 0 : index
    %c0_21 = arith.constant 0 : index
    %c1 = arith.constant 1 : index
    %c0_22 = arith.constant 0 : index
    %16 = vector.load %arg4[%c0_20, %c0_21, %c1, %c0_22] : memref<7x10x5x4xf32, #tpu.memory_space<vmem>>, vector<7x10x1x4xf32>
    tpu.vector_store %arg4[%c0_20, %c0_21, %c1, %c0_22], %15 {strides = array<i32>} : memref<7x10x5x4xf32, #tpu.memory_space<vmem>>, vector<7x10x1x4xf32>,
    %cst_23 = arith.constant dense<0xFF800000> : vector<7x10x4xf32>
    %17 = vector.multi_reduction <maximumf>, %11, %cst_23 [2] : vector<7x10x4x4xf32> to vector<7x10x4xf32>
    %18 = vector.shape_cast %17 : vector<7x10x4xf32> to vector<7x10x1x4xf32>
    %c0_24 = arith.constant 0 : index
    %c0_25 = arith.constant 0 : index
    %c1_26 = arith.constant 1 : index
    %c0_27 = arith.constant 0 : index
    %19 = vector.load %arg5[%c0_24, %c0_25, %c1_26, %c0_27] : memref<7x10x5x4xf32, #tpu.memory_space<vmem>>, vector<7x10x1x4xf32>
    tpu.vector_store %arg5[%c0_24, %c0_25, %c1_26, %c0_27], %18 {strides = array<i32>} : memref<7x10x5x4xf32, #tpu.memory_space<vmem>>, vector<7x10x1x4xf32>,
    %c0_28 = arith.constant 0 : index
    %c0_29 = arith.constant 0 : index
    %c0_30 = arith.constant 0 : index
    %c6 = arith.constant 6 : index
    %c0_31 = arith.constant 0 : index
    %20 = vector.load %arg2[%c0_28, %c0_29, %c0_30, %c6, %c0_31] : memref<1x7x10x16x4xf32, #tpu.memory_space<vmem>>, vector<1x7x10x4x4xf32>
    %21 = vector.shape_cast %20 : vector<1x7x10x4x4xf32> to vector<7x10x4x4xf32>
    %cst_32 = arith.constant dense<0.000000e+00> : vector<7x10x4xf32>
    %22 = vector.multi_reduction <add>, %21, %cst_32 [2] : vector<7x10x4x4xf32> to vector<7x10x4xf32>
    %23 = vector.shape_cast %22 : vector<7x10x4xf32> to vector<7x10x1x4xf32>
    %cst_33 = arith.constant 2.500000e-01 : f32
    %24 = vector.broadcast %cst_33 : f32 to vector<7x10x1x4xf32>
    %25 = arith.mulf %23, %24 : vector<7x10x1x4xf32>
    %c0_34 = arith.constant 0 : index
    %c0_35 = arith.constant 0 : index
    %c2 = arith.constant 2 : index
    %c0_36 = arith.constant 0 : index
    %26 = vector.load %arg4[%c0_34, %c0_35, %c2, %c0_36] : memref<7x10x5x4xf32, #tpu.memory_space<vmem>>, vector<7x10x1x4xf32>
    tpu.vector_store %arg4[%c0_34, %c0_35, %c2, %c0_36], %25 {strides = array<i32>} : memref<7x10x5x4xf32, #tpu.memory_space<vmem>>, vector<7x10x1x4xf32>,
    %cst_37 = arith.constant dense<0xFF800000> : vector<7x10x4xf32>
    %27 = vector.multi_reduction <maximumf>, %21, %cst_37 [2] : vector<7x10x4x4xf32> to vector<7x10x4xf32>
    %28 = vector.shape_cast %27 : vector<7x10x4xf32> to vector<7x10x1x4xf32>
    %c0_38 = arith.constant 0 : index
    %c0_39 = arith.constant 0 : index
    %c2_40 = arith.constant 2 : index
    %c0_41 = arith.constant 0 : index
    %29 = vector.load %arg5[%c0_38, %c0_39, %c2_40, %c0_41] : memref<7x10x5x4xf32, #tpu.memory_space<vmem>>, vector<7x10x1x4xf32>
    tpu.vector_store %arg5[%c0_38, %c0_39, %c2_40, %c0_41], %28 {strides = array<i32>} : memref<7x10x5x4xf32, #tpu.memory_space<vmem>>, vector<7x10x1x4xf32>,
    %c0_42 = arith.constant 0 : index
    %c0_43 = arith.constant 0 : index
    %c0_44 = arith.constant 0 : index
    %c9 = arith.constant 9 : index
    %c0_45 = arith.constant 0 : index
    %30 = vector.load %arg2[%c0_42, %c0_43, %c0_44, %c9, %c0_45] : memref<1x7x10x16x4xf32, #tpu.memory_space<vmem>>, vector<1x7x10x4x4xf32>
    %31 = vector.shape_cast %30 : vector<1x7x10x4x4xf32> to vector<7x10x4x4xf32>
    %cst_46 = arith.constant dense<0.000000e+00> : vector<7x10x4xf32>
    %32 = vector.multi_reduction <add>, %31, %cst_46 [2] : vector<7x10x4x4xf32> to vector<7x10x4xf32>
    %33 = vector.shape_cast %32 : vector<7x10x4xf32> to vector<7x10x1x4xf32>
    %cst_47 = arith.constant 2.500000e-01 : f32
    %34 = vector.broadcast %cst_47 : f32 to vector<7x10x1x4xf32>
    %35 = arith.mulf %33, %34 : vector<7x10x1x4xf32>
    %c0_48 = arith.constant 0 : index
    %c0_49 = arith.constant 0 : index
    %c3_50 = arith.constant 3 : index
    %c0_51 = arith.constant 0 : index
    %36 = vector.load %arg4[%c0_48, %c0_49, %c3_50, %c0_51] : memref<7x10x5x4xf32, #tpu.memory_space<vmem>>, vector<7x10x1x4xf32>
    tpu.vector_store %arg4[%c0_48, %c0_49, %c3_50, %c0_51], %35 {strides = array<i32>} : memref<7x10x5x4xf32, #tpu.memory_space<vmem>>, vector<7x10x1x4xf32>,
    %cst_52 = arith.constant dense<0xFF800000> : vector<7x10x4xf32>
    %37 = vector.multi_reduction <maximumf>, %31, %cst_52 [2] : vector<7x10x4x4xf32> to vector<7x10x4xf32>
    %38 = vector.shape_cast %37 : vector<7x10x4xf32> to vector<7x10x1x4xf32>
    %c0_53 = arith.constant 0 : index
    %c0_54 = arith.constant 0 : index
    %c3_55 = arith.constant 3 : index
    %c0_56 = arith.constant 0 : index
    %39 = vector.load %arg5[%c0_53, %c0_54, %c3_55, %c0_56] : memref<7x10x5x4xf32, #tpu.memory_space<vmem>>, vector<7x10x1x4xf32>
    tpu.vector_store %arg5[%c0_53, %c0_54, %c3_55, %c0_56], %38 {strides = array<i32>} : memref<7x10x5x4xf32, #tpu.memory_space<vmem>>, vector<7x10x1x4xf32>,
    %c0_57 = arith.constant 0 : index
    %c0_58 = arith.constant 0 : index
    %c0_59 = arith.constant 0 : index
    %c12 = arith.constant 12 : index
    %c0_60 = arith.constant 0 : index
    %40 = vector.load %arg2[%c0_57, %c0_58, %c0_59, %c12, %c0_60] : memref<1x7x10x16x4xf32, #tpu.memory_space<vmem>>, vector<1x7x10x4x4xf32>
    %41 = vector.shape_cast %40 : vector<1x7x10x4x4xf32> to vector<7x10x4x4xf32>
    %cst_61 = arith.constant dense<0.000000e+00> : vector<7x10x4xf32>
    %42 = vector.multi_reduction <add>, %41, %cst_61 [2] : vector<7x10x4x4xf32> to vector<7x10x4xf32>
    %43 = vector.shape_cast %42 : vector<7x10x4xf32> to vector<7x10x1x4xf32>
    %cst_62 = arith.constant 2.500000e-01 : f32
    %44 = vector.broadcast %cst_62 : f32 to vector<7x10x1x4xf32>
    %45 = arith.mulf %43, %44 : vector<7x10x1x4xf32>
    %c0_63 = arith.constant 0 : index
    %c0_64 = arith.constant 0 : index
    %c4 = arith.constant 4 : index
    %c0_65 = arith.constant 0 : index
    %46 = vector.load %arg4[%c0_63, %c0_64, %c4, %c0_65] : memref<7x10x5x4xf32, #tpu.memory_space<vmem>>, vector<7x10x1x4xf32>
    tpu.vector_store %arg4[%c0_63, %c0_64, %c4, %c0_65], %45 {strides = array<i32>} : memref<7x10x5x4xf32, #tpu.memory_space<vmem>>, vector<7x10x1x4xf32>,
    %cst_66 = arith.constant dense<0xFF800000> : vector<7x10x4xf32>
    %47 = vector.multi_reduction <maximumf>, %41, %cst_66 [2] : vector<7x10x4x4xf32> to vector<7x10x4xf32>
    %48 = vector.shape_cast %47 : vector<7x10x4xf32> to vector<7x10x1x4xf32>
    %c0_67 = arith.constant 0 : index
    %c0_68 = arith.constant 0 : index
    %c4_69 = arith.constant 4 : index
    %c0_70 = arith.constant 0 : index
    %49 = vector.load %arg5[%c0_67, %c0_68, %c4_69, %c0_70] : memref<7x10x5x4xf32, #tpu.memory_space<vmem>>, vector<7x10x1x4xf32>
    tpu.vector_store %arg5[%c0_67, %c0_68, %c4_69, %c0_70], %48 {strides = array<i32>} : memref<7x10x5x4xf32, #tpu.memory_space<vmem>>, vector<7x10x1x4xf32>,
    %c0_71 = arith.constant 0 : index
    %c0_72 = arith.constant 0 : index
    %c0_73 = arith.constant 0 : index
    %c0_74 = arith.constant 0 : index
    %50 = vector.load %arg4[%c0_71, %c0_72, %c0_73, %c0_74] : memref<7x10x5x4xf32, #tpu.memory_space<vmem>>, vector<3x3x5x4xf32>
    %c0_75 = arith.constant 0 : index
    %c0_76 = arith.constant 0 : index
    %c0_77 = arith.constant 0 : index
    %c0_78 = arith.constant 0 : index
    %51 = vector.load %arg5[%c0_75, %c0_76, %c0_77, %c0_78] : memref<7x10x5x4xf32, #tpu.memory_space<vmem>>, vector<3x3x5x4xf32>
    %cst_79 = arith.constant dense<0.000000e+00> : vector<3x5x4xf32>
    %52 = vector.multi_reduction <add>, %50, %cst_79 [0] : vector<3x3x5x4xf32> to vector<3x5x4xf32>
    %53 = vector.shape_cast %52 : vector<3x5x4xf32> to vector<1x3x5x4xf32>
    %cst_80 = arith.constant dense<0.000000e+00> : vector<1x5x4xf32>
    %54 = vector.multi_reduction <add>, %53, %cst_80 [1] : vector<1x3x5x4xf32> to vector<1x5x4xf32>
    %55 = vector.shape_cast %54 : vector<1x5x4xf32> to vector<1x1x5x4xf32>
    %cst_81 = arith.constant 0.111111112 : f32
    %56 = vector.broadcast %cst_81 : f32 to vector<1x1x5x4xf32>
    %57 = arith.mulf %55, %56 : vector<1x1x5x4xf32>
    %cst_82 = arith.constant dense<0xFF800000> : vector<3x5x4xf32>
    %58 = vector.multi_reduction <maximumf>, %51, %cst_82 [0] : vector<3x3x5x4xf32> to vector<3x5x4xf32>
    %59 = vector.shape_cast %58 : vector<3x5x4xf32> to vector<1x3x5x4xf32>
    %cst_83 = arith.constant dense<0xFF800000> : vector<1x5x4xf32>
    %60 = vector.multi_reduction <maximumf>, %59, %cst_83 [1] : vector<1x3x5x4xf32> to vector<1x5x4xf32>
    %61 = vector.shape_cast %60 : vector<1x5x4xf32> to vector<1x1x5x4xf32>
    %62 = arith.addf %57, %61 : vector<1x1x5x4xf32>
    %c0_84 = arith.constant 0 : index
    %c0_85 = arith.constant 0 : index
    %c0_86 = arith.constant 0 : index
    %c0_87 = arith.constant 0 : index
    %c0_88 = arith.constant 0 : index
    %63 = vector.load %arg3[%c0_84, %c0_85, %c0_86, %c0_87, %c0_88] : memref<1x3x4x5x4xf32, #tpu.memory_space<vmem>>, vector<1x1x1x5x4xf32>
    %64 = vector.shape_cast %63 : vector<1x1x1x5x4xf32> to vector<1x1x5x4xf32>
    %65 = vector.shape_cast %62 : vector<1x1x5x4xf32> to vector<1x1x1x5x4xf32>
    tpu.vector_store %arg3[%c0_84, %c0_85, %c0_86, %c0_87, %c0_88], %65 {strides = array<i32>} : memref<1x3x4x5x4xf32, #tpu.memory_space<vmem>>, vector<1x1x1x5x4xf32>,
    %c0_89 = arith.constant 0 : index
    %c2_90 = arith.constant 2 : index
    %c0_91 = arith.constant 0 : index
    %c0_92 = arith.constant 0 : index
    %66 = vector.load %arg4[%c0_89, %c2_90, %c0_91, %c0_92] : memref<7x10x5x4xf32, #tpu.memory_space<vmem>>, vector<3x3x5x4xf32>
    %c0_93 = arith.constant 0 : index
    %c2_94 = arith.constant 2 : index
    %c0_95 = arith.constant 0 : index
    %c0_96 = arith.constant 0 : index
    %67 = vector.load %arg5[%c0_93, %c2_94, %c0_95, %c0_96] : memref<7x10x5x4xf32, #tpu.memory_space<vmem>>, vector<3x3x5x4xf32>
    %cst_97 = arith.constant dense<0.000000e+00> : vector<3x5x4xf32>
    %68 = vector.multi_reduction <add>, %66, %cst_97 [0] : vector<3x3x5x4xf32> to vector<3x5x4xf32>
    %69 = vector.shape_cast %68 : vector<3x5x4xf32> to vector<1x3x5x4xf32>
    %cst_98 = arith.constant dense<0.000000e+00> : vector<1x5x4xf32>
    %70 = vector.multi_reduction <add>, %69, %cst_98 [1] : vector<1x3x5x4xf32> to vector<1x5x4xf32>
    %71 = vector.shape_cast %70 : vector<1x5x4xf32> to vector<1x1x5x4xf32>
    %cst_99 = arith.constant 0.111111112 : f32
    %72 = vector.broadcast %cst_99 : f32 to vector<1x1x5x4xf32>
    %73 = arith.mulf %71, %72 : vector<1x1x5x4xf32>
    %cst_100 = arith.constant dense<0xFF800000> : vector<3x5x4xf32>
    %74 = vector.multi_reduction <maximumf>, %67, %cst_100 [0] : vector<3x3x5x4xf32> to vector<3x5x4xf32>
    %75 = vector.shape_cast %74 : vector<3x5x4xf32> to vector<1x3x5x4xf32>
    %cst_101 = arith.constant dense<0xFF800000> : vector<1x5x4xf32>
    %76 = vector.multi_reduction <maximumf>, %75, %cst_101 [1] : vector<1x3x5x4xf32> to vector<1x5x4xf32>
    %77 = vector.shape_cast %76 : vector<1x5x4xf32> to vector<1x1x5x4xf32>
    %78 = arith.addf %73, %77 : vector<1x1x5x4xf32>
    %c0_102 = arith.constant 0 : index
    %c0_103 = arith.constant 0 : index
    %c1_104 = arith.constant 1 : index
    %c0_105 = arith.constant 0 : index
    %c0_106 = arith.constant 0 : index
    %79 = vector.load %arg3[%c0_102, %c0_103, %c1_104, %c0_105, %c0_106] : memref<1x3x4x5x4xf32, #tpu.memory_space<vmem>>, vector<1x1x1x5x4xf32>
    %80 = vector.shape_cast %79 : vector<1x1x1x5x4xf32> to vector<1x1x5x4xf32>
    %81 = vector.shape_cast %78 : vector<1x1x5x4xf32> to vector<1x1x1x5x4xf32>
    tpu.vector_store %arg3[%c0_102, %c0_103, %c1_104, %c0_105, %c0_106], %81 {strides = array<i32>} : memref<1x3x4x5x4xf32, #tpu.memory_space<vmem>>, vector<1x1x1x5x4xf32>,
    %c0_107 = arith.constant 0 : index
    %c5 = arith.constant 5 : index
    %c0_108 = arith.constant 0 : index
    %c0_109 = arith.constant 0 : index
    %82 = vector.load %arg4[%c0_107, %c5, %c0_108, %c0_109] : memref<7x10x5x4xf32, #tpu.memory_space<vmem>>, vector<3x3x5x4xf32>
    %c0_110 = arith.constant 0 : index
    %c5_111 = arith.constant 5 : index
    %c0_112 = arith.constant 0 : index
    %c0_113 = arith.constant 0 : index
    %83 = vector.load %arg5[%c0_110, %c5_111, %c0_112, %c0_113] : memref<7x10x5x4xf32, #tpu.memory_space<vmem>>, vector<3x3x5x4xf32>
    %cst_114 = arith.constant dense<0.000000e+00> : vector<3x5x4xf32>
    %84 = vector.multi_reduction <add>, %82, %cst_114 [0] : vector<3x3x5x4xf32> to vector<3x5x4xf32>
    %85 = vector.shape_cast %84 : vector<3x5x4xf32> to vector<1x3x5x4xf32>
    %cst_115 = arith.constant dense<0.000000e+00> : vector<1x5x4xf32>
    %86 = vector.multi_reduction <add>, %85, %cst_115 [1] : vector<1x3x5x4xf32> to vector<1x5x4xf32>
    %87 = vector.shape_cast %86 : vector<1x5x4xf32> to vector<1x1x5x4xf32>
    %cst_116 = arith.constant 0.111111112 : f32
    %88 = vector.broadcast %cst_116 : f32 to vector<1x1x5x4xf32>
    %89 = arith.mulf %87, %88 : vector<1x1x5x4xf32>
    %cst_117 = arith.constant dense<0xFF800000> : vector<3x5x4xf32>
    %90 = vector.multi_reduction <maximumf>, %83, %cst_117 [0] : vector<3x3x5x4xf32> to vector<3x5x4xf32>
    %91 = vector.shape_cast %90 : vector<3x5x4xf32> to vector<1x3x5x4xf32>
    %cst_118 = arith.constant dense<0xFF800000> : vector<1x5x4xf32>
    %92 = vector.multi_reduction <maximumf>, %91, %cst_118 [1] : vector<1x3x5x4xf32> to vector<1x5x4xf32>
    %93 = vector.shape_cast %92 : vector<1x5x4xf32> to vector<1x1x5x4xf32>
    %94 = arith.addf %89, %93 : vector<1x1x5x4xf32>
    %c0_119 = arith.constant 0 : index
    %c0_120 = arith.constant 0 : index
    %c2_121 = arith.constant 2 : index
    %c0_122 = arith.constant 0 : index
    %c0_123 = arith.constant 0 : index
    %95 = vector.load %arg3[%c0_119, %c0_120, %c2_121, %c0_122, %c0_123] : memref<1x3x4x5x4xf32, #tpu.memory_space<vmem>>, vector<1x1x1x5x4xf32>
    %96 = vector.shape_cast %95 : vector<1x1x1x5x4xf32> to vector<1x1x5x4xf32>
    %97 = vector.shape_cast %94 : vector<1x1x5x4xf32> to vector<1x1x1x5x4xf32>
    tpu.vector_store %arg3[%c0_119, %c0_120, %c2_121, %c0_122, %c0_123], %97 {strides = array<i32>} : memref<1x3x4x5x4xf32, #tpu.memory_space<vmem>>, vector<1x1x1x5x4xf32>,
    %c0_124 = arith.constant 0 : index
    %c7 = arith.constant 7 : index
    %c0_125 = arith.constant 0 : index
    %c0_126 = arith.constant 0 : index
    %98 = vector.load %arg4[%c0_124, %c7, %c0_125, %c0_126] : memref<7x10x5x4xf32, #tpu.memory_space<vmem>>, vector<3x3x5x4xf32>
    %c0_127 = arith.constant 0 : index
    %c7_128 = arith.constant 7 : index
    %c0_129 = arith.constant 0 : index
    %c0_130 = arith.constant 0 : index
    %99 = vector.load %arg5[%c0_127, %c7_128, %c0_129, %c0_130] : memref<7x10x5x4xf32, #tpu.memory_space<vmem>>, vector<3x3x5x4xf32>
    %cst_131 = arith.constant dense<0.000000e+00> : vector<3x5x4xf32>
    %100 = vector.multi_reduction <add>, %98, %cst_131 [0] : vector<3x3x5x4xf32> to vector<3x5x4xf32>
    %101 = vector.shape_cast %100 : vector<3x5x4xf32> to vector<1x3x5x4xf32>
    %cst_132 = arith.constant dense<0.000000e+00> : vector<1x5x4xf32>
    %102 = vector.multi_reduction <add>, %101, %cst_132 [1] : vector<1x3x5x4xf32> to vector<1x5x4xf32>
    %103 = vector.shape_cast %102 : vector<1x5x4xf32> to vector<1x1x5x4xf32>
    %cst_133 = arith.constant 0.111111112 : f32
    %104 = vector.broadcast %cst_133 : f32 to vector<1x1x5x4xf32>
    %105 = arith.mulf %103, %104 : vector<1x1x5x4xf32>
    %cst_134 = arith.constant dense<0xFF800000> : vector<3x5x4xf32>
    %106 = vector.multi_reduction <maximumf>, %99, %cst_134 [0] : vector<3x3x5x4xf32> to vector<3x5x4xf32>
    %107 = vector.shape_cast %106 : vector<3x5x4xf32> to vector<1x3x5x4xf32>
    %cst_135 = arith.constant dense<0xFF800000> : vector<1x5x4xf32>
    %108 = vector.multi_reduction <maximumf>, %107, %cst_135 [1] : vector<1x3x5x4xf32> to vector<1x5x4xf32>
    %109 = vector.shape_cast %108 : vector<1x5x4xf32> to vector<1x1x5x4xf32>
    %110 = arith.addf %105, %109 : vector<1x1x5x4xf32>
    %c0_136 = arith.constant 0 : index
    %c0_137 = arith.constant 0 : index
    %c3_138 = arith.constant 3 : index
    %c0_139 = arith.constant 0 : index
    %c0_140 = arith.constant 0 : index
    %111 = vector.load %arg3[%c0_136, %c0_137, %c3_138, %c0_139, %c0_140] : memref<1x3x4x5x4xf32, #tpu.memory_space<vmem>>, vector<1x1x1x5x4xf32>
    %112 = vector.shape_cast %111 : vector<1x1x1x5x4xf32> to vector<1x1x5x4xf32>
    %113 = vector.shape_cast %110 : vector<1x1x5x4xf32> to vector<1x1x1x5x4xf32>
    tpu.vector_store %arg3[%c0_136, %c0_137, %c3_138, %c0_139, %c0_140], %113 {strides = array<i32>} : memref<1x3x4x5x4xf32, #tpu.memory_space<vmem>>, vector<1x1x1x5x4xf32>,
    %c2_141 = arith.constant 2 : index
    %c0_142 = arith.constant 0 : index
    %c0_143 = arith.constant 0 : index
    %c0_144 = arith.constant 0 : index
    %114 = vector.load %arg4[%c2_141, %c0_142, %c0_143, %c0_144] : memref<7x10x5x4xf32, #tpu.memory_space<vmem>>, vector<3x3x5x4xf32>
    %c2_145 = arith.constant 2 : index
    %c0_146 = arith.constant 0 : index
    %c0_147 = arith.constant 0 : index
    %c0_148 = arith.constant 0 : index
    %115 = vector.load %arg5[%c2_145, %c0_146, %c0_147, %c0_148] : memref<7x10x5x4xf32, #tpu.memory_space<vmem>>, vector<3x3x5x4xf32>
    %cst_149 = arith.constant dense<0.000000e+00> : vector<3x5x4xf32>
    %116 = vector.multi_reduction <add>, %114, %cst_149 [0] : vector<3x3x5x4xf32> to vector<3x5x4xf32>
    %117 = vector.shape_cast %116 : vector<3x5x4xf32> to vector<1x3x5x4xf32>
    %cst_150 = arith.constant dense<0.000000e+00> : vector<1x5x4xf32>
    %118 = vector.multi_reduction <add>, %117, %cst_150 [1] : vector<1x3x5x4xf32> to vector<1x5x4xf32>
    %119 = vector.shape_cast %118 : vector<1x5x4xf32> to vector<1x1x5x4xf32>
    %cst_151 = arith.constant 0.111111112 : f32
    %120 = vector.broadcast %cst_151 : f32 to vector<1x1x5x4xf32>
    %121 = arith.mulf %119, %120 : vector<1x1x5x4xf32>
    %cst_152 = arith.constant dense<0xFF800000> : vector<3x5x4xf32>
    %122 = vector.multi_reduction <maximumf>, %115, %cst_152 [0] : vector<3x3x5x4xf32> to vector<3x5x4xf32>
    %123 = vector.shape_cast %122 : vector<3x5x4xf32> to vector<1x3x5x4xf32>
    %cst_153 = arith.constant dense<0xFF800000> : vector<1x5x4xf32>
    %124 = vector.multi_reduction <maximumf>, %123, %cst_153 [1] : vector<1x3x5x4xf32> to vector<1x5x4xf32>
    %125 = vector.shape_cast %124 : vector<1x5x4xf32> to vector<1x1x5x4xf32>
    %126 = arith.addf %121, %125 : vector<1x1x5x4xf32>
    %c0_154 = arith.constant 0 : index
    %c1_155 = arith.constant 1 : index
    %c0_156 = arith.constant 0 : index
    %c0_157 = arith.constant 0 : index
    %c0_158 = arith.constant 0 : index
    %127 = vector.load %arg3[%c0_154, %c1_155, %c0_156, %c0_157, %c0_158] : memref<1x3x4x5x4xf32, #tpu.memory_space<vmem>>, vector<1x1x1x5x4xf32>
    %128 = vector.shape_cast %127 : vector<1x1x1x5x4xf32> to vector<1x1x5x4xf32>
    %129 = vector.shape_cast %126 : vector<1x1x5x4xf32> to vector<1x1x1x5x4xf32>
    tpu.vector_store %arg3[%c0_154, %c1_155, %c0_156, %c0_157, %c0_158], %129 {strides = array<i32>} : memref<1x3x4x5x4xf32, #tpu.memory_space<vmem>>, vector<1x1x1x5x4xf32>,
    %c2_159 = arith.constant 2 : index
    %c2_160 = arith.constant 2 : index
    %c0_161 = arith.constant 0 : index
    %c0_162 = arith.constant 0 : index
    %130 = vector.load %arg4[%c2_159, %c2_160, %c0_161, %c0_162] : memref<7x10x5x4xf32, #tpu.memory_space<vmem>>, vector<3x3x5x4xf32>
    %c2_163 = arith.constant 2 : index
    %c2_164 = arith.constant 2 : index
    %c0_165 = arith.constant 0 : index
    %c0_166 = arith.constant 0 : index
    %131 = vector.load %arg5[%c2_163, %c2_164, %c0_165, %c0_166] : memref<7x10x5x4xf32, #tpu.memory_space<vmem>>, vector<3x3x5x4xf32>
    %cst_167 = arith.constant dense<0.000000e+00> : vector<3x5x4xf32>
    %132 = vector.multi_reduction <add>, %130, %cst_167 [0] : vector<3x3x5x4xf32> to vector<3x5x4xf32>
    %133 = vector.shape_cast %132 : vector<3x5x4xf32> to vector<1x3x5x4xf32>
    %cst_168 = arith.constant dense<0.000000e+00> : vector<1x5x4xf32>
    %134 = vector.multi_reduction <add>, %133, %cst_168 [1] : vector<1x3x5x4xf32> to vector<1x5x4xf32>
    %135 = vector.shape_cast %134 : vector<1x5x4xf32> to vector<1x1x5x4xf32>
    %cst_169 = arith.constant 0.111111112 : f32
    %136 = vector.broadcast %cst_169 : f32 to vector<1x1x5x4xf32>
    %137 = arith.mulf %135, %136 : vector<1x1x5x4xf32>
    %cst_170 = arith.constant dense<0xFF800000> : vector<3x5x4xf32>
    %138 = vector.multi_reduction <maximumf>, %131, %cst_170 [0] : vector<3x3x5x4xf32> to vector<3x5x4xf32>
    %139 = vector.shape_cast %138 : vector<3x5x4xf32> to vector<1x3x5x4xf32>
    %cst_171 = arith.constant dense<0xFF800000> : vector<1x5x4xf32>
    %140 = vector.multi_reduction <maximumf>, %139, %cst_171 [1] : vector<1x3x5x4xf32> to vector<1x5x4xf32>
    %141 = vector.shape_cast %140 : vector<1x5x4xf32> to vector<1x1x5x4xf32>
    %142 = arith.addf %137, %141 : vector<1x1x5x4xf32>
    %c0_172 = arith.constant 0 : index
    %c1_173 = arith.constant 1 : index
    %c1_174 = arith.constant 1 : index
    %c0_175 = arith.constant 0 : index
    %c0_176 = arith.constant 0 : index
    %143 = vector.load %arg3[%c0_172, %c1_173, %c1_174, %c0_175, %c0_176] : memref<1x3x4x5x4xf32, #tpu.memory_space<vmem>>, vector<1x1x1x5x4xf32>
    %144 = vector.shape_cast %143 : vector<1x1x1x5x4xf32> to vector<1x1x5x4xf32>
    %145 = vector.shape_cast %142 : vector<1x1x5x4xf32> to vector<1x1x1x5x4xf32>
    tpu.vector_store %arg3[%c0_172, %c1_173, %c1_174, %c0_175, %c0_176], %145 {strides = array<i32>} : memref<1x3x4x5x4xf32, #tpu.memory_space<vmem>>, vector<1x1x1x5x4xf32>,
    %c2_177 = arith.constant 2 : index
    %c5_178 = arith.constant 5 : index
    %c0_179 = arith.constant 0 : index
    %c0_180 = arith.constant 0 : index
    %146 = vector.load %arg4[%c2_177, %c5_178, %c0_179, %c0_180] : memref<7x10x5x4xf32, #tpu.memory_space<vmem>>, vector<3x3x5x4xf32>
    %c2_181 = arith.constant 2 : index
    %c5_182 = arith.constant 5 : index
    %c0_183 = arith.constant 0 : index
    %c0_184 = arith.constant 0 : index
    %147 = vector.load %arg5[%c2_181, %c5_182, %c0_183, %c0_184] : memref<7x10x5x4xf32, #tpu.memory_space<vmem>>, vector<3x3x5x4xf32>
    %cst_185 = arith.constant dense<0.000000e+00> : vector<3x5x4xf32>
    %148 = vector.multi_reduction <add>, %146, %cst_185 [0] : vector<3x3x5x4xf32> to vector<3x5x4xf32>
    %149 = vector.shape_cast %148 : vector<3x5x4xf32> to vector<1x3x5x4xf32>
    %cst_186 = arith.constant dense<0.000000e+00> : vector<1x5x4xf32>
    %150 = vector.multi_reduction <add>, %149, %cst_186 [1] : vector<1x3x5x4xf32> to vector<1x5x4xf32>
    %151 = vector.shape_cast %150 : vector<1x5x4xf32> to vector<1x1x5x4xf32>
    %cst_187 = arith.constant 0.111111112 : f32
    %152 = vector.broadcast %cst_187 : f32 to vector<1x1x5x4xf32>
    %153 = arith.mulf %151, %152 : vector<1x1x5x4xf32>
    %cst_188 = arith.constant dense<0xFF800000> : vector<3x5x4xf32>
    %154 = vector.multi_reduction <maximumf>, %147, %cst_188 [0] : vector<3x3x5x4xf32> to vector<3x5x4xf32>
    %155 = vector.shape_cast %154 : vector<3x5x4xf32> to vector<1x3x5x4xf32>
    %cst_189 = arith.constant dense<0xFF800000> : vector<1x5x4xf32>
    %156 = vector.multi_reduction <maximumf>, %155, %cst_189 [1] : vector<1x3x5x4xf32> to vector<1x5x4xf32>
    %157 = vector.shape_cast %156 : vector<1x5x4xf32> to vector<1x1x5x4xf32>
    %158 = arith.addf %153, %157 : vector<1x1x5x4xf32>
    %c0_190 = arith.constant 0 : index
    %c1_191 = arith.constant 1 : index
    %c2_192 = arith.constant 2 : index
    %c0_193 = arith.constant 0 : index
    %c0_194 = arith.constant 0 : index
    %159 = vector.load %arg3[%c0_190, %c1_191, %c2_192, %c0_193, %c0_194] : memref<1x3x4x5x4xf32, #tpu.memory_space<vmem>>, vector<1x1x1x5x4xf32>
    %160 = vector.shape_cast %159 : vector<1x1x1x5x4xf32> to vector<1x1x5x4xf32>
    %161 = vector.shape_cast %158 : vector<1x1x5x4xf32> to vector<1x1x1x5x4xf32>
    tpu.vector_store %arg3[%c0_190, %c1_191, %c2_192, %c0_193, %c0_194], %161 {strides = array<i32>} : memref<1x3x4x5x4xf32, #tpu.memory_space<vmem>>, vector<1x1x1x5x4xf32>,
    %c2_195 = arith.constant 2 : index
    %c7_196 = arith.constant 7 : index
    %c0_197 = arith.constant 0 : index
    %c0_198 = arith.constant 0 : index
    %162 = vector.load %arg4[%c2_195, %c7_196, %c0_197, %c0_198] : memref<7x10x5x4xf32, #tpu.memory_space<vmem>>, vector<3x3x5x4xf32>
    %c2_199 = arith.constant 2 : index
    %c7_200 = arith.constant 7 : index
    %c0_201 = arith.constant 0 : index
    %c0_202 = arith.constant 0 : index
    %163 = vector.load %arg5[%c2_199, %c7_200, %c0_201, %c0_202] : memref<7x10x5x4xf32, #tpu.memory_space<vmem>>, vector<3x3x5x4xf32>
    %cst_203 = arith.constant dense<0.000000e+00> : vector<3x5x4xf32>
    %164 = vector.multi_reduction <add>, %162, %cst_203 [0] : vector<3x3x5x4xf32> to vector<3x5x4xf32>
    %165 = vector.shape_cast %164 : vector<3x5x4xf32> to vector<1x3x5x4xf32>
    %cst_204 = arith.constant dense<0.000000e+00> : vector<1x5x4xf32>
    %166 = vector.multi_reduction <add>, %165, %cst_204 [1] : vector<1x3x5x4xf32> to vector<1x5x4xf32>
    %167 = vector.shape_cast %166 : vector<1x5x4xf32> to vector<1x1x5x4xf32>
    %cst_205 = arith.constant 0.111111112 : f32
    %168 = vector.broadcast %cst_205 : f32 to vector<1x1x5x4xf32>
    %169 = arith.mulf %167, %168 : vector<1x1x5x4xf32>
    %cst_206 = arith.constant dense<0xFF800000> : vector<3x5x4xf32>
    %170 = vector.multi_reduction <maximumf>, %163, %cst_206 [0] : vector<3x3x5x4xf32> to vector<3x5x4xf32>
    %171 = vector.shape_cast %170 : vector<3x5x4xf32> to vector<1x3x5x4xf32>
    %cst_207 = arith.constant dense<0xFF800000> : vector<1x5x4xf32>
    %172 = vector.multi_reduction <maximumf>, %171, %cst_207 [1] : vector<1x3x5x4xf32> to vector<1x5x4xf32>
    %173 = vector.shape_cast %172 : vector<1x5x4xf32> to vector<1x1x5x4xf32>
    %174 = arith.addf %169, %173 : vector<1x1x5x4xf32>
    %c0_208 = arith.constant 0 : index
    %c1_209 = arith.constant 1 : index
    %c3_210 = arith.constant 3 : index
    %c0_211 = arith.constant 0 : index
    %c0_212 = arith.constant 0 : index
    %175 = vector.load %arg3[%c0_208, %c1_209, %c3_210, %c0_211, %c0_212] : memref<1x3x4x5x4xf32, #tpu.memory_space<vmem>>, vector<1x1x1x5x4xf32>
    %176 = vector.shape_cast %175 : vector<1x1x1x5x4xf32> to vector<1x1x5x4xf32>
    %177 = vector.shape_cast %174 : vector<1x1x5x4xf32> to vector<1x1x1x5x4xf32>
    tpu.vector_store %arg3[%c0_208, %c1_209, %c3_210, %c0_211, %c0_212], %177 {strides = array<i32>} : memref<1x3x4x5x4xf32, #tpu.memory_space<vmem>>, vector<1x1x1x5x4xf32>,
    %c4_213 = arith.constant 4 : index
    %c0_214 = arith.constant 0 : index
    %c0_215 = arith.constant 0 : index
    %c0_216 = arith.constant 0 : index
    %178 = vector.load %arg4[%c4_213, %c0_214, %c0_215, %c0_216] : memref<7x10x5x4xf32, #tpu.memory_space<vmem>>, vector<3x3x5x4xf32>
    %c4_217 = arith.constant 4 : index
    %c0_218 = arith.constant 0 : index
    %c0_219 = arith.constant 0 : index
    %c0_220 = arith.constant 0 : index
    %179 = vector.load %arg5[%c4_217, %c0_218, %c0_219, %c0_220] : memref<7x10x5x4xf32, #tpu.memory_space<vmem>>, vector<3x3x5x4xf32>
    %cst_221 = arith.constant dense<0.000000e+00> : vector<3x5x4xf32>
    %180 = vector.multi_reduction <add>, %178, %cst_221 [0] : vector<3x3x5x4xf32> to vector<3x5x4xf32>
    %181 = vector.shape_cast %180 : vector<3x5x4xf32> to vector<1x3x5x4xf32>
    %cst_222 = arith.constant dense<0.000000e+00> : vector<1x5x4xf32>
    %182 = vector.multi_reduction <add>, %181, %cst_222 [1] : vector<1x3x5x4xf32> to vector<1x5x4xf32>
    %183 = vector.shape_cast %182 : vector<1x5x4xf32> to vector<1x1x5x4xf32>
    %cst_223 = arith.constant 0.111111112 : f32
    %184 = vector.broadcast %cst_223 : f32 to vector<1x1x5x4xf32>
    %185 = arith.mulf %183, %184 : vector<1x1x5x4xf32>
    %cst_224 = arith.constant dense<0xFF800000> : vector<3x5x4xf32>
    %186 = vector.multi_reduction <maximumf>, %179, %cst_224 [0] : vector<3x3x5x4xf32> to vector<3x5x4xf32>
    %187 = vector.shape_cast %186 : vector<3x5x4xf32> to vector<1x3x5x4xf32>
    %cst_225 = arith.constant dense<0xFF800000> : vector<1x5x4xf32>
    %188 = vector.multi_reduction <maximumf>, %187, %cst_225 [1] : vector<1x3x5x4xf32> to vector<1x5x4xf32>
    %189 = vector.shape_cast %188 : vector<1x5x4xf32> to vector<1x1x5x4xf32>
    %190 = arith.addf %185, %189 : vector<1x1x5x4xf32>
    %c0_226 = arith.constant 0 : index
    %c2_227 = arith.constant 2 : index
    %c0_228 = arith.constant 0 : index
    %c0_229 = arith.constant 0 : index
    %c0_230 = arith.constant 0 : index
    %191 = vector.load %arg3[%c0_226, %c2_227, %c0_228, %c0_229, %c0_230] : memref<1x3x4x5x4xf32, #tpu.memory_space<vmem>>, vector<1x1x1x5x4xf32>
    %192 = vector.shape_cast %191 : vector<1x1x1x5x4xf32> to vector<1x1x5x4xf32>
    %193 = vector.shape_cast %190 : vector<1x1x5x4xf32> to vector<1x1x1x5x4xf32>
    tpu.vector_store %arg3[%c0_226, %c2_227, %c0_228, %c0_229, %c0_230], %193 {strides = array<i32>} : memref<1x3x4x5x4xf32, #tpu.memory_space<vmem>>, vector<1x1x1x5x4xf32>,
    %c4_231 = arith.constant 4 : index
    %c2_232 = arith.constant 2 : index
    %c0_233 = arith.constant 0 : index
    %c0_234 = arith.constant 0 : index
    %194 = vector.load %arg4[%c4_231, %c2_232, %c0_233, %c0_234] : memref<7x10x5x4xf32, #tpu.memory_space<vmem>>, vector<3x3x5x4xf32>
    %c4_235 = arith.constant 4 : index
    %c2_236 = arith.constant 2 : index
    %c0_237 = arith.constant 0 : index
    %c0_238 = arith.constant 0 : index
    %195 = vector.load %arg5[%c4_235, %c2_236, %c0_237, %c0_238] : memref<7x10x5x4xf32, #tpu.memory_space<vmem>>, vector<3x3x5x4xf32>
    %cst_239 = arith.constant dense<0.000000e+00> : vector<3x5x4xf32>
    %196 = vector.multi_reduction <add>, %194, %cst_239 [0] : vector<3x3x5x4xf32> to vector<3x5x4xf32>
    %197 = vector.shape_cast %196 : vector<3x5x4xf32> to vector<1x3x5x4xf32>
    %cst_240 = arith.constant dense<0.000000e+00> : vector<1x5x4xf32>
    %198 = vector.multi_reduction <add>, %197, %cst_240 [1] : vector<1x3x5x4xf32> to vector<1x5x4xf32>
    %199 = vector.shape_cast %198 : vector<1x5x4xf32> to vector<1x1x5x4xf32>
    %cst_241 = arith.constant 0.111111112 : f32
    %200 = vector.broadcast %cst_241 : f32 to vector<1x1x5x4xf32>
    %201 = arith.mulf %199, %200 : vector<1x1x5x4xf32>
    %cst_242 = arith.constant dense<0xFF800000> : vector<3x5x4xf32>
    %202 = vector.multi_reduction <maximumf>, %195, %cst_242 [0] : vector<3x3x5x4xf32> to vector<3x5x4xf32>
    %203 = vector.shape_cast %202 : vector<3x5x4xf32> to vector<1x3x5x4xf32>
    %cst_243 = arith.constant dense<0xFF800000> : vector<1x5x4xf32>
    %204 = vector.multi_reduction <maximumf>, %203, %cst_243 [1] : vector<1x3x5x4xf32> to vector<1x5x4xf32>
    %205 = vector.shape_cast %204 : vector<1x5x4xf32> to vector<1x1x5x4xf32>
    %206 = arith.addf %201, %205 : vector<1x1x5x4xf32>
    %c0_244 = arith.constant 0 : index
    %c2_245 = arith.constant 2 : index
    %c1_246 = arith.constant 1 : index
    %c0_247 = arith.constant 0 : index
    %c0_248 = arith.constant 0 : index
    %207 = vector.load %arg3[%c0_244, %c2_245, %c1_246, %c0_247, %c0_248] : memref<1x3x4x5x4xf32, #tpu.memory_space<vmem>>, vector<1x1x1x5x4xf32>
    %208 = vector.shape_cast %207 : vector<1x1x1x5x4xf32> to vector<1x1x5x4xf32>
    %209 = vector.shape_cast %206 : vector<1x1x5x4xf32> to vector<1x1x1x5x4xf32>
    tpu.vector_store %arg3[%c0_244, %c2_245, %c1_246, %c0_247, %c0_248], %209 {strides = array<i32>} : memref<1x3x4x5x4xf32, #tpu.memory_space<vmem>>, vector<1x1x1x5x4xf32>,
    %c4_249 = arith.constant 4 : index
    %c5_250 = arith.constant 5 : index
    %c0_251 = arith.constant 0 : index
    %c0_252 = arith.constant 0 : index
    %210 = vector.load %arg4[%c4_249, %c5_250, %c0_251, %c0_252] : memref<7x10x5x4xf32, #tpu.memory_space<vmem>>, vector<3x3x5x4xf32>
    %c4_253 = arith.constant 4 : index
    %c5_254 = arith.constant 5 : index
    %c0_255 = arith.constant 0 : index
    %c0_256 = arith.constant 0 : index
    %211 = vector.load %arg5[%c4_253, %c5_254, %c0_255, %c0_256] : memref<7x10x5x4xf32, #tpu.memory_space<vmem>>, vector<3x3x5x4xf32>
    %cst_257 = arith.constant dense<0.000000e+00> : vector<3x5x4xf32>
    %212 = vector.multi_reduction <add>, %210, %cst_257 [0] : vector<3x3x5x4xf32> to vector<3x5x4xf32>
    %213 = vector.shape_cast %212 : vector<3x5x4xf32> to vector<1x3x5x4xf32>
    %cst_258 = arith.constant dense<0.000000e+00> : vector<1x5x4xf32>
    %214 = vector.multi_reduction <add>, %213, %cst_258 [1] : vector<1x3x5x4xf32> to vector<1x5x4xf32>
    %215 = vector.shape_cast %214 : vector<1x5x4xf32> to vector<1x1x5x4xf32>
    %cst_259 = arith.constant 0.111111112 : f32
    %216 = vector.broadcast %cst_259 : f32 to vector<1x1x5x4xf32>
    %217 = arith.mulf %215, %216 : vector<1x1x5x4xf32>
    %cst_260 = arith.constant dense<0xFF800000> : vector<3x5x4xf32>
    %218 = vector.multi_reduction <maximumf>, %211, %cst_260 [0] : vector<3x3x5x4xf32> to vector<3x5x4xf32>
    %219 = vector.shape_cast %218 : vector<3x5x4xf32> to vector<1x3x5x4xf32>
    %cst_261 = arith.constant dense<0xFF800000> : vector<1x5x4xf32>
    %220 = vector.multi_reduction <maximumf>, %219, %cst_261 [1] : vector<1x3x5x4xf32> to vector<1x5x4xf32>
    %221 = vector.shape_cast %220 : vector<1x5x4xf32> to vector<1x1x5x4xf32>
    %222 = arith.addf %217, %221 : vector<1x1x5x4xf32>
    %c0_262 = arith.constant 0 : index
    %c2_263 = arith.constant 2 : index
    %c2_264 = arith.constant 2 : index
    %c0_265 = arith.constant 0 : index
    %c0_266 = arith.constant 0 : index
    %223 = vector.load %arg3[%c0_262, %c2_263, %c2_264, %c0_265, %c0_266] : memref<1x3x4x5x4xf32, #tpu.memory_space<vmem>>, vector<1x1x1x5x4xf32>
    %224 = vector.shape_cast %223 : vector<1x1x1x5x4xf32> to vector<1x1x5x4xf32>
    %225 = vector.shape_cast %222 : vector<1x1x5x4xf32> to vector<1x1x1x5x4xf32>
    tpu.vector_store %arg3[%c0_262, %c2_263, %c2_264, %c0_265, %c0_266], %225 {strides = array<i32>} : memref<1x3x4x5x4xf32, #tpu.memory_space<vmem>>, vector<1x1x1x5x4xf32>,
    %c4_267 = arith.constant 4 : index
    %c7_268 = arith.constant 7 : index
    %c0_269 = arith.constant 0 : index
    %c0_270 = arith.constant 0 : index
    %226 = vector.load %arg4[%c4_267, %c7_268, %c0_269, %c0_270] : memref<7x10x5x4xf32, #tpu.memory_space<vmem>>, vector<3x3x5x4xf32>
    %c4_271 = arith.constant 4 : index
    %c7_272 = arith.constant 7 : index
    %c0_273 = arith.constant 0 : index
    %c0_274 = arith.constant 0 : index
    %227 = vector.load %arg5[%c4_271, %c7_272, %c0_273, %c0_274] : memref<7x10x5x4xf32, #tpu.memory_space<vmem>>, vector<3x3x5x4xf32>
    %cst_275 = arith.constant dense<0.000000e+00> : vector<3x5x4xf32>
    %228 = vector.multi_reduction <add>, %226, %cst_275 [0] : vector<3x3x5x4xf32> to vector<3x5x4xf32>
    %229 = vector.shape_cast %228 : vector<3x5x4xf32> to vector<1x3x5x4xf32>
    %cst_276 = arith.constant dense<0.000000e+00> : vector<1x5x4xf32>
    %230 = vector.multi_reduction <add>, %229, %cst_276 [1] : vector<1x3x5x4xf32> to vector<1x5x4xf32>
    %231 = vector.shape_cast %230 : vector<1x5x4xf32> to vector<1x1x5x4xf32>
    %cst_277 = arith.constant 0.111111112 : f32
    %232 = vector.broadcast %cst_277 : f32 to vector<1x1x5x4xf32>
    %233 = arith.mulf %231, %232 : vector<1x1x5x4xf32>
    %cst_278 = arith.constant dense<0xFF800000> : vector<3x5x4xf32>
    %234 = vector.multi_reduction <maximumf>, %227, %cst_278 [0] : vector<3x3x5x4xf32> to vector<3x5x4xf32>
    %235 = vector.shape_cast %234 : vector<3x5x4xf32> to vector<1x3x5x4xf32>
    %cst_279 = arith.constant dense<0xFF800000> : vector<1x5x4xf32>
    %236 = vector.multi_reduction <maximumf>, %235, %cst_279 [1] : vector<1x3x5x4xf32> to vector<1x5x4xf32>
    %237 = vector.shape_cast %236 : vector<1x5x4xf32> to vector<1x1x5x4xf32>
    %238 = arith.addf %233, %237 : vector<1x1x5x4xf32>
    %c0_280 = arith.constant 0 : index
    %c2_281 = arith.constant 2 : index
    %c3_282 = arith.constant 3 : index
    %c0_283 = arith.constant 0 : index
    %c0_284 = arith.constant 0 : index
    %239 = vector.load %arg3[%c0_280, %c2_281, %c3_282, %c0_283, %c0_284] : memref<1x3x4x5x4xf32, #tpu.memory_space<vmem>>, vector<1x1x1x5x4xf32>
    %240 = vector.shape_cast %239 : vector<1x1x1x5x4xf32> to vector<1x1x5x4xf32>
    %241 = vector.shape_cast %238 : vector<1x1x5x4xf32> to vector<1x1x1x5x4xf32>
    tpu.vector_store %arg3[%c0_280, %c2_281, %c3_282, %c0_283, %c0_284], %241 {strides = array<i32>} : memref<1x3x4x5x4xf32, #tpu.memory_space<vmem>>, vector<1x1x1x5x4xf32>,
    return
  }
  func.func @transform_0(%arg0: i32, %arg1: i32) -> (i32, i32, i32, i32, i32) {
    %c0_i32 = arith.constant 0 : i32
    %c0_i32_0 = arith.constant 0 : i32
    %c0_i32_1 = arith.constant 0 : i32
    %c0_i32_2 = arith.constant 0 : i32
    return %arg0, %c0_i32, %c0_i32_0, %c0_i32_1, %arg1 : i32, i32, i32, i32, i32
  }
  func.func @transform_1(%arg0: i32, %arg1: i32) -> (i32, i32, i32, i32, i32) {
    %c0_i32 = arith.constant 0 : i32
    %c0_i32_0 = arith.constant 0 : i32
    %c0_i32_1 = arith.constant 0 : i32
    %c0_i32_2 = arith.constant 0 : i32
    return %arg0, %c0_i32, %c0_i32_0, %c0_i32_1, %arg1 : i32, i32, i32, i32, i32
  }
}

</mosaic_0001>

<llo_original>
// kernel: adaptive_pool3d.1
$region0: #{adaptive_pool3d.1}
  #allocation0 [shape = 'u32[]', space=smem, size = 0x4, offset = 0x4, fixed_abs, tag = 'smem constant byte address 0x4 - core index']
  #allocation1 [shape = 'u32[144,128]{1,0:T(1,128)}', space=vmem, size = 0x12000, scoped, tag = 'internal scratch']
  #allocation2 [shape = 'f32[7,10,5,4]{3,2,1,0:T(8,128)}', space=vmem, size = 0x46000, scoped, tag = 'scratch operand']
  #allocation3 [shape = 'f32[7,10,5,4]{3,2,1,0:T(8,128)}', space=vmem, size = 0x46000, scoped, tag = 'scratch operand']
  %s0 = inlined_call_operand.vmem [shape: f32[2,7,10,16,4], index: 0, kind: input, shape index: {}]
  %s1 = inlined_call_operand.vmem [shape: f32[2,3,4,5,4], index: 1, kind: output, shape index: {}]
  %s2 = sld [smem:[#allocation0]]
  $region37: #{adaptive_pool3d.1} parent=0
    _
  %s4 = ssub.s32 1, %s2
  %s5 = scalar_select 0, %s4, %s2
  loop: start=0, step=1, limit=4
  $region2: #{adaptive_pool3d.1} parent=0 // loop_pre_header
    _
  $region3: #{adaptive_pool3d.1} parent=0 // loop_header
    %s7 = sphi 0, %s11
    %p8 = scmp.ge.s32.totalorder %s7, 4
    %s14 = sphi 0, %s26
    %s15 = sphi 0, %s22
    %s16 = sphi 0, %s14
    %s17 = sphi 0, %s15
    %s18 = sphi 0, %s16
    %s19 = sphi 0, %s17
    %s31 = sphi 0, %s33
    %s34 = sphi 0, %s31
    %s35 = sphi 0, %s34
    %s51 = sphi 0, %s35
    %s59 = sphi 0, %s61
    %s62 = sphi 0, %s59
    %s63 = sphi 0, %s62
    %s79 = sphi 0, %s63
  $region4: #{adaptive_pool3d.1} parent=0 // loop_header_branch
    %10 = sbr.rel (%p8) target = $region8
  $region5: #{adaptive_pool3d.1} parent=0 // loop_body
    %s12 = ssub.s32 %s7, 1
    %s13 = ssub.s32 %s7, 2
    %s20 = sadd.s32 1, %s15
    %p21 = scmp.ge.s32.totalorder %s20, 1
    %s22 = scalar_select %p21, 0, %s20
    %s23 = sadd.s32 1, %s14
    %s24 = scalar_select %p21, %s23, %s14
    %p25 = scmp.ge.s32.totalorder %s24, 2
    %s26 = scalar_select %p25, 0, %s24
    %s27 = ssub.s32 %s14, %s26
    %s28 = ssub.s32 %s15, %s22
    %s29 = sor.u32 %s27, %s28
    %p30 = scmp.eq.s32.totalorder %s29, 0
    %s32 = sadd.s32 %s31, 1
    %s33 = scalar_select %p30, %s31, %s32
    %p36 = pneg %p30
    %p37 = scmp.eq.s32.totalorder %s7, 1
    %p38 = por %p36, %p37
    %p39 = scmp.ne.s32.totalorder %s31, %s34
    %p40 = scmp.eq.s32.totalorder %s7, 0
    %p41 = por %p39, %p40
    %p42 = scmp.ne.s32.totalorder %s31, %s34
    %p43 = scmp.eq.s32.totalorder %s12, 1
    %p44 = por %p42, %p43
    %p45 = scmp.ne.s32.totalorder %s34, %s35
    %p46 = scmp.eq.s32.totalorder %s12, 0
    %p47 = por %p45, %p46
    %p48 = scmp.ne.s32.totalorder %s34, %s35
    %p49 = scmp.eq.s32.totalorder %s13, 1
    %p50 = por %p48, %p49
    %p52 = scmp.ne.s32.totalorder %s35, %s51
    %p53 = scmp.eq.s32.totalorder %s13, 0
    %p54 = por %p52, %p53
    %s55 = ssub.s32 %s14, %s26
    %s56 = ssub.s32 %s15, %s22
    %s57 = sor.u32 %s55, %s56
    %p58 = scmp.eq.s32.totalorder %s57, 0
    %s60 = sadd.s32 %s59, 1
    %s61 = scalar_select %p58, %s59, %s60
    %p64 = pneg %p58
    %p65 = scmp.eq.s32.totalorder %s7, 1
    %p66 = por %p64, %p65
    %p67 = scmp.ne.s32.totalorder %s59, %s62
    %p68 = scmp.eq.s32.totalorder %s7, 0
    %p69 = por %p67, %p68
    %p70 = scmp.ne.s32.totalorder %s59, %s62
    %p71 = scmp.eq.s32.totalorder %s12, 1
    %p72 = por %p70, %p71
    %p73 = scmp.ne.s32.totalorder %s62, %s63
    %p74 = scmp.eq.s32.totalorder %s12, 0
    %p75 = por %p73, %p74
    %p76 = scmp.ne.s32.totalorder %s62, %s63
    %p77 = scmp.eq.s32.totalorder %s13, 1
    %p78 = por %p76, %p77
    %p80 = scmp.ne.s32.totalorder %s63, %s79
    %p81 = scmp.eq.s32.totalorder %s13, 0
    %p82 = por %p80, %p81
    %p83 = scmp.le.s32.totalorder 1, %s7
    %p84 = scmp.lt.s32.totalorder %s7, 3
    %p85 = pnand %p83, %p84
    %p86 = pneg %p85
    // Predicated region
    $region9: #{adaptive_pool3d.1} parent=5 // pred_check
      _
    $region10: #{adaptive_pool3d.1} parent=5 // pred_check_branch
      %88 = sbr.rel (%p85) target = $region12
    $region11: #{adaptive_pool3d.1} parent=5 // pred_region
      %s89 = ssub.s32 %s7, 1
    $region12: #{adaptive_pool3d.1} parent=5 // pred_fallthru
      _
    %p90 = scmp.lt.s32.totalorder %s7, 2
    // Predicated region
    $region13: #{adaptive_pool3d.1} parent=5 // pred_check
      %p91 = pneg %p90
    $region14: #{adaptive_pool3d.1} parent=5 // pred_check_branch
      %93 = sbr.rel (%p91) target = $region16
    $region15: #{adaptive_pool3d.1} parent=5 // pred_region
      // Predicated region
      $region17: #{adaptive_pool3d.1} parent=15 // pred_check
        %p94 = pneg %p41
      $region18: #{adaptive_pool3d.1} parent=15 // pred_check_branch
        %96 = sbr.rel (%p94) target = $region20
      $region19: #{adaptive_pool3d.1} parent=15 // pred_region
        %p97 = scmp.lt.s32.totalorder %s14, 1
        %s98 = scalar_select %p97, %s14, 1
        %p99 = scmp.lt.s32.totalorder %s15, 0
        %s100 = scalar_select %p99, %s15, 0
        %s101 = smul.addr %s98, 140
        %s102 = sadd.s32 %s100, %s101
        %s103 = smul.addr %s102, 8
        %s104 = scalar_lea.vmem %s0, %s103
      $region20: #{adaptive_pool3d.1} parent=15 // pred_fallthru
        _
    $region16: #{adaptive_pool3d.1} parent=5 // pred_fallthru
      _
    %p105 = scmp.le.s32.totalorder 1, %s7
    %p106 = scmp.lt.s32.totalorder %s7, 3
    %p107 = pnand %p105, %p106
    %p108 = pneg %p107
    // Predicated region
    $region21: #{adaptive_pool3d.1} parent=5 // pred_check
      _
    $region22: #{adaptive_pool3d.1} parent=5 // pred_check_branch
      %110 = sbr.rel (%p107) target = $region24
    $region23: #{adaptive_pool3d.1} parent=5 // pred_region
      %s111 = ssub.s32 %s7, 1
      %p112 = scmp.lt.s32.totalorder %s16, 1
      %s113 = scalar_select %p112, %s16, 1
      %p114 = scmp.lt.s32.totalorder %s17, 0
      %s115 = scalar_select %p114, %s17, 0
      %s116 = smul.addr %s113, 140
      %s117 = sadd.s32 %s115, %s116
      %s118 = smul.addr %s117, 8
      %s119 = scalar_lea.vmem %s0, %s118
      %p120 = pneg %p47
      %p121 = pneg %p44
      %p122 = pneg %p75
      %p123 = pneg %p72
      %p124 = scmp.lt.s32.totalorder %s16, 1
      %s125 = scalar_select %p124, %s16, 1
      %p126 = scmp.lt.s32.totalorder %s17, 0
      %s127 = scalar_select %p126, %s17, 0
      %s128 = smul.addr %s125, 12
      %s129 = sadd.s32 %s127, %s128
      %s130 = smul.addr %s129, 8
      %s131 = scalar_lea.vmem %s1, %s130
      %p132 = scmp.lt.s32.totalorder %s16, 1
      %s133 = scalar_select %p132, %s16, 1
      %p134 = scmp.lt.s32.totalorder %s17, 0
      %s135 = scalar_select %p134, %s17, 0
      %s136 = smul.addr %s133, 140
      %s137 = sadd.s32 %s135, %s136
      %s138 = smul.addr %s137, 8
      %s139 = scalar_lea.vmem %s0, %s138
      %p140 = scmp.lt.s32.totalorder %s16, 1
      %s141 = scalar_select %p140, %s16, 1
      %p142 = scmp.lt.s32.totalorder %s17, 0
      %s143 = scalar_select %p142, %s17, 0
      %s144 = smul.addr %s141, 12
      %s145 = sadd.s32 %s143, %s144
      %s146 = smul.addr %s145, 8
      %s147 = scalar_lea.vmem %s1, %s146
      %v148 = vld [vmem:[%s139] sm:$0xf]
      %v149 = vld [vmem:[%s139 + $0x10] sm:$0xf]
      %v150 = vld [vmem:[%s139 + $0x20] sm:$0xf]
      %v151 = vld [vmem:[%s139 + $0x30] sm:$0xf]
      %v152 = vld [vmem:[%s139 + $0x40] sm:$0xf]
      %v153 = vld [vmem:[%s139 + $0x50] sm:$0xf]
      %v154 = vld [vmem:[%s139 + $0x60] sm:$0xf]
      %v155 = vld [vmem:[%s139 + $0x70] sm:$0xf]
      %v156 = vld [vmem:[%s139 + $0x80] sm:$0xf]
      %v157 = vld [vmem:[%s139 + $0x90] sm:$0xf]
      %v158 = vld [vmem:[%s139 + $0xa0] sm:$0xf]
      %v159 = vld [vmem:[%s139 + $0xb0] sm:$0xf]
      %v160 = vld [vmem:[%s139 + $0xc0] sm:$0xf]
      %v161 = vld [vmem:[%s139 + $0xd0] sm:$0xf]
      %v162 = vld [vmem:[%s139 + $0xe0] sm:$0xf]
      %v163 = vld [vmem:[%s139 + $0xf0] sm:$0xf]
      %v164 = vld [vmem:[%s139 + $0x100] sm:$0xf]
      %v165 = vld [vmem:[%s139 + $0x110] sm:$0xf]
      %v166 = vld [vmem:[%s139 + $0x120] sm:$0xf]
      %v167 = vld [vmem:[%s139 + $0x130] sm:$0xf]
      %v168 = vld [vmem:[%s139 + $0x140] sm:$0xf]
      %v169 = vld [vmem:[%s139 + $0x150] sm:$0xf]
      %v170 = vld [vmem:[%s139 + $0x160] sm:$0xf]
      %v171 = vld [vmem:[%s139 + $0x170] sm:$0xf]
      %v172 = vld [vmem:[%s139 + $0x180] sm:$0xf]
      %v173 = vld [vmem:[%s139 + $0x190] sm:$0xf]
      %v174 = vld [vmem:[%s139 + $0x1a0] sm:$0xf]
      %v175 = vld [vmem:[%s139 + $0x1b0] sm:$0xf]
      %v176 = vld [vmem:[%s139 + $0x1c0] sm:$0xf]
      %v177 = vld [vmem:[%s139 + $0x1d0] sm:$0xf]
      %v178 = vld [vmem:[%s139 + $0x1e0] sm:$0xf]
      %v179 = vld [vmem:[%s139 + $0x1f0] sm:$0xf]
      %v180 = vld [vmem:[%s139 + $0x200] sm:$0xf]
      %v181 = vld [vmem:[%s139 + $0x210] sm:$0xf]
      %v182 = vld [vmem:[%s139 + $0x220] sm:$0xf]
      %v183 = vld [vmem:[%s139 + $0x230] sm:$0xf]
      %v184 = vld [vmem:[%s139 + $0x240] sm:$0xf]
      %v185 = vld [vmem:[%s139 + $0x250] sm:$0xf]
      %v186 = vld [vmem:[%s139 + $0x260] sm:$0xf]
      %v187 = vld [vmem:[%s139 + $0x270] sm:$0xf]
      %v188 = vld [vmem:[%s139 + $0x280] sm:$0xf]
      %v189 = vld [vmem:[%s139 + $0x290] sm:$0xf]
      %v190 = vld [vmem:[%s139 + $0x2a0] sm:$0xf]
      %v191 = vld [vmem:[%s139 + $0x2b0] sm:$0xf]
      %v192 = vld [vmem:[%s139 + $0x2c0] sm:$0xf]
      %v193 = vld [vmem:[%s139 + $0x2d0] sm:$0xf]
      %v194 = vld [vmem:[%s139 + $0x2e0] sm:$0xf]
      %v195 = vld [vmem:[%s139 + $0x2f0] sm:$0xf]
      %v196 = vld [vmem:[%s139 + $0x300] sm:$0xf]
      %v197 = vld [vmem:[%s139 + $0x310] sm:$0xf]
      %v198 = vld [vmem:[%s139 + $0x320] sm:$0xf]
      %v199 = vld [vmem:[%s139 + $0x330] sm:$0xf]
      %v200 = vld [vmem:[%s139 + $0x340] sm:$0xf]
      %v201 = vld [vmem:[%s139 + $0x350] sm:$0xf]
      %v202 = vld [vmem:[%s139 + $0x360] sm:$0xf]
      %v203 = vld [vmem:[%s139 + $0x370] sm:$0xf]
      %v204 = vld [vmem:[%s139 + $0x380] sm:$0xf]
      %v205 = vld [vmem:[%s139 + $0x390] sm:$0xf]
      %v206 = vld [vmem:[%s139 + $0x3a0] sm:$0xf]
      %v207 = vld [vmem:[%s139 + $0x3b0] sm:$0xf]
      %v208 = vld [vmem:[%s139 + $0x3c0] sm:$0xf]
      %v209 = vld [vmem:[%s139 + $0x3d0] sm:$0xf]
      %v210 = vld [vmem:[%s139 + $0x3e0] sm:$0xf]
      %v211 = vld [vmem:[%s139 + $0x3f0] sm:$0xf]
      %v212 = vld [vmem:[%s139 + $0x400] sm:$0xf]
      %v213 = vld [vmem:[%s139 + $0x410] sm:$0xf]
      %v214 = vld [vmem:[%s139 + $0x420] sm:$0xf]
      %v215 = vld [vmem:[%s139 + $0x430] sm:$0xf]
      %v216 = vld [vmem:[%s139 + $0x440] sm:$0xf]
      %v217 = vld [vmem:[%s139 + $0x450] sm:$0xf]
      %vm218 = vcmask 27648
      %v219 = vsel %vm218, %v148, 0.0
      %v220 = vrot.slane %v219, 4
      %v221 = vadd.f32 %v219, %v220
      %v222 = vrot.slane %v221, 2
      %v223 = vadd.f32 %v221, %v222
      %v224 = vrot.slane %v223, 1
      %v225 = vadd.f32 %v223, %v224
      %v226 = vsel %vm218, %v149, 0.0
      %v227 = vrot.slane %v226, 4
      %v228 = vadd.f32 %v226, %v227
      %v229 = vrot.slane %v228, 2
      %v230 = vadd.f32 %v228, %v229
      %v231 = vrot.slane %v230, 1
      %v232 = vadd.f32 %v230, %v231
      %v233 = vsel %vm218, %v150, 0.0
      %v234 = vrot.slane %v233, 4
      %v235 = vadd.f32 %v233, %v234
      %v236 = vrot.slane %v235, 2
      %v237 = vadd.f32 %v235, %v236
      %v238 = vrot.slane %v237, 1
      %v239 = vadd.f32 %v237, %v238
      %v240 = vsel %vm218, %v151, 0.0
      %v241 = vrot.slane %v240, 4
      %v242 = vadd.f32 %v240, %v241
      %v243 = vrot.slane %v242, 2
      %v244 = vadd.f32 %v242, %v243
      %v245 = vrot.slane %v244, 1
      %v246 = vadd.f32 %v244, %v245
      %v247 = vsel %vm218, %v152, 0.0
      %v248 = vrot.slane %v247, 4
      %v249 = vadd.f32 %v247, %v248
      %v250 = vrot.slane %v249, 2
      %v251 = vadd.f32 %v249, %v250
      %v252 = vrot.slane %v251, 1
      %v253 = vadd.f32 %v251, %v252
      %v254 = vsel %vm218, %v153, 0.0
      %v255 = vrot.slane %v254, 4
      %v256 = vadd.f32 %v254, %v255
      %v257 = vrot.slane %v256, 2
      %v258 = vadd.f32 %v256, %v257
      %v259 = vrot.slane %v258, 1
      %v260 = vadd.f32 %v258, %v259
      %v261 = vsel %vm218, %v154, 0.0
      %v262 = vrot.slane %v261, 4
      %v263 = vadd.f32 %v261, %v262
      %v264 = vrot.slane %v263, 2
      %v265 = vadd.f32 %v263, %v264
      %v266 = vrot.slane %v265, 1
      %v267 = vadd.f32 %v265, %v266
      %v268 = vsel %vm218, %v155, 0.0
      %v269 = vrot.slane %v268, 4
      %v270 = vadd.f32 %v268, %v269
      %v271 = vrot.slane %v270, 2
      %v272 = vadd.f32 %v270, %v271
      %v273 = vrot.slane %v272, 1
      %v274 = vadd.f32 %v272, %v273
      %v275 = vsel %vm218, %v156, 0.0
      %v276 = vrot.slane %v275, 4
      %v277 = vadd.f32 %v275, %v276
      %v278 = vrot.slane %v277, 2
      %v279 = vadd.f32 %v277, %v278
      %v280 = vrot.slane %v279, 1
      %v281 = vadd.f32 %v279, %v280
      %v282 = vsel %vm218, %v157, 0.0
      %v283 = vrot.slane %v282, 4
      %v284 = vadd.f32 %v282, %v283
      %v285 = vrot.slane %v284, 2
      %v286 = vadd.f32 %v284, %v285
      %v287 = vrot.slane %v286, 1
      %v288 = vadd.f32 %v286, %v287
      %v289 = vsel %vm218, %v158, 0.0
      %v290 = vrot.slane %v289, 4
      %v291 = vadd.f32 %v289, %v290
      %v292 = vrot.slane %v291, 2
      %v293 = vadd.f32 %v291, %v292
      %v294 = vrot.slane %v293, 1
      %v295 = vadd.f32 %v293, %v294
      %v296 = vsel %vm218, %v159, 0.0
      %v297 = vrot.slane %v296, 4
      %v298 = vadd.f32 %v296, %v297
      %v299 = vrot.slane %v298, 2
      %v300 = vadd.f32 %v298, %v299
      %v301 = vrot.slane %v300, 1
      %v302 = vadd.f32 %v300, %v301
      %v303 = vsel %vm218, %v160, 0.0
      %v304 = vrot.slane %v303, 4
      %v305 = vadd.f32 %v303, %v304
      %v306 = vrot.slane %v305, 2
      %v307 = vadd.f32 %v305, %v306
      %v308 = vrot.slane %v307, 1
      %v309 = vadd.f32 %v307, %v308
      %v310 = vsel %vm218, %v161, 0.0
      %v311 = vrot.slane %v310, 4
      %v312 = vadd.f32 %v310, %v311
      %v313 = vrot.slane %v312, 2
      %v314 = vadd.f32 %v312, %v313
      %v315 = vrot.slane %v314, 1
      %v316 = vadd.f32 %v314, %v315
      %v317 = vsel %vm218, %v162, 0.0
      %v318 = vrot.slane %v317, 4
      %v319 = vadd.f32 %v317, %v318
      %v320 = vrot.slane %v319, 2
      %v321 = vadd.f32 %v319, %v320
      %v322 = vrot.slane %v321, 1
      %v323 = vadd.f32 %v321, %v322
      %v324 = vsel %vm218, %v163, 0.0
      %v325 = vrot.slane %v324, 4
      %v326 = vadd.f32 %v324, %v325
      %v327 = vrot.slane %v326, 2
      %v328 = vadd.f32 %v326, %v327
      %v329 = vrot.slane %v328, 1
      %v330 = vadd.f32 %v328, %v329
      %v331 = vsel %vm218, %v164, 0.0
      %v332 = vrot.slane %v331, 4
      %v333 = vadd.f32 %v331, %v332
      %v334 = vrot.slane %v333, 2
      %v335 = vadd.f32 %v333, %v334
      %v336 = vrot.slane %v335, 1
      %v337 = vadd.f32 %v335, %v336
      %v338 = vsel %vm218, %v165, 0.0
      %v339 = vrot.slane %v338, 4
      %v340 = vadd.f32 %v338, %v339
      %v341 = vrot.slane %v340, 2
      %v342 = vadd.f32 %v340, %v341
      %v343 = vrot.slane %v342, 1
      %v344 = vadd.f32 %v342, %v343
      %v345 = vsel %vm218, %v166, 0.0
      %v346 = vrot.slane %v345, 4
      %v347 = vadd.f32 %v345, %v346
      %v348 = vrot.slane %v347, 2
      %v349 = vadd.f32 %v347, %v348
      %v350 = vrot.slane %v349, 1
      %v351 = vadd.f32 %v349, %v350
      %v352 = vsel %vm218, %v167, 0.0
      %v353 = vrot.slane %v352, 4
      %v354 = vadd.f32 %v352, %v353
      %v355 = vrot.slane %v354, 2
      %v356 = vadd.f32 %v354, %v355
      %v357 = vrot.slane %v356, 1
      %v358 = vadd.f32 %v356, %v357
      %v359 = vsel %vm218, %v168, 0.0
      %v360 = vrot.slane %v359, 4
      %v361 = vadd.f32 %v359, %v360
      %v362 = vrot.slane %v361, 2
      %v363 = vadd.f32 %v361, %v362
      %v364 = vrot.slane %v363, 1
      %v365 = vadd.f32 %v363, %v364
      %v366 = vsel %vm218, %v169, 0.0
      %v367 = vrot.slane %v366, 4
      %v368 = vadd.f32 %v366, %v367
      %v369 = vrot.slane %v368, 2
      %v370 = vadd.f32 %v368, %v369
      %v371 = vrot.slane %v370, 1
      %v372 = vadd.f32 %v370, %v371
      %v373 = vsel %vm218, %v170, 0.0
      %v374 = vrot.slane %v373, 4
      %v375 = vadd.f32 %v373, %v374
      %v376 = vrot.slane %v375, 2
      %v377 = vadd.f32 %v375, %v376
      %v378 = vrot.slane %v377, 1
      %v379 = vadd.f32 %v377, %v378
      %v380 = vsel %vm218, %v171, 0.0
      %v381 = vrot.slane %v380, 4
      %v382 = vadd.f32 %v380, %v381
      %v383 = vrot.slane %v382, 2
      %v384 = vadd.f32 %v382, %v383
      %v385 = vrot.slane %v384, 1
      %v386 = vadd.f32 %v384, %v385
      %v387 = vsel %vm218, %v172, 0.0
      %v388 = vrot.slane %v387, 4
      %v389 = vadd.f32 %v387, %v388
      %v390 = vrot.slane %v389, 2
      %v391 = vadd.f32 %v389, %v390
      %v392 = vrot.slane %v391, 1
      %v393 = vadd.f32 %v391, %v392
      %v394 = vsel %vm218, %v173, 0.0
      %v395 = vrot.slane %v394, 4
      %v396 = vadd.f32 %v394, %v395
      %v397 = vrot.slane %v396, 2
      %v398 = vadd.f32 %v396, %v397
      %v399 = vrot.slane %v398, 1
      %v400 = vadd.f32 %v398, %v399
      %v401 = vsel %vm218, %v174, 0.0
      %v402 = vrot.slane %v401, 4
      %v403 = vadd.f32 %v401, %v402
      %v404 = vrot.slane %v403, 2
      %v405 = vadd.f32 %v403, %v404
      %v406 = vrot.slane %v405, 1
      %v407 = vadd.f32 %v405, %v406
      %v408 = vsel %vm218, %v175, 0.0
      %v409 = vrot.slane %v408, 4
      %v410 = vadd.f32 %v408, %v409
      %v411 = vrot.slane %v410, 2
      %v412 = vadd.f32 %v410, %v411
      %v413 = vrot.slane %v412, 1
      %v414 = vadd.f32 %v412, %v413
      %v415 = vsel %vm218, %v176, 0.0
      %v416 = vrot.slane %v415, 4
      %v417 = vadd.f32 %v415, %v416
      %v418 = vrot.slane %v417, 2
      %v419 = vadd.f32 %v417, %v418
      %v420 = vrot.slane %v419, 1
      %v421 = vadd.f32 %v419, %v420
      %v422 = vsel %vm218, %v177, 0.0
      %v423 = vrot.slane %v422, 4
      %v424 = vadd.f32 %v422, %v423
      %v425 = vrot.slane %v424, 2
      %v426 = vadd.f32 %v424, %v425
      %v427 = vrot.slane %v426, 1
      %v428 = vadd.f32 %v426, %v427
      %v429 = vsel %vm218, %v178, 0.0
      %v430 = vrot.slane %v429, 4
      %v431 = vadd.f32 %v429, %v430
      %v432 = vrot.slane %v431, 2
      %v433 = vadd.f32 %v431, %v432
      %v434 = vrot.slane %v433, 1
      %v435 = vadd.f32 %v433, %v434
      %v436 = vsel %vm218, %v179, 0.0
      %v437 = vrot.slane %v436, 4
      %v438 = vadd.f32 %v436, %v437
      %v439 = vrot.slane %v438, 2
      %v440 = vadd.f32 %v438, %v439
      %v441 = vrot.slane %v440, 1
      %v442 = vadd.f32 %v440, %v441
      %v443 = vsel %vm218, %v180, 0.0
      %v444 = vrot.slane %v443, 4
      %v445 = vadd.f32 %v443, %v444
      %v446 = vrot.slane %v445, 2
      %v447 = vadd.f32 %v445, %v446
      %v448 = vrot.slane %v447, 1
      %v449 = vadd.f32 %v447, %v448
      %v450 = vsel %vm218, %v181, 0.0
      %v451 = vrot.slane %v450, 4
      %v452 = vadd.f32 %v450, %v451
      %v453 = vrot.slane %v452, 2
      %v454 = vadd.f32 %v452, %v453
      %v455 = vrot.slane %v454, 1
      %v456 = vadd.f32 %v454, %v455
      %v457 = vsel %vm218, %v182, 0.0
      %v458 = vrot.slane %v457, 4
      %v459 = vadd.f32 %v457, %v458
      %v460 = vrot.slane %v459, 2
      %v461 = vadd.f32 %v459, %v460
      %v462 = vrot.slane %v461, 1
      %v463 = vadd.f32 %v461, %v462
      %v464 = vsel %vm218, %v183, 0.0
      %v465 = vrot.slane %v464, 4
      %v466 = vadd.f32 %v464, %v465
      %v467 = vrot.slane %v466, 2
      %v468 = vadd.f32 %v466, %v467
      %v469 = vrot.slane %v468, 1
      %v470 = vadd.f32 %v468, %v469
      %v471 = vsel %vm218, %v184, 0.0
      %v472 = vrot.slane %v471, 4
      %v473 = vadd.f32 %v471, %v472
      %v474 = vrot.slane %v473, 2
      %v475 = vadd.f32 %v473, %v474
      %v476 = vrot.slane %v475, 1
      %v477 = vadd.f32 %v475, %v476
      %v478 = vsel %vm218, %v185, 0.0
      %v479 = vrot.slane %v478, 4
      %v480 = vadd.f32 %v478, %v479
      %v481 = vrot.slane %v480, 2
      %v482 = vadd.f32 %v480, %v481
      %v483 = vrot.slane %v482, 1
      %v484 = vadd.f32 %v482, %v483
      %v485 = vsel %vm218, %v186, 0.0
      %v486 = vrot.slane %v485, 4
      %v487 = vadd.f32 %v485, %v486
      %v488 = vrot.slane %v487, 2
      %v489 = vadd.f32 %v487, %v488
      %v490 = vrot.slane %v489, 1
      %v491 = vadd.f32 %v489, %v490
      %v492 = vsel %vm218, %v187, 0.0
      %v493 = vrot.slane %v492, 4
      %v494 = vadd.f32 %v492, %v493
      %v495 = vrot.slane %v494, 2
      %v496 = vadd.f32 %v494, %v495
      %v497 = vrot.slane %v496, 1
      %v498 = vadd.f32 %v496, %v497
      %v499 = vsel %vm218, %v188, 0.0
      %v500 = vrot.slane %v499, 4
      %v501 = vadd.f32 %v499, %v500
      %v502 = vrot.slane %v501, 2
      %v503 = vadd.f32 %v501, %v502
      %v504 = vrot.slane %v503, 1
      %v505 = vadd.f32 %v503, %v504
      %v506 = vsel %vm218, %v189, 0.0
      %v507 = vrot.slane %v506, 4
      %v508 = vadd.f32 %v506, %v507
      %v509 = vrot.slane %v508, 2
      %v510 = vadd.f32 %v508, %v509
      %v511 = vrot.slane %v510, 1
      %v512 = vadd.f32 %v510, %v511
      %v513 = vsel %vm218, %v190, 0.0
      %v514 = vrot.slane %v513, 4
      %v515 = vadd.f32 %v513, %v514
      %v516 = vrot.slane %v515, 2
      %v517 = vadd.f32 %v515, %v516
      %v518 = vrot.slane %v517, 1
      %v519 = vadd.f32 %v517, %v518
      %v520 = vsel %vm218, %v191, 0.0
      %v521 = vrot.slane %v520, 4
      %v522 = vadd.f32 %v520, %v521
      %v523 = vrot.slane %v522, 2
      %v524 = vadd.f32 %v522, %v523
      %v525 = vrot.slane %v524, 1
      %v526 = vadd.f32 %v524, %v525
      %v527 = vsel %vm218, %v192, 0.0
      %v528 = vrot.slane %v527, 4
      %v529 = vadd.f32 %v527, %v528
      %v530 = vrot.slane %v529, 2
      %v531 = vadd.f32 %v529, %v530
      %v532 = vrot.slane %v531, 1
      %v533 = vadd.f32 %v531, %v532
      %v534 = vsel %vm218, %v193, 0.0
      %v535 = vrot.slane %v534, 4
      %v536 = vadd.f32 %v534, %v535
      %v537 = vrot.slane %v536, 2
      %v538 = vadd.f32 %v536, %v537
      %v539 = vrot.slane %v538, 1
      %v540 = vadd.f32 %v538, %v539
      %v541 = vsel %vm218, %v194, 0.0
      %v542 = vrot.slane %v541, 4
      %v543 = vadd.f32 %v541, %v542
      %v544 = vrot.slane %v543, 2
      %v545 = vadd.f32 %v543, %v544
      %v546 = vrot.slane %v545, 1
      %v547 = vadd.f32 %v545, %v546
      %v548 = vsel %vm218, %v195, 0.0
      %v549 = vrot.slane %v548, 4
      %v550 = vadd.f32 %v548, %v549
      %v551 = vrot.slane %v550, 2
      %v552 = vadd.f32 %v550, %v551
      %v553 = vrot.slane %v552, 1
      %v554 = vadd.f32 %v552, %v553
      %v555 = vsel %vm218, %v196, 0.0
      %v556 = vrot.slane %v555, 4
      %v557 = vadd.f32 %v555, %v556
      %v558 = vrot.slane %v557, 2
      %v559 = vadd.f32 %v557, %v558
      %v560 = vrot.slane %v559, 1
      %v561 = vadd.f32 %v559, %v560
      %v562 = vsel %vm218, %v197, 0.0
      %v563 = vrot.slane %v562, 4
      %v564 = vadd.f32 %v562, %v563
      %v565 = vrot.slane %v564, 2
      %v566 = vadd.f32 %v564, %v565
      %v567 = vrot.slane %v566, 1
      %v568 = vadd.f32 %v566, %v567
      %v569 = vsel %vm218, %v198, 0.0
      %v570 = vrot.slane %v569, 4
      %v571 = vadd.f32 %v569, %v570
      %v572 = vrot.slane %v571, 2
      %v573 = vadd.f32 %v571, %v572
      %v574 = vrot.slane %v573, 1
      %v575 = vadd.f32 %v573, %v574
      %v576 = vsel %vm218, %v199, 0.0
      %v577 = vrot.slane %v576, 4
      %v578 = vadd.f32 %v576, %v577
      %v579 = vrot.slane %v578, 2
      %v580 = vadd.f32 %v578, %v579
      %v581 = vrot.slane %v580, 1
      %v582 = vadd.f32 %v580, %v581
      %v583 = vsel %vm218, %v200, 0.0
      %v584 = vrot.slane %v583, 4
      %v585 = vadd.f32 %v583, %v584
      %v586 = vrot.slane %v585, 2
      %v587 = vadd.f32 %v585, %v586
      %v588 = vrot.slane %v587, 1
      %v589 = vadd.f32 %v587, %v588
      %v590 = vsel %vm218, %v201, 0.0
      %v591 = vrot.slane %v590, 4
      %v592 = vadd.f32 %v590, %v591
      %v593 = vrot.slane %v592, 2
      %v594 = vadd.f32 %v592, %v593
      %v595 = vrot.slane %v594, 1
      %v596 = vadd.f32 %v594, %v595
      %v597 = vsel %vm218, %v202, 0.0
      %v598 = vrot.slane %v597, 4
      %v599 = vadd.f32 %v597, %v598
      %v600 = vrot.slane %v599, 2
      %v601 = vadd.f32 %v599, %v600
      %v602 = vrot.slane %v601, 1
      %v603 = vadd.f32 %v601, %v602
      %v604 = vsel %vm218, %v203, 0.0
      %v605 = vrot.slane %v604, 4
      %v606 = vadd.f32 %v604, %v605
      %v607 = vrot.slane %v606, 2
      %v608 = vadd.f32 %v606, %v607
      %v609 = vrot.slane %v608, 1
      %v610 = vadd.f32 %v608, %v609
      %v611 = vsel %vm218, %v204, 0.0
      %v612 = vrot.slane %v611, 4
      %v613 = vadd.f32 %v611, %v612
      %v614 = vrot.slane %v613, 2
      %v615 = vadd.f32 %v613, %v614
      %v616 = vrot.slane %v615, 1
      %v617 = vadd.f32 %v615, %v616
      %v618 = vsel %vm218, %v205, 0.0
      %v619 = vrot.slane %v618, 4
      %v620 = vadd.f32 %v618, %v619
      %v621 = vrot.slane %v620, 2
      %v622 = vadd.f32 %v620, %v621
      %v623 = vrot.slane %v622, 1
      %v624 = vadd.f32 %v622, %v623
      %v625 = vsel %vm218, %v206, 0.0
      %v626 = vrot.slane %v625, 4
      %v627 = vadd.f32 %v625, %v626
      %v628 = vrot.slane %v627, 2
      %v629 = vadd.f32 %v627, %v628
      %v630 = vrot.slane %v629, 1
      %v631 = vadd.f32 %v629, %v630
      %v632 = vsel %vm218, %v207, 0.0
      %v633 = vrot.slane %v632, 4
      %v634 = vadd.f32 %v632, %v633
      %v635 = vrot.slane %v634, 2
      %v636 = vadd.f32 %v634, %v635
      %v637 = vrot.slane %v636, 1
      %v638 = vadd.f32 %v636, %v637
      %v639 = vsel %vm218, %v208, 0.0
      %v640 = vrot.slane %v639, 4
      %v641 = vadd.f32 %v639, %v640
      %v642 = vrot.slane %v641, 2
      %v643 = vadd.f32 %v641, %v642
      %v644 = vrot.slane %v643, 1
      %v645 = vadd.f32 %v643, %v644
      %v646 = vsel %vm218, %v209, 0.0
      %v647 = vrot.slane %v646, 4
      %v648 = vadd.f32 %v646, %v647
      %v649 = vrot.slane %v648, 2
      %v650 = vadd.f32 %v648, %v649
      %v651 = vrot.slane %v650, 1
      %v652 = vadd.f32 %v650, %v651
      %v653 = vsel %vm218, %v210, 0.0
      %v654 = vrot.slane %v653, 4
      %v655 = vadd.f32 %v653, %v654
      %v656 = vrot.slane %v655, 2
      %v657 = vadd.f32 %v655, %v656
      %v658 = vrot.slane %v657, 1
      %v659 = vadd.f32 %v657, %v658
      %v660 = vsel %vm218, %v211, 0.0
      %v661 = vrot.slane %v660, 4
      %v662 = vadd.f32 %v660, %v661
      %v663 = vrot.slane %v662, 2
      %v664 = vadd.f32 %v662, %v663
      %v665 = vrot.slane %v664, 1
      %v666 = vadd.f32 %v664, %v665
      %v667 = vsel %vm218, %v212, 0.0
      %v668 = vrot.slane %v667, 4
      %v669 = vadd.f32 %v667, %v668
      %v670 = vrot.slane %v669, 2
      %v671 = vadd.f32 %v669, %v670
      %v672 = vrot.slane %v671, 1
      %v673 = vadd.f32 %v671, %v672
      %v674 = vsel %vm218, %v213, 0.0
      %v675 = vrot.slane %v674, 4
      %v676 = vadd.f32 %v674, %v675
      %v677 = vrot.slane %v676, 2
      %v678 = vadd.f32 %v676, %v677
      %v679 = vrot.slane %v678, 1
      %v680 = vadd.f32 %v678, %v679
      %v681 = vsel %vm218, %v214, 0.0
      %v682 = vrot.slane %v681, 4
      %v683 = vadd.f32 %v681, %v682
      %v684 = vrot.slane %v683, 2
      %v685 = vadd.f32 %v683, %v684
      %v686 = vrot.slane %v685, 1
      %v687 = vadd.f32 %v685, %v686
      %v688 = vsel %vm218, %v215, 0.0
      %v689 = vrot.slane %v688, 4
      %v690 = vadd.f32 %v688, %v689
      %v691 = vrot.slane %v690, 2
      %v692 = vadd.f32 %v690, %v691
      %v693 = vrot.slane %v692, 1
      %v694 = vadd.f32 %v692, %v693
      %v695 = vsel %vm218, %v216, 0.0
      %v696 = vrot.slane %v695, 4
      %v697 = vadd.f32 %v695, %v696
      %v698 = vrot.slane %v697, 2
      %v699 = vadd.f32 %v697, %v698
      %v700 = vrot.slane %v699, 1
      %v701 = vadd.f32 %v699, %v700
      %v702 = vsel %vm218, %v217, 0.0
      %v703 = vrot.slane %v702, 4
      %v704 = vadd.f32 %v702, %v703
      %v705 = vrot.slane %v704, 2
      %v706 = vadd.f32 %v704, %v705
      %v707 = vrot.slane %v706, 1
      %v708 = vadd.f32 %v706, %v707
      %v709 = vmul.f32 %v225, 0.25
      %v710 = vmul.f32 %v232, 0.25
      %v711 = vmul.f32 %v239, 0.25
      %v712 = vmul.f32 %v246, 0.25
      %v713 = vmul.f32 %v253, 0.25
      %v714 = vmul.f32 %v260, 0.25
      %v715 = vmul.f32 %v267, 0.25
      %v716 = vmul.f32 %v274, 0.25
      %v717 = vmul.f32 %v281, 0.25
      %v718 = vmul.f32 %v288, 0.25
      %v719 = vmul.f32 %v295, 0.25
      %v720 = vmul.f32 %v302, 0.25
      %v721 = vmul.f32 %v309, 0.25
      %v722 = vmul.f32 %v316, 0.25
      %v723 = vmul.f32 %v323, 0.25
      %v724 = vmul.f32 %v330, 0.25
      %v725 = vmul.f32 %v337, 0.25
      %v726 = vmul.f32 %v344, 0.25
      %v727 = vmul.f32 %v351, 0.25
      %v728 = vmul.f32 %v358, 0.25
      %v729 = vmul.f32 %v365, 0.25
      %v730 = vmul.f32 %v372, 0.25
      %v731 = vmul.f32 %v379, 0.25
      %v732 = vmul.f32 %v386, 0.25
      %v733 = vmul.f32 %v393, 0.25
      %v734 = vmul.f32 %v400, 0.25
      %v735 = vmul.f32 %v407, 0.25
      %v736 = vmul.f32 %v414, 0.25
      %v737 = vmul.f32 %v421, 0.25
      %v738 = vmul.f32 %v428, 0.25
      %v739 = vmul.f32 %v435, 0.25
      %v740 = vmul.f32 %v442, 0.25
      %v741 = vmul.f32 %v449, 0.25
      %v742 = vmul.f32 %v456, 0.25
      %v743 = vmul.f32 %v463, 0.25
      %v744 = vmul.f32 %v470, 0.25
      %v745 = vmul.f32 %v477, 0.25
      %v746 = vmul.f32 %v484, 0.25
      %v747 = vmul.f32 %v491, 0.25
      %v748 = vmul.f32 %v498, 0.25
      %v749 = vmul.f32 %v505, 0.25
      %v750 = vmul.f32 %v512, 0.25
      %v751 = vmul.f32 %v519, 0.25
      %v752 = vmul.f32 %v526, 0.25
      %v753 = vmul.f32 %v533, 0.25
      %v754 = vmul.f32 %v540, 0.25
      %v755 = vmul.f32 %v547, 0.25
      %v756 = vmul.f32 %v554, 0.25
      %v757 = vmul.f32 %v561, 0.25
      %v758 = vmul.f32 %v568, 0.25
      %v759 = vmul.f32 %v575, 0.25
      %v760 = vmul.f32 %v582, 0.25
      %v761 = vmul.f32 %v589, 0.25
      %v762 = vmul.f32 %v596, 0.25
      %v763 = vmul.f32 %v603, 0.25
      %v764 = vmul.f32 %v610, 0.25
      %v765 = vmul.f32 %v617, 0.25
      %v766 = vmul.f32 %v624, 0.25
      %v767 = vmul.f32 %v631, 0.25
      %v768 = vmul.f32 %v638, 0.25
      %v769 = vmul.f32 %v645, 0.25
      %v770 = vmul.f32 %v652, 0.25
      %v771 = vmul.f32 %v659, 0.25
      %v772 = vmul.f32 %v666, 0.25
      %v773 = vmul.f32 %v673, 0.25
      %v774 = vmul.f32 %v680, 0.25
      %v775 = vmul.f32 %v687, 0.25
      %v776 = vmul.f32 %v694, 0.25
      %v777 = vmul.f32 %v701, 0.25
      %v778 = vmul.f32 %v708, 0.25
      %vm779 = vcmask 24576
      %780 = vst.msk [vmem:[#allocation2] sm:$0x1] %vm779, %v709
      %781 = vst.msk [vmem:[#allocation2 + $0x8] sm:$0x1] %vm779, %v710
      %782 = vst.msk [vmem:[#allocation2 + $0x10] sm:$0x1] %vm779, %v711
      %783 = vst.msk [vmem:[#allocation2 + $0x18] sm:$0x1] %vm779, %v712
      %784 = vst.msk [vmem:[#allocation2 + $0x20] sm:$0x1] %vm779, %v713
      %785 = vst.msk [vmem:[#allocation2 + $0x28] sm:$0x1] %vm779, %v714
      %786 = vst.msk [vmem:[#allocation2 + $0x30] sm:$0x1] %vm779, %v715
      %787 = vst.msk [vmem:[#allocation2 + $0x38] sm:$0x1] %vm779, %v716
      %788 = vst.msk [vmem:[#allocation2 + $0x40] sm:$0x1] %vm779, %v717
      %789 = vst.msk [vmem:[#allocation2 + $0x48] sm:$0x1] %vm779, %v718
      %790 = vst.msk [vmem:[#allocation2 + $0x50] sm:$0x1] %vm779, %v719
      %791 = vst.msk [vmem:[#allocation2 + $0x58] sm:$0x1] %vm779, %v720
      %792 = vst.msk [vmem:[#allocation2 + $0x60] sm:$0x1] %vm779, %v721
      %793 = vst.msk [vmem:[#allocation2 + $0x68] sm:$0x1] %vm779, %v722
      %794 = vst.msk [vmem:[#allocation2 + $0x70] sm:$0x1] %vm779, %v723
      %795 = vst.msk [vmem:[#allocation2 + $0x78] sm:$0x1] %vm779, %v724
      %796 = vst.msk [vmem:[#allocation2 + $0x80] sm:$0x1] %vm779, %v725
      %797 = vst.msk [vmem:[#allocation2 + $0x88] sm:$0x1] %vm779, %v726
      %798 = vst.msk [vmem:[#allocation2 + $0x90] sm:$0x1] %vm779, %v727
      %799 = vst.msk [vmem:[#allocation2 + $0x98] sm:$0x1] %vm779, %v728
      %800 = vst.msk [vmem:[#allocation2 + $0xa0] sm:$0x1] %vm779, %v729
      %801 = vst.msk [vmem:[#allocation2 + $0xa8] sm:$0x1] %vm779, %v730
      %802 = vst.msk [vmem:[#allocation2 + $0xb0] sm:$0x1] %vm779, %v731
      %803 = vst.msk [vmem:[#allocation2 + $0xb8] sm:$0x1] %vm779, %v732
      %804 = vst.msk [vmem:[#allocation2 + $0xc0] sm:$0x1] %vm779, %v733
      %805 = vst.msk [vmem:[#allocation2 + $0xc8] sm:$0x1] %vm779, %v734
      %806 = vst.msk [vmem:[#allocation2 + $0xd0] sm:$0x1] %vm779, %v735
      %807 = vst.msk [vmem:[#allocation2 + $0xd8] sm:$0x1] %vm779, %v736
      %808 = vst.msk [vmem:[#allocation2 + $0xe0] sm:$0x1] %vm779, %v737
      %809 = vst.msk [vmem:[#allocation2 + $0xe8] sm:$0x1] %vm779, %v738
      %810 = vst.msk [vmem:[#allocation2 + $0xf0] sm:$0x1] %vm779, %v739
      %811 = vst.msk [vmem:[#allocation2 + $0xf8] sm:$0x1] %vm779, %v740
      %812 = vst.msk [vmem:[#allocation2 + $0x100] sm:$0x1] %vm779, %v741
      %813 = vst.msk [vmem:[#allocation2 + $0x108] sm:$0x1] %vm779, %v742
      %814 = vst.msk [vmem:[#allocation2 + $0x110] sm:$0x1] %vm779, %v743
      %815 = vst.msk [vmem:[#allocation2 + $0x118] sm:$0x1] %vm779, %v744
      %816 = vst.msk [vmem:[#allocation2 + $0x120] sm:$0x1] %vm779, %v745
      %817 = vst.msk [vmem:[#allocation2 + $0x128] sm:$0x1] %vm779, %v746
      %818 = vst.msk [vmem:[#allocation2 + $0x130] sm:$0x1] %vm779, %v747
      %819 = vst.msk [vmem:[#allocation2 + $0x138] sm:$0x1] %vm779, %v748
      %820 = vst.msk [vmem:[#allocation2 + $0x140] sm:$0x1] %vm779, %v749
      %821 = vst.msk [vmem:[#allocation2 + $0x148] sm:$0x1] %vm779, %v750
      %822 = vst.msk [vmem:[#allocation2 + $0x150] sm:$0x1] %vm779, %v751
      %823 = vst.msk [vmem:[#allocation2 + $0x158] sm:$0x1] %vm779, %v752
      %824 = vst.msk [vmem:[#allocation2 + $0x160] sm:$0x1] %vm779, %v753
      %825 = vst.msk [vmem:[#allocation2 + $0x168] sm:$0x1] %vm779, %v754
      %826 = vst.msk [vmem:[#allocation2 + $0x170] sm:$0x1] %vm779, %v755
      %827 = vst.msk [vmem:[#allocation2 + $0x178] sm:$0x1] %vm779, %v756
      %828 = vst.msk [vmem:[#allocation2 + $0x180] sm:$0x1] %vm779, %v757
      %829 = vst.msk [vmem:[#allocation2 + $0x188] sm:$0x1] %vm779, %v758
      %830 = vst.msk [vmem:[#allocation2 + $0x190] sm:$0x1] %vm779, %v759
      %831 = vst.msk [vmem:[#allocation2 + $0x198] sm:$0x1] %vm779, %v760
      %832 = vst.msk [vmem:[#allocation2 + $0x1a0] sm:$0x1] %vm779, %v761
      %833 = vst.msk [vmem:[#allocation2 + $0x1a8] sm:$0x1] %vm779, %v762
      %834 = vst.msk [vmem:[#allocation2 + $0x1b0] sm:$0x1] %vm779, %v763
      %835 = vst.msk [vmem:[#allocation2 + $0x1b8] sm:$0x1] %vm779, %v764
      %836 = vst.msk [vmem:[#allocation2 + $0x1c0] sm:$0x1] %vm779, %v765
      %837 = vst.msk [vmem:[#allocation2 + $0x1c8] sm:$0x1] %vm779, %v766
      %838 = vst.msk [vmem:[#allocation2 + $0x1d0] sm:$0x1] %vm779, %v767
      %839 = vst.msk [vmem:[#allocation2 + $0x1d8] sm:$0x1] %vm779, %v768
      %840 = vst.msk [vmem:[#allocation2 + $0x1e0] sm:$0x1] %vm779, %v769
      %841 = vst.msk [vmem:[#allocation2 + $0x1e8] sm:$0x1] %vm779, %v770
      %842 = vst.msk [vmem:[#allocation2 + $0x1f0] sm:$0x1] %vm779, %v771
      %843 = vst.msk [vmem:[#allocation2 + $0x1f8] sm:$0x1] %vm779, %v772
      %844 = vst.msk [vmem:[#allocation2 + $0x200] sm:$0x1] %vm779, %v773
      %845 = vst.msk [vmem:[#allocation2 + $0x208] sm:$0x1] %vm779, %v774
      %846 = vst.msk [vmem:[#allocation2 + $0x210] sm:$0x1] %vm779, %v775
      %847 = vst.msk [vmem:[#allocation2 + $0x218] sm:$0x1] %vm779, %v776
      %848 = vst.msk [vmem:[#allocation2 + $0x220] sm:$0x1] %vm779, %v777
      %849 = vst.msk [vmem:[#allocation2 + $0x228] sm:$0x1] %vm779, %v778
      %v850 = vsel %vm218, %v148, -inf
      %v851 = vrot.slane %v850, 4
      %v852 = vmax.f32 %v850, %v851
      %v853 = vrot.slane %v852, 2
      %v854 = vmax.f32 %v852, %v853
      %v855 = vrot.slane %v854, 1
      %v856 = vmax.f32 %v854, %v855
      %v857 = vsel %vm218, %v149, -inf
      %v858 = vrot.slane %v857, 4
      %v859 = vmax.f32 %v857, %v858
      %v860 = vrot.slane %v859, 2
      %v861 = vmax.f32 %v859, %v860
      %v862 = vrot.slane %v861, 1
      %v863 = vmax.f32 %v861, %v862
      %v864 = vsel %vm218, %v150, -inf
      %v865 = vrot.slane %v864, 4
      %v866 = vmax.f32 %v864, %v865
      %v867 = vrot.slane %v866, 2
      %v868 = vmax.f32 %v866, %v867
      %v869 = vrot.slane %v868, 1
      %v870 = vmax.f32 %v868, %v869
      %v871 = vsel %vm218, %v151, -inf
      %v872 = vrot.slane %v871, 4
      %v873 = vmax.f32 %v871, %v872
      %v874 = vrot.slane %v873, 2
      %v875 = vmax.f32 %v873, %v874
      %v876 = vrot.slane %v875, 1
      %v877 = vmax.f32 %v875, %v876
      %v878 = vsel %vm218, %v152, -inf
      %v879 = vrot.slane %v878, 4
      %v880 = vmax.f32 %v878, %v879
      %v881 = vrot.slane %v880, 2
      %v882 = vmax.f32 %v880, %v881
      %v883 = vrot.slane %v882, 1
      %v884 = vmax.f32 %v882, %v883
      %v885 = vsel %vm218, %v153, -inf
      %v886 = vrot.slane %v885, 4
      %v887 = vmax.f32 %v885, %v886
      %v888 = vrot.slane %v887, 2
      %v889 = vmax.f32 %v887, %v888
      %v890 = vrot.slane %v889, 1
      %v891 = vmax.f32 %v889, %v890
      %v892 = vsel %vm218, %v154, -inf
      %v893 = vrot.slane %v892, 4
      %v894 = vmax.f32 %v892, %v893
      %v895 = vrot.slane %v894, 2
      %v896 = vmax.f32 %v894, %v895
      %v897 = vrot.slane %v896, 1
      %v898 = vmax.f32 %v896, %v897
      %v899 = vsel %vm218, %v155, -inf
      %v900 = vrot.slane %v899, 4
      %v901 = vmax.f32 %v899, %v900
      %v902 = vrot.slane %v901, 2
      %v903 = vmax.f32 %v901, %v902
      %v904 = vrot.slane %v903, 1
      %v905 = vmax.f32 %v903, %v904
      %v906 = vsel %vm218, %v156, -inf
      %v907 = vrot.slane %v906, 4
      %v908 = vmax.f32 %v906, %v907
      %v909 = vrot.slane %v908, 2
      %v910 = vmax.f32 %v908, %v909
      %v911 = vrot.slane %v910, 1
      %v912 = vmax.f32 %v910, %v911
      %v913 = vsel %vm218, %v157, -inf
      %v914 = vrot.slane %v913, 4
      %v915 = vmax.f32 %v913, %v914
      %v916 = vrot.slane %v915, 2
      %v917 = vmax.f32 %v915, %v916
      %v918 = vrot.slane %v917, 1
      %v919 = vmax.f32 %v917, %v918
      %v920 = vsel %vm218, %v158, -inf
      %v921 = vrot.slane %v920, 4
      %v922 = vmax.f32 %v920, %v921
      %v923 = vrot.slane %v922, 2
      %v924 = vmax.f32 %v922, %v923
      %v925 = vrot.slane %v924, 1
      %v926 = vmax.f32 %v924, %v925
      %v927 = vsel %vm218, %v159, -inf
      %v928 = vrot.slane %v927, 4
      %v929 = vmax.f32 %v927, %v928
      %v930 = vrot.slane %v929, 2
      %v931 = vmax.f32 %v929, %v930
      %v932 = vrot.slane %v931, 1
      %v933 = vmax.f32 %v931, %v932
      %v934 = vsel %vm218, %v160, -inf
      %v935 = vrot.slane %v934, 4
      %v936 = vmax.f32 %v934, %v935
      %v937 = vrot.slane %v936, 2
      %v938 = vmax.f32 %v936, %v937
      %v939 = vrot.slane %v938, 1
      %v940 = vmax.f32 %v938, %v939
      %v941 = vsel %vm218, %v161, -inf
      %v942 = vrot.slane %v941, 4
      %v943 = vmax.f32 %v941, %v942
      %v944 = vrot.slane %v943, 2
      %v945 = vmax.f32 %v943, %v944
      %v946 = vrot.slane %v945, 1
      %v947 = vmax.f32 %v945, %v946
      %v948 = vsel %vm218, %v162, -inf
      %v949 = vrot.slane %v948, 4
      %v950 = vmax.f32 %v948, %v949
      %v951 = vrot.slane %v950, 2
      %v952 = vmax.f32 %v950, %v951
      %v953 = vrot.slane %v952, 1
      %v954 = vmax.f32 %v952, %v953
      %v955 = vsel %vm218, %v163, -inf
      %v956 = vrot.slane %v955, 4
      %v957 = vmax.f32 %v955, %v956
      %v958 = vrot.slane %v957, 2
      %v959 = vmax.f32 %v957, %v958
      %v960 = vrot.slane %v959, 1
      %v961 = vmax.f32 %v959, %v960
      %v962 = vsel %vm218, %v164, -inf
      %v963 = vrot.slane %v962, 4
      %v964 = vmax.f32 %v962, %v963
      %v965 = vrot.slane %v964, 2
      %v966 = vmax.f32 %v964, %v965
      %v967 = vrot.slane %v966, 1
      %v968 = vmax.f32 %v966, %v967
      %v969 = vsel %vm218, %v165, -inf
      %v970 = vrot.slane %v969, 4
      %v971 = vmax.f32 %v969, %v970
      %v972 = vrot.slane %v971, 2
      %v973 = vmax.f32 %v971, %v972
      %v974 = vrot.slane %v973, 1
      %v975 = vmax.f32 %v973, %v974
      %v976 = vsel %vm218, %v166, -inf
      %v977 = vrot.slane %v976, 4
      %v978 = vmax.f32 %v976, %v977
      %v979 = vrot.slane %v978, 2
      %v980 = vmax.f32 %v978, %v979
      %v981 = vrot.slane %v980, 1
      %v982 = vmax.f32 %v980, %v981
      %v983 = vsel %vm218, %v167, -inf
      %v984 = vrot.slane %v983, 4
      %v985 = vmax.f32 %v983, %v984
      %v986 = vrot.slane %v985, 2
      %v987 = vmax.f32 %v985, %v986
      %v988 = vrot.slane %v987, 1
      %v989 = vmax.f32 %v987, %v988
      %v990 = vsel %vm218, %v168, -inf
      %v991 = vrot.slane %v990, 4
      %v992 = vmax.f32 %v990, %v991
      %v993 = vrot.slane %v992, 2
      %v994 = vmax.f32 %v992, %v993
      %v995 = vrot.slane %v994, 1
      %v996 = vmax.f32 %v994, %v995
      %v997 = vsel %vm218, %v169, -inf
      %v998 = vrot.slane %v997, 4
      %v999 = vmax.f32 %v997, %v998
      %v1000 = vrot.slane %v999, 2
      %v1001 = vmax.f32 %v999, %v1000
      %v1002 = vrot.slane %v1001, 1
      %v1003 = vmax.f32 %v1001, %v1002
      %v1004 = vsel %vm218, %v170, -inf
      %v1005 = vrot.slane %v1004, 4
      %v1006 = vmax.f32 %v1004, %v1005
      %v1007 = vrot.slane %v1006, 2
      %v1008 = vmax.f32 %v1006, %v1007
      %v1009 = vrot.slane %v1008, 1
      %v1010 = vmax.f32 %v1008, %v1009
      %v1011 = vsel %vm218, %v171, -inf
      %v1012 = vrot.slane %v1011, 4
      %v1013 = vmax.f32 %v1011, %v1012
      %v1014 = vrot.slane %v1013, 2
      %v1015 = vmax.f32 %v1013, %v1014
      %v1016 = vrot.slane %v1015, 1
      %v1017 = vmax.f32 %v1015, %v1016
      %v1018 = vsel %vm218, %v172, -inf
      %v1019 = vrot.slane %v1018, 4
      %v1020 = vmax.f32 %v1018, %v1019
      %v1021 = vrot.slane %v1020, 2
      %v1022 = vmax.f32 %v1020, %v1021
      %v1023 = vrot.slane %v1022, 1
      %v1024 = vmax.f32 %v1022, %v1023
      %v1025 = vsel %vm218, %v173, -inf
      %v1026 = vrot.slane %v1025, 4
      %v1027 = vmax.f32 %v1025, %v1026
      %v1028 = vrot.slane %v1027, 2
      %v1029 = vmax.f32 %v1027, %v1028
      %v1030 = vrot.slane %v1029, 1
      %v1031 = vmax.f32 %v1029, %v1030
      %v1032 = vsel %vm218, %v174, -inf
      %v1033 = vrot.slane %v1032, 4
      %v1034 = vmax.f32 %v1032, %v1033
      %v1035 = vrot.slane %v1034, 2
      %v1036 = vmax.f32 %v1034, %v1035
      %v1037 = vrot.slane %v1036, 1
      %v1038 = vmax.f32 %v1036, %v1037
      %v1039 = vsel %vm218, %v175, -inf
      %v1040 = vrot.slane %v1039, 4
      %v1041 = vmax.f32 %v1039, %v1040
      %v1042 = vrot.slane %v1041, 2
      %v1043 = vmax.f32 %v1041, %v1042
      %v1044 = vrot.slane %v1043, 1
      %v1045 = vmax.f32 %v1043, %v1044
      %v1046 = vsel %vm218, %v176, -inf
      %v1047 = vrot.slane %v1046, 4
      %v1048 = vmax.f32 %v1046, %v1047
      %v1049 = vrot.slane %v1048, 2
      %v1050 = vmax.f32 %v1048, %v1049
      %v1051 = vrot.slane %v1050, 1
      %v1052 = vmax.f32 %v1050, %v1051
      %v1053 = vsel %vm218, %v177, -inf
      %v1054 = vrot.slane %v1053, 4
      %v1055 = vmax.f32 %v1053, %v1054
      %v1056 = vrot.slane %v1055, 2
      %v1057 = vmax.f32 %v1055, %v1056
      %v1058 = vrot.slane %v1057, 1
      %v1059 = vmax.f32 %v1057, %v1058
      %v1060 = vsel %vm218, %v178, -inf
      %v1061 = vrot.slane %v1060, 4
      %v1062 = vmax.f32 %v1060, %v1061
      %v1063 = vrot.slane %v1062, 2
      %v1064 = vmax.f32 %v1062, %v1063
      %v1065 = vrot.slane %v1064, 1
      %v1066 = vmax.f32 %v1064, %v1065
      %v1067 = vsel %vm218, %v179, -inf
      %v1068 = vrot.slane %v1067, 4
      %v1069 = vmax.f32 %v1067, %v1068
      %v1070 = vrot.slane %v1069, 2
      %v1071 = vmax.f32 %v1069, %v1070
      %v1072 = vrot.slane %v1071, 1
      %v1073 = vmax.f32 %v1071, %v1072
      %v1074 = vsel %vm218, %v180, -inf
      %v1075 = vrot.slane %v1074, 4
      %v1076 = vmax.f32 %v1074, %v1075
      %v1077 = vrot.slane %v1076, 2
      %v1078 = vmax.f32 %v1076, %v1077
      %v1079 = vrot.slane %v1078, 1
      %v1080 = vmax.f32 %v1078, %v1079
      %v1081 = vsel %vm218, %v181, -inf
      %v1082 = vrot.slane %v1081, 4
      %v1083 = vmax.f32 %v1081, %v1082
      %v1084 = vrot.slane %v1083, 2
      %v1085 = vmax.f32 %v1083, %v1084
      %v1086 = vrot.slane %v1085, 1
      %v1087 = vmax.f32 %v1085, %v1086
      %v1088 = vsel %vm218, %v182, -inf
      %v1089 = vrot.slane %v1088, 4
      %v1090 = vmax.f32 %v1088, %v1089
      %v1091 = vrot.slane %v1090, 2
      %v1092 = vmax.f32 %v1090, %v1091
      %v1093 = vrot.slane %v1092, 1
      %v1094 = vmax.f32 %v1092, %v1093
      %v1095 = vsel %vm218, %v183, -inf
      %v1096 = vrot.slane %v1095, 4
      %v1097 = vmax.f32 %v1095, %v1096
      %v1098 = vrot.slane %v1097, 2
      %v1099 = vmax.f32 %v1097, %v1098
      %v1100 = vrot.slane %v1099, 1
      %v1101 = vmax.f32 %v1099, %v1100
      %v1102 = vsel %vm218, %v184, -inf
      %v1103 = vrot.slane %v1102, 4
      %v1104 = vmax.f32 %v1102, %v1103
      %v1105 = vrot.slane %v1104, 2
      %v1106 = vmax.f32 %v1104, %v1105
      %v1107 = vrot.slane %v1106, 1
      %v1108 = vmax.f32 %v1106, %v1107
      %v1109 = vsel %vm218, %v185, -inf
      %v1110 = vrot.slane %v1109, 4
      %v1111 = vmax.f32 %v1109, %v1110
      %v1112 = vrot.slane %v1111, 2
      %v1113 = vmax.f32 %v1111, %v1112
      %v1114 = vrot.slane %v1113, 1
      %v1115 = vmax.f32 %v1113, %v1114
      %v1116 = vsel %vm218, %v186, -inf
      %v1117 = vrot.slane %v1116, 4
      %v1118 = vmax.f32 %v1116, %v1117
      %v1119 = vrot.slane %v1118, 2
      %v1120 = vmax.f32 %v1118, %v1119
      %v1121 = vrot.slane %v1120, 1
      %v1122 = vmax.f32 %v1120, %v1121
      %v1123 = vsel %vm218, %v187, -inf
      %v1124 = vrot.slane %v1123, 4
      %v1125 = vmax.f32 %v1123, %v1124
      %v1126 = vrot.slane %v1125, 2
      %v1127 = vmax.f32 %v1125, %v1126
      %v1128 = vrot.slane %v1127, 1
      %v1129 = vmax.f32 %v1127, %v1128
      %v1130 = vsel %vm218, %v188, -inf
      %v1131 = vrot.slane %v1130, 4
      %v1132 = vmax.f32 %v1130, %v1131
      %v1133 = vrot.slane %v1132, 2
      %v1134 = vmax.f32 %v1132, %v1133
      %v1135 = vrot.slane %v1134, 1
      %v1136 = vmax.f32 %v1134, %v1135
      %v1137 = vsel %vm218, %v189, -inf
      %v1138 = vrot.slane %v1137, 4
      %v1139 = vmax.f32 %v1137, %v1138
      %v1140 = vrot.slane %v1139, 2
      %v1141 = vmax.f32 %v1139, %v1140
      %v1142 = vrot.slane %v1141, 1
      %v1143 = vmax.f32 %v1141, %v1142
      %v1144 = vsel %vm218, %v190, -inf
      %v1145 = vrot.slane %v1144, 4
      %v1146 = vmax.f32 %v1144, %v1145
      %v1147 = vrot.slane %v1146, 2
      %v1148 = vmax.f32 %v1146, %v1147
      %v1149 = vrot.slane %v1148, 1
      %v1150 = vmax.f32 %v1148, %v1149
      %v1151 = vsel %vm218, %v191, -inf
      %v1152 = vrot.slane %v1151, 4
      %v1153 = vmax.f32 %v1151, %v1152
      %v1154 = vrot.slane %v1153, 2
      %v1155 = vmax.f32 %v1153, %v1154
      %v1156 = vrot.slane %v1155, 1
      %v1157 = vmax.f32 %v1155, %v1156
      %v1158 = vsel %vm218, %v192, -inf
      %v1159 = vrot.slane %v1158, 4
      %v1160 = vmax.f32 %v1158, %v1159
      %v1161 = vrot.slane %v1160, 2
      %v1162 = vmax.f32 %v1160, %v1161
      %v1163 = vrot.slane %v1162, 1
      %v1164 = vmax.f32 %v1162, %v1163
      %v1165 = vsel %vm218, %v193, -inf
      %v1166 = vrot.slane %v1165, 4
      %v1167 = vmax.f32 %v1165, %v1166
      %v1168 = vrot.slane %v1167, 2
      %v1169 = vmax.f32 %v1167, %v1168
      %v1170 = vrot.slane %v1169, 1
      %v1171 = vmax.f32 %v1169, %v1170
      %v1172 = vsel %vm218, %v194, -inf
      %v1173 = vrot.slane %v1172, 4
      %v1174 = vmax.f32 %v1172, %v1173
      %v1175 = vrot.slane %v1174, 2
      %v1176 = vmax.f32 %v1174, %v1175
      %v1177 = vrot.slane %v1176, 1
      %v1178 = vmax.f32 %v1176, %v1177
      %v1179 = vsel %vm218, %v195, -inf
      %v1180 = vrot.slane %v1179, 4
      %v1181 = vmax.f32 %v1179, %v1180
      %v1182 = vrot.slane %v1181, 2
      %v1183 = vmax.f32 %v1181, %v1182
      %v1184 = vrot.slane %v1183, 1
      %v1185 = vmax.f32 %v1183, %v1184
      %v1186 = vsel %vm218, %v196, -inf
      %v1187 = vrot.slane %v1186, 4
      %v1188 = vmax.f32 %v1186, %v1187
      %v1189 = vrot.slane %v1188, 2
      %v1190 = vmax.f32 %v1188, %v1189
      %v1191 = vrot.slane %v1190, 1
      %v1192 = vmax.f32 %v1190, %v1191
      %v1193 = vsel %vm218, %v197, -inf
      %v1194 = vrot.slane %v1193, 4
      %v1195 = vmax.f32 %v1193, %v1194
      %v1196 = vrot.slane %v1195, 2
      %v1197 = vmax.f32 %v1195, %v1196
      %v1198 = vrot.slane %v1197, 1
      %v1199 = vmax.f32 %v1197, %v1198
      %v1200 = vsel %vm218, %v198, -inf
      %v1201 = vrot.slane %v1200, 4
      %v1202 = vmax.f32 %v1200, %v1201
      %v1203 = vrot.slane %v1202, 2
      %v1204 = vmax.f32 %v1202, %v1203
      %v1205 = vrot.slane %v1204, 1
      %v1206 = vmax.f32 %v1204, %v1205
      %v1207 = vsel %vm218, %v199, -inf
      %v1208 = vrot.slane %v1207, 4
      %v1209 = vmax.f32 %v1207, %v1208
      %v1210 = vrot.slane %v1209, 2
      %v1211 = vmax.f32 %v1209, %v1210
      %v1212 = vrot.slane %v1211, 1
      %v1213 = vmax.f32 %v1211, %v1212
      %v1214 = vsel %vm218, %v200, -inf
      %v1215 = vrot.slane %v1214, 4
      %v1216 = vmax.f32 %v1214, %v1215
      %v1217 = vrot.slane %v1216, 2
      %v1218 = vmax.f32 %v1216, %v1217
      %v1219 = vrot.slane %v1218, 1
      %v1220 = vmax.f32 %v1218, %v1219
      %v1221 = vsel %vm218, %v201, -inf
      %v1222 = vrot.slane %v1221, 4
      %v1223 = vmax.f32 %v1221, %v1222
      %v1224 = vrot.slane %v1223, 2
      %v1225 = vmax.f32 %v1223, %v1224
      %v1226 = vrot.slane %v1225, 1
      %v1227 = vmax.f32 %v1225, %v1226
      %v1228 = vsel %vm218, %v202, -inf
      %v1229 = vrot.slane %v1228, 4
      %v1230 = vmax.f32 %v1228, %v1229
      %v1231 = vrot.slane %v1230, 2
      %v1232 = vmax.f32 %v1230, %v1231
      %v1233 = vrot.slane %v1232, 1
      %v1234 = vmax.f32 %v1232, %v1233
      %v1235 = vsel %vm218, %v203, -inf
      %v1236 = vrot.slane %v1235, 4
      %v1237 = vmax.f32 %v1235, %v1236
      %v1238 = vrot.slane %v1237, 2
      %v1239 = vmax.f32 %v1237, %v1238
      %v1240 = vrot.slane %v1239, 1
      %v1241 = vmax.f32 %v1239, %v1240
      %v1242 = vsel %vm218, %v204, -inf
      %v1243 = vrot.slane %v1242, 4
      %v1244 = vmax.f32 %v1242, %v1243
      %v1245 = vrot.slane %v1244, 2
      %v1246 = vmax.f32 %v1244, %v1245
      %v1247 = vrot.slane %v1246, 1
      %v1248 = vmax.f32 %v1246, %v1247
      %v1249 = vsel %vm218, %v205, -inf
      %v1250 = vrot.slane %v1249, 4
      %v1251 = vmax.f32 %v1249, %v1250
      %v1252 = vrot.slane %v1251, 2
      %v1253 = vmax.f32 %v1251, %v1252
      %v1254 = vrot.slane %v1253, 1
      %v1255 = vmax.f32 %v1253, %v1254
      %v1256 = vsel %vm218, %v206, -inf
      %v1257 = vrot.slane %v1256, 4
      %v1258 = vmax.f32 %v1256, %v1257
      %v1259 = vrot.slane %v1258, 2
      %v1260 = vmax.f32 %v1258, %v1259
      %v1261 = vrot.slane %v1260, 1
      %v1262 = vmax.f32 %v1260, %v1261
      %v1263 = vsel %vm218, %v207, -inf
      %v1264 = vrot.slane %v1263, 4
      %v1265 = vmax.f32 %v1263, %v1264
      %v1266 = vrot.slane %v1265, 2
      %v1267 = vmax.f32 %v1265, %v1266
      %v1268 = vrot.slane %v1267, 1
      %v1269 = vmax.f32 %v1267, %v1268
      %v1270 = vsel %vm218, %v208, -inf
      %v1271 = vrot.slane %v1270, 4
      %v1272 = vmax.f32 %v1270, %v1271
      %v1273 = vrot.slane %v1272, 2
      %v1274 = vmax.f32 %v1272, %v1273
      %v1275 = vrot.slane %v1274, 1
      %v1276 = vmax.f32 %v1274, %v1275
      %v1277 = vsel %vm218, %v209, -inf
      %v1278 = vrot.slane %v1277, 4
      %v1279 = vmax.f32 %v1277, %v1278
      %v1280 = vrot.slane %v1279, 2
      %v1281 = vmax.f32 %v1279, %v1280
      %v1282 = vrot.slane %v1281, 1
      %v1283 = vmax.f32 %v1281, %v1282
      %v1284 = vsel %vm218, %v210, -inf
      %v1285 = vrot.slane %v1284, 4
      %v1286 = vmax.f32 %v1284, %v1285
      %v1287 = vrot.slane %v1286, 2
      %v1288 = vmax.f32 %v1286, %v1287
      %v1289 = vrot.slane %v1288, 1
      %v1290 = vmax.f32 %v1288, %v1289
      %v1291 = vsel %vm218, %v211, -inf
      %v1292 = vrot.slane %v1291, 4
      %v1293 = vmax.f32 %v1291, %v1292
      %v1294 = vrot.slane %v1293, 2
      %v1295 = vmax.f32 %v1293, %v1294
      %v1296 = vrot.slane %v1295, 1
      %v1297 = vmax.f32 %v1295, %v1296
      %v1298 = vsel %vm218, %v212, -inf
      %v1299 = vrot.slane %v1298, 4
      %v1300 = vmax.f32 %v1298, %v1299
      %v1301 = vrot.slane %v1300, 2
      %v1302 = vmax.f32 %v1300, %v1301
      %v1303 = vrot.slane %v1302, 1
      %v1304 = vmax.f32 %v1302, %v1303
      %v1305 = vsel %vm218, %v213, -inf
      %v1306 = vrot.slane %v1305, 4
      %v1307 = vmax.f32 %v1305, %v1306
      %v1308 = vrot.slane %v1307, 2
      %v1309 = vmax.f32 %v1307, %v1308
      %v1310 = vrot.slane %v1309, 1
      %v1311 = vmax.f32 %v1309, %v1310
      %v1312 = vsel %vm218, %v214, -inf
      %v1313 = vrot.slane %v1312, 4
      %v1314 = vmax.f32 %v1312, %v1313
      %v1315 = vrot.slane %v1314, 2
      %v1316 = vmax.f32 %v1314, %v1315
      %v1317 = vrot.slane %v1316, 1
      %v1318 = vmax.f32 %v1316, %v1317
      %v1319 = vsel %vm218, %v215, -inf
      %v1320 = vrot.slane %v1319, 4
      %v1321 = vmax.f32 %v1319, %v1320
      %v1322 = vrot.slane %v1321, 2
      %v1323 = vmax.f32 %v1321, %v1322
      %v1324 = vrot.slane %v1323, 1
      %v1325 = vmax.f32 %v1323, %v1324
      %v1326 = vsel %vm218, %v216, -inf
      %v1327 = vrot.slane %v1326, 4
      %v1328 = vmax.f32 %v1326, %v1327
      %v1329 = vrot.slane %v1328, 2
      %v1330 = vmax.f32 %v1328, %v1329
      %v1331 = vrot.slane %v1330, 1
      %v1332 = vmax.f32 %v1330, %v1331
      %v1333 = vsel %vm218, %v217, -inf
      %v1334 = vrot.slane %v1333, 4
      %v1335 = vmax.f32 %v1333, %v1334
      %v1336 = vrot.slane %v1335, 2
      %v1337 = vmax.f32 %v1335, %v1336
      %v1338 = vrot.slane %v1337, 1
      %v1339 = vmax.f32 %v1337, %v1338
      %1340 = vst.msk [vmem:[#allocation3] sm:$0x1] %vm779, %v856
      %1341 = vst.msk [vmem:[#allocation3 + $0x8] sm:$0x1] %vm779, %v863
      %1342 = vst.msk [vmem:[#allocation3 + $0x10] sm:$0x1] %vm779, %v870
      %1343 = vst.msk [vmem:[#allocation3 + $0x18] sm:$0x1] %vm779, %v877
      %1344 = vst.msk [vmem:[#allocation3 + $0x20] sm:$0x1] %vm779, %v884
      %1345 = vst.msk [vmem:[#allocation3 + $0x28] sm:$0x1] %vm779, %v891
      %1346 = vst.msk [vmem:[#allocation3 + $0x30] sm:$0x1] %vm779, %v898
      %1347 = vst.msk [vmem:[#allocation3 + $0x38] sm:$0x1] %vm779, %v905
      %1348 = vst.msk [vmem:[#allocation3 + $0x40] sm:$0x1] %vm779, %v912
      %1349 = vst.msk [vmem:[#allocation3 + $0x48] sm:$0x1] %vm779, %v919
      %1350 = vst.msk [vmem:[#allocation3 + $0x50] sm:$0x1] %vm779, %v926
      %1351 = vst.msk [vmem:[#allocation3 + $0x58] sm:$0x1] %vm779, %v933
      %1352 = vst.msk [vmem:[#allocation3 + $0x60] sm:$0x1] %vm779, %v940
      %1353 = vst.msk [vmem:[#allocation3 + $0x68] sm:$0x1] %vm779, %v947
      %1354 = vst.msk [vmem:[#allocation3 + $0x70] sm:$0x1] %vm779, %v954
      %1355 = vst.msk [vmem:[#allocation3 + $0x78] sm:$0x1] %vm779, %v961
      %1356 = vst.msk [vmem:[#allocation3 + $0x80] sm:$0x1] %vm779, %v968
      %1357 = vst.msk [vmem:[#allocation3 + $0x88] sm:$0x1] %vm779, %v975
      %1358 = vst.msk [vmem:[#allocation3 + $0x90] sm:$0x1] %vm779, %v982
      %1359 = vst.msk [vmem:[#allocation3 + $0x98] sm:$0x1] %vm779, %v989
      %1360 = vst.msk [vmem:[#allocation3 + $0xa0] sm:$0x1] %vm779, %v996
      %1361 = vst.msk [vmem:[#allocation3 + $0xa8] sm:$0x1] %vm779, %v1003
      %1362 = vst.msk [vmem:[#allocation3 + $0xb0] sm:$0x1] %vm779, %v1010
      %1363 = vst.msk [vmem:[#allocation3 + $0xb8] sm:$0x1] %vm779, %v1017
      %1364 = vst.msk [vmem:[#allocation3 + $0xc0] sm:$0x1] %vm779, %v1024
      %1365 = vst.msk [vmem:[#allocation3 + $0xc8] sm:$0x1] %vm779, %v1031
      %1366 = vst.msk [vmem:[#allocation3 + $0xd0] sm:$0x1] %vm779, %v1038
      %1367 = vst.msk [vmem:[#allocation3 + $0xd8] sm:$0x1] %vm779, %v1045
      %1368 = vst.msk [vmem:[#allocation3 + $0xe0] sm:$0x1] %vm779, %v1052
      %1369 = vst.msk [vmem:[#allocation3 + $0xe8] sm:$0x1] %vm779, %v1059
      %1370 = vst.msk [vmem:[#allocation3 + $0xf0] sm:$0x1] %vm779, %v1066
      %1371 = vst.msk [vmem:[#allocation3 + $0xf8] sm:$0x1] %vm779, %v1073
      %1372 = vst.msk [vmem:[#allocation3 + $0x100] sm:$0x1] %vm779, %v1080
      %1373 = vst.msk [vmem:[#allocation3 + $0x108] sm:$0x1] %vm779, %v1087
      %1374 = vst.msk [vmem:[#allocation3 + $0x110] sm:$0x1] %vm779, %v1094
      %1375 = vst.msk [vmem:[#allocation3 + $0x118] sm:$0x1] %vm779, %v1101
      %1376 = vst.msk [vmem:[#allocation3 + $0x120] sm:$0x1] %vm779, %v1108
      %1377 = vst.msk [vmem:[#allocation3 + $0x128] sm:$0x1] %vm779, %v1115
      %1378 = vst.msk [vmem:[#allocation3 + $0x130] sm:$0x1] %vm779, %v1122
      %1379 = vst.msk [vmem:[#allocation3 + $0x138] sm:$0x1] %vm779, %v1129
      %1380 = vst.msk [vmem:[#allocation3 + $0x140] sm:$0x1] %vm779, %v1136
      %1381 = vst.msk [vmem:[#allocation3 + $0x148] sm:$0x1] %vm779, %v1143
      %1382 = vst.msk [vmem:[#allocation3 + $0x150] sm:$0x1] %vm779, %v1150
      %1383 = vst.msk [vmem:[#allocation3 + $0x158] sm:$0x1] %vm779, %v1157
      %1384 = vst.msk [vmem:[#allocation3 + $0x160] sm:$0x1] %vm779, %v1164
      %1385 = vst.msk [vmem:[#allocation3 + $0x168] sm:$0x1] %vm779, %v1171
      %1386 = vst.msk [vmem:[#allocation3 + $0x170] sm:$0x1] %vm779, %v1178
      %1387 = vst.msk [vmem:[#allocation3 + $0x178] sm:$0x1] %vm779, %v1185
      %1388 = vst.msk [vmem:[#allocation3 + $0x180] sm:$0x1] %vm779, %v1192
      %1389 = vst.msk [vmem:[#allocation3 + $0x188] sm:$0x1] %vm779, %v1199
      %1390 = vst.msk [vmem:[#allocation3 + $0x190] sm:$0x1] %vm779, %v1206
      %1391 = vst.msk [vmem:[#allocation3 + $0x198] sm:$0x1] %vm779, %v1213
      %1392 = vst.msk [vmem:[#allocation3 + $0x1a0] sm:$0x1] %vm779, %v1220
      %1393 = vst.msk [vmem:[#allocation3 + $0x1a8] sm:$0x1] %vm779, %v1227
      %1394 = vst.msk [vmem:[#allocation3 + $0x1b0] sm:$0x1] %vm779, %v1234
      %1395 = vst.msk [vmem:[#allocation3 + $0x1b8] sm:$0x1] %vm779, %v1241
      %1396 = vst.msk [vmem:[#allocation3 + $0x1c0] sm:$0x1] %vm779, %v1248
      %1397 = vst.msk [vmem:[#allocation3 + $0x1c8] sm:$0x1] %vm779, %v1255
      %1398 = vst.msk [vmem:[#allocation3 + $0x1d0] sm:$0x1] %vm779, %v1262
      %1399 = vst.msk [vmem:[#allocation3 + $0x1d8] sm:$0x1] %vm779, %v1269
      %1400 = vst.msk [vmem:[#allocation3 + $0x1e0] sm:$0x1] %vm779, %v1276
      %1401 = vst.msk [vmem:[#allocation3 + $0x1e8] sm:$0x1] %vm779, %v1283
      %1402 = vst.msk [vmem:[#allocation3 + $0x1f0] sm:$0x1] %vm779, %v1290
      %1403 = vst.msk [vmem:[#allocation3 + $0x1f8] sm:$0x1] %vm779, %v1297
      %1404 = vst.msk [vmem:[#allocation3 + $0x200] sm:$0x1] %vm779, %v1304
      %1405 = vst.msk [vmem:[#allocation3 + $0x208] sm:$0x1] %vm779, %v1311
      %1406 = vst.msk [vmem:[#allocation3 + $0x210] sm:$0x1] %vm779, %v1318
      %1407 = vst.msk [vmem:[#allocation3 + $0x218] sm:$0x1] %vm779, %v1325
      %1408 = vst.msk [vmem:[#allocation3 + $0x220] sm:$0x1] %vm779, %v1332
      %1409 = vst.msk [vmem:[#allocation3 + $0x228] sm:$0x1] %vm779, %v1339
      %v1410 = vld [vmem:[%s139 + $0x3] sm:$0xf]
      %v1411 = vld [vmem:[%s139 + $0x13] sm:$0xf]
      %v1412 = vld [vmem:[%s139 + $0x23] sm:$0xf]
      %v1413 = vld [vmem:[%s139 + $0x33] sm:$0xf]
      %v1414 = vld [vmem:[%s139 + $0x43] sm:$0xf]
      %v1415 = vld [vmem:[%s139 + $0x53] sm:$0xf]
      %v1416 = vld [vmem:[%s139 + $0x63] sm:$0xf]
      %v1417 = vld [vmem:[%s139 + $0x73] sm:$0xf]
      %v1418 = vld [vmem:[%s139 + $0x83] sm:$0xf]
      %v1419 = vld [vmem:[%s139 + $0x93] sm:$0xf]
      %v1420 = vld [vmem:[%s139 + $0xa3] sm:$0xf]
      %v1421 = vld [vmem:[%s139 + $0xb3] sm:$0xf]
      %v1422 = vld [vmem:[%s139 + $0xc3] sm:$0xf]
      %v1423 = vld [vmem:[%s139 + $0xd3] sm:$0xf]
      %v1424 = vld [vmem:[%s139 + $0xe3] sm:$0xf]
      %v1425 = vld [vmem:[%s139 + $0xf3] sm:$0xf]
      %v1426 = vld [vmem:[%s139 + $0x103] sm:$0xf]
      %v1427 = vld [vmem:[%s139 + $0x113] sm:$0xf]
      %v1428 = vld [vmem:[%s139 + $0x123] sm:$0xf]
      %v1429 = vld [vmem:[%s139 + $0x133] sm:$0xf]
      %v1430 = vld [vmem:[%s139 + $0x143] sm:$0xf]
      %v1431 = vld [vmem:[%s139 + $0x153] sm:$0xf]
      %v1432 = vld [vmem:[%s139 + $0x163] sm:$0xf]
      %v1433 = vld [vmem:[%s139 + $0x173] sm:$0xf]
      %v1434 = vld [vmem:[%s139 + $0x183] sm:$0xf]
      %v1435 = vld [vmem:[%s139 + $0x193] sm:$0xf]
      %v1436 = vld [vmem:[%s139 + $0x1a3] sm:$0xf]
      %v1437 = vld [vmem:[%s139 + $0x1b3] sm:$0xf]
      %v1438 = vld [vmem:[%s139 + $0x1c3] sm:$0xf]
      %v1439 = vld [vmem:[%s139 + $0x1d3] sm:$0xf]
      %v1440 = vld [vmem:[%s139 + $0x1e3] sm:$0xf]
      %v1441 = vld [vmem:[%s139 + $0x1f3] sm:$0xf]
      %v1442 = vld [vmem:[%s139 + $0x203] sm:$0xf]
      %v1443 = vld [vmem:[%s139 + $0x213] sm:$0xf]
      %v1444 = vld [vmem:[%s139 + $0x223] sm:$0xf]
      %v1445 = vld [vmem:[%s139 + $0x233] sm:$0xf]
      %v1446 = vld [vmem:[%s139 + $0x243] sm:$0xf]
      %v1447 = vld [vmem:[%s139 + $0x253] sm:$0xf]
      %v1448 = vld [vmem:[%s139 + $0x263] sm:$0xf]
      %v1449 = vld [vmem:[%s139 + $0x273] sm:$0xf]
      %v1450 = vld [vmem:[%s139 + $0x283] sm:$0xf]
      %v1451 = vld [vmem:[%s139 + $0x293] sm:$0xf]
      %v1452 = vld [vmem:[%s139 + $0x2a3] sm:$0xf]
      %v1453 = vld [vmem:[%s139 + $0x2b3] sm:$0xf]
      %v1454 = vld [vmem:[%s139 + $0x2c3] sm:$0xf]
      %v1455 = vld [vmem:[%s139 + $0x2d3] sm:$0xf]
      %v1456 = vld [vmem:[%s139 + $0x2e3] sm:$0xf]
      %v1457 = vld [vmem:[%s139 + $0x2f3] sm:$0xf]
      %v1458 = vld [vmem:[%s139 + $0x303] sm:$0xf]
      %v1459 = vld [vmem:[%s139 + $0x313] sm:$0xf]
      %v1460 = vld [vmem:[%s139 + $0x323] sm:$0xf]
      %v1461 = vld [vmem:[%s139 + $0x333] sm:$0xf]
      %v1462 = vld [vmem:[%s139 + $0x343] sm:$0xf]
      %v1463 = vld [vmem:[%s139 + $0x353] sm:$0xf]
      %v1464 = vld [vmem:[%s139 + $0x363] sm:$0xf]
      %v1465 = vld [vmem:[%s139 + $0x373] sm:$0xf]
      %v1466 = vld [vmem:[%s139 + $0x383] sm:$0xf]
      %v1467 = vld [vmem:[%s139 + $0x393] sm:$0xf]
      %v1468 = vld [vmem:[%s139 + $0x3a3] sm:$0xf]
      %v1469 = vld [vmem:[%s139 + $0x3b3] sm:$0xf]
      %v1470 = vld [vmem:[%s139 + $0x3c3] sm:$0xf]
      %v1471 = vld [vmem:[%s139 + $0x3d3] sm:$0xf]
      %v1472 = vld [vmem:[%s139 + $0x3e3] sm:$0xf]
      %v1473 = vld [vmem:[%s139 + $0x3f3] sm:$0xf]
      %v1474 = vld [vmem:[%s139 + $0x403] sm:$0xf]
      %v1475 = vld [vmem:[%s139 + $0x413] sm:$0xf]
      %v1476 = vld [vmem:[%s139 + $0x423] sm:$0xf]
      %v1477 = vld [vmem:[%s139 + $0x433] sm:$0xf]
      %v1478 = vld [vmem:[%s139 + $0x443] sm:$0xf]
      %v1479 = vld [vmem:[%s139 + $0x453] sm:$0xf]
      %v1480 = vsel %vm218, %v1410, 0.0
      %v1481 = vrot.slane %v1480, 4
      %v1482 = vadd.f32 %v1480, %v1481
      %v1483 = vrot.slane %v1482, 2
      %v1484 = vadd.f32 %v1482, %v1483
      %v1485 = vrot.slane %v1484, 1
      %v1486 = vadd.f32 %v1484, %v1485
      %v1487 = vsel %vm218, %v1411, 0.0
      %v1488 = vrot.slane %v1487, 4
      %v1489 = vadd.f32 %v1487, %v1488
      %v1490 = vrot.slane %v1489, 2
      %v1491 = vadd.f32 %v1489, %v1490
      %v1492 = vrot.slane %v1491, 1
      %v1493 = vadd.f32 %v1491, %v1492
      %v1494 = vsel %vm218, %v1412, 0.0
      %v1495 = vrot.slane %v1494, 4
      %v1496 = vadd.f32 %v1494, %v1495
      %v1497 = vrot.slane %v1496, 2
      %v1498 = vadd.f32 %v1496, %v1497
      %v1499 = vrot.slane %v1498, 1
      %v1500 = vadd.f32 %v1498, %v1499
      %v1501 = vsel %vm218, %v1413, 0.0
      %v1502 = vrot.slane %v1501, 4
      %v1503 = vadd.f32 %v1501, %v1502
      %v1504 = vrot.slane %v1503, 2
      %v1505 = vadd.f32 %v1503, %v1504
      %v1506 = vrot.slane %v1505, 1
      %v1507 = vadd.f32 %v1505, %v1506
      %v1508 = vsel %vm218, %v1414, 0.0
      %v1509 = vrot.slane %v1508, 4
      %v1510 = vadd.f32 %v1508, %v1509
      %v1511 = vrot.slane %v1510, 2
      %v1512 = vadd.f32 %v1510, %v1511
      %v1513 = vrot.slane %v1512, 1
      %v1514 = vadd.f32 %v1512, %v1513
      %v1515 = vsel %vm218, %v1415, 0.0
      %v1516 = vrot.slane %v1515, 4
      %v1517 = vadd.f32 %v1515, %v1516
      %v1518 = vrot.slane %v1517, 2
      %v1519 = vadd.f32 %v1517, %v1518
      %v1520 = vrot.slane %v1519, 1
      %v1521 = vadd.f32 %v1519, %v1520
      %v1522 = vsel %vm218, %v1416, 0.0
      %v1523 = vrot.slane %v1522, 4
      %v1524 = vadd.f32 %v1522, %v1523
      %v1525 = vrot.slane %v1524, 2
      %v1526 = vadd.f32 %v1524, %v1525
      %v1527 = vrot.slane %v1526, 1
      %v1528 = vadd.f32 %v1526, %v1527
      %v1529 = vsel %vm218, %v1417, 0.0
      %v1530 = vrot.slane %v1529, 4
      %v1531 = vadd.f32 %v1529, %v1530
      %v1532 = vrot.slane %v1531, 2
      %v1533 = vadd.f32 %v1531, %v1532
      %v1534 = vrot.slane %v1533, 1
      %v1535 = vadd.f32 %v1533, %v1534
      %v1536 = vsel %vm218, %v1418, 0.0
      %v1537 = vrot.slane %v1536, 4
      %v1538 = vadd.f32 %v1536, %v1537
      %v1539 = vrot.slane %v1538, 2
      %v1540 = vadd.f32 %v1538, %v1539
      %v1541 = vrot.slane %v1540, 1
      %v1542 = vadd.f32 %v1540, %v1541
      %v1543 = vsel %vm218, %v1419, 0.0
      %v1544 = vrot.slane %v1543, 4
      %v1545 = vadd.f32 %v1543, %v1544
      %v1546 = vrot.slane %v1545, 2
      %v1547 = vadd.f32 %v1545, %v1546
      %v1548 = vrot.slane %v1547, 1
      %v1549 = vadd.f32 %v1547, %v1548
      %v1550 = vsel %vm218, %v1420, 0.0
      %v1551 = vrot.slane %v1550, 4
      %v1552 = vadd.f32 %v1550, %v1551
      %v1553 = vrot.slane %v1552, 2
      %v1554 = vadd.f32 %v1552, %v1553
      %v1555 = vrot.slane %v1554, 1
      %v1556 = vadd.f32 %v1554, %v1555
      %v1557 = vsel %vm218, %v1421, 0.0
      %v1558 = vrot.slane %v1557, 4
      %v1559 = vadd.f32 %v1557, %v1558
      %v1560 = vrot.slane %v1559, 2
      %v1561 = vadd.f32 %v1559, %v1560
      %v1562 = vrot.slane %v1561, 1
      %v1563 = vadd.f32 %v1561, %v1562
      %v1564 = vsel %vm218, %v1422, 0.0
      %v1565 = vrot.slane %v1564, 4
      %v1566 = vadd.f32 %v1564, %v1565
      %v1567 = vrot.slane %v1566, 2
      %v1568 = vadd.f32 %v1566, %v1567
      %v1569 = vrot.slane %v1568, 1
      %v1570 = vadd.f32 %v1568, %v1569
      %v1571 = vsel %vm218, %v1423, 0.0
      %v1572 = vrot.slane %v1571, 4
      %v1573 = vadd.f32 %v1571, %v1572
      %v1574 = vrot.slane %v1573, 2
      %v1575 = vadd.f32 %v1573, %v1574
      %v1576 = vrot.slane %v1575, 1
      %v1577 = vadd.f32 %v1575, %v1576
      %v1578 = vsel %vm218, %v1424, 0.0
      %v1579 = vrot.slane %v1578, 4
      %v1580 = vadd.f32 %v1578, %v1579
      %v1581 = vrot.slane %v1580, 2
      %v1582 = vadd.f32 %v1580, %v1581
      %v1583 = vrot.slane %v1582, 1
      %v1584 = vadd.f32 %v1582, %v1583
      %v1585 = vsel %vm218, %v1425, 0.0
      %v1586 = vrot.slane %v1585, 4
      %v1587 = vadd.f32 %v1585, %v1586
      %v1588 = vrot.slane %v1587, 2
      %v1589 = vadd.f32 %v1587, %v1588
      %v1590 = vrot.slane %v1589, 1
      %v1591 = vadd.f32 %v1589, %v1590
      %v1592 = vsel %vm218, %v1426, 0.0
      %v1593 = vrot.slane %v1592, 4
      %v1594 = vadd.f32 %v1592, %v1593
      %v1595 = vrot.slane %v1594, 2
      %v1596 = vadd.f32 %v1594, %v1595
      %v1597 = vrot.slane %v1596, 1
      %v1598 = vadd.f32 %v1596, %v1597
      %v1599 = vsel %vm218, %v1427, 0.0
      %v1600 = vrot.slane %v1599, 4
      %v1601 = vadd.f32 %v1599, %v1600
      %v1602 = vrot.slane %v1601, 2
      %v1603 = vadd.f32 %v1601, %v1602
      %v1604 = vrot.slane %v1603, 1
      %v1605 = vadd.f32 %v1603, %v1604
      %v1606 = vsel %vm218, %v1428, 0.0
      %v1607 = vrot.slane %v1606, 4
      %v1608 = vadd.f32 %v1606, %v1607
      %v1609 = vrot.slane %v1608, 2
      %v1610 = vadd.f32 %v1608, %v1609
      %v1611 = vrot.slane %v1610, 1
      %v1612 = vadd.f32 %v1610, %v1611
      %v1613 = vsel %vm218, %v1429, 0.0
      %v1614 = vrot.slane %v1613, 4
      %v1615 = vadd.f32 %v1613, %v1614
      %v1616 = vrot.slane %v1615, 2
      %v1617 = vadd.f32 %v1615, %v1616
      %v1618 = vrot.slane %v1617, 1
      %v1619 = vadd.f32 %v1617, %v1618
      %v1620 = vsel %vm218, %v1430, 0.0
      %v1621 = vrot.slane %v1620, 4
      %v1622 = vadd.f32 %v1620, %v1621
      %v1623 = vrot.slane %v1622, 2
      %v1624 = vadd.f32 %v1622, %v1623
      %v1625 = vrot.slane %v1624, 1
      %v1626 = vadd.f32 %v1624, %v1625
      %v1627 = vsel %vm218, %v1431, 0.0
      %v1628 = vrot.slane %v1627, 4
      %v1629 = vadd.f32 %v1627, %v1628
      %v1630 = vrot.slane %v1629, 2
      %v1631 = vadd.f32 %v1629, %v1630
      %v1632 = vrot.slane %v1631, 1
      %v1633 = vadd.f32 %v1631, %v1632
      %v1634 = vsel %vm218, %v1432, 0.0
      %v1635 = vrot.slane %v1634, 4
      %v1636 = vadd.f32 %v1634, %v1635
      %v1637 = vrot.slane %v1636, 2
      %v1638 = vadd.f32 %v1636, %v1637
      %v1639 = vrot.slane %v1638, 1
      %v1640 = vadd.f32 %v1638, %v1639
      %v1641 = vsel %vm218, %v1433, 0.0
      %v1642 = vrot.slane %v1641, 4
      %v1643 = vadd.f32 %v1641, %v1642
      %v1644 = vrot.slane %v1643, 2
      %v1645 = vadd.f32 %v1643, %v1644
      %v1646 = vrot.slane %v1645, 1
      %v1647 = vadd.f32 %v1645, %v1646
      %v1648 = vsel %vm218, %v1434, 0.0
      %v1649 = vrot.slane %v1648, 4
      %v1650 = vadd.f32 %v1648, %v1649
      %v1651 = vrot.slane %v1650, 2
      %v1652 = vadd.f32 %v1650, %v1651
      %v1653 = vrot.slane %v1652, 1
      %v1654 = vadd.f32 %v1652, %v1653
      %v1655 = vsel %vm218, %v1435, 0.0
      %v1656 = vrot.slane %v1655, 4
      %v1657 = vadd.f32 %v1655, %v1656
      %v1658 = vrot.slane %v1657, 2
      %v1659 = vadd.f32 %v1657, %v1658
      %v1660 = vrot.slane %v1659, 1
      %v1661 = vadd.f32 %v1659, %v1660
      %v1662 = vsel %vm218, %v1436, 0.0
      %v1663 = vrot.slane %v1662, 4
      %v1664 = vadd.f32 %v1662, %v1663
      %v1665 = vrot.slane %v1664, 2
      %v1666 = vadd.f32 %v1664, %v1665
      %v1667 = vrot.slane %v1666, 1
      %v1668 = vadd.f32 %v1666, %v1667
      %v1669 = vsel %vm218, %v1437, 0.0
      %v1670 = vrot.slane %v1669, 4
      %v1671 = vadd.f32 %v1669, %v1670
      %v1672 = vrot.slane %v1671, 2
      %v1673 = vadd.f32 %v1671, %v1672
      %v1674 = vrot.slane %v1673, 1
      %v1675 = vadd.f32 %v1673, %v1674
      %v1676 = vsel %vm218, %v1438, 0.0
      %v1677 = vrot.slane %v1676, 4
      %v1678 = vadd.f32 %v1676, %v1677
      %v1679 = vrot.slane %v1678, 2
      %v1680 = vadd.f32 %v1678, %v1679
      %v1681 = vrot.slane %v1680, 1
      %v1682 = vadd.f32 %v1680, %v1681
      %v1683 = vsel %vm218, %v1439, 0.0
      %v1684 = vrot.slane %v1683, 4
      %v1685 = vadd.f32 %v1683, %v1684
      %v1686 = vrot.slane %v1685, 2
      %v1687 = vadd.f32 %v1685, %v1686
      %v1688 = vrot.slane %v1687, 1
      %v1689 = vadd.f32 %v1687, %v1688
      %v1690 = vsel %vm218, %v1440, 0.0
      %v1691 = vrot.slane %v1690, 4
      %v1692 = vadd.f32 %v1690, %v1691
      %v1693 = vrot.slane %v1692, 2
      %v1694 = vadd.f32 %v1692, %v1693
      %v1695 = vrot.slane %v1694, 1
      %v1696 = vadd.f32 %v1694, %v1695
      %v1697 = vsel %vm218, %v1441, 0.0
      %v1698 = vrot.slane %v1697, 4
      %v1699 = vadd.f32 %v1697, %v1698
      %v1700 = vrot.slane %v1699, 2
      %v1701 = vadd.f32 %v1699, %v1700
      %v1702 = vrot.slane %v1701, 1
      %v1703 = vadd.f32 %v1701, %v1702
      %v1704 = vsel %vm218, %v1442, 0.0
      %v1705 = vrot.slane %v1704, 4
      %v1706 = vadd.f32 %v1704, %v1705
      %v1707 = vrot.slane %v1706, 2
      %v1708 = vadd.f32 %v1706, %v1707
      %v1709 = vrot.slane %v1708, 1
      %v1710 = vadd.f32 %v1708, %v1709
      %v1711 = vsel %vm218, %v1443, 0.0
      %v1712 = vrot.slane %v1711, 4
      %v1713 = vadd.f32 %v1711, %v1712
      %v1714 = vrot.slane %v1713, 2
      %v1715 = vadd.f32 %v1713, %v1714
      %v1716 = vrot.slane %v1715, 1
      %v1717 = vadd.f32 %v1715, %v1716
      %v1718 = vsel %vm218, %v1444, 0.0
      %v1719 = vrot.slane %v1718, 4
      %v1720 = vadd.f32 %v1718, %v1719
      %v1721 = vrot.slane %v1720, 2
      %v1722 = vadd.f32 %v1720, %v1721
      %v1723 = vrot.slane %v1722, 1
      %v1724 = vadd.f32 %v1722, %v1723
      %v1725 = vsel %vm218, %v1445, 0.0
      %v1726 = vrot.slane %v1725, 4
      %v1727 = vadd.f32 %v1725, %v1726
      %v1728 = vrot.slane %v1727, 2
      %v1729 = vadd.f32 %v1727, %v1728
      %v1730 = vrot.slane %v1729, 1
      %v1731 = vadd.f32 %v1729, %v1730
      %v1732 = vsel %vm218, %v1446, 0.0
      %v1733 = vrot.slane %v1732, 4
      %v1734 = vadd.f32 %v1732, %v1733
      %v1735 = vrot.slane %v1734, 2
      %v1736 = vadd.f32 %v1734, %v1735
      %v1737 = vrot.slane %v1736, 1
      %v1738 = vadd.f32 %v1736, %v1737
      %v1739 = vsel %vm218, %v1447, 0.0
      %v1740 = vrot.slane %v1739, 4
      %v1741 = vadd.f32 %v1739, %v1740
      %v1742 = vrot.slane %v1741, 2
      %v1743 = vadd.f32 %v1741, %v1742
      %v1744 = vrot.slane %v1743, 1
      %v1745 = vadd.f32 %v1743, %v1744
      %v1746 = vsel %vm218, %v1448, 0.0
      %v1747 = vrot.slane %v1746, 4
      %v1748 = vadd.f32 %v1746, %v1747
      %v1749 = vrot.slane %v1748, 2
      %v1750 = vadd.f32 %v1748, %v1749
      %v1751 = vrot.slane %v1750, 1
      %v1752 = vadd.f32 %v1750, %v1751
      %v1753 = vsel %vm218, %v1449, 0.0
      %v1754 = vrot.slane %v1753, 4
      %v1755 = vadd.f32 %v1753, %v1754
      %v1756 = vrot.slane %v1755, 2
      %v1757 = vadd.f32 %v1755, %v1756
      %v1758 = vrot.slane %v1757, 1
      %v1759 = vadd.f32 %v1757, %v1758
      %v1760 = vsel %vm218, %v1450, 0.0
      %v1761 = vrot.slane %v1760, 4
      %v1762 = vadd.f32 %v1760, %v1761
      %v1763 = vrot.slane %v1762, 2
      %v1764 = vadd.f32 %v1762, %v1763
      %v1765 = vrot.slane %v1764, 1
      %v1766 = vadd.f32 %v1764, %v1765
      %v1767 = vsel %vm218, %v1451, 0.0
      %v1768 = vrot.slane %v1767, 4
      %v1769 = vadd.f32 %v1767, %v1768
      %v1770 = vrot.slane %v1769, 2
      %v1771 = vadd.f32 %v1769, %v1770
      %v1772 = vrot.slane %v1771, 1
      %v1773 = vadd.f32 %v1771, %v1772
      %v1774 = vsel %vm218, %v1452, 0.0
      %v1775 = vrot.slane %v1774, 4
      %v1776 = vadd.f32 %v1774, %v1775
      %v1777 = vrot.slane %v1776, 2
      %v1778 = vadd.f32 %v1776, %v1777
      %v1779 = vrot.slane %v1778, 1
      %v1780 = vadd.f32 %v1778, %v1779
      %v1781 = vsel %vm218, %v1453, 0.0
      %v1782 = vrot.slane %v1781, 4
      %v1783 = vadd.f32 %v1781, %v1782
      %v1784 = vrot.slane %v1783, 2
      %v1785 = vadd.f32 %v1783, %v1784
      %v1786 = vrot.slane %v1785, 1
      %v1787 = vadd.f32 %v1785, %v1786
      %v1788 = vsel %vm218, %v1454, 0.0
      %v1789 = vrot.slane %v1788, 4
      %v1790 = vadd.f32 %v1788, %v1789
      %v1791 = vrot.slane %v1790, 2
      %v1792 = vadd.f32 %v1790, %v1791
      %v1793 = vrot.slane %v1792, 1
      %v1794 = vadd.f32 %v1792, %v1793
      %v1795 = vsel %vm218, %v1455, 0.0
      %v1796 = vrot.slane %v1795, 4
      %v1797 = vadd.f32 %v1795, %v1796
      %v1798 = vrot.slane %v1797, 2
      %v1799 = vadd.f32 %v1797, %v1798
      %v1800 = vrot.slane %v1799, 1
      %v1801 = vadd.f32 %v1799, %v1800
      %v1802 = vsel %vm218, %v1456, 0.0
      %v1803 = vrot.slane %v1802, 4
      %v1804 = vadd.f32 %v1802, %v1803
      %v1805 = vrot.slane %v1804, 2
      %v1806 = vadd.f32 %v1804, %v1805
      %v1807 = vrot.slane %v1806, 1
      %v1808 = vadd.f32 %v1806, %v1807
      %v1809 = vsel %vm218, %v1457, 0.0
      %v1810 = vrot.slane %v1809, 4
      %v1811 = vadd.f32 %v1809, %v1810
      %v1812 = vrot.slane %v1811, 2
      %v1813 = vadd.f32 %v1811, %v1812
      %v1814 = vrot.slane %v1813, 1
      %v1815 = vadd.f32 %v1813, %v1814
      %v1816 = vsel %vm218, %v1458, 0.0
      %v1817 = vrot.slane %v1816, 4
      %v1818 = vadd.f32 %v1816, %v1817
      %v1819 = vrot.slane %v1818, 2
      %v1820 = vadd.f32 %v1818, %v1819
      %v1821 = vrot.slane %v1820, 1
      %v1822 = vadd.f32 %v1820, %v1821
      %v1823 = vsel %vm218, %v1459, 0.0
      %v1824 = vrot.slane %v1823, 4
      %v1825 = vadd.f32 %v1823, %v1824
      %v1826 = vrot.slane %v1825, 2
      %v1827 = vadd.f32 %v1825, %v1826
      %v1828 = vrot.slane %v1827, 1
      %v1829 = vadd.f32 %v1827, %v1828
      %v1830 = vsel %vm218, %v1460, 0.0
      %v1831 = vrot.slane %v1830, 4
      %v1832 = vadd.f32 %v1830, %v1831
      %v1833 = vrot.slane %v1832, 2
      %v1834 = vadd.f32 %v1832, %v1833
      %v1835 = vrot.slane %v1834, 1
      %v1836 = vadd.f32 %v1834, %v1835
      %v1837 = vsel %vm218, %v1461, 0.0
      %v1838 = vrot.slane %v1837, 4
      %v1839 = vadd.f32 %v1837, %v1838
      %v1840 = vrot.slane %v1839, 2
      %v1841 = vadd.f32 %v1839, %v1840
      %v1842 = vrot.slane %v1841, 1
      %v1843 = vadd.f32 %v1841, %v1842
      %v1844 = vsel %vm218, %v1462, 0.0
      %v1845 = vrot.slane %v1844, 4
      %v1846 = vadd.f32 %v1844, %v1845
      %v1847 = vrot.slane %v1846, 2
      %v1848 = vadd.f32 %v1846, %v1847
      %v1849 = vrot.slane %v1848, 1
      %v1850 = vadd.f32 %v1848, %v1849
      %v1851 = vsel %vm218, %v1463, 0.0
      %v1852 = vrot.slane %v1851, 4
      %v1853 = vadd.f32 %v1851, %v1852
      %v1854 = vrot.slane %v1853, 2
      %v1855 = vadd.f32 %v1853, %v1854
      %v1856 = vrot.slane %v1855, 1
      %v1857 = vadd.f32 %v1855, %v1856
      %v1858 = vsel %vm218, %v1464, 0.0
      %v1859 = vrot.slane %v1858, 4
      %v1860 = vadd.f32 %v1858, %v1859
      %v1861 = vrot.slane %v1860, 2
      %v1862 = vadd.f32 %v1860, %v1861
      %v1863 = vrot.slane %v1862, 1
      %v1864 = vadd.f32 %v1862, %v1863
      %v1865 = vsel %vm218, %v1465, 0.0
      %v1866 = vrot.slane %v1865, 4
      %v1867 = vadd.f32 %v1865, %v1866
      %v1868 = vrot.slane %v1867, 2
      %v1869 = vadd.f32 %v1867, %v1868
      %v1870 = vrot.slane %v1869, 1
      %v1871 = vadd.f32 %v1869, %v1870
      %v1872 = vsel %vm218, %v1466, 0.0
      %v1873 = vrot.slane %v1872, 4
      %v1874 = vadd.f32 %v1872, %v1873
      %v1875 = vrot.slane %v1874, 2
      %v1876 = vadd.f32 %v1874, %v1875
      %v1877 = vrot.slane %v1876, 1
      %v1878 = vadd.f32 %v1876, %v1877
      %v1879 = vsel %vm218, %v1467, 0.0
      %v1880 = vrot.slane %v1879, 4
      %v1881 = vadd.f32 %v1879, %v1880
      %v1882 = vrot.slane %v1881, 2
      %v1883 = vadd.f32 %v1881, %v1882
      %v1884 = vrot.slane %v1883, 1
      %v1885 = vadd.f32 %v1883, %v1884
      %v1886 = vsel %vm218, %v1468, 0.0
      %v1887 = vrot.slane %v1886, 4
      %v1888 = vadd.f32 %v1886, %v1887
      %v1889 = vrot.slane %v1888, 2
      %v1890 = vadd.f32 %v1888, %v1889
      %v1891 = vrot.slane %v1890, 1
      %v1892 = vadd.f32 %v1890, %v1891
      %v1893 = vsel %vm218, %v1469, 0.0
      %v1894 = vrot.slane %v1893, 4
      %v1895 = vadd.f32 %v1893, %v1894
      %v1896 = vrot.slane %v1895, 2
      %v1897 = vadd.f32 %v1895, %v1896
      %v1898 = vrot.slane %v1897, 1
      %v1899 = vadd.f32 %v1897, %v1898
      %v1900 = vsel %vm218, %v1470, 0.0
      %v1901 = vrot.slane %v1900, 4
      %v1902 = vadd.f32 %v1900, %v1901
      %v1903 = vrot.slane %v1902, 2
      %v1904 = vadd.f32 %v1902, %v1903
      %v1905 = vrot.slane %v1904, 1
      %v1906 = vadd.f32 %v1904, %v1905
      %v1907 = vsel %vm218, %v1471, 0.0
      %v1908 = vrot.slane %v1907, 4
      %v1909 = vadd.f32 %v1907, %v1908
      %v1910 = vrot.slane %v1909, 2
      %v1911 = vadd.f32 %v1909, %v1910
      %v1912 = vrot.slane %v1911, 1
      %v1913 = vadd.f32 %v1911, %v1912
      %v1914 = vsel %vm218, %v1472, 0.0
      %v1915 = vrot.slane %v1914, 4
      %v1916 = vadd.f32 %v1914, %v1915
      %v1917 = vrot.slane %v1916, 2
      %v1918 = vadd.f32 %v1916, %v1917
      %v1919 = vrot.slane %v1918, 1
      %v1920 = vadd.f32 %v1918, %v1919
      %v1921 = vsel %vm218, %v1473, 0.0
      %v1922 = vrot.slane %v1921, 4
      %v1923 = vadd.f32 %v1921, %v1922
      %v1924 = vrot.slane %v1923, 2
      %v1925 = vadd.f32 %v1923, %v1924
      %v1926 = vrot.slane %v1925, 1
      %v1927 = vadd.f32 %v1925, %v1926
      %v1928 = vsel %vm218, %v1474, 0.0
      %v1929 = vrot.slane %v1928, 4
      %v1930 = vadd.f32 %v1928, %v1929
      %v1931 = vrot.slane %v1930, 2
      %v1932 = vadd.f32 %v1930, %v1931
      %v1933 = vrot.slane %v1932, 1
      %v1934 = vadd.f32 %v1932, %v1933
      %v1935 = vsel %vm218, %v1475, 0.0
      %v1936 = vrot.slane %v1935, 4
      %v1937 = vadd.f32 %v1935, %v1936
      %v1938 = vrot.slane %v1937, 2
      %v1939 = vadd.f32 %v1937, %v1938
      %v1940 = vrot.slane %v1939, 1
      %v1941 = vadd.f32 %v1939, %v1940
      %v1942 = vsel %vm218, %v1476, 0.0
      %v1943 = vrot.slane %v1942, 4
      %v1944 = vadd.f32 %v1942, %v1943
      %v1945 = vrot.slane %v1944, 2
      %v1946 = vadd.f32 %v1944, %v1945
      %v1947 = vrot.slane %v1946, 1
      %v1948 = vadd.f32 %v1946, %v1947
      %v1949 = vsel %vm218, %v1477, 0.0
      %v1950 = vrot.slane %v1949, 4
      %v1951 = vadd.f32 %v1949, %v1950
      %v1952 = vrot.slane %v1951, 2
      %v1953 = vadd.f32 %v1951, %v1952
      %v1954 = vrot.slane %v1953, 1
      %v1955 = vadd.f32 %v1953, %v1954
      %v1956 = vsel %vm218, %v1478, 0.0
      %v1957 = vrot.slane %v1956, 4
      %v1958 = vadd.f32 %v1956, %v1957
      %v1959 = vrot.slane %v1958, 2
      %v1960 = vadd.f32 %v1958, %v1959
      %v1961 = vrot.slane %v1960, 1
      %v1962 = vadd.f32 %v1960, %v1961
      %v1963 = vsel %vm218, %v1479, 0.0
      %v1964 = vrot.slane %v1963, 4
      %v1965 = vadd.f32 %v1963, %v1964
      %v1966 = vrot.slane %v1965, 2
      %v1967 = vadd.f32 %v1965, %v1966
      %v1968 = vrot.slane %v1967, 1
      %v1969 = vadd.f32 %v1967, %v1968
      %v1970 = vmul.f32 %v1486, 0.25
      %v1971 = vmul.f32 %v1493, 0.25
      %v1972 = vmul.f32 %v1500, 0.25
      %v1973 = vmul.f32 %v1507, 0.25
      %v1974 = vmul.f32 %v1514, 0.25
      %v1975 = vmul.f32 %v1521, 0.25
      %v1976 = vmul.f32 %v1528, 0.25
      %v1977 = vmul.f32 %v1535, 0.25
      %v1978 = vmul.f32 %v1542, 0.25
      %v1979 = vmul.f32 %v1549, 0.25
      %v1980 = vmul.f32 %v1556, 0.25
      %v1981 = vmul.f32 %v1563, 0.25
      %v1982 = vmul.f32 %v1570, 0.25
      %v1983 = vmul.f32 %v1577, 0.25
      %v1984 = vmul.f32 %v1584, 0.25
      %v1985 = vmul.f32 %v1591, 0.25
      %v1986 = vmul.f32 %v1598, 0.25
      %v1987 = vmul.f32 %v1605, 0.25
      %v1988 = vmul.f32 %v1612, 0.25
      %v1989 = vmul.f32 %v1619, 0.25
      %v1990 = vmul.f32 %v1626, 0.25
      %v1991 = vmul.f32 %v1633, 0.25
      %v1992 = vmul.f32 %v1640, 0.25
      %v1993 = vmul.f32 %v1647, 0.25
      %v1994 = vmul.f32 %v1654, 0.25
      %v1995 = vmul.f32 %v1661, 0.25
      %v1996 = vmul.f32 %v1668, 0.25
      %v1997 = vmul.f32 %v1675, 0.25
      %v1998 = vmul.f32 %v1682, 0.25
      %v1999 = vmul.f32 %v1689, 0.25
      %v2000 = vmul.f32 %v1696, 0.25
      %v2001 = vmul.f32 %v1703, 0.25
      %v2002 = vmul.f32 %v1710, 0.25
      %v2003 = vmul.f32 %v1717, 0.25
      %v2004 = vmul.f32 %v1724, 0.25
      %v2005 = vmul.f32 %v1731, 0.25
      %v2006 = vmul.f32 %v1738, 0.25
      %v2007 = vmul.f32 %v1745, 0.25
      %v2008 = vmul.f32 %v1752, 0.25
      %v2009 = vmul.f32 %v1759, 0.25
      %v2010 = vmul.f32 %v1766, 0.25
      %v2011 = vmul.f32 %v1773, 0.25
      %v2012 = vmul.f32 %v1780, 0.25
      %v2013 = vmul.f32 %v1787, 0.25
      %v2014 = vmul.f32 %v1794, 0.25
      %v2015 = vmul.f32 %v1801, 0.25
      %v2016 = vmul.f32 %v1808, 0.25
      %v2017 = vmul.f32 %v1815, 0.25
      %v2018 = vmul.f32 %v1822, 0.25
      %v2019 = vmul.f32 %v1829, 0.25
      %v2020 = vmul.f32 %v1836, 0.25
      %v2021 = vmul.f32 %v1843, 0.25
      %v2022 = vmul.f32 %v1850, 0.25
      %v2023 = vmul.f32 %v1857, 0.25
      %v2024 = vmul.f32 %v1864, 0.25
      %v2025 = vmul.f32 %v1871, 0.25
      %v2026 = vmul.f32 %v1878, 0.25
      %v2027 = vmul.f32 %v1885, 0.25
      %v2028 = vmul.f32 %v1892, 0.25
      %v2029 = vmul.f32 %v1899, 0.25
      %v2030 = vmul.f32 %v1906, 0.25
      %v2031 = vmul.f32 %v1913, 0.25
      %v2032 = vmul.f32 %v1920, 0.25
      %v2033 = vmul.f32 %v1927, 0.25
      %v2034 = vmul.f32 %v1934, 0.25
      %v2035 = vmul.f32 %v1941, 0.25
      %v2036 = vmul.f32 %v1948, 0.25
      %v2037 = vmul.f32 %v1955, 0.25
      %v2038 = vmul.f32 %v1962, 0.25
      %v2039 = vmul.f32 %v1969, 0.25
      %2040 = vst.msk [vmem:[#allocation2 + $0x1] sm:$0x1] %vm779, %v1970
      %2041 = vst.msk [vmem:[#allocation2 + $0x9] sm:$0x1] %vm779, %v1971
      %2042 = vst.msk [vmem:[#allocation2 + $0x11] sm:$0x1] %vm779, %v1972
      %2043 = vst.msk [vmem:[#allocation2 + $0x19] sm:$0x1] %vm779, %v1973
      %2044 = vst.msk [vmem:[#allocation2 + $0x21] sm:$0x1] %vm779, %v1974
      %2045 = vst.msk [vmem:[#allocation2 + $0x29] sm:$0x1] %vm779, %v1975
      %2046 = vst.msk [vmem:[#allocation2 + $0x31] sm:$0x1] %vm779, %v1976
      %2047 = vst.msk [vmem:[#allocation2 + $0x39] sm:$0x1] %vm779, %v1977
      %2048 = vst.msk [vmem:[#allocation2 + $0x41] sm:$0x1] %vm779, %v1978
      %2049 = vst.msk [vmem:[#allocation2 + $0x49] sm:$0x1] %vm779, %v1979
      %2050 = vst.msk [vmem:[#allocation2 + $0x51] sm:$0x1] %vm779, %v1980
      %2051 = vst.msk [vmem:[#allocation2 + $0x59] sm:$0x1] %vm779, %v1981
      %2052 = vst.msk [vmem:[#allocation2 + $0x61] sm:$0x1] %vm779, %v1982
      %2053 = vst.msk [vmem:[#allocation2 + $0x69] sm:$0x1] %vm779, %v1983
      %2054 = vst.msk [vmem:[#allocation2 + $0x71] sm:$0x1] %vm779, %v1984
      %2055 = vst.msk [vmem:[#allocation2 + $0x79] sm:$0x1] %vm779, %v1985
      %2056 = vst.msk [vmem:[#allocation2 + $0x81] sm:$0x1] %vm779, %v1986
      %2057 = vst.msk [vmem:[#allocation2 + $0x89] sm:$0x1] %vm779, %v1987
      %2058 = vst.msk [vmem:[#allocation2 + $0x91] sm:$0x1] %vm779, %v1988
      %2059 = vst.msk [vmem:[#allocation2 + $0x99] sm:$0x1] %vm779, %v1989
      %2060 = vst.msk [vmem:[#allocation2 + $0xa1] sm:$0x1] %vm779, %v1990
      %2061 = vst.msk [vmem:[#allocation2 + $0xa9] sm:$0x1] %vm779, %v1991
      %2062 = vst.msk [vmem:[#allocation2 + $0xb1] sm:$0x1] %vm779, %v1992
      %2063 = vst.msk [vmem:[#allocation2 + $0xb9] sm:$0x1] %vm779, %v1993
      %2064 = vst.msk [vmem:[#allocation2 + $0xc1] sm:$0x1] %vm779, %v1994
      %2065 = vst.msk [vmem:[#allocation2 + $0xc9] sm:$0x1] %vm779, %v1995
      %2066 = vst.msk [vmem:[#allocation2 + $0xd1] sm:$0x1] %vm779, %v1996
      %2067 = vst.msk [vmem:[#allocation2 + $0xd9] sm:$0x1] %vm779, %v1997
      %2068 = vst.msk [vmem:[#allocation2 + $0xe1] sm:$0x1] %vm779, %v1998
      %2069 = vst.msk [vmem:[#allocation2 + $0xe9] sm:$0x1] %vm779, %v1999
      %2070 = vst.msk [vmem:[#allocation2 + $0xf1] sm:$0x1] %vm779, %v2000
      %2071 = vst.msk [vmem:[#allocation2 + $0xf9] sm:$0x1] %vm779, %v2001
      %2072 = vst.msk [vmem:[#allocation2 + $0x101] sm:$0x1] %vm779, %v2002
      %2073 = vst.msk [vmem:[#allocation2 + $0x109] sm:$0x1] %vm779, %v2003
      %2074 = vst.msk [vmem:[#allocation2 + $0x111] sm:$0x1] %vm779, %v2004
      %2075 = vst.msk [vmem:[#allocation2 + $0x119] sm:$0x1] %vm779, %v2005
      %2076 = vst.msk [vmem:[#allocation2 + $0x121] sm:$0x1] %vm779, %v2006
      %2077 = vst.msk [vmem:[#allocation2 + $0x129] sm:$0x1] %vm779, %v2007
      %2078 = vst.msk [vmem:[#allocation2 + $0x131] sm:$0x1] %vm779, %v2008
      %2079 = vst.msk [vmem:[#allocation2 + $0x139] sm:$0x1] %vm779, %v2009
      %2080 = vst.msk [vmem:[#allocation2 + $0x141] sm:$0x1] %vm779, %v2010
      %2081 = vst.msk [vmem:[#allocation2 + $0x149] sm:$0x1] %vm779, %v2011
      %2082 = vst.msk [vmem:[#allocation2 + $0x151] sm:$0x1] %vm779, %v2012
      %2083 = vst.msk [vmem:[#allocation2 + $0x159] sm:$0x1] %vm779, %v2013
      %2084 = vst.msk [vmem:[#allocation2 + $0x161] sm:$0x1] %vm779, %v2014
      %2085 = vst.msk [vmem:[#allocation2 + $0x169] sm:$0x1] %vm779, %v2015
      %2086 = vst.msk [vmem:[#allocation2 + $0x171] sm:$0x1] %vm779, %v2016
      %2087 = vst.msk [vmem:[#allocation2 + $0x179] sm:$0x1] %vm779, %v2017
      %2088 = vst.msk [vmem:[#allocation2 + $0x181] sm:$0x1] %vm779, %v2018
      %2089 = vst.msk [vmem:[#allocation2 + $0x189] sm:$0x1] %vm779, %v2019
      %2090 = vst.msk [vmem:[#allocation2 + $0x191] sm:$0x1] %vm779, %v2020
      %2091 = vst.msk [vmem:[#allocation2 + $0x199] sm:$0x1] %vm779, %v2021
      %2092 = vst.msk [vmem:[#allocation2 + $0x1a1] sm:$0x1] %vm779, %v2022
      %2093 = vst.msk [vmem:[#allocation2 + $0x1a9] sm:$0x1] %vm779, %v2023
      %2094 = vst.msk [vmem:[#allocation2 + $0x1b1] sm:$0x1] %vm779, %v2024
      %2095 = vst.msk [vmem:[#allocation2 + $0x1b9] sm:$0x1] %vm779, %v2025
      %2096 = vst.msk [vmem:[#allocation2 + $0x1c1] sm:$0x1] %vm779, %v2026
      %2097 = vst.msk [vmem:[#allocation2 + $0x1c9] sm:$0x1] %vm779, %v2027
      %2098 = vst.msk [vmem:[#allocation2 + $0x1d1] sm:$0x1] %vm779, %v2028
      %2099 = vst.msk [vmem:[#allocation2 + $0x1d9] sm:$0x1] %vm779, %v2029
      %2100 = vst.msk [vmem:[#allocation2 + $0x1e1] sm:$0x1] %vm779, %v2030
      %2101 = vst.msk [vmem:[#allocation2 + $0x1e9] sm:$0x1] %vm779, %v2031
      %2102 = vst.msk [vmem:[#allocation2 + $0x1f1] sm:$0x1] %vm779, %v2032
      %2103 = vst.msk [vmem:[#allocation2 + $0x1f9] sm:$0x1] %vm779, %v2033
      %2104 = vst.msk [vmem:[#allocation2 + $0x201] sm:$0x1] %vm779, %v2034
      %2105 = vst.msk [vmem:[#allocation2 + $0x209] sm:$0x1] %vm779, %v2035
      %2106 = vst.msk [vmem:[#allocation2 + $0x211] sm:$0x1] %vm779, %v2036
      %2107 = vst.msk [vmem:[#allocation2 + $0x219] sm:$0x1] %vm779, %v2037
      %2108 = vst.msk [vmem:[#allocation2 + $0x221] sm:$0x1] %vm779, %v2038
      %2109 = vst.msk [vmem:[#allocation2 + $0x229] sm:$0x1] %vm779, %v2039
      %v2110 = vsel %vm218, %v1410, -inf
      %v2111 = vrot.slane %v2110, 4
      %v2112 = vmax.f32 %v2110, %v2111
      %v2113 = vrot.slane %v2112, 2
      %v2114 = vmax.f32 %v2112, %v2113
      %v2115 = vrot.slane %v2114, 1
      %v2116 = vmax.f32 %v2114, %v2115
      %v2117 = vsel %vm218, %v1411, -inf
      %v2118 = vrot.slane %v2117, 4
      %v2119 = vmax.f32 %v2117, %v2118
      %v2120 = vrot.slane %v2119, 2
      %v2121 = vmax.f32 %v2119, %v2120
      %v2122 = vrot.slane %v2121, 1
      %v2123 = vmax.f32 %v2121, %v2122
      %v2124 = vsel %vm218, %v1412, -inf
      %v2125 = vrot.slane %v2124, 4
      %v2126 = vmax.f32 %v2124, %v2125
      %v2127 = vrot.slane %v2126, 2
      %v2128 = vmax.f32 %v2126, %v2127
      %v2129 = vrot.slane %v2128, 1
      %v2130 = vmax.f32 %v2128, %v2129
      %v2131 = vsel %vm218, %v1413, -inf
      %v2132 = vrot.slane %v2131, 4
      %v2133 = vmax.f32 %v2131, %v2132
      %v2134 = vrot.slane %v2133, 2
      %v2135 = vmax.f32 %v2133, %v2134
      %v2136 = vrot.slane %v2135, 1
      %v2137 = vmax.f32 %v2135, %v2136
      %v2138 = vsel %vm218, %v1414, -inf
      %v2139 = vrot.slane %v2138, 4
      %v2140 = vmax.f32 %v2138, %v2139
      %v2141 = vrot.slane %v2140, 2
      %v2142 = vmax.f32 %v2140, %v2141
      %v2143 = vrot.slane %v2142, 1
      %v2144 = vmax.f32 %v2142, %v2143
      %v2145 = vsel %vm218, %v1415, -inf
      %v2146 = vrot.slane %v2145, 4
      %v2147 = vmax.f32 %v2145, %v2146
      %v2148 = vrot.slane %v2147, 2
      %v2149 = vmax.f32 %v2147, %v2148
      %v2150 = vrot.slane %v2149, 1
      %v2151 = vmax.f32 %v2149, %v2150
      %v2152 = vsel %vm218, %v1416, -inf
      %v2153 = vrot.slane %v2152, 4
      %v2154 = vmax.f32 %v2152, %v2153
      %v2155 = vrot.slane %v2154, 2
      %v2156 = vmax.f32 %v2154, %v2155
      %v2157 = vrot.slane %v2156, 1
      %v2158 = vmax.f32 %v2156, %v2157
      %v2159 = vsel %vm218, %v1417, -inf
      %v2160 = vrot.slane %v2159, 4
      %v2161 = vmax.f32 %v2159, %v2160
      %v2162 = vrot.slane %v2161, 2
      %v2163 = vmax.f32 %v2161, %v2162
      %v2164 = vrot.slane %v2163, 1
      %v2165 = vmax.f32 %v2163, %v2164
      %v2166 = vsel %vm218, %v1418, -inf
      %v2167 = vrot.slane %v2166, 4
      %v2168 = vmax.f32 %v2166, %v2167
      %v2169 = vrot.slane %v2168, 2
      %v2170 = vmax.f32 %v2168, %v2169
      %v2171 = vrot.slane %v2170, 1
      %v2172 = vmax.f32 %v2170, %v2171
      %v2173 = vsel %vm218, %v1419, -inf
      %v2174 = vrot.slane %v2173, 4
      %v2175 = vmax.f32 %v2173, %v2174
      %v2176 = vrot.slane %v2175, 2
      %v2177 = vmax.f32 %v2175, %v2176
      %v2178 = vrot.slane %v2177, 1
      %v2179 = vmax.f32 %v2177, %v2178
      %v2180 = vsel %vm218, %v1420, -inf
      %v2181 = vrot.slane %v2180, 4
      %v2182 = vmax.f32 %v2180, %v2181
      %v2183 = vrot.slane %v2182, 2
      %v2184 = vmax.f32 %v2182, %v2183
      %v2185 = vrot.slane %v2184, 1
      %v2186 = vmax.f32 %v2184, %v2185
      %v2187 = vsel %vm218, %v1421, -inf
      %v2188 = vrot.slane %v2187, 4
      %v2189 = vmax.f32 %v2187, %v2188
      %v2190 = vrot.slane %v2189, 2
      %v2191 = vmax.f32 %v2189, %v2190
      %v2192 = vrot.slane %v2191, 1
      %v2193 = vmax.f32 %v2191, %v2192
      %v2194 = vsel %vm218, %v1422, -inf
      %v2195 = vrot.slane %v2194, 4
      %v2196 = vmax.f32 %v2194, %v2195
      %v2197 = vrot.slane %v2196, 2
      %v2198 = vmax.f32 %v2196, %v2197
      %v2199 = vrot.slane %v2198, 1
      %v2200 = vmax.f32 %v2198, %v2199
      %v2201 = vsel %vm218, %v1423, -inf
      %v2202 = vrot.slane %v2201, 4
      %v2203 = vmax.f32 %v2201, %v2202
      %v2204 = vrot.slane %v2203, 2
      %v2205 = vmax.f32 %v2203, %v2204
      %v2206 = vrot.slane %v2205, 1
      %v2207 = vmax.f32 %v2205, %v2206
      %v2208 = vsel %vm218, %v1424, -inf
      %v2209 = vrot.slane %v2208, 4
      %v2210 = vmax.f32 %v2208, %v2209
      %v2211 = vrot.slane %v2210, 2
      %v2212 = vmax.f32 %v2210, %v2211
      %v2213 = vrot.slane %v2212, 1
      %v2214 = vmax.f32 %v2212, %v2213
      %v2215 = vsel %vm218, %v1425, -inf
      %v2216 = vrot.slane %v2215, 4
      %v2217 = vmax.f32 %v2215, %v2216
      %v2218 = vrot.slane %v2217, 2
      %v2219 = vmax.f32 %v2217, %v2218
      %v2220 = vrot.slane %v2219, 1
      %v2221 = vmax.f32 %v2219, %v2220
      %v2222 = vsel %vm218, %v1426, -inf
      %v2223 = vrot.slane %v2222, 4
      %v2224 = vmax.f32 %v2222, %v2223
      %v2225 = vrot.slane %v2224, 2
      %v2226 = vmax.f32 %v2224, %v2225
      %v2227 = vrot.slane %v2226, 1
      %v2228 = vmax.f32 %v2226, %v2227
      %v2229 = vsel %vm218, %v1427, -inf
      %v2230 = vrot.slane %v2229, 4
      %v2231 = vmax.f32 %v2229, %v2230
      %v2232 = vrot.slane %v2231, 2
      %v2233 = vmax.f32 %v2231, %v2232
      %v2234 = vrot.slane %v2233, 1
      %v2235 = vmax.f32 %v2233, %v2234
      %v2236 = vsel %vm218, %v1428, -inf
      %v2237 = vrot.slane %v2236, 4
      %v2238 = vmax.f32 %v2236, %v2237
      %v2239 = vrot.slane %v2238, 2
      %v2240 = vmax.f32 %v2238, %v2239
      %v2241 = vrot.slane %v2240, 1
      %v2242 = vmax.f32 %v2240, %v2241
      %v2243 = vsel %vm218, %v1429, -inf
      %v2244 = vrot.slane %v2243, 4
      %v2245 = vmax.f32 %v2243, %v2244
      %v2246 = vrot.slane %v2245, 2
      %v2247 = vmax.f32 %v2245, %v2246
      %v2248 = vrot.slane %v2247, 1
      %v2249 = vmax.f32 %v2247, %v2248
      %v2250 = vsel %vm218, %v1430, -inf
      %v2251 = vrot.slane %v2250, 4
      %v2252 = vmax.f32 %v2250, %v2251
      %v2253 = vrot.slane %v2252, 2
      %v2254 = vmax.f32 %v2252, %v2253
      %v2255 = vrot.slane %v2254, 1
      %v2256 = vmax.f32 %v2254, %v2255
      %v2257 = vsel %vm218, %v1431, -inf
      %v2258 = vrot.slane %v2257, 4
      %v2259 = vmax.f32 %v2257, %v2258
      %v2260 = vrot.slane %v2259, 2
      %v2261 = vmax.f32 %v2259, %v2260
      %v2262 = vrot.slane %v2261, 1
      %v2263 = vmax.f32 %v2261, %v2262
      %v2264 = vsel %vm218, %v1432, -inf
      %v2265 = vrot.slane %v2264, 4
      %v2266 = vmax.f32 %v2264, %v2265
      %v2267 = vrot.slane %v2266, 2
      %v2268 = vmax.f32 %v2266, %v2267
      %v2269 = vrot.slane %v2268, 1
      %v2270 = vmax.f32 %v2268, %v2269
      %v2271 = vsel %vm218, %v1433, -inf
      %v2272 = vrot.slane %v2271, 4
      %v2273 = vmax.f32 %v2271, %v2272
      %v2274 = vrot.slane %v2273, 2
      %v2275 = vmax.f32 %v2273, %v2274
      %v2276 = vrot.slane %v2275, 1
      %v2277 = vmax.f32 %v2275, %v2276
      %v2278 = vsel %vm218, %v1434, -inf
      %v2279 = vrot.slane %v2278, 4
      %v2280 = vmax.f32 %v2278, %v2279
      %v2281 = vrot.slane %v2280, 2
      %v2282 = vmax.f32 %v2280, %v2281
      %v2283 = vrot.slane %v2282, 1
      %v2284 = vmax.f32 %v2282, %v2283
      %v2285 = vsel %vm218, %v1435, -inf
      %v2286 = vrot.slane %v2285, 4
      %v2287 = vmax.f32 %v2285, %v2286
      %v2288 = vrot.slane %v2287, 2
      %v2289 = vmax.f32 %v2287, %v2288
      %v2290 = vrot.slane %v2289, 1
      %v2291 = vmax.f32 %v2289, %v2290
      %v2292 = vsel %vm218, %v1436, -inf
      %v2293 = vrot.slane %v2292, 4
      %v2294 = vmax.f32 %v2292, %v2293
      %v2295 = vrot.slane %v2294, 2
      %v2296 = vmax.f32 %v2294, %v2295
      %v2297 = vrot.slane %v2296, 1
      %v2298 = vmax.f32 %v2296, %v2297
      %v2299 = vsel %vm218, %v1437, -inf
      %v2300 = vrot.slane %v2299, 4
      %v2301 = vmax.f32 %v2299, %v2300
      %v2302 = vrot.slane %v2301, 2
      %v2303 = vmax.f32 %v2301, %v2302
      %v2304 = vrot.slane %v2303, 1
      %v2305 = vmax.f32 %v2303, %v2304
      %v2306 = vsel %vm218, %v1438, -inf
      %v2307 = vrot.slane %v2306, 4
      %v2308 = vmax.f32 %v2306, %v2307
      %v2309 = vrot.slane %v2308, 2
      %v2310 = vmax.f32 %v2308, %v2309
      %v2311 = vrot.slane %v2310, 1
      %v2312 = vmax.f32 %v2310, %v2311
      %v2313 = vsel %vm218, %v1439, -inf
      %v2314 = vrot.slane %v2313, 4
      %v2315 = vmax.f32 %v2313, %v2314
      %v2316 = vrot.slane %v2315, 2
      %v2317 = vmax.f32 %v2315, %v2316
      %v2318 = vrot.slane %v2317, 1
      %v2319 = vmax.f32 %v2317, %v2318
      %v2320 = vsel %vm218, %v1440, -inf
      %v2321 = vrot.slane %v2320, 4
      %v2322 = vmax.f32 %v2320, %v2321
      %v2323 = vrot.slane %v2322, 2
      %v2324 = vmax.f32 %v2322, %v2323
      %v2325 = vrot.slane %v2324, 1
      %v2326 = vmax.f32 %v2324, %v2325
      %v2327 = vsel %vm218, %v1441, -inf
      %v2328 = vrot.slane %v2327, 4
      %v2329 = vmax.f32 %v2327, %v2328
      %v2330 = vrot.slane %v2329, 2
      %v2331 = vmax.f32 %v2329, %v2330
      %v2332 = vrot.slane %v2331, 1
      %v2333 = vmax.f32 %v2331, %v2332
      %v2334 = vsel %vm218, %v1442, -inf
      %v2335 = vrot.slane %v2334, 4
      %v2336 = vmax.f32 %v2334, %v2335
      %v2337 = vrot.slane %v2336, 2
      %v2338 = vmax.f32 %v2336, %v2337
      %v2339 = vrot.slane %v2338, 1
      %v2340 = vmax.f32 %v2338, %v2339
      %v2341 = vsel %vm218, %v1443, -inf
      %v2342 = vrot.slane %v2341, 4
      %v2343 = vmax.f32 %v2341, %v2342
      %v2344 = vrot.slane %v2343, 2
      %v2345 = vmax.f32 %v2343, %v2344
      %v2346 = vrot.slane %v2345, 1
      %v2347 = vmax.f32 %v2345, %v2346
      %v2348 = vsel %vm218, %v1444, -inf
      %v2349 = vrot.slane %v2348, 4
      %v2350 = vmax.f32 %v2348, %v2349
      %v2351 = vrot.slane %v2350, 2
      %v2352 = vmax.f32 %v2350, %v2351
      %v2353 = vrot.slane %v2352, 1
      %v2354 = vmax.f32 %v2352, %v2353
      %v2355 = vsel %vm218, %v1445, -inf
      %v2356 = vrot.slane %v2355, 4
      %v2357 = vmax.f32 %v2355, %v2356
      %v2358 = vrot.slane %v2357, 2
      %v2359 = vmax.f32 %v2357, %v2358
      %v2360 = vrot.slane %v2359, 1
      %v2361 = vmax.f32 %v2359, %v2360
      %v2362 = vsel %vm218, %v1446, -inf
      %v2363 = vrot.slane %v2362, 4
      %v2364 = vmax.f32 %v2362, %v2363
      %v2365 = vrot.slane %v2364, 2
      %v2366 = vmax.f32 %v2364, %v2365
      %v2367 = vrot.slane %v2366, 1
      %v2368 = vmax.f32 %v2366, %v2367
      %v2369 = vsel %vm218, %v1447, -inf
      %v2370 = vrot.slane %v2369, 4
      %v2371 = vmax.f32 %v2369, %v2370
      %v2372 = vrot.slane %v2371, 2
      %v2373 = vmax.f32 %v2371, %v2372
      %v2374 = vrot.slane %v2373, 1
      %v2375 = vmax.f32 %v2373, %v2374
      %v2376 = vsel %vm218, %v1448, -inf
      %v2377 = vrot.slane %v2376, 4
      %v2378 = vmax.f32 %v2376, %v2377
      %v2379 = vrot.slane %v2378, 2
      %v2380 = vmax.f32 %v2378, %v2379
      %v2381 = vrot.slane %v2380, 1
      %v2382 = vmax.f32 %v2380, %v2381
      %v2383 = vsel %vm218, %v1449, -inf
      %v2384 = vrot.slane %v2383, 4
      %v2385 = vmax.f32 %v2383, %v2384
      %v2386 = vrot.slane %v2385, 2
      %v2387 = vmax.f32 %v2385, %v2386
      %v2388 = vrot.slane %v2387, 1
      %v2389 = vmax.f32 %v2387, %v2388
      %v2390 = vsel %vm218, %v1450, -inf
      %v2391 = vrot.slane %v2390, 4
      %v2392 = vmax.f32 %v2390, %v2391
      %v2393 = vrot.slane %v2392, 2
      %v2394 = vmax.f32 %v2392, %v2393
      %v2395 = vrot.slane %v2394, 1
      %v2396 = vmax.f32 %v2394, %v2395
      %v2397 = vsel %vm218, %v1451, -inf
      %v2398 = vrot.slane %v2397, 4
      %v2399 = vmax.f32 %v2397, %v2398
      %v2400 = vrot.slane %v2399, 2
      %v2401 = vmax.f32 %v2399, %v2400
      %v2402 = vrot.slane %v2401, 1
      %v2403 = vmax.f32 %v2401, %v2402
      %v2404 = vsel %vm218, %v1452, -inf
      %v2405 = vrot.slane %v2404, 4
      %v2406 = vmax.f32 %v2404, %v2405
      %v2407 = vrot.slane %v2406, 2
      %v2408 = vmax.f32 %v2406, %v2407
      %v2409 = vrot.slane %v2408, 1
      %v2410 = vmax.f32 %v2408, %v2409
      %v2411 = vsel %vm218, %v1453, -inf
      %v2412 = vrot.slane %v2411, 4
      %v2413 = vmax.f32 %v2411, %v2412
      %v2414 = vrot.slane %v2413, 2
      %v2415 = vmax.f32 %v2413, %v2414
      %v2416 = vrot.slane %v2415, 1
      %v2417 = vmax.f32 %v2415, %v2416
      %v2418 = vsel %vm218, %v1454, -inf
      %v2419 = vrot.slane %v2418, 4
      %v2420 = vmax.f32 %v2418, %v2419
      %v2421 = vrot.slane %v2420, 2
      %v2422 = vmax.f32 %v2420, %v2421
      %v2423 = vrot.slane %v2422, 1
      %v2424 = vmax.f32 %v2422, %v2423
      %v2425 = vsel %vm218, %v1455, -inf
      %v2426 = vrot.slane %v2425, 4
      %v2427 = vmax.f32 %v2425, %v2426
      %v2428 = vrot.slane %v2427, 2
      %v2429 = vmax.f32 %v2427, %v2428
      %v2430 = vrot.slane %v2429, 1
      %v2431 = vmax.f32 %v2429, %v2430
      %v2432 = vsel %vm218, %v1456, -inf
      %v2433 = vrot.slane %v2432, 4
      %v2434 = vmax.f32 %v2432, %v2433
      %v2435 = vrot.slane %v2434, 2
      %v2436 = vmax.f32 %v2434, %v2435
      %v2437 = vrot.slane %v2436, 1
      %v2438 = vmax.f32 %v2436, %v2437
      %v2439 = vsel %vm218, %v1457, -inf
      %v2440 = vrot.slane %v2439, 4
      %v2441 = vmax.f32 %v2439, %v2440
      %v2442 = vrot.slane %v2441, 2
      %v2443 = vmax.f32 %v2441, %v2442
      %v2444 = vrot.slane %v2443, 1
      %v2445 = vmax.f32 %v2443, %v2444
      %v2446 = vsel %vm218, %v1458, -inf
      %v2447 = vrot.slane %v2446, 4
      %v2448 = vmax.f32 %v2446, %v2447
      %v2449 = vrot.slane %v2448, 2
      %v2450 = vmax.f32 %v2448, %v2449
      %v2451 = vrot.slane %v2450, 1
      %v2452 = vmax.f32 %v2450, %v2451
      %v2453 = vsel %vm218, %v1459, -inf
      %v2454 = vrot.slane %v2453, 4
      %v2455 = vmax.f32 %v2453, %v2454
      %v2456 = vrot.slane %v2455, 2
      %v2457 = vmax.f32 %v2455, %v2456
      %v2458 = vrot.slane %v2457, 1
      %v2459 = vmax.f32 %v2457, %v2458
      %v2460 = vsel %vm218, %v1460, -inf
      %v2461 = vrot.slane %v2460, 4
      %v2462 = vmax.f32 %v2460, %v2461
      %v2463 = vrot.slane %v2462, 2
      %v2464 = vmax.f32 %v2462, %v2463
      %v2465 = vrot.slane %v2464, 1
      %v2466 = vmax.f32 %v2464, %v2465
      %v2467 = vsel %vm218, %v1461, -inf
      %v2468 = vrot.slane %v2467, 4
      %v2469 = vmax.f32 %v2467, %v2468
      %v2470 = vrot.slane %v2469, 2
      %v2471 = vmax.f32 %v2469, %v2470
      %v2472 = vrot.slane %v2471, 1
      %v2473 = vmax.f32 %v2471, %v2472
      %v2474 = vsel %vm218, %v1462, -inf
      %v2475 = vrot.slane %v2474, 4
      %v2476 = vmax.f32 %v2474, %v2475
      %v2477 = vrot.slane %v2476, 2
      %v2478 = vmax.f32 %v2476, %v2477
      %v2479 = vrot.slane %v2478, 1
      %v2480 = vmax.f32 %v2478, %v2479
      %v2481 = vsel %vm218, %v1463, -inf
      %v2482 = vrot.slane %v2481, 4
      %v2483 = vmax.f32 %v2481, %v2482
      %v2484 = vrot.slane %v2483, 2
      %v2485 = vmax.f32 %v2483, %v2484
      %v2486 = vrot.slane %v2485, 1
      %v2487 = vmax.f32 %v2485, %v2486
      %v2488 = vsel %vm218, %v1464, -inf
      %v2489 = vrot.slane %v2488, 4
      %v2490 = vmax.f32 %v2488, %v2489
      %v2491 = vrot.slane %v2490, 2
      %v2492 = vmax.f32 %v2490, %v2491
      %v2493 = vrot.slane %v2492, 1
      %v2494 = vmax.f32 %v2492, %v2493
      %v2495 = vsel %vm218, %v1465, -inf
      %v2496 = vrot.slane %v2495, 4
      %v2497 = vmax.f32 %v2495, %v2496
      %v2498 = vrot.slane %v2497, 2
      %v2499 = vmax.f32 %v2497, %v2498
      %v2500 = vrot.slane %v2499, 1
      %v2501 = vmax.f32 %v2499, %v2500
      %v2502 = vsel %vm218, %v1466, -inf
      %v2503 = vrot.slane %v2502, 4
      %v2504 = vmax.f32 %v2502, %v2503
      %v2505 = vrot.slane %v2504, 2
      %v2506 = vmax.f32 %v2504, %v2505
      %v2507 = vrot.slane %v2506, 1
      %v2508 = vmax.f32 %v2506, %v2507
      %v2509 = vsel %vm218, %v1467, -inf
      %v2510 = vrot.slane %v2509, 4
      %v2511 = vmax.f32 %v2509, %v2510
      %v2512 = vrot.slane %v2511, 2
      %v2513 = vmax.f32 %v2511, %v2512
      %v2514 = vrot.slane %v2513, 1
      %v2515 = vmax.f32 %v2513, %v2514
      %v2516 = vsel %vm218, %v1468, -inf
      %v2517 = vrot.slane %v2516, 4
      %v2518 = vmax.f32 %v2516, %v2517
      %v2519 = vrot.slane %v2518, 2
      %v2520 = vmax.f32 %v2518, %v2519
      %v2521 = vrot.slane %v2520, 1
      %v2522 = vmax.f32 %v2520, %v2521
      %v2523 = vsel %vm218, %v1469, -inf
      %v2524 = vrot.slane %v2523, 4
      %v2525 = vmax.f32 %v2523, %v2524
      %v2526 = vrot.slane %v2525, 2
      %v2527 = vmax.f32 %v2525, %v2526
      %v2528 = vrot.slane %v2527, 1
      %v2529 = vmax.f32 %v2527, %v2528
      %v2530 = vsel %vm218, %v1470, -inf
      %v2531 = vrot.slane %v2530, 4
      %v2532 = vmax.f32 %v2530, %v2531
      %v2533 = vrot.slane %v2532, 2
      %v2534 = vmax.f32 %v2532, %v2533
      %v2535 = vrot.slane %v2534, 1
      %v2536 = vmax.f32 %v2534, %v2535
      %v2537 = vsel %vm218, %v1471, -inf
      %v2538 = vrot.slane %v2537, 4
      %v2539 = vmax.f32 %v2537, %v2538
      %v2540 = vrot.slane %v2539, 2
      %v2541 = vmax.f32 %v2539, %v2540
      %v2542 = vrot.slane %v2541, 1
      %v2543 = vmax.f32 %v2541, %v2542
      %v2544 = vsel %vm218, %v1472, -inf
      %v2545 = vrot.slane %v2544, 4
      %v2546 = vmax.f32 %v2544, %v2545
      %v2547 = vrot.slane %v2546, 2
      %v2548 = vmax.f32 %v2546, %v2547
      %v2549 = vrot.slane %v2548, 1
      %v2550 = vmax.f32 %v2548, %v2549
      %v2551 = vsel %vm218, %v1473, -inf
      %v2552 = vrot.slane %v2551, 4
      %v2553 = vmax.f32 %v2551, %v2552
      %v2554 = vrot.slane %v2553, 2
      %v2555 = vmax.f32 %v2553, %v2554
      %v2556 = vrot.slane %v2555, 1
      %v2557 = vmax.f32 %v2555, %v2556
      %v2558 = vsel %vm218, %v1474, -inf
      %v2559 = vrot.slane %v2558, 4
      %v2560 = vmax.f32 %v2558, %v2559
      %v2561 = vrot.slane %v2560, 2
      %v2562 = vmax.f32 %v2560, %v2561
      %v2563 = vrot.slane %v2562, 1
      %v2564 = vmax.f32 %v2562, %v2563
      %v2565 = vsel %vm218, %v1475, -inf
      %v2566 = vrot.slane %v2565, 4
      %v2567 = vmax.f32 %v2565, %v2566
      %v2568 = vrot.slane %v2567, 2
      %v2569 = vmax.f32 %v2567, %v2568
      %v2570 = vrot.slane %v2569, 1
      %v2571 = vmax.f32 %v2569, %v2570
      %v2572 = vsel %vm218, %v1476, -inf
      %v2573 = vrot.slane %v2572, 4
      %v2574 = vmax.f32 %v2572, %v2573
      %v2575 = vrot.slane %v2574, 2
      %v2576 = vmax.f32 %v2574, %v2575
      %v2577 = vrot.slane %v2576, 1
      %v2578 = vmax.f32 %v2576, %v2577
      %v2579 = vsel %vm218, %v1477, -inf
      %v2580 = vrot.slane %v2579, 4
      %v2581 = vmax.f32 %v2579, %v2580
      %v2582 = vrot.slane %v2581, 2
      %v2583 = vmax.f32 %v2581, %v2582
      %v2584 = vrot.slane %v2583, 1
      %v2585 = vmax.f32 %v2583, %v2584
      %v2586 = vsel %vm218, %v1478, -inf
      %v2587 = vrot.slane %v2586, 4
      %v2588 = vmax.f32 %v2586, %v2587
      %v2589 = vrot.slane %v2588, 2
      %v2590 = vmax.f32 %v2588, %v2589
      %v2591 = vrot.slane %v2590, 1
      %v2592 = vmax.f32 %v2590, %v2591
      %v2593 = vsel %vm218, %v1479, -inf
      %v2594 = vrot.slane %v2593, 4
      %v2595 = vmax.f32 %v2593, %v2594
      %v2596 = vrot.slane %v2595, 2
      %v2597 = vmax.f32 %v2595, %v2596
      %v2598 = vrot.slane %v2597, 1
      %v2599 = vmax.f32 %v2597, %v2598
      %2600 = vst.msk [vmem:[#allocation3 + $0x1] sm:$0x1] %vm779, %v2116
      %2601 = vst.msk [vmem:[#allocation3 + $0x9] sm:$0x1] %vm779, %v2123
      %2602 = vst.msk [vmem:[#allocation3 + $0x11] sm:$0x1] %vm779, %v2130
      %2603 = vst.msk [vmem:[#allocation3 + $0x19] sm:$0x1] %vm779, %v2137
      %2604 = vst.msk [vmem:[#allocation3 + $0x21] sm:$0x1] %vm779, %v2144
      %2605 = vst.msk [vmem:[#allocation3 + $0x29] sm:$0x1] %vm779, %v2151
      %2606 = vst.msk [vmem:[#allocation3 + $0x31] sm:$0x1] %vm779, %v2158
      %2607 = vst.msk [vmem:[#allocation3 + $0x39] sm:$0x1] %vm779, %v2165
      %2608 = vst.msk [vmem:[#allocation3 + $0x41] sm:$0x1] %vm779, %v2172
      %2609 = vst.msk [vmem:[#allocation3 + $0x49] sm:$0x1] %vm779, %v2179
      %2610 = vst.msk [vmem:[#allocation3 + $0x51] sm:$0x1] %vm779, %v2186
      %2611 = vst.msk [vmem:[#allocation3 + $0x59] sm:$0x1] %vm779, %v2193
      %2612 = vst.msk [vmem:[#allocation3 + $0x61] sm:$0x1] %vm779, %v2200
      %2613 = vst.msk [vmem:[#allocation3 + $0x69] sm:$0x1] %vm779, %v2207
      %2614 = vst.msk [vmem:[#allocation3 + $0x71] sm:$0x1] %vm779, %v2214
      %2615 = vst.msk [vmem:[#allocation3 + $0x79] sm:$0x1] %vm779, %v2221
      %2616 = vst.msk [vmem:[#allocation3 + $0x81] sm:$0x1] %vm779, %v2228
      %2617 = vst.msk [vmem:[#allocation3 + $0x89] sm:$0x1] %vm779, %v2235
      %2618 = vst.msk [vmem:[#allocation3 + $0x91] sm:$0x1] %vm779, %v2242
      %2619 = vst.msk [vmem:[#allocation3 + $0x99] sm:$0x1] %vm779, %v2249
      %2620 = vst.msk [vmem:[#allocation3 + $0xa1] sm:$0x1] %vm779, %v2256
      %2621 = vst.msk [vmem:[#allocation3 + $0xa9] sm:$0x1] %vm779, %v2263
      %2622 = vst.msk [vmem:[#allocation3 + $0xb1] sm:$0x1] %vm779, %v2270
      %2623 = vst.msk [vmem:[#allocation3 + $0xb9] sm:$0x1] %vm779, %v2277
      %2624 = vst.msk [vmem:[#allocation3 + $0xc1] sm:$0x1] %vm779, %v2284
      %2625 = vst.msk [vmem:[#allocation3 + $0xc9] sm:$0x1] %vm779, %v2291
      %2626 = vst.msk [vmem:[#allocation3 + $0xd1] sm:$0x1] %vm779, %v2298
      %2627 = vst.msk [vmem:[#allocation3 + $0xd9] sm:$0x1] %vm779, %v2305
      %2628 = vst.msk [vmem:[#allocation3 + $0xe1] sm:$0x1] %vm779, %v2312
      %2629 = vst.msk [vmem:[#allocation3 + $0xe9] sm:$0x1] %vm779, %v2319
      %2630 = vst.msk [vmem:[#allocation3 + $0xf1] sm:$0x1] %vm779, %v2326
      %2631 = vst.msk [vmem:[#allocation3 + $0xf9] sm:$0x1] %vm779, %v2333
      %2632 = vst.msk [vmem:[#allocation3 + $0x101] sm:$0x1] %vm779, %v2340
      %2633 = vst.msk [vmem:[#allocation3 + $0x109] sm:$0x1] %vm779, %v2347
      %2634 = vst.msk [vmem:[#allocation3 + $0x111] sm:$0x1] %vm779, %v2354
      %2635 = vst.msk [vmem:[#allocation3 + $0x119] sm:$0x1] %vm779, %v2361
      %2636 = vst.msk [vmem:[#allocation3 + $0x121] sm:$0x1] %vm779, %v2368
      %2637 = vst.msk [vmem:[#allocation3 + $0x129] sm:$0x1] %vm779, %v2375
      %2638 = vst.msk [vmem:[#allocation3 + $0x131] sm:$0x1] %vm779, %v2382
      %2639 = vst.msk [vmem:[#allocation3 + $0x139] sm:$0x1] %vm779, %v2389
      %2640 = vst.msk [vmem:[#allocation3 + $0x141] sm:$0x1] %vm779, %v2396
      %2641 = vst.msk [vmem:[#allocation3 + $0x149] sm:$0x1] %vm779, %v2403
      %2642 = vst.msk [vmem:[#allocation3 + $0x151] sm:$0x1] %vm779, %v2410
      %2643 = vst.msk [vmem:[#allocation3 + $0x159] sm:$0x1] %vm779, %v2417
      %2644 = vst.msk [vmem:[#allocation3 + $0x161] sm:$0x1] %vm779, %v2424
      %2645 = vst.msk [vmem:[#allocation3 + $0x169] sm:$0x1] %vm779, %v2431
      %2646 = vst.msk [vmem:[#allocation3 + $0x171] sm:$0x1] %vm779, %v2438
      %2647 = vst.msk [vmem:[#allocation3 + $0x179] sm:$0x1] %vm779, %v2445
      %2648 = vst.msk [vmem:[#allocation3 + $0x181] sm:$0x1] %vm779, %v2452
      %2649 = vst.msk [vmem:[#allocation3 + $0x189] sm:$0x1] %vm779, %v2459
      %2650 = vst.msk [vmem:[#allocation3 + $0x191] sm:$0x1] %vm779, %v2466
      %2651 = vst.msk [vmem:[#allocation3 + $0x199] sm:$0x1] %vm779, %v2473
      %2652 = vst.msk [vmem:[#allocation3 + $0x1a1] sm:$0x1] %vm779, %v2480
      %2653 = vst.msk [vmem:[#allocation3 + $0x1a9] sm:$0x1] %vm779, %v2487
      %2654 = vst.msk [vmem:[#allocation3 + $0x1b1] sm:$0x1] %vm779, %v2494
      %2655 = vst.msk [vmem:[#allocation3 + $0x1b9] sm:$0x1] %vm779, %v2501
      %2656 = vst.msk [vmem:[#allocation3 + $0x1c1] sm:$0x1] %vm779, %v2508
      %2657 = vst.msk [vmem:[#allocation3 + $0x1c9] sm:$0x1] %vm779, %v2515
      %2658 = vst.msk [vmem:[#allocation3 + $0x1d1] sm:$0x1] %vm779, %v2522
      %2659 = vst.msk [vmem:[#allocation3 + $0x1d9] sm:$0x1] %vm779, %v2529
      %2660 = vst.msk [vmem:[#allocation3 + $0x1e1] sm:$0x1] %vm779, %v2536
      %2661 = vst.msk [vmem:[#allocation3 + $0x1e9] sm:$0x1] %vm779, %v2543
      %2662 = vst.msk [vmem:[#allocation3 + $0x1f1] sm:$0x1] %vm779, %v2550
      %2663 = vst.msk [vmem:[#allocation3 + $0x1f9] sm:$0x1] %vm779, %v2557
      %2664 = vst.msk [vmem:[#allocation3 + $0x201] sm:$0x1] %vm779, %v2564
      %2665 = vst.msk [vmem:[#allocation3 + $0x209] sm:$0x1] %vm779, %v2571
      %2666 = vst.msk [vmem:[#allocation3 + $0x211] sm:$0x1] %vm779, %v2578
      %2667 = vst.msk [vmem:[#allocation3 + $0x219] sm:$0x1] %vm779, %v2585
      %2668 = vst.msk [vmem:[#allocation3 + $0x221] sm:$0x1] %vm779, %v2592
      %2669 = vst.msk [vmem:[#allocation3 + $0x229] sm:$0x1] %vm779, %v2599
      %v2670 = vld [vmem:[%s139 + $0x6] sm:$0xf]
      %v2671 = vld [vmem:[%s139 + $0x16] sm:$0xf]
      %v2672 = vld [vmem:[%s139 + $0x26] sm:$0xf]
      %v2673 = vld [vmem:[%s139 + $0x36] sm:$0xf]
      %v2674 = vld [vmem:[%s139 + $0x46] sm:$0xf]
      %v2675 = vld [vmem:[%s139 + $0x56] sm:$0xf]
      %v2676 = vld [vmem:[%s139 + $0x66] sm:$0xf]
      %v2677 = vld [vmem:[%s139 + $0x76] sm:$0xf]
      %v2678 = vld [vmem:[%s139 + $0x86] sm:$0xf]
      %v2679 = vld [vmem:[%s139 + $0x96] sm:$0xf]
      %v2680 = vld [vmem:[%s139 + $0xa6] sm:$0xf]
      %v2681 = vld [vmem:[%s139 + $0xb6] sm:$0xf]
      %v2682 = vld [vmem:[%s139 + $0xc6] sm:$0xf]
      %v2683 = vld [vmem:[%s139 + $0xd6] sm:$0xf]
      %v2684 = vld [vmem:[%s139 + $0xe6] sm:$0xf]
      %v2685 = vld [vmem:[%s139 + $0xf6] sm:$0xf]
      %v2686 = vld [vmem:[%s139 + $0x106] sm:$0xf]
      %v2687 = vld [vmem:[%s139 + $0x116] sm:$0xf]
      %v2688 = vld [vmem:[%s139 + $0x126] sm:$0xf]
      %v2689 = vld [vmem:[%s139 + $0x136] sm:$0xf]
      %v2690 = vld [vmem:[%s139 + $0x146] sm:$0xf]
      %v2691 = vld [vmem:[%s139 + $0x156] sm:$0xf]
      %v2692 = vld [vmem:[%s139 + $0x166] sm:$0xf]
      %v2693 = vld [vmem:[%s139 + $0x176] sm:$0xf]
      %v2694 = vld [vmem:[%s139 + $0x186] sm:$0xf]
      %v2695 = vld [vmem:[%s139 + $0x196] sm:$0xf]
      %v2696 = vld [vmem:[%s139 + $0x1a6] sm:$0xf]
      %v2697 = vld [vmem:[%s139 + $0x1b6] sm:$0xf]
      %v2698 = vld [vmem:[%s139 + $0x1c6] sm:$0xf]
      %v2699 = vld [vmem:[%s139 + $0x1d6] sm:$0xf]
      %v2700 = vld [vmem:[%s139 + $0x1e6] sm:$0xf]
      %v2701 = vld [vmem:[%s139 + $0x1f6] sm:$0xf]
      %v2702 = vld [vmem:[%s139 + $0x206] sm:$0xf]
      %v2703 = vld [vmem:[%s139 + $0x216] sm:$0xf]
      %v2704 = vld [vmem:[%s139 + $0x226] sm:$0xf]
      %v2705 = vld [vmem:[%s139 + $0x236] sm:$0xf]
      %v2706 = vld [vmem:[%s139 + $0x246] sm:$0xf]
      %v2707 = vld [vmem:[%s139 + $0x256] sm:$0xf]
      %v2708 = vld [vmem:[%s139 + $0x266] sm:$0xf]
      %v2709 = vld [vmem:[%s139 + $0x276] sm:$0xf]
      %v2710 = vld [vmem:[%s139 + $0x286] sm:$0xf]
      %v2711 = vld [vmem:[%s139 + $0x296] sm:$0xf]
      %v2712 = vld [vmem:[%s139 + $0x2a6] sm:$0xf]
      %v2713 = vld [vmem:[%s139 + $0x2b6] sm:$0xf]
      %v2714 = vld [vmem:[%s139 + $0x2c6] sm:$0xf]
      %v2715 = vld [vmem:[%s139 + $0x2d6] sm:$0xf]
      %v2716 = vld [vmem:[%s139 + $0x2e6] sm:$0xf]
      %v2717 = vld [vmem:[%s139 + $0x2f6] sm:$0xf]
      %v2718 = vld [vmem:[%s139 + $0x306] sm:$0xf]
      %v2719 = vld [vmem:[%s139 + $0x316] sm:$0xf]
      %v2720 = vld [vmem:[%s139 + $0x326] sm:$0xf]
      %v2721 = vld [vmem:[%s139 + $0x336] sm:$0xf]
      %v2722 = vld [vmem:[%s139 + $0x346] sm:$0xf]
      %v2723 = vld [vmem:[%s139 + $0x356] sm:$0xf]
      %v2724 = vld [vmem:[%s139 + $0x366] sm:$0xf]
      %v2725 = vld [vmem:[%s139 + $0x376] sm:$0xf]
      %v2726 = vld [vmem:[%s139 + $0x386] sm:$0xf]
      %v2727 = vld [vmem:[%s139 + $0x396] sm:$0xf]
      %v2728 = vld [vmem:[%s139 + $0x3a6] sm:$0xf]
      %v2729 = vld [vmem:[%s139 + $0x3b6] sm:$0xf]
      %v2730 = vld [vmem:[%s139 + $0x3c6] sm:$0xf]
      %v2731 = vld [vmem:[%s139 + $0x3d6] sm:$0xf]
      %v2732 = vld [vmem:[%s139 + $0x3e6] sm:$0xf]
      %v2733 = vld [vmem:[%s139 + $0x3f6] sm:$0xf]
      %v2734 = vld [vmem:[%s139 + $0x406] sm:$0xf]
      %v2735 = vld [vmem:[%s139 + $0x416] sm:$0xf]
      %v2736 = vld [vmem:[%s139 + $0x426] sm:$0xf]
      %v2737 = vld [vmem:[%s139 + $0x436] sm:$0xf]
      %v2738 = vld [vmem:[%s139 + $0x446] sm:$0xf]
      %v2739 = vld [vmem:[%s139 + $0x456] sm:$0xf]
      %v2740 = vsel %vm218, %v2670, 0.0
      %v2741 = vrot.slane %v2740, 4
      %v2742 = vadd.f32 %v2740, %v2741
      %v2743 = vrot.slane %v2742, 2
      %v2744 = vadd.f32 %v2742, %v2743
      %v2745 = vrot.slane %v2744, 1
      %v2746 = vadd.f32 %v2744, %v2745
      %v2747 = vsel %vm218, %v2671, 0.0
      %v2748 = vrot.slane %v2747, 4
      %v2749 = vadd.f32 %v2747, %v2748
      %v2750 = vrot.slane %v2749, 2
      %v2751 = vadd.f32 %v2749, %v2750
      %v2752 = vrot.slane %v2751, 1
      %v2753 = vadd.f32 %v2751, %v2752
      %v2754 = vsel %vm218, %v2672, 0.0
      %v2755 = vrot.slane %v2754, 4
      %v2756 = vadd.f32 %v2754, %v2755
      %v2757 = vrot.slane %v2756, 2
      %v2758 = vadd.f32 %v2756, %v2757
      %v2759 = vrot.slane %v2758, 1
      %v2760 = vadd.f32 %v2758, %v2759
      %v2761 = vsel %vm218, %v2673, 0.0
      %v2762 = vrot.slane %v2761, 4
      %v2763 = vadd.f32 %v2761, %v2762
      %v2764 = vrot.slane %v2763, 2
      %v2765 = vadd.f32 %v2763, %v2764
      %v2766 = vrot.slane %v2765, 1
      %v2767 = vadd.f32 %v2765, %v2766
      %v2768 = vsel %vm218, %v2674, 0.0
      %v2769 = vrot.slane %v2768, 4
      %v2770 = vadd.f32 %v2768, %v2769
      %v2771 = vrot.slane %v2770, 2
      %v2772 = vadd.f32 %v2770, %v2771
      %v2773 = vrot.slane %v2772, 1
      %v2774 = vadd.f32 %v2772, %v2773
      %v2775 = vsel %vm218, %v2675, 0.0
      %v2776 = vrot.slane %v2775, 4
      %v2777 = vadd.f32 %v2775, %v2776
      %v2778 = vrot.slane %v2777, 2
      %v2779 = vadd.f32 %v2777, %v2778
      %v2780 = vrot.slane %v2779, 1
      %v2781 = vadd.f32 %v2779, %v2780
      %v2782 = vsel %vm218, %v2676, 0.0
      %v2783 = vrot.slane %v2782, 4
      %v2784 = vadd.f32 %v2782, %v2783
      %v2785 = vrot.slane %v2784, 2
      %v2786 = vadd.f32 %v2784, %v2785
      %v2787 = vrot.slane %v2786, 1
      %v2788 = vadd.f32 %v2786, %v2787
      %v2789 = vsel %vm218, %v2677, 0.0
      %v2790 = vrot.slane %v2789, 4
      %v2791 = vadd.f32 %v2789, %v2790
      %v2792 = vrot.slane %v2791, 2
      %v2793 = vadd.f32 %v2791, %v2792
      %v2794 = vrot.slane %v2793, 1
      %v2795 = vadd.f32 %v2793, %v2794
      %v2796 = vsel %vm218, %v2678, 0.0
      %v2797 = vrot.slane %v2796, 4
      %v2798 = vadd.f32 %v2796, %v2797
      %v2799 = vrot.slane %v2798, 2
      %v2800 = vadd.f32 %v2798, %v2799
      %v2801 = vrot.slane %v2800, 1
      %v2802 = vadd.f32 %v2800, %v2801
      %v2803 = vsel %vm218, %v2679, 0.0
      %v2804 = vrot.slane %v2803, 4
      %v2805 = vadd.f32 %v2803, %v2804
      %v2806 = vrot.slane %v2805, 2
      %v2807 = vadd.f32 %v2805, %v2806
      %v2808 = vrot.slane %v2807, 1
      %v2809 = vadd.f32 %v2807, %v2808
      %v2810 = vsel %vm218, %v2680, 0.0
      %v2811 = vrot.slane %v2810, 4
      %v2812 = vadd.f32 %v2810, %v2811
      %v2813 = vrot.slane %v2812, 2
      %v2814 = vadd.f32 %v2812, %v2813
      %v2815 = vrot.slane %v2814, 1
      %v2816 = vadd.f32 %v2814, %v2815
      %v2817 = vsel %vm218, %v2681, 0.0
      %v2818 = vrot.slane %v2817, 4
      %v2819 = vadd.f32 %v2817, %v2818
      %v2820 = vrot.slane %v2819, 2
      %v2821 = vadd.f32 %v2819, %v2820
      %v2822 = vrot.slane %v2821, 1
      %v2823 = vadd.f32 %v2821, %v2822
      %v2824 = vsel %vm218, %v2682, 0.0
      %v2825 = vrot.slane %v2824, 4
      %v2826 = vadd.f32 %v2824, %v2825
      %v2827 = vrot.slane %v2826, 2
      %v2828 = vadd.f32 %v2826, %v2827
      %v2829 = vrot.slane %v2828, 1
      %v2830 = vadd.f32 %v2828, %v2829
      %v2831 = vsel %vm218, %v2683, 0.0
      %v2832 = vrot.slane %v2831, 4
      %v2833 = vadd.f32 %v2831, %v2832
      %v2834 = vrot.slane %v2833, 2
      %v2835 = vadd.f32 %v2833, %v2834
      %v2836 = vrot.slane %v2835, 1
      %v2837 = vadd.f32 %v2835, %v2836
      %v2838 = vsel %vm218, %v2684, 0.0
      %v2839 = vrot.slane %v2838, 4
      %v2840 = vadd.f32 %v2838, %v2839
      %v2841 = vrot.slane %v2840, 2
      %v2842 = vadd.f32 %v2840, %v2841
      %v2843 = vrot.slane %v2842, 1
      %v2844 = vadd.f32 %v2842, %v2843
      %v2845 = vsel %vm218, %v2685, 0.0
      %v2846 = vrot.slane %v2845, 4
      %v2847 = vadd.f32 %v2845, %v2846
      %v2848 = vrot.slane %v2847, 2
      %v2849 = vadd.f32 %v2847, %v2848
      %v2850 = vrot.slane %v2849, 1
      %v2851 = vadd.f32 %v2849, %v2850
      %v2852 = vsel %vm218, %v2686, 0.0
      %v2853 = vrot.slane %v2852, 4
      %v2854 = vadd.f32 %v2852, %v2853
      %v2855 = vrot.slane %v2854, 2
      %v2856 = vadd.f32 %v2854, %v2855
      %v2857 = vrot.slane %v2856, 1
      %v2858 = vadd.f32 %v2856, %v2857
      %v2859 = vsel %vm218, %v2687, 0.0
      %v2860 = vrot.slane %v2859, 4
      %v2861 = vadd.f32 %v2859, %v2860
      %v2862 = vrot.slane %v2861, 2
      %v2863 = vadd.f32 %v2861, %v2862
      %v2864 = vrot.slane %v2863, 1
      %v2865 = vadd.f32 %v2863, %v2864
      %v2866 = vsel %vm218, %v2688, 0.0
      %v2867 = vrot.slane %v2866, 4
      %v2868 = vadd.f32 %v2866, %v2867
      %v2869 = vrot.slane %v2868, 2
      %v2870 = vadd.f32 %v2868, %v2869
      %v2871 = vrot.slane %v2870, 1
      %v2872 = vadd.f32 %v2870, %v2871
      %v2873 = vsel %vm218, %v2689, 0.0
      %v2874 = vrot.slane %v2873, 4
      %v2875 = vadd.f32 %v2873, %v2874
      %v2876 = vrot.slane %v2875, 2
      %v2877 = vadd.f32 %v2875, %v2876
      %v2878 = vrot.slane %v2877, 1
      %v2879 = vadd.f32 %v2877, %v2878
      %v2880 = vsel %vm218, %v2690, 0.0
      %v2881 = vrot.slane %v2880, 4
      %v2882 = vadd.f32 %v2880, %v2881
      %v2883 = vrot.slane %v2882, 2
      %v2884 = vadd.f32 %v2882, %v2883
      %v2885 = vrot.slane %v2884, 1
      %v2886 = vadd.f32 %v2884, %v2885
      %v2887 = vsel %vm218, %v2691, 0.0
      %v2888 = vrot.slane %v2887, 4
      %v2889 = vadd.f32 %v2887, %v2888
      %v2890 = vrot.slane %v2889, 2
      %v2891 = vadd.f32 %v2889, %v2890
      %v2892 = vrot.slane %v2891, 1
      %v2893 = vadd.f32 %v2891, %v2892
      %v2894 = vsel %vm218, %v2692, 0.0
      %v2895 = vrot.slane %v2894, 4
      %v2896 = vadd.f32 %v2894, %v2895
      %v2897 = vrot.slane %v2896, 2
      %v2898 = vadd.f32 %v2896, %v2897
      %v2899 = vrot.slane %v2898, 1
      %v2900 = vadd.f32 %v2898, %v2899
      %v2901 = vsel %vm218, %v2693, 0.0
      %v2902 = vrot.slane %v2901, 4
      %v2903 = vadd.f32 %v2901, %v2902
      %v2904 = vrot.slane %v2903, 2
      %v2905 = vadd.f32 %v2903, %v2904
      %v2906 = vrot.slane %v2905, 1
      %v2907 = vadd.f32 %v2905, %v2906
      %v2908 = vsel %vm218, %v2694, 0.0
      %v2909 = vrot.slane %v2908, 4
      %v2910 = vadd.f32 %v2908, %v2909
      %v2911 = vrot.slane %v2910, 2
      %v2912 = vadd.f32 %v2910, %v2911
      %v2913 = vrot.slane %v2912, 1
      %v2914 = vadd.f32 %v2912, %v2913
      %v2915 = vsel %vm218, %v2695, 0.0
      %v2916 = vrot.slane %v2915, 4
      %v2917 = vadd.f32 %v2915, %v2916
      %v2918 = vrot.slane %v2917, 2
      %v2919 = vadd.f32 %v2917, %v2918
      %v2920 = vrot.slane %v2919, 1
      %v2921 = vadd.f32 %v2919, %v2920
      %v2922 = vsel %vm218, %v2696, 0.0
      %v2923 = vrot.slane %v2922, 4
      %v2924 = vadd.f32 %v2922, %v2923
      %v2925 = vrot.slane %v2924, 2
      %v2926 = vadd.f32 %v2924, %v2925
      %v2927 = vrot.slane %v2926, 1
      %v2928 = vadd.f32 %v2926, %v2927
      %v2929 = vsel %vm218, %v2697, 0.0
      %v2930 = vrot.slane %v2929, 4
      %v2931 = vadd.f32 %v2929, %v2930
      %v2932 = vrot.slane %v2931, 2
      %v2933 = vadd.f32 %v2931, %v2932
      %v2934 = vrot.slane %v2933, 1
      %v2935 = vadd.f32 %v2933, %v2934
      %v2936 = vsel %vm218, %v2698, 0.0
      %v2937 = vrot.slane %v2936, 4
      %v2938 = vadd.f32 %v2936, %v2937
      %v2939 = vrot.slane %v2938, 2
      %v2940 = vadd.f32 %v2938, %v2939
      %v2941 = vrot.slane %v2940, 1
      %v2942 = vadd.f32 %v2940, %v2941
      %v2943 = vsel %vm218, %v2699, 0.0
      %v2944 = vrot.slane %v2943, 4
      %v2945 = vadd.f32 %v2943, %v2944
      %v2946 = vrot.slane %v2945, 2
      %v2947 = vadd.f32 %v2945, %v2946
      %v2948 = vrot.slane %v2947, 1
      %v2949 = vadd.f32 %v2947, %v2948
      %v2950 = vsel %vm218, %v2700, 0.0
      %v2951 = vrot.slane %v2950, 4
      %v2952 = vadd.f32 %v2950, %v2951
      %v2953 = vrot.slane %v2952, 2
      %v2954 = vadd.f32 %v2952, %v2953
      %v2955 = vrot.slane %v2954, 1
      %v2956 = vadd.f32 %v2954, %v2955
      %v2957 = vsel %vm218, %v2701, 0.0
      %v2958 = vrot.slane %v2957, 4
      %v2959 = vadd.f32 %v2957, %v2958
      %v2960 = vrot.slane %v2959, 2
      %v2961 = vadd.f32 %v2959, %v2960
      %v2962 = vrot.slane %v2961, 1
      %v2963 = vadd.f32 %v2961, %v2962
      %v2964 = vsel %vm218, %v2702, 0.0
      %v2965 = vrot.slane %v2964, 4
      %v2966 = vadd.f32 %v2964, %v2965
      %v2967 = vrot.slane %v2966, 2
      %v2968 = vadd.f32 %v2966, %v2967
      %v2969 = vrot.slane %v2968, 1
      %v2970 = vadd.f32 %v2968, %v2969
      %v2971 = vsel %vm218, %v2703, 0.0
      %v2972 = vrot.slane %v2971, 4
      %v2973 = vadd.f32 %v2971, %v2972
      %v2974 = vrot.slane %v2973, 2
      %v2975 = vadd.f32 %v2973, %v2974
      %v2976 = vrot.slane %v2975, 1
      %v2977 = vadd.f32 %v2975, %v2976
      %v2978 = vsel %vm218, %v2704, 0.0
      %v2979 = vrot.slane %v2978, 4
      %v2980 = vadd.f32 %v2978, %v2979
      %v2981 = vrot.slane %v2980, 2
      %v2982 = vadd.f32 %v2980, %v2981
      %v2983 = vrot.slane %v2982, 1
      %v2984 = vadd.f32 %v2982, %v2983
      %v2985 = vsel %vm218, %v2705, 0.0
      %v2986 = vrot.slane %v2985, 4
      %v2987 = vadd.f32 %v2985, %v2986
      %v2988 = vrot.slane %v2987, 2
      %v2989 = vadd.f32 %v2987, %v2988
      %v2990 = vrot.slane %v2989, 1
      %v2991 = vadd.f32 %v2989, %v2990
      %v2992 = vsel %vm218, %v2706, 0.0
      %v2993 = vrot.slane %v2992, 4
      %v2994 = vadd.f32 %v2992, %v2993
      %v2995 = vrot.slane %v2994, 2
      %v2996 = vadd.f32 %v2994, %v2995
      %v2997 = vrot.slane %v2996, 1
      %v2998 = vadd.f32 %v2996, %v2997
      %v2999 = vsel %vm218, %v2707, 0.0
      %v3000 = vrot.slane %v2999, 4
      %v3001 = vadd.f32 %v2999, %v3000
      %v3002 = vrot.slane %v3001, 2
      %v3003 = vadd.f32 %v3001, %v3002
      %v3004 = vrot.slane %v3003, 1
      %v3005 = vadd.f32 %v3003, %v3004
      %v3006 = vsel %vm218, %v2708, 0.0
      %v3007 = vrot.slane %v3006, 4
      %v3008 = vadd.f32 %v3006, %v3007
      %v3009 = vrot.slane %v3008, 2
      %v3010 = vadd.f32 %v3008, %v3009
      %v3011 = vrot.slane %v3010, 1
      %v3012 = vadd.f32 %v3010, %v3011
      %v3013 = vsel %vm218, %v2709, 0.0
      %v3014 = vrot.slane %v3013, 4
      %v3015 = vadd.f32 %v3013, %v3014
      %v3016 = vrot.slane %v3015, 2
      %v3017 = vadd.f32 %v3015, %v3016
      %v3018 = vrot.slane %v3017, 1
      %v3019 = vadd.f32 %v3017, %v3018
      %v3020 = vsel %vm218, %v2710, 0.0
      %v3021 = vrot.slane %v3020, 4
      %v3022 = vadd.f32 %v3020, %v3021
      %v3023 = vrot.slane %v3022, 2
      %v3024 = vadd.f32 %v3022, %v3023
      %v3025 = vrot.slane %v3024, 1
      %v3026 = vadd.f32 %v3024, %v3025
      %v3027 = vsel %vm218, %v2711, 0.0
      %v3028 = vrot.slane %v3027, 4
      %v3029 = vadd.f32 %v3027, %v3028
      %v3030 = vrot.slane %v3029, 2
      %v3031 = vadd.f32 %v3029, %v3030
      %v3032 = vrot.slane %v3031, 1
      %v3033 = vadd.f32 %v3031, %v3032
      %v3034 = vsel %vm218, %v2712, 0.0
      %v3035 = vrot.slane %v3034, 4
      %v3036 = vadd.f32 %v3034, %v3035
      %v3037 = vrot.slane %v3036, 2
      %v3038 = vadd.f32 %v3036, %v3037
      %v3039 = vrot.slane %v3038, 1
      %v3040 = vadd.f32 %v3038, %v3039
      %v3041 = vsel %vm218, %v2713, 0.0
      %v3042 = vrot.slane %v3041, 4
      %v3043 = vadd.f32 %v3041, %v3042
      %v3044 = vrot.slane %v3043, 2
      %v3045 = vadd.f32 %v3043, %v3044
      %v3046 = vrot.slane %v3045, 1
      %v3047 = vadd.f32 %v3045, %v3046
      %v3048 = vsel %vm218, %v2714, 0.0
      %v3049 = vrot.slane %v3048, 4
      %v3050 = vadd.f32 %v3048, %v3049
      %v3051 = vrot.slane %v3050, 2
      %v3052 = vadd.f32 %v3050, %v3051
      %v3053 = vrot.slane %v3052, 1
      %v3054 = vadd.f32 %v3052, %v3053
      %v3055 = vsel %vm218, %v2715, 0.0
      %v3056 = vrot.slane %v3055, 4
      %v3057 = vadd.f32 %v3055, %v3056
      %v3058 = vrot.slane %v3057, 2
      %v3059 = vadd.f32 %v3057, %v3058
      %v3060 = vrot.slane %v3059, 1
      %v3061 = vadd.f32 %v3059, %v3060
      %v3062 = vsel %vm218, %v2716, 0.0
      %v3063 = vrot.slane %v3062, 4
      %v3064 = vadd.f32 %v3062, %v3063
      %v3065 = vrot.slane %v3064, 2
      %v3066 = vadd.f32 %v3064, %v3065
      %v3067 = vrot.slane %v3066, 1
      %v3068 = vadd.f32 %v3066, %v3067
      %v3069 = vsel %vm218, %v2717, 0.0
      %v3070 = vrot.slane %v3069, 4
      %v3071 = vadd.f32 %v3069, %v3070
      %v3072 = vrot.slane %v3071, 2
      %v3073 = vadd.f32 %v3071, %v3072
      %v3074 = vrot.slane %v3073, 1
      %v3075 = vadd.f32 %v3073, %v3074
      %v3076 = vsel %vm218, %v2718, 0.0
      %v3077 = vrot.slane %v3076, 4
      %v3078 = vadd.f32 %v3076, %v3077
      %v3079 = vrot.slane %v3078, 2
      %v3080 = vadd.f32 %v3078, %v3079
      %v3081 = vrot.slane %v3080, 1
      %v3082 = vadd.f32 %v3080, %v3081
      %v3083 = vsel %vm218, %v2719, 0.0
      %v3084 = vrot.slane %v3083, 4
      %v3085 = vadd.f32 %v3083, %v3084
      %v3086 = vrot.slane %v3085, 2
      %v3087 = vadd.f32 %v3085, %v3086
      %v3088 = vrot.slane %v3087, 1
      %v3089 = vadd.f32 %v3087, %v3088
      %v3090 = vsel %vm218, %v2720, 0.0
      %v3091 = vrot.slane %v3090, 4
      %v3092 = vadd.f32 %v3090, %v3091
      %v3093 = vrot.slane %v3092, 2
      %v3094 = vadd.f32 %v3092, %v3093
      %v3095 = vrot.slane %v3094, 1
      %v3096 = vadd.f32 %v3094, %v3095
      %v3097 = vsel %vm218, %v2721, 0.0
      %v3098 = vrot.slane %v3097, 4
      %v3099 = vadd.f32 %v3097, %v3098
      %v3100 = vrot.slane %v3099, 2
      %v3101 = vadd.f32 %v3099, %v3100
      %v3102 = vrot.slane %v3101, 1
      %v3103 = vadd.f32 %v3101, %v3102
      %v3104 = vsel %vm218, %v2722, 0.0
      %v3105 = vrot.slane %v3104, 4
      %v3106 = vadd.f32 %v3104, %v3105
      %v3107 = vrot.slane %v3106, 2
      %v3108 = vadd.f32 %v3106, %v3107
      %v3109 = vrot.slane %v3108, 1
      %v3110 = vadd.f32 %v3108, %v3109
      %v3111 = vsel %vm218, %v2723, 0.0
      %v3112 = vrot.slane %v3111, 4
      %v3113 = vadd.f32 %v3111, %v3112
      %v3114 = vrot.slane %v3113, 2
      %v3115 = vadd.f32 %v3113, %v3114
      %v3116 = vrot.slane %v3115, 1
      %v3117 = vadd.f32 %v3115, %v3116
      %v3118 = vsel %vm218, %v2724, 0.0
      %v3119 = vrot.slane %v3118, 4
      %v3120 = vadd.f32 %v3118, %v3119
      %v3121 = vrot.slane %v3120, 2
      %v3122 = vadd.f32 %v3120, %v3121
      %v3123 = vrot.slane %v3122, 1
      %v3124 = vadd.f32 %v3122, %v3123
      %v3125 = vsel %vm218, %v2725, 0.0
      %v3126 = vrot.slane %v3125, 4
      %v3127 = vadd.f32 %v3125, %v3126
      %v3128 = vrot.slane %v3127, 2
      %v3129 = vadd.f32 %v3127, %v3128
      %v3130 = vrot.slane %v3129, 1
      %v3131 = vadd.f32 %v3129, %v3130
      %v3132 = vsel %vm218, %v2726, 0.0
      %v3133 = vrot.slane %v3132, 4
      %v3134 = vadd.f32 %v3132, %v3133
      %v3135 = vrot.slane %v3134, 2
      %v3136 = vadd.f32 %v3134, %v3135
      %v3137 = vrot.slane %v3136, 1
      %v3138 = vadd.f32 %v3136, %v3137
      %v3139 = vsel %vm218, %v2727, 0.0
      %v3140 = vrot.slane %v3139, 4
      %v3141 = vadd.f32 %v3139, %v3140
      %v3142 = vrot.slane %v3141, 2
      %v3143 = vadd.f32 %v3141, %v3142
      %v3144 = vrot.slane %v3143, 1
      %v3145 = vadd.f32 %v3143, %v3144
      %v3146 = vsel %vm218, %v2728, 0.0
      %v3147 = vrot.slane %v3146, 4
      %v3148 = vadd.f32 %v3146, %v3147
      %v3149 = vrot.slane %v3148, 2
      %v3150 = vadd.f32 %v3148, %v3149
      %v3151 = vrot.slane %v3150, 1
      %v3152 = vadd.f32 %v3150, %v3151
      %v3153 = vsel %vm218, %v2729, 0.0
      %v3154 = vrot.slane %v3153, 4
      %v3155 = vadd.f32 %v3153, %v3154
      %v3156 = vrot.slane %v3155, 2
      %v3157 = vadd.f32 %v3155, %v3156
      %v3158 = vrot.slane %v3157, 1
      %v3159 = vadd.f32 %v3157, %v3158
      %v3160 = vsel %vm218, %v2730, 0.0
      %v3161 = vrot.slane %v3160, 4
      %v3162 = vadd.f32 %v3160, %v3161
      %v3163 = vrot.slane %v3162, 2
      %v3164 = vadd.f32 %v3162, %v3163
      %v3165 = vrot.slane %v3164, 1
      %v3166 = vadd.f32 %v3164, %v3165
      %v3167 = vsel %vm218, %v2731, 0.0
      %v3168 = vrot.slane %v3167, 4
      %v3169 = vadd.f32 %v3167, %v3168
      %v3170 = vrot.slane %v3169, 2
      %v3171 = vadd.f32 %v3169, %v3170
      %v3172 = vrot.slane %v3171, 1
      %v3173 = vadd.f32 %v3171, %v3172
      %v3174 = vsel %vm218, %v2732, 0.0
      %v3175 = vrot.slane %v3174, 4
      %v3176 = vadd.f32 %v3174, %v3175
      %v3177 = vrot.slane %v3176, 2
      %v3178 = vadd.f32 %v3176, %v3177
      %v3179 = vrot.slane %v3178, 1
      %v3180 = vadd.f32 %v3178, %v3179
      %v3181 = vsel %vm218, %v2733, 0.0
      %v3182 = vrot.slane %v3181, 4
      %v3183 = vadd.f32 %v3181, %v3182
      %v3184 = vrot.slane %v3183, 2
      %v3185 = vadd.f32 %v3183, %v3184
      %v3186 = vrot.slane %v3185, 1
      %v3187 = vadd.f32 %v3185, %v3186
      %v3188 = vsel %vm218, %v2734, 0.0
      %v3189 = vrot.slane %v3188, 4
      %v3190 = vadd.f32 %v3188, %v3189
      %v3191 = vrot.slane %v3190, 2
      %v3192 = vadd.f32 %v3190, %v3191
      %v3193 = vrot.slane %v3192, 1
      %v3194 = vadd.f32 %v3192, %v3193
      %v3195 = vsel %vm218, %v2735, 0.0
      %v3196 = vrot.slane %v3195, 4
      %v3197 = vadd.f32 %v3195, %v3196
      %v3198 = vrot.slane %v3197, 2
      %v3199 = vadd.f32 %v3197, %v3198
      %v3200 = vrot.slane %v3199, 1
      %v3201 = vadd.f32 %v3199, %v3200
      %v3202 = vsel %vm218, %v2736, 0.0
      %v3203 = vrot.slane %v3202, 4
      %v3204 = vadd.f32 %v3202, %v3203
      %v3205 = vrot.slane %v3204, 2
      %v3206 = vadd.f32 %v3204, %v3205
      %v3207 = vrot.slane %v3206, 1
      %v3208 = vadd.f32 %v3206, %v3207
      %v3209 = vsel %vm218, %v2737, 0.0
      %v3210 = vrot.slane %v3209, 4
      %v3211 = vadd.f32 %v3209, %v3210
      %v3212 = vrot.slane %v3211, 2
      %v3213 = vadd.f32 %v3211, %v3212
      %v3214 = vrot.slane %v3213, 1
      %v3215 = vadd.f32 %v3213, %v3214
      %v3216 = vsel %vm218, %v2738, 0.0
      %v3217 = vrot.slane %v3216, 4
      %v3218 = vadd.f32 %v3216, %v3217
      %v3219 = vrot.slane %v3218, 2
      %v3220 = vadd.f32 %v3218, %v3219
      %v3221 = vrot.slane %v3220, 1
      %v3222 = vadd.f32 %v3220, %v3221
      %v3223 = vsel %vm218, %v2739, 0.0
      %v3224 = vrot.slane %v3223, 4
      %v3225 = vadd.f32 %v3223, %v3224
      %v3226 = vrot.slane %v3225, 2
      %v3227 = vadd.f32 %v3225, %v3226
      %v3228 = vrot.slane %v3227, 1
      %v3229 = vadd.f32 %v3227, %v3228
      %v3230 = vmul.f32 %v2746, 0.25
      %v3231 = vmul.f32 %v2753, 0.25
      %v3232 = vmul.f32 %v2760, 0.25
      %v3233 = vmul.f32 %v2767, 0.25
      %v3234 = vmul.f32 %v2774, 0.25
      %v3235 = vmul.f32 %v2781, 0.25
      %v3236 = vmul.f32 %v2788, 0.25
      %v3237 = vmul.f32 %v2795, 0.25
      %v3238 = vmul.f32 %v2802, 0.25
      %v3239 = vmul.f32 %v2809, 0.25
      %v3240 = vmul.f32 %v2816, 0.25
      %v3241 = vmul.f32 %v2823, 0.25
      %v3242 = vmul.f32 %v2830, 0.25
      %v3243 = vmul.f32 %v2837, 0.25
      %v3244 = vmul.f32 %v2844, 0.25
      %v3245 = vmul.f32 %v2851, 0.25
      %v3246 = vmul.f32 %v2858, 0.25
      %v3247 = vmul.f32 %v2865, 0.25
      %v3248 = vmul.f32 %v2872, 0.25
      %v3249 = vmul.f32 %v2879, 0.25
      %v3250 = vmul.f32 %v2886, 0.25
      %v3251 = vmul.f32 %v2893, 0.25
      %v3252 = vmul.f32 %v2900, 0.25
      %v3253 = vmul.f32 %v2907, 0.25
      %v3254 = vmul.f32 %v2914, 0.25
      %v3255 = vmul.f32 %v2921, 0.25
      %v3256 = vmul.f32 %v2928, 0.25
      %v3257 = vmul.f32 %v2935, 0.25
      %v3258 = vmul.f32 %v2942, 0.25
      %v3259 = vmul.f32 %v2949, 0.25
      %v3260 = vmul.f32 %v2956, 0.25
      %v3261 = vmul.f32 %v2963, 0.25
      %v3262 = vmul.f32 %v2970, 0.25
      %v3263 = vmul.f32 %v2977, 0.25
      %v3264 = vmul.f32 %v2984, 0.25
      %v3265 = vmul.f32 %v2991, 0.25
      %v3266 = vmul.f32 %v2998, 0.25
      %v3267 = vmul.f32 %v3005, 0.25
      %v3268 = vmul.f32 %v3012, 0.25
      %v3269 = vmul.f32 %v3019, 0.25
      %v3270 = vmul.f32 %v3026, 0.25
      %v3271 = vmul.f32 %v3033, 0.25
      %v3272 = vmul.f32 %v3040, 0.25
      %v3273 = vmul.f32 %v3047, 0.25
      %v3274 = vmul.f32 %v3054, 0.25
      %v3275 = vmul.f32 %v3061, 0.25
      %v3276 = vmul.f32 %v3068, 0.25
      %v3277 = vmul.f32 %v3075, 0.25
      %v3278 = vmul.f32 %v3082, 0.25
      %v3279 = vmul.f32 %v3089, 0.25
      %v3280 = vmul.f32 %v3096, 0.25
      %v3281 = vmul.f32 %v3103, 0.25
      %v3282 = vmul.f32 %v3110, 0.25
      %v3283 = vmul.f32 %v3117, 0.25
      %v3284 = vmul.f32 %v3124, 0.25
      %v3285 = vmul.f32 %v3131, 0.25
      %v3286 = vmul.f32 %v3138, 0.25
      %v3287 = vmul.f32 %v3145, 0.25
      %v3288 = vmul.f32 %v3152, 0.25
      %v3289 = vmul.f32 %v3159, 0.25
      %v3290 = vmul.f32 %v3166, 0.25
      %v3291 = vmul.f32 %v3173, 0.25
      %v3292 = vmul.f32 %v3180, 0.25
      %v3293 = vmul.f32 %v3187, 0.25
      %v3294 = vmul.f32 %v3194, 0.25
      %v3295 = vmul.f32 %v3201, 0.25
      %v3296 = vmul.f32 %v3208, 0.25
      %v3297 = vmul.f32 %v3215, 0.25
      %v3298 = vmul.f32 %v3222, 0.25
      %v3299 = vmul.f32 %v3229, 0.25
      %3300 = vst.msk [vmem:[#allocation2 + $0x2] sm:$0x1] %vm779, %v3230
      %3301 = vst.msk [vmem:[#allocation2 + $0xa] sm:$0x1] %vm779, %v3231
      %3302 = vst.msk [vmem:[#allocation2 + $0x12] sm:$0x1] %vm779, %v3232
      %3303 = vst.msk [vmem:[#allocation2 + $0x1a] sm:$0x1] %vm779, %v3233
      %3304 = vst.msk [vmem:[#allocation2 + $0x22] sm:$0x1] %vm779, %v3234
      %3305 = vst.msk [vmem:[#allocation2 + $0x2a] sm:$0x1] %vm779, %v3235
      %3306 = vst.msk [vmem:[#allocation2 + $0x32] sm:$0x1] %vm779, %v3236
      %3307 = vst.msk [vmem:[#allocation2 + $0x3a] sm:$0x1] %vm779, %v3237
      %3308 = vst.msk [vmem:[#allocation2 + $0x42] sm:$0x1] %vm779, %v3238
      %3309 = vst.msk [vmem:[#allocation2 + $0x4a] sm:$0x1] %vm779, %v3239
      %3310 = vst.msk [vmem:[#allocation2 + $0x52] sm:$0x1] %vm779, %v3240
      %3311 = vst.msk [vmem:[#allocation2 + $0x5a] sm:$0x1] %vm779, %v3241
      %3312 = vst.msk [vmem:[#allocation2 + $0x62] sm:$0x1] %vm779, %v3242
      %3313 = vst.msk [vmem:[#allocation2 + $0x6a] sm:$0x1] %vm779, %v3243
      %3314 = vst.msk [vmem:[#allocation2 + $0x72] sm:$0x1] %vm779, %v3244
      %3315 = vst.msk [vmem:[#allocation2 + $0x7a] sm:$0x1] %vm779, %v3245
      %3316 = vst.msk [vmem:[#allocation2 + $0x82] sm:$0x1] %vm779, %v3246
      %3317 = vst.msk [vmem:[#allocation2 + $0x8a] sm:$0x1] %vm779, %v3247
      %3318 = vst.msk [vmem:[#allocation2 + $0x92] sm:$0x1] %vm779, %v3248
      %3319 = vst.msk [vmem:[#allocation2 + $0x9a] sm:$0x1] %vm779, %v3249
      %3320 = vst.msk [vmem:[#allocation2 + $0xa2] sm:$0x1] %vm779, %v3250
      %3321 = vst.msk [vmem:[#allocation2 + $0xaa] sm:$0x1] %vm779, %v3251
      %3322 = vst.msk [vmem:[#allocation2 + $0xb2] sm:$0x1] %vm779, %v3252
      %3323 = vst.msk [vmem:[#allocation2 + $0xba] sm:$0x1] %vm779, %v3253
      %3324 = vst.msk [vmem:[#allocation2 + $0xc2] sm:$0x1] %vm779, %v3254
      %3325 = vst.msk [vmem:[#allocation2 + $0xca] sm:$0x1] %vm779, %v3255
      %3326 = vst.msk [vmem:[#allocation2 + $0xd2] sm:$0x1] %vm779, %v3256
      %3327 = vst.msk [vmem:[#allocation2 + $0xda] sm:$0x1] %vm779, %v3257
      %3328 = vst.msk [vmem:[#allocation2 + $0xe2] sm:$0x1] %vm779, %v3258
      %3329 = vst.msk [vmem:[#allocation2 + $0xea] sm:$0x1] %vm779, %v3259
      %3330 = vst.msk [vmem:[#allocation2 + $0xf2] sm:$0x1] %vm779, %v3260
      %3331 = vst.msk [vmem:[#allocation2 + $0xfa] sm:$0x1] %vm779, %v3261
      %3332 = vst.msk [vmem:[#allocation2 + $0x102] sm:$0x1] %vm779, %v3262
      %3333 = vst.msk [vmem:[#allocation2 + $0x10a] sm:$0x1] %vm779, %v3263
      %3334 = vst.msk [vmem:[#allocation2 + $0x112] sm:$0x1] %vm779, %v3264
      %3335 = vst.msk [vmem:[#allocation2 + $0x11a] sm:$0x1] %vm779, %v3265
      %3336 = vst.msk [vmem:[#allocation2 + $0x122] sm:$0x1] %vm779, %v3266
      %3337 = vst.msk [vmem:[#allocation2 + $0x12a] sm:$0x1] %vm779, %v3267
      %3338 = vst.msk [vmem:[#allocation2 + $0x132] sm:$0x1] %vm779, %v3268
      %3339 = vst.msk [vmem:[#allocation2 + $0x13a] sm:$0x1] %vm779, %v3269
      %3340 = vst.msk [vmem:[#allocation2 + $0x142] sm:$0x1] %vm779, %v3270
      %3341 = vst.msk [vmem:[#allocation2 + $0x14a] sm:$0x1] %vm779, %v3271
      %3342 = vst.msk [vmem:[#allocation2 + $0x152] sm:$0x1] %vm779, %v3272
      %3343 = vst.msk [vmem:[#allocation2 + $0x15a] sm:$0x1] %vm779, %v3273
      %3344 = vst.msk [vmem:[#allocation2 + $0x162] sm:$0x1] %vm779, %v3274
      %3345 = vst.msk [vmem:[#allocation2 + $0x16a] sm:$0x1] %vm779, %v3275
      %3346 = vst.msk [vmem:[#allocation2 + $0x172] sm:$0x1] %vm779, %v3276
      %3347 = vst.msk [vmem:[#allocation2 + $0x17a] sm:$0x1] %vm779, %v3277
      %3348 = vst.msk [vmem:[#allocation2 + $0x182] sm:$0x1] %vm779, %v3278
      %3349 = vst.msk [vmem:[#allocation2 + $0x18a] sm:$0x1] %vm779, %v3279
      %3350 = vst.msk [vmem:[#allocation2 + $0x192] sm:$0x1] %vm779, %v3280
      %3351 = vst.msk [vmem:[#allocation2 + $0x19a] sm:$0x1] %vm779, %v3281
      %3352 = vst.msk [vmem:[#allocation2 + $0x1a2] sm:$0x1] %vm779, %v3282
      %3353 = vst.msk [vmem:[#allocation2 + $0x1aa] sm:$0x1] %vm779, %v3283
      %3354 = vst.msk [vmem:[#allocation2 + $0x1b2] sm:$0x1] %vm779, %v3284
      %3355 = vst.msk [vmem:[#allocation2 + $0x1ba] sm:$0x1] %vm779, %v3285
      %3356 = vst.msk [vmem:[#allocation2 + $0x1c2] sm:$0x1] %vm779, %v3286
      %3357 = vst.msk [vmem:[#allocation2 + $0x1ca] sm:$0x1] %vm779, %v3287
      %3358 = vst.msk [vmem:[#allocation2 + $0x1d2] sm:$0x1] %vm779, %v3288
      %3359 = vst.msk [vmem:[#allocation2 + $0x1da] sm:$0x1] %vm779, %v3289
      %3360 = vst.msk [vmem:[#allocation2 + $0x1e2] sm:$0x1] %vm779, %v3290
      %3361 = vst.msk [vmem:[#allocation2 + $0x1ea] sm:$0x1] %vm779, %v3291
      %3362 = vst.msk [vmem:[#allocation2 + $0x1f2] sm:$0x1] %vm779, %v3292
      %3363 = vst.msk [vmem:[#allocation2 + $0x1fa] sm:$0x1] %vm779, %v3293
      %3364 = vst.msk [vmem:[#allocation2 + $0x202] sm:$0x1] %vm779, %v3294
      %3365 = vst.msk [vmem:[#allocation2 + $0x20a] sm:$0x1] %vm779, %v3295
      %3366 = vst.msk [vmem:[#allocation2 + $0x212] sm:$0x1] %vm779, %v3296
      %3367 = vst.msk [vmem:[#allocation2 + $0x21a] sm:$0x1] %vm779, %v3297
      %3368 = vst.msk [vmem:[#allocation2 + $0x222] sm:$0x1] %vm779, %v3298
      %3369 = vst.msk [vmem:[#allocation2 + $0x22a] sm:$0x1] %vm779, %v3299
      %v3370 = vsel %vm218, %v2670, -inf
      %v3371 = vrot.slane %v3370, 4
      %v3372 = vmax.f32 %v3370, %v3371
      %v3373 = vrot.slane %v3372, 2
      %v3374 = vmax.f32 %v3372, %v3373
      %v3375 = vrot.slane %v3374, 1
      %v3376 = vmax.f32 %v3374, %v3375
      %v3377 = vsel %vm218, %v2671, -inf
      %v3378 = vrot.slane %v3377, 4
      %v3379 = vmax.f32 %v3377, %v3378
      %v3380 = vrot.slane %v3379, 2
      %v3381 = vmax.f32 %v3379, %v3380
      %v3382 = vrot.slane %v3381, 1
      %v3383 = vmax.f32 %v3381, %v3382
      %v3384 = vsel %vm218, %v2672, -inf
      %v3385 = vrot.slane %v3384, 4
      %v3386 = vmax.f32 %v3384, %v3385
      %v3387 = vrot.slane %v3386, 2
      %v3388 = vmax.f32 %v3386, %v3387
      %v3389 = vrot.slane %v3388, 1
      %v3390 = vmax.f32 %v3388, %v3389
      %v3391 = vsel %vm218, %v2673, -inf
      %v3392 = vrot.slane %v3391, 4
      %v3393 = vmax.f32 %v3391, %v3392
      %v3394 = vrot.slane %v3393, 2
      %v3395 = vmax.f32 %v3393, %v3394
      %v3396 = vrot.slane %v3395, 1
      %v3397 = vmax.f32 %v3395, %v3396
      %v3398 = vsel %vm218, %v2674, -inf
      %v3399 = vrot.slane %v3398, 4
      %v3400 = vmax.f32 %v3398, %v3399
      %v3401 = vrot.slane %v3400, 2
      %v3402 = vmax.f32 %v3400, %v3401
      %v3403 = vrot.slane %v3402, 1
      %v3404 = vmax.f32 %v3402, %v3403
      %v3405 = vsel %vm218, %v2675, -inf
      %v3406 = vrot.slane %v3405, 4
      %v3407 = vmax.f32 %v3405, %v3406
      %v3408 = vrot.slane %v3407, 2
      %v3409 = vmax.f32 %v3407, %v3408
      %v3410 = vrot.slane %v3409, 1
      %v3411 = vmax.f32 %v3409, %v3410
      %v3412 = vsel %vm218, %v2676, -inf
      %v3413 = vrot.slane %v3412, 4
      %v3414 = vmax.f32 %v3412, %v3413
      %v3415 = vrot.slane %v3414, 2
      %v3416 = vmax.f32 %v3414, %v3415
      %v3417 = vrot.slane %v3416, 1
      %v3418 = vmax.f32 %v3416, %v3417
      %v3419 = vsel %vm218, %v2677, -inf
      %v3420 = vrot.slane %v3419, 4
      %v3421 = vmax.f32 %v3419, %v3420
      %v3422 = vrot.slane %v3421, 2
      %v3423 = vmax.f32 %v3421, %v3422
      %v3424 = vrot.slane %v3423, 1
      %v3425 = vmax.f32 %v3423, %v3424
      %v3426 = vsel %vm218, %v2678, -inf
      %v3427 = vrot.slane %v3426, 4
      %v3428 = vmax.f32 %v3426, %v3427
      %v3429 = vrot.slane %v3428, 2
      %v3430 = vmax.f32 %v3428, %v3429
      %v3431 = vrot.slane %v3430, 1
      %v3432 = vmax.f32 %v3430, %v3431
      %v3433 = vsel %vm218, %v2679, -inf
      %v3434 = vrot.slane %v3433, 4
      %v3435 = vmax.f32 %v3433, %v3434
      %v3436 = vrot.slane %v3435, 2
      %v3437 = vmax.f32 %v3435, %v3436
      %v3438 = vrot.slane %v3437, 1
      %v3439 = vmax.f32 %v3437, %v3438
      %v3440 = vsel %vm218, %v2680, -inf
      %v3441 = vrot.slane %v3440, 4
      %v3442 = vmax.f32 %v3440, %v3441
      %v3443 = vrot.slane %v3442, 2
      %v3444 = vmax.f32 %v3442, %v3443
      %v3445 = vrot.slane %v3444, 1
      %v3446 = vmax.f32 %v3444, %v3445
      %v3447 = vsel %vm218, %v2681, -inf
      %v3448 = vrot.slane %v3447, 4
      %v3449 = vmax.f32 %v3447, %v3448
      %v3450 = vrot.slane %v3449, 2
      %v3451 = vmax.f32 %v3449, %v3450
      %v3452 = vrot.slane %v3451, 1
      %v3453 = vmax.f32 %v3451, %v3452
      %v3454 = vsel %vm218, %v2682, -inf
      %v3455 = vrot.slane %v3454, 4
      %v3456 = vmax.f32 %v3454, %v3455
      %v3457 = vrot.slane %v3456, 2
      %v3458 = vmax.f32 %v3456, %v3457
      %v3459 = vrot.slane %v3458, 1
      %v3460 = vmax.f32 %v3458, %v3459
      %v3461 = vsel %vm218, %v2683, -inf
      %v3462 = vrot.slane %v3461, 4
      %v3463 = vmax.f32 %v3461, %v3462
      %v3464 = vrot.slane %v3463, 2
      %v3465 = vmax.f32 %v3463, %v3464
      %v3466 = vrot.slane %v3465, 1
      %v3467 = vmax.f32 %v3465, %v3466
      %v3468 = vsel %vm218, %v2684, -inf
      %v3469 = vrot.slane %v3468, 4
      %v3470 = vmax.f32 %v3468, %v3469
      %v3471 = vrot.slane %v3470, 2
      %v3472 = vmax.f32 %v3470, %v3471
      %v3473 = vrot.slane %v3472, 1
      %v3474 = vmax.f32 %v3472, %v3473
      %v3475 = vsel %vm218, %v2685, -inf
      %v3476 = vrot.slane %v3475, 4
      %v3477 = vmax.f32 %v3475, %v3476
      %v3478 = vrot.slane %v3477, 2
      %v3479 = vmax.f32 %v3477, %v3478
      %v3480 = vrot.slane %v3479, 1
      %v3481 = vmax.f32 %v3479, %v3480
      %v3482 = vsel %vm218, %v2686, -inf
      %v3483 = vrot.slane %v3482, 4
      %v3484 = vmax.f32 %v3482, %v3483
      %v3485 = vrot.slane %v3484, 2
      %v3486 = vmax.f32 %v3484, %v3485
      %v3487 = vrot.slane %v3486, 1
      %v3488 = vmax.f32 %v3486, %v3487
      %v3489 = vsel %vm218, %v2687, -inf
      %v3490 = vrot.slane %v3489, 4
      %v3491 = vmax.f32 %v3489, %v3490
      %v3492 = vrot.slane %v3491, 2
      %v3493 = vmax.f32 %v3491, %v3492
      %v3494 = vrot.slane %v3493, 1
      %v3495 = vmax.f32 %v3493, %v3494
      %v3496 = vsel %vm218, %v2688, -inf
      %v3497 = vrot.slane %v3496, 4
      %v3498 = vmax.f32 %v3496, %v3497
      %v3499 = vrot.slane %v3498, 2
      %v3500 = vmax.f32 %v3498, %v3499
      %v3501 = vrot.slane %v3500, 1
      %v3502 = vmax.f32 %v3500, %v3501
      %v3503 = vsel %vm218, %v2689, -inf
      %v3504 = vrot.slane %v3503, 4
      %v3505 = vmax.f32 %v3503, %v3504
      %v3506 = vrot.slane %v3505, 2
      %v3507 = vmax.f32 %v3505, %v3506
      %v3508 = vrot.slane %v3507, 1
      %v3509 = vmax.f32 %v3507, %v3508
      %v3510 = vsel %vm218, %v2690, -inf
      %v3511 = vrot.slane %v3510, 4
      %v3512 = vmax.f32 %v3510, %v3511
      %v3513 = vrot.slane %v3512, 2
      %v3514 = vmax.f32 %v3512, %v3513
      %v3515 = vrot.slane %v3514, 1
      %v3516 = vmax.f32 %v3514, %v3515
      %v3517 = vsel %vm218, %v2691, -inf
      %v3518 = vrot.slane %v3517, 4
      %v3519 = vmax.f32 %v3517, %v3518
      %v3520 = vrot.slane %v3519, 2
      %v3521 = vmax.f32 %v3519, %v3520
      %v3522 = vrot.slane %v3521, 1
      %v3523 = vmax.f32 %v3521, %v3522
      %v3524 = vsel %vm218, %v2692, -inf
      %v3525 = vrot.slane %v3524, 4
      %v3526 = vmax.f32 %v3524, %v3525
      %v3527 = vrot.slane %v3526, 2
      %v3528 = vmax.f32 %v3526, %v3527
      %v3529 = vrot.slane %v3528, 1
      %v3530 = vmax.f32 %v3528, %v3529
      %v3531 = vsel %vm218, %v2693, -inf
      %v3532 = vrot.slane %v3531, 4
      %v3533 = vmax.f32 %v3531, %v3532
      %v3534 = vrot.slane %v3533, 2
      %v3535 = vmax.f32 %v3533, %v3534
      %v3536 = vrot.slane %v3535, 1
      %v3537 = vmax.f32 %v3535, %v3536
      %v3538 = vsel %vm218, %v2694, -inf
      %v3539 = vrot.slane %v3538, 4
      %v3540 = vmax.f32 %v3538, %v3539
      %v3541 = vrot.slane %v3540, 2
      %v3542 = vmax.f32 %v3540, %v3541
      %v3543 = vrot.slane %v3542, 1
      %v3544 = vmax.f32 %v3542, %v3543
      %v3545 = vsel %vm218, %v2695, -inf
      %v3546 = vrot.slane %v3545, 4
      %v3547 = vmax.f32 %v3545, %v3546
      %v3548 = vrot.slane %v3547, 2
      %v3549 = vmax.f32 %v3547, %v3548
      %v3550 = vrot.slane %v3549, 1
      %v3551 = vmax.f32 %v3549, %v3550
      %v3552 = vsel %vm218, %v2696, -inf
      %v3553 = vrot.slane %v3552, 4
      %v3554 = vmax.f32 %v3552, %v3553
      %v3555 = vrot.slane %v3554, 2
      %v3556 = vmax.f32 %v3554, %v3555
      %v3557 = vrot.slane %v3556, 1
      %v3558 = vmax.f32 %v3556, %v3557
      %v3559 = vsel %vm218, %v2697, -inf
      %v3560 = vrot.slane %v3559, 4
      %v3561 = vmax.f32 %v3559, %v3560
      %v3562 = vrot.slane %v3561, 2
      %v3563 = vmax.f32 %v3561, %v3562
      %v3564 = vrot.slane %v3563, 1
      %v3565 = vmax.f32 %v3563, %v3564
      %v3566 = vsel %vm218, %v2698, -inf
      %v3567 = vrot.slane %v3566, 4
      %v3568 = vmax.f32 %v3566, %v3567
      %v3569 = vrot.slane %v3568, 2
      %v3570 = vmax.f32 %v3568, %v3569
      %v3571 = vrot.slane %v3570, 1
      %v3572 = vmax.f32 %v3570, %v3571
      %v3573 = vsel %vm218, %v2699, -inf
      %v3574 = vrot.slane %v3573, 4
      %v3575 = vmax.f32 %v3573, %v3574
      %v3576 = vrot.slane %v3575, 2
      %v3577 = vmax.f32 %v3575, %v3576
      %v3578 = vrot.slane %v3577, 1
      %v3579 = vmax.f32 %v3577, %v3578
      %v3580 = vsel %vm218, %v2700, -inf
      %v3581 = vrot.slane %v3580, 4
      %v3582 = vmax.f32 %v3580, %v3581
      %v3583 = vrot.slane %v3582, 2
      %v3584 = vmax.f32 %v3582, %v3583
      %v3585 = vrot.slane %v3584, 1
      %v3586 = vmax.f32 %v3584, %v3585
      %v3587 = vsel %vm218, %v2701, -inf
      %v3588 = vrot.slane %v3587, 4
      %v3589 = vmax.f32 %v3587, %v3588
      %v3590 = vrot.slane %v3589, 2
      %v3591 = vmax.f32 %v3589, %v3590
      %v3592 = vrot.slane %v3591, 1
      %v3593 = vmax.f32 %v3591, %v3592
      %v3594 = vsel %vm218, %v2702, -inf
      %v3595 = vrot.slane %v3594, 4
      %v3596 = vmax.f32 %v3594, %v3595
      %v3597 = vrot.slane %v3596, 2
      %v3598 = vmax.f32 %v3596, %v3597
      %v3599 = vrot.slane %v3598, 1
      %v3600 = vmax.f32 %v3598, %v3599
      %v3601 = vsel %vm218, %v2703, -inf
      %v3602 = vrot.slane %v3601, 4
      %v3603 = vmax.f32 %v3601, %v3602
      %v3604 = vrot.slane %v3603, 2
      %v3605 = vmax.f32 %v3603, %v3604
      %v3606 = vrot.slane %v3605, 1
      %v3607 = vmax.f32 %v3605, %v3606
      %v3608 = vsel %vm218, %v2704, -inf
      %v3609 = vrot.slane %v3608, 4
      %v3610 = vmax.f32 %v3608, %v3609
      %v3611 = vrot.slane %v3610, 2
      %v3612 = vmax.f32 %v3610, %v3611
      %v3613 = vrot.slane %v3612, 1
      %v3614 = vmax.f32 %v3612, %v3613
      %v3615 = vsel %vm218, %v2705, -inf
      %v3616 = vrot.slane %v3615, 4
      %v3617 = vmax.f32 %v3615, %v3616
      %v3618 = vrot.slane %v3617, 2
      %v3619 = vmax.f32 %v3617, %v3618
      %v3620 = vrot.slane %v3619, 1
      %v3621 = vmax.f32 %v3619, %v3620
      %v3622 = vsel %vm218, %v2706, -inf
      %v3623 = vrot.slane %v3622, 4
      %v3624 = vmax.f32 %v3622, %v3623
      %v3625 = vrot.slane %v3624, 2
      %v3626 = vmax.f32 %v3624, %v3625
      %v3627 = vrot.slane %v3626, 1
      %v3628 = vmax.f32 %v3626, %v3627
      %v3629 = vsel %vm218, %v2707, -inf
      %v3630 = vrot.slane %v3629, 4
      %v3631 = vmax.f32 %v3629, %v3630
      %v3632 = vrot.slane %v3631, 2
      %v3633 = vmax.f32 %v3631, %v3632
      %v3634 = vrot.slane %v3633, 1
      %v3635 = vmax.f32 %v3633, %v3634
      %v3636 = vsel %vm218, %v2708, -inf
      %v3637 = vrot.slane %v3636, 4
      %v3638 = vmax.f32 %v3636, %v3637
      %v3639 = vrot.slane %v3638, 2
      %v3640 = vmax.f32 %v3638, %v3639
      %v3641 = vrot.slane %v3640, 1
      %v3642 = vmax.f32 %v3640, %v3641
      %v3643 = vsel %vm218, %v2709, -inf
      %v3644 = vrot.slane %v3643, 4
      %v3645 = vmax.f32 %v3643, %v3644
      %v3646 = vrot.slane %v3645, 2
      %v3647 = vmax.f32 %v3645, %v3646
      %v3648 = vrot.slane %v3647, 1
      %v3649 = vmax.f32 %v3647, %v3648
      %v3650 = vsel %vm218, %v2710, -inf
      %v3651 = vrot.slane %v3650, 4
      %v3652 = vmax.f32 %v3650, %v3651
      %v3653 = vrot.slane %v3652, 2
      %v3654 = vmax.f32 %v3652, %v3653
      %v3655 = vrot.slane %v3654, 1
      %v3656 = vmax.f32 %v3654, %v3655
      %v3657 = vsel %vm218, %v2711, -inf
      %v3658 = vrot.slane %v3657, 4
      %v3659 = vmax.f32 %v3657, %v3658
      %v3660 = vrot.slane %v3659, 2
      %v3661 = vmax.f32 %v3659, %v3660
      %v3662 = vrot.slane %v3661, 1
      %v3663 = vmax.f32 %v3661, %v3662
      %v3664 = vsel %vm218, %v2712, -inf
      %v3665 = vrot.slane %v3664, 4
      %v3666 = vmax.f32 %v3664, %v3665
      %v3667 = vrot.slane %v3666, 2
      %v3668 = vmax.f32 %v3666, %v3667
      %v3669 = vrot.slane %v3668, 1
      %v3670 = vmax.f32 %v3668, %v3669
      %v3671 = vsel %vm218, %v2713, -inf
      %v3672 = vrot.slane %v3671, 4
      %v3673 = vmax.f32 %v3671, %v3672
      %v3674 = vrot.slane %v3673, 2
      %v3675 = vmax.f32 %v3673, %v3674
      %v3676 = vrot.slane %v3675, 1
      %v3677 = vmax.f32 %v3675, %v3676
      %v3678 = vsel %vm218, %v2714, -inf
      %v3679 = vrot.slane %v3678, 4
      %v3680 = vmax.f32 %v3678, %v3679
      %v3681 = vrot.slane %v3680, 2
      %v3682 = vmax.f32 %v3680, %v3681
      %v3683 = vrot.slane %v3682, 1
      %v3684 = vmax.f32 %v3682, %v3683
      %v3685 = vsel %vm218, %v2715, -inf
      %v3686 = vrot.slane %v3685, 4
      %v3687 = vmax.f32 %v3685, %v3686
      %v3688 = vrot.slane %v3687, 2
      %v3689 = vmax.f32 %v3687, %v3688
      %v3690 = vrot.slane %v3689, 1
      %v3691 = vmax.f32 %v3689, %v3690
      %v3692 = vsel %vm218, %v2716, -inf
      %v3693 = vrot.slane %v3692, 4
      %v3694 = vmax.f32 %v3692, %v3693
      %v3695 = vrot.slane %v3694, 2
      %v3696 = vmax.f32 %v3694, %v3695
      %v3697 = vrot.slane %v3696, 1
      %v3698 = vmax.f32 %v3696, %v3697
      %v3699 = vsel %vm218, %v2717, -inf
      %v3700 = vrot.slane %v3699, 4
      %v3701 = vmax.f32 %v3699, %v3700
      %v3702 = vrot.slane %v3701, 2
      %v3703 = vmax.f32 %v3701, %v3702
      %v3704 = vrot.slane %v3703, 1
      %v3705 = vmax.f32 %v3703, %v3704
      %v3706 = vsel %vm218, %v2718, -inf
      %v3707 = vrot.slane %v3706, 4
      %v3708 = vmax.f32 %v3706, %v3707
      %v3709 = vrot.slane %v3708, 2
      %v3710 = vmax.f32 %v3708, %v3709
      %v3711 = vrot.slane %v3710, 1
      %v3712 = vmax.f32 %v3710, %v3711
      %v3713 = vsel %vm218, %v2719, -inf
      %v3714 = vrot.slane %v3713, 4
      %v3715 = vmax.f32 %v3713, %v3714
      %v3716 = vrot.slane %v3715, 2
      %v3717 = vmax.f32 %v3715, %v3716
      %v3718 = vrot.slane %v3717, 1
      %v3719 = vmax.f32 %v3717, %v3718
      %v3720 = vsel %vm218, %v2720, -inf
      %v3721 = vrot.slane %v3720, 4
      %v3722 = vmax.f32 %v3720, %v3721
      %v3723 = vrot.slane %v3722, 2
      %v3724 = vmax.f32 %v3722, %v3723
      %v3725 = vrot.slane %v3724, 1
      %v3726 = vmax.f32 %v3724, %v3725
      %v3727 = vsel %vm218, %v2721, -inf
      %v3728 = vrot.slane %v3727, 4
      %v3729 = vmax.f32 %v3727, %v3728
      %v3730 = vrot.slane %v3729, 2
      %v3731 = vmax.f32 %v3729, %v3730
      %v3732 = vrot.slane %v3731, 1
      %v3733 = vmax.f32 %v3731, %v3732
      %v3734 = vsel %vm218, %v2722, -inf
      %v3735 = vrot.slane %v3734, 4
      %v3736 = vmax.f32 %v3734, %v3735
      %v3737 = vrot.slane %v3736, 2
      %v3738 = vmax.f32 %v3736, %v3737
      %v3739 = vrot.slane %v3738, 1
      %v3740 = vmax.f32 %v3738, %v3739
      %v3741 = vsel %vm218, %v2723, -inf
      %v3742 = vrot.slane %v3741, 4
      %v3743 = vmax.f32 %v3741, %v3742
      %v3744 = vrot.slane %v3743, 2
      %v3745 = vmax.f32 %v3743, %v3744
      %v3746 = vrot.slane %v3745, 1
      %v3747 = vmax.f32 %v3745, %v3746
      %v3748 = vsel %vm218, %v2724, -inf
      %v3749 = vrot.slane %v3748, 4
      %v3750 = vmax.f32 %v3748, %v3749
      %v3751 = vrot.slane %v3750, 2
      %v3752 = vmax.f32 %v3750, %v3751
      %v3753 = vrot.slane %v3752, 1
      %v3754 = vmax.f32 %v3752, %v3753
      %v3755 = vsel %vm218, %v2725, -inf
      %v3756 = vrot.slane %v3755, 4
      %v3757 = vmax.f32 %v3755, %v3756
      %v3758 = vrot.slane %v3757, 2
      %v3759 = vmax.f32 %v3757, %v3758
      %v3760 = vrot.slane %v3759, 1
      %v3761 = vmax.f32 %v3759, %v3760
      %v3762 = vsel %vm218, %v2726, -inf
      %v3763 = vrot.slane %v3762, 4
      %v3764 = vmax.f32 %v3762, %v3763
      %v3765 = vrot.slane %v3764, 2
      %v3766 = vmax.f32 %v3764, %v3765
      %v3767 = vrot.slane %v3766, 1
      %v3768 = vmax.f32 %v3766, %v3767
      %v3769 = vsel %vm218, %v2727, -inf
      %v3770 = vrot.slane %v3769, 4
      %v3771 = vmax.f32 %v3769, %v3770
      %v3772 = vrot.slane %v3771, 2
      %v3773 = vmax.f32 %v3771, %v3772
      %v3774 = vrot.slane %v3773, 1
      %v3775 = vmax.f32 %v3773, %v3774
      %v3776 = vsel %vm218, %v2728, -inf
      %v3777 = vrot.slane %v3776, 4
      %v3778 = vmax.f32 %v3776, %v3777
      %v3779 = vrot.slane %v3778, 2
      %v3780 = vmax.f32 %v3778, %v3779
      %v3781 = vrot.slane %v3780, 1
      %v3782 = vmax.f32 %v3780, %v3781
      %v3783 = vsel %vm218, %v2729, -inf
      %v3784 = vrot.slane %v3783, 4
      %v3785 = vmax.f32 %v3783, %v3784
      %v3786 = vrot.slane %v3785, 2
      %v3787 = vmax.f32 %v3785, %v3786
      %v3788 = vrot.slane %v3787, 1
      %v3789 = vmax.f32 %v3787, %v3788
      %v3790 = vsel %vm218, %v2730, -inf
      %v3791 = vrot.slane %v3790, 4
      %v3792 = vmax.f32 %v3790, %v3791
      %v3793 = vrot.slane %v3792, 2
      %v3794 = vmax.f32 %v3792, %v3793
      %v3795 = vrot.slane %v3794, 1
      %v3796 = vmax.f32 %v3794, %v3795
      %v3797 = vsel %vm218, %v2731, -inf
      %v3798 = vrot.slane %v3797, 4
      %v3799 = vmax.f32 %v3797, %v3798
      %v3800 = vrot.slane %v3799, 2
      %v3801 = vmax.f32 %v3799, %v3800
      %v3802 = vrot.slane %v3801, 1
      %v3803 = vmax.f32 %v3801, %v3802
      %v3804 = vsel %vm218, %v2732, -inf
      %v3805 = vrot.slane %v3804, 4
      %v3806 = vmax.f32 %v3804, %v3805
      %v3807 = vrot.slane %v3806, 2
      %v3808 = vmax.f32 %v3806, %v3807
      %v3809 = vrot.slane %v3808, 1
      %v3810 = vmax.f32 %v3808, %v3809
      %v3811 = vsel %vm218, %v2733, -inf
      %v3812 = vrot.slane %v3811, 4
      %v3813 = vmax.f32 %v3811, %v3812
      %v3814 = vrot.slane %v3813, 2
      %v3815 = vmax.f32 %v3813, %v3814
      %v3816 = vrot.slane %v3815, 1
      %v3817 = vmax.f32 %v3815, %v3816
      %v3818 = vsel %vm218, %v2734, -inf
      %v3819 = vrot.slane %v3818, 4
      %v3820 = vmax.f32 %v3818, %v3819
      %v3821 = vrot.slane %v3820, 2
      %v3822 = vmax.f32 %v3820, %v3821
      %v3823 = vrot.slane %v3822, 1
      %v3824 = vmax.f32 %v3822, %v3823
      %v3825 = vsel %vm218, %v2735, -inf
      %v3826 = vrot.slane %v3825, 4
      %v3827 = vmax.f32 %v3825, %v3826
      %v3828 = vrot.slane %v3827, 2
      %v3829 = vmax.f32 %v3827, %v3828
      %v3830 = vrot.slane %v3829, 1
      %v3831 = vmax.f32 %v3829, %v3830
      %v3832 = vsel %vm218, %v2736, -inf
      %v3833 = vrot.slane %v3832, 4
      %v3834 = vmax.f32 %v3832, %v3833
      %v3835 = vrot.slane %v3834, 2
      %v3836 = vmax.f32 %v3834, %v3835
      %v3837 = vrot.slane %v3836, 1
      %v3838 = vmax.f32 %v3836, %v3837
      %v3839 = vsel %vm218, %v2737, -inf
      %v3840 = vrot.slane %v3839, 4
      %v3841 = vmax.f32 %v3839, %v3840
      %v3842 = vrot.slane %v3841, 2
      %v3843 = vmax.f32 %v3841, %v3842
      %v3844 = vrot.slane %v3843, 1
      %v3845 = vmax.f32 %v3843, %v3844
      %v3846 = vsel %vm218, %v2738, -inf
      %v3847 = vrot.slane %v3846, 4
      %v3848 = vmax.f32 %v3846, %v3847
      %v3849 = vrot.slane %v3848, 2
      %v3850 = vmax.f32 %v3848, %v3849
      %v3851 = vrot.slane %v3850, 1
      %v3852 = vmax.f32 %v3850, %v3851
      %v3853 = vsel %vm218, %v2739, -inf
      %v3854 = vrot.slane %v3853, 4
      %v3855 = vmax.f32 %v3853, %v3854
      %v3856 = vrot.slane %v3855, 2
      %v3857 = vmax.f32 %v3855, %v3856
      %v3858 = vrot.slane %v3857, 1
      %v3859 = vmax.f32 %v3857, %v3858
      %3860 = vst.msk [vmem:[#allocation3 + $0x2] sm:$0x1] %vm779, %v3376
      %3861 = vst.msk [vmem:[#allocation3 + $0xa] sm:$0x1] %vm779, %v3383
      %3862 = vst.msk [vmem:[#allocation3 + $0x12] sm:$0x1] %vm779, %v3390
      %3863 = vst.msk [vmem:[#allocation3 + $0x1a] sm:$0x1] %vm779, %v3397
      %3864 = vst.msk [vmem:[#allocation3 + $0x22] sm:$0x1] %vm779, %v3404
      %3865 = vst.msk [vmem:[#allocation3 + $0x2a] sm:$0x1] %vm779, %v3411
      %3866 = vst.msk [vmem:[#allocation3 + $0x32] sm:$0x1] %vm779, %v3418
      %3867 = vst.msk [vmem:[#allocation3 + $0x3a] sm:$0x1] %vm779, %v3425
      %3868 = vst.msk [vmem:[#allocation3 + $0x42] sm:$0x1] %vm779, %v3432
      %3869 = vst.msk [vmem:[#allocation3 + $0x4a] sm:$0x1] %vm779, %v3439
      %3870 = vst.msk [vmem:[#allocation3 + $0x52] sm:$0x1] %vm779, %v3446
      %3871 = vst.msk [vmem:[#allocation3 + $0x5a] sm:$0x1] %vm779, %v3453
      %3872 = vst.msk [vmem:[#allocation3 + $0x62] sm:$0x1] %vm779, %v3460
      %3873 = vst.msk [vmem:[#allocation3 + $0x6a] sm:$0x1] %vm779, %v3467
      %3874 = vst.msk [vmem:[#allocation3 + $0x72] sm:$0x1] %vm779, %v3474
      %3875 = vst.msk [vmem:[#allocation3 + $0x7a] sm:$0x1] %vm779, %v3481
      %3876 = vst.msk [vmem:[#allocation3 + $0x82] sm:$0x1] %vm779, %v3488
      %3877 = vst.msk [vmem:[#allocation3 + $0x8a] sm:$0x1] %vm779, %v3495
      %3878 = vst.msk [vmem:[#allocation3 + $0x92] sm:$0x1] %vm779, %v3502
      %3879 = vst.msk [vmem:[#allocation3 + $0x9a] sm:$0x1] %vm779, %v3509
      %3880 = vst.msk [vmem:[#allocation3 + $0xa2] sm:$0x1] %vm779, %v3516
      %3881 = vst.msk [vmem:[#allocation3 + $0xaa] sm:$0x1] %vm779, %v3523
      %3882 = vst.msk [vmem:[#allocation3 + $0xb2] sm:$0x1] %vm779, %v3530
      %3883 = vst.msk [vmem:[#allocation3 + $0xba] sm:$0x1] %vm779, %v3537
      %3884 = vst.msk [vmem:[#allocation3 + $0xc2] sm:$0x1] %vm779, %v3544
      %3885 = vst.msk [vmem:[#allocation3 + $0xca] sm:$0x1] %vm779, %v3551
      %3886 = vst.msk [vmem:[#allocation3 + $0xd2] sm:$0x1] %vm779, %v3558
      %3887 = vst.msk [vmem:[#allocation3 + $0xda] sm:$0x1] %vm779, %v3565
      %3888 = vst.msk [vmem:[#allocation3 + $0xe2] sm:$0x1] %vm779, %v3572
      %3889 = vst.msk [vmem:[#allocation3 + $0xea] sm:$0x1] %vm779, %v3579
      %3890 = vst.msk [vmem:[#allocation3 + $0xf2] sm:$0x1] %vm779, %v3586
      %3891 = vst.msk [vmem:[#allocation3 + $0xfa] sm:$0x1] %vm779, %v3593
      %3892 = vst.msk [vmem:[#allocation3 + $0x102] sm:$0x1] %vm779, %v3600
      %3893 = vst.msk [vmem:[#allocation3 + $0x10a] sm:$0x1] %vm779, %v3607
      %3894 = vst.msk [vmem:[#allocation3 + $0x112] sm:$0x1] %vm779, %v3614
      %3895 = vst.msk [vmem:[#allocation3 + $0x11a] sm:$0x1] %vm779, %v3621
      %3896 = vst.msk [vmem:[#allocation3 + $0x122] sm:$0x1] %vm779, %v3628
      %3897 = vst.msk [vmem:[#allocation3 + $0x12a] sm:$0x1] %vm779, %v3635
      %3898 = vst.msk [vmem:[#allocation3 + $0x132] sm:$0x1] %vm779, %v3642
      %3899 = vst.msk [vmem:[#allocation3 + $0x13a] sm:$0x1] %vm779, %v3649
      %3900 = vst.msk [vmem:[#allocation3 + $0x142] sm:$0x1] %vm779, %v3656
      %3901 = vst.msk [vmem:[#allocation3 + $0x14a] sm:$0x1] %vm779, %v3663
      %3902 = vst.msk [vmem:[#allocation3 + $0x152] sm:$0x1] %vm779, %v3670
      %3903 = vst.msk [vmem:[#allocation3 + $0x15a] sm:$0x1] %vm779, %v3677
      %3904 = vst.msk [vmem:[#allocation3 + $0x162] sm:$0x1] %vm779, %v3684
      %3905 = vst.msk [vmem:[#allocation3 + $0x16a] sm:$0x1] %vm779, %v3691
      %3906 = vst.msk [vmem:[#allocation3 + $0x172] sm:$0x1] %vm779, %v3698
      %3907 = vst.msk [vmem:[#allocation3 + $0x17a] sm:$0x1] %vm779, %v3705
      %3908 = vst.msk [vmem:[#allocation3 + $0x182] sm:$0x1] %vm779, %v3712
      %3909 = vst.msk [vmem:[#allocation3 + $0x18a] sm:$0x1] %vm779, %v3719
      %3910 = vst.msk [vmem:[#allocation3 + $0x192] sm:$0x1] %vm779, %v3726
      %3911 = vst.msk [vmem:[#allocation3 + $0x19a] sm:$0x1] %vm779, %v3733
      %3912 = vst.msk [vmem:[#allocation3 + $0x1a2] sm:$0x1] %vm779, %v3740
      %3913 = vst.msk [vmem:[#allocation3 + $0x1aa] sm:$0x1] %vm779, %v3747
      %3914 = vst.msk [vmem:[#allocation3 + $0x1b2] sm:$0x1] %vm779, %v3754
      %3915 = vst.msk [vmem:[#allocation3 + $0x1ba] sm:$0x1] %vm779, %v3761
      %3916 = vst.msk [vmem:[#allocation3 + $0x1c2] sm:$0x1] %vm779, %v3768
      %3917 = vst.msk [vmem:[#allocation3 + $0x1ca] sm:$0x1] %vm779, %v3775
      %3918 = vst.msk [vmem:[#allocation3 + $0x1d2] sm:$0x1] %vm779, %v3782
      %3919 = vst.msk [vmem:[#allocation3 + $0x1da] sm:$0x1] %vm779, %v3789
      %3920 = vst.msk [vmem:[#allocation3 + $0x1e2] sm:$0x1] %vm779, %v3796
      %3921 = vst.msk [vmem:[#allocation3 + $0x1ea] sm:$0x1] %vm779, %v3803
      %3922 = vst.msk [vmem:[#allocation3 + $0x1f2] sm:$0x1] %vm779, %v3810
      %3923 = vst.msk [vmem:[#allocation3 + $0x1fa] sm:$0x1] %vm779, %v3817
      %3924 = vst.msk [vmem:[#allocation3 + $0x202] sm:$0x1] %vm779, %v3824
      %3925 = vst.msk [vmem:[#allocation3 + $0x20a] sm:$0x1] %vm779, %v3831
      %3926 = vst.msk [vmem:[#allocation3 + $0x212] sm:$0x1] %vm779, %v3838
      %3927 = vst.msk [vmem:[#allocation3 + $0x21a] sm:$0x1] %vm779, %v3845
      %3928 = vst.msk [vmem:[#allocation3 + $0x222] sm:$0x1] %vm779, %v3852
      %3929 = vst.msk [vmem:[#allocation3 + $0x22a] sm:$0x1] %vm779, %v3859
      %v3930 = vld [vmem:[%s139 + $0x9] sm:$0xf]
      %v3931 = vld [vmem:[%s139 + $0x19] sm:$0xf]
      %v3932 = vld [vmem:[%s139 + $0x29] sm:$0xf]
      %v3933 = vld [vmem:[%s139 + $0x39] sm:$0xf]
      %v3934 = vld [vmem:[%s139 + $0x49] sm:$0xf]
      %v3935 = vld [vmem:[%s139 + $0x59] sm:$0xf]
      %v3936 = vld [vmem:[%s139 + $0x69] sm:$0xf]
      %v3937 = vld [vmem:[%s139 + $0x79] sm:$0xf]
      %v3938 = vld [vmem:[%s139 + $0x89] sm:$0xf]
      %v3939 = vld [vmem:[%s139 + $0x99] sm:$0xf]
      %v3940 = vld [vmem:[%s139 + $0xa9] sm:$0xf]
      %v3941 = vld [vmem:[%s139 + $0xb9] sm:$0xf]
      %v3942 = vld [vmem:[%s139 + $0xc9] sm:$0xf]
      %v3943 = vld [vmem:[%s139 + $0xd9] sm:$0xf]
      %v3944 = vld [vmem:[%s139 + $0xe9] sm:$0xf]
      %v3945 = vld [vmem:[%s139 + $0xf9] sm:$0xf]
      %v3946 = vld [vmem:[%s139 + $0x109] sm:$0xf]
      %v3947 = vld [vmem:[%s139 + $0x119] sm:$0xf]
      %v3948 = vld [vmem:[%s139 + $0x129] sm:$0xf]
      %v3949 = vld [vmem:[%s139 + $0x139] sm:$0xf]
      %v3950 = vld [vmem:[%s139 + $0x149] sm:$0xf]
      %v3951 = vld [vmem:[%s139 + $0x159] sm:$0xf]
      %v3952 = vld [vmem:[%s139 + $0x169] sm:$0xf]
      %v3953 = vld [vmem:[%s139 + $0x179] sm:$0xf]
      %v3954 = vld [vmem:[%s139 + $0x189] sm:$0xf]
      %v3955 = vld [vmem:[%s139 + $0x199] sm:$0xf]
      %v3956 = vld [vmem:[%s139 + $0x1a9] sm:$0xf]
      %v3957 = vld [vmem:[%s139 + $0x1b9] sm:$0xf]
      %v3958 = vld [vmem:[%s139 + $0x1c9] sm:$0xf]
      %v3959 = vld [vmem:[%s139 + $0x1d9] sm:$0xf]
      %v3960 = vld [vmem:[%s139 + $0x1e9] sm:$0xf]
      %v3961 = vld [vmem:[%s139 + $0x1f9] sm:$0xf]
      %v3962 = vld [vmem:[%s139 + $0x209] sm:$0xf]
      %v3963 = vld [vmem:[%s139 + $0x219] sm:$0xf]
      %v3964 = vld [vmem:[%s139 + $0x229] sm:$0xf]
      %v3965 = vld [vmem:[%s139 + $0x239] sm:$0xf]
      %v3966 = vld [vmem:[%s139 + $0x249] sm:$0xf]
      %v3967 = vld [vmem:[%s139 + $0x259] sm:$0xf]
      %v3968 = vld [vmem:[%s139 + $0x269] sm:$0xf]
      %v3969 = vld [vmem:[%s139 + $0x279] sm:$0xf]
      %v3970 = vld [vmem:[%s139 + $0x289] sm:$0xf]
      %v3971 = vld [vmem:[%s139 + $0x299] sm:$0xf]
      %v3972 = vld [vmem:[%s139 + $0x2a9] sm:$0xf]
      %v3973 = vld [vmem:[%s139 + $0x2b9] sm:$0xf]
      %v3974 = vld [vmem:[%s139 + $0x2c9] sm:$0xf]
      %v3975 = vld [vmem:[%s139 + $0x2d9] sm:$0xf]
      %v3976 = vld [vmem:[%s139 + $0x2e9] sm:$0xf]
      %v3977 = vld [vmem:[%s139 + $0x2f9] sm:$0xf]
      %v3978 = vld [vmem:[%s139 + $0x309] sm:$0xf]
      %v3979 = vld [vmem:[%s139 + $0x319] sm:$0xf]
      %v3980 = vld [vmem:[%s139 + $0x329] sm:$0xf]
      %v3981 = vld [vmem:[%s139 + $0x339] sm:$0xf]
      %v3982 = vld [vmem:[%s139 + $0x349] sm:$0xf]
      %v3983 = vld [vmem:[%s139 + $0x359] sm:$0xf]
      %v3984 = vld [vmem:[%s139 + $0x369] sm:$0xf]
      %v3985 = vld [vmem:[%s139 + $0x379] sm:$0xf]
      %v3986 = vld [vmem:[%s139 + $0x389] sm:$0xf]
      %v3987 = vld [vmem:[%s139 + $0x399] sm:$0xf]
      %v3988 = vld [vmem:[%s139 + $0x3a9] sm:$0xf]
      %v3989 = vld [vmem:[%s139 + $0x3b9] sm:$0xf]
      %v3990 = vld [vmem:[%s139 + $0x3c9] sm:$0xf]
      %v3991 = vld [vmem:[%s139 + $0x3d9] sm:$0xf]
      %v3992 = vld [vmem:[%s139 + $0x3e9] sm:$0xf]
      %v3993 = vld [vmem:[%s139 + $0x3f9] sm:$0xf]
      %v3994 = vld [vmem:[%s139 + $0x409] sm:$0xf]
      %v3995 = vld [vmem:[%s139 + $0x419] sm:$0xf]
      %v3996 = vld [vmem:[%s139 + $0x429] sm:$0xf]
      %v3997 = vld [vmem:[%s139 + $0x439] sm:$0xf]
      %v3998 = vld [vmem:[%s139 + $0x449] sm:$0xf]
      %v3999 = vld [vmem:[%s139 + $0x459] sm:$0xf]
      %v4000 = vsel %vm218, %v3930, 0.0
      %v4001 = vrot.slane %v4000, 4
      %v4002 = vadd.f32 %v4000, %v4001
      %v4003 = vrot.slane %v4002, 2
      %v4004 = vadd.f32 %v4002, %v4003
      %v4005 = vrot.slane %v4004, 1
      %v4006 = vadd.f32 %v4004, %v4005
      %v4007 = vsel %vm218, %v3931, 0.0
      %v4008 = vrot.slane %v4007, 4
      %v4009 = vadd.f32 %v4007, %v4008
      %v4010 = vrot.slane %v4009, 2
      %v4011 = vadd.f32 %v4009, %v4010
      %v4012 = vrot.slane %v4011, 1
      %v4013 = vadd.f32 %v4011, %v4012
      %v4014 = vsel %vm218, %v3932, 0.0
      %v4015 = vrot.slane %v4014, 4
      %v4016 = vadd.f32 %v4014, %v4015
      %v4017 = vrot.slane %v4016, 2
      %v4018 = vadd.f32 %v4016, %v4017
      %v4019 = vrot.slane %v4018, 1
      %v4020 = vadd.f32 %v4018, %v4019
      %v4021 = vsel %vm218, %v3933, 0.0
      %v4022 = vrot.slane %v4021, 4
      %v4023 = vadd.f32 %v4021, %v4022
      %v4024 = vrot.slane %v4023, 2
      %v4025 = vadd.f32 %v4023, %v4024
      %v4026 = vrot.slane %v4025, 1
      %v4027 = vadd.f32 %v4025, %v4026
      %v4028 = vsel %vm218, %v3934, 0.0
      %v4029 = vrot.slane %v4028, 4
      %v4030 = vadd.f32 %v4028, %v4029
      %v4031 = vrot.slane %v4030, 2
      %v4032 = vadd.f32 %v4030, %v4031
      %v4033 = vrot.slane %v4032, 1
      %v4034 = vadd.f32 %v4032, %v4033
      %v4035 = vsel %vm218, %v3935, 0.0
      %v4036 = vrot.slane %v4035, 4
      %v4037 = vadd.f32 %v4035, %v4036
      %v4038 = vrot.slane %v4037, 2
      %v4039 = vadd.f32 %v4037, %v4038
      %v4040 = vrot.slane %v4039, 1
      %v4041 = vadd.f32 %v4039, %v4040
      %v4042 = vsel %vm218, %v3936, 0.0
      %v4043 = vrot.slane %v4042, 4
      %v4044 = vadd.f32 %v4042, %v4043
      %v4045 = vrot.slane %v4044, 2
      %v4046 = vadd.f32 %v4044, %v4045
      %v4047 = vrot.slane %v4046, 1
      %v4048 = vadd.f32 %v4046, %v4047
      %v4049 = vsel %vm218, %v3937, 0.0
      %v4050 = vrot.slane %v4049, 4
      %v4051 = vadd.f32 %v4049, %v4050
      %v4052 = vrot.slane %v4051, 2
      %v4053 = vadd.f32 %v4051, %v4052
      %v4054 = vrot.slane %v4053, 1
      %v4055 = vadd.f32 %v4053, %v4054
      %v4056 = vsel %vm218, %v3938, 0.0
      %v4057 = vrot.slane %v4056, 4
      %v4058 = vadd.f32 %v4056, %v4057
      %v4059 = vrot.slane %v4058, 2
      %v4060 = vadd.f32 %v4058, %v4059
      %v4061 = vrot.slane %v4060, 1
      %v4062 = vadd.f32 %v4060, %v4061
      %v4063 = vsel %vm218, %v3939, 0.0
      %v4064 = vrot.slane %v4063, 4
      %v4065 = vadd.f32 %v4063, %v4064
      %v4066 = vrot.slane %v4065, 2
      %v4067 = vadd.f32 %v4065, %v4066
      %v4068 = vrot.slane %v4067, 1
      %v4069 = vadd.f32 %v4067, %v4068
      %v4070 = vsel %vm218, %v3940, 0.0
      %v4071 = vrot.slane %v4070, 4
      %v4072 = vadd.f32 %v4070, %v4071
      %v4073 = vrot.slane %v4072, 2
      %v4074 = vadd.f32 %v4072, %v4073
      %v4075 = vrot.slane %v4074, 1
      %v4076 = vadd.f32 %v4074, %v4075
      %v4077 = vsel %vm218, %v3941, 0.0
      %v4078 = vrot.slane %v4077, 4
      %v4079 = vadd.f32 %v4077, %v4078
      %v4080 = vrot.slane %v4079, 2
      %v4081 = vadd.f32 %v4079, %v4080
      %v4082 = vrot.slane %v4081, 1
      %v4083 = vadd.f32 %v4081, %v4082
      %v4084 = vsel %vm218, %v3942, 0.0
      %v4085 = vrot.slane %v4084, 4
      %v4086 = vadd.f32 %v4084, %v4085
      %v4087 = vrot.slane %v4086, 2
      %v4088 = vadd.f32 %v4086, %v4087
      %v4089 = vrot.slane %v4088, 1
      %v4090 = vadd.f32 %v4088, %v4089
      %v4091 = vsel %vm218, %v3943, 0.0
      %v4092 = vrot.slane %v4091, 4
      %v4093 = vadd.f32 %v4091, %v4092
      %v4094 = vrot.slane %v4093, 2
      %v4095 = vadd.f32 %v4093, %v4094
      %v4096 = vrot.slane %v4095, 1
      %v4097 = vadd.f32 %v4095, %v4096
      %v4098 = vsel %vm218, %v3944, 0.0
      %v4099 = vrot.slane %v4098, 4
      %v4100 = vadd.f32 %v4098, %v4099
      %v4101 = vrot.slane %v4100, 2
      %v4102 = vadd.f32 %v4100, %v4101
      %v4103 = vrot.slane %v4102, 1
      %v4104 = vadd.f32 %v4102, %v4103
      %v4105 = vsel %vm218, %v3945, 0.0
      %v4106 = vrot.slane %v4105, 4
      %v4107 = vadd.f32 %v4105, %v4106
      %v4108 = vrot.slane %v4107, 2
      %v4109 = vadd.f32 %v4107, %v4108
      %v4110 = vrot.slane %v4109, 1
      %v4111 = vadd.f32 %v4109, %v4110
      %v4112 = vsel %vm218, %v3946, 0.0
      %v4113 = vrot.slane %v4112, 4
      %v4114 = vadd.f32 %v4112, %v4113
      %v4115 = vrot.slane %v4114, 2
      %v4116 = vadd.f32 %v4114, %v4115
      %v4117 = vrot.slane %v4116, 1
      %v4118 = vadd.f32 %v4116, %v4117
      %v4119 = vsel %vm218, %v3947, 0.0
      %v4120 = vrot.slane %v4119, 4
      %v4121 = vadd.f32 %v4119, %v4120
      %v4122 = vrot.slane %v4121, 2
      %v4123 = vadd.f32 %v4121, %v4122
      %v4124 = vrot.slane %v4123, 1
      %v4125 = vadd.f32 %v4123, %v4124
      %v4126 = vsel %vm218, %v3948, 0.0
      %v4127 = vrot.slane %v4126, 4
      %v4128 = vadd.f32 %v4126, %v4127
      %v4129 = vrot.slane %v4128, 2
      %v4130 = vadd.f32 %v4128, %v4129
      %v4131 = vrot.slane %v4130, 1
      %v4132 = vadd.f32 %v4130, %v4131
      %v4133 = vsel %vm218, %v3949, 0.0
      %v4134 = vrot.slane %v4133, 4
      %v4135 = vadd.f32 %v4133, %v4134
      %v4136 = vrot.slane %v4135, 2
      %v4137 = vadd.f32 %v4135, %v4136
      %v4138 = vrot.slane %v4137, 1
      %v4139 = vadd.f32 %v4137, %v4138
      %v4140 = vsel %vm218, %v3950, 0.0
      %v4141 = vrot.slane %v4140, 4
      %v4142 = vadd.f32 %v4140, %v4141
      %v4143 = vrot.slane %v4142, 2
      %v4144 = vadd.f32 %v4142, %v4143
      %v4145 = vrot.slane %v4144, 1
      %v4146 = vadd.f32 %v4144, %v4145
      %v4147 = vsel %vm218, %v3951, 0.0
      %v4148 = vrot.slane %v4147, 4
      %v4149 = vadd.f32 %v4147, %v4148
      %v4150 = vrot.slane %v4149, 2
      %v4151 = vadd.f32 %v4149, %v4150
      %v4152 = vrot.slane %v4151, 1
      %v4153 = vadd.f32 %v4151, %v4152
      %v4154 = vsel %vm218, %v3952, 0.0
      %v4155 = vrot.slane %v4154, 4
      %v4156 = vadd.f32 %v4154, %v4155
      %v4157 = vrot.slane %v4156, 2
      %v4158 = vadd.f32 %v4156, %v4157
      %v4159 = vrot.slane %v4158, 1
      %v4160 = vadd.f32 %v4158, %v4159
      %v4161 = vsel %vm218, %v3953, 0.0
      %v4162 = vrot.slane %v4161, 4
      %v4163 = vadd.f32 %v4161, %v4162
      %v4164 = vrot.slane %v4163, 2
      %v4165 = vadd.f32 %v4163, %v4164
      %v4166 = vrot.slane %v4165, 1
      %v4167 = vadd.f32 %v4165, %v4166
      %v4168 = vsel %vm218, %v3954, 0.0
      %v4169 = vrot.slane %v4168, 4
      %v4170 = vadd.f32 %v4168, %v4169
      %v4171 = vrot.slane %v4170, 2
      %v4172 = vadd.f32 %v4170, %v4171
      %v4173 = vrot.slane %v4172, 1
      %v4174 = vadd.f32 %v4172, %v4173
      %v4175 = vsel %vm218, %v3955, 0.0
      %v4176 = vrot.slane %v4175, 4
      %v4177 = vadd.f32 %v4175, %v4176
      %v4178 = vrot.slane %v4177, 2
      %v4179 = vadd.f32 %v4177, %v4178
      %v4180 = vrot.slane %v4179, 1
      %v4181 = vadd.f32 %v4179, %v4180
      %v4182 = vsel %vm218, %v3956, 0.0
      %v4183 = vrot.slane %v4182, 4
      %v4184 = vadd.f32 %v4182, %v4183
      %v4185 = vrot.slane %v4184, 2
      %v4186 = vadd.f32 %v4184, %v4185
      %v4187 = vrot.slane %v4186, 1
      %v4188 = vadd.f32 %v4186, %v4187
      %v4189 = vsel %vm218, %v3957, 0.0
      %v4190 = vrot.slane %v4189, 4
      %v4191 = vadd.f32 %v4189, %v4190
      %v4192 = vrot.slane %v4191, 2
      %v4193 = vadd.f32 %v4191, %v4192
      %v4194 = vrot.slane %v4193, 1
      %v4195 = vadd.f32 %v4193, %v4194
      %v4196 = vsel %vm218, %v3958, 0.0
      %v4197 = vrot.slane %v4196, 4
      %v4198 = vadd.f32 %v4196, %v4197
      %v4199 = vrot.slane %v4198, 2
      %v4200 = vadd.f32 %v4198, %v4199
      %v4201 = vrot.slane %v4200, 1
      %v4202 = vadd.f32 %v4200, %v4201
      %v4203 = vsel %vm218, %v3959, 0.0
      %v4204 = vrot.slane %v4203, 4
      %v4205 = vadd.f32 %v4203, %v4204
      %v4206 = vrot.slane %v4205, 2
      %v4207 = vadd.f32 %v4205, %v4206
      %v4208 = vrot.slane %v4207, 1
      %v4209 = vadd.f32 %v4207, %v4208
      %v4210 = vsel %vm218, %v3960, 0.0
      %v4211 = vrot.slane %v4210, 4
      %v4212 = vadd.f32 %v4210, %v4211
      %v4213 = vrot.slane %v4212, 2
      %v4214 = vadd.f32 %v4212, %v4213
      %v4215 = vrot.slane %v4214, 1
      %v4216 = vadd.f32 %v4214, %v4215
      %v4217 = vsel %vm218, %v3961, 0.0
      %v4218 = vrot.slane %v4217, 4
      %v4219 = vadd.f32 %v4217, %v4218
      %v4220 = vrot.slane %v4219, 2
      %v4221 = vadd.f32 %v4219, %v4220
      %v4222 = vrot.slane %v4221, 1
      %v4223 = vadd.f32 %v4221, %v4222
      %v4224 = vsel %vm218, %v3962, 0.0
      %v4225 = vrot.slane %v4224, 4
      %v4226 = vadd.f32 %v4224, %v4225
      %v4227 = vrot.slane %v4226, 2
      %v4228 = vadd.f32 %v4226, %v4227
      %v4229 = vrot.slane %v4228, 1
      %v4230 = vadd.f32 %v4228, %v4229
      %v4231 = vsel %vm218, %v3963, 0.0
      %v4232 = vrot.slane %v4231, 4
      %v4233 = vadd.f32 %v4231, %v4232
      %v4234 = vrot.slane %v4233, 2
      %v4235 = vadd.f32 %v4233, %v4234
      %v4236 = vrot.slane %v4235, 1
      %v4237 = vadd.f32 %v4235, %v4236
      %v4238 = vsel %vm218, %v3964, 0.0
      %v4239 = vrot.slane %v4238, 4
      %v4240 = vadd.f32 %v4238, %v4239
      %v4241 = vrot.slane %v4240, 2
      %v4242 = vadd.f32 %v4240, %v4241
      %v4243 = vrot.slane %v4242, 1
      %v4244 = vadd.f32 %v4242, %v4243
      %v4245 = vsel %vm218, %v3965, 0.0
      %v4246 = vrot.slane %v4245, 4
      %v4247 = vadd.f32 %v4245, %v4246
      %v4248 = vrot.slane %v4247, 2
      %v4249 = vadd.f32 %v4247, %v4248
      %v4250 = vrot.slane %v4249, 1
      %v4251 = vadd.f32 %v4249, %v4250
      %v4252 = vsel %vm218, %v3966, 0.0
      %v4253 = vrot.slane %v4252, 4
      %v4254 = vadd.f32 %v4252, %v4253
      %v4255 = vrot.slane %v4254, 2
      %v4256 = vadd.f32 %v4254, %v4255
      %v4257 = vrot.slane %v4256, 1
      %v4258 = vadd.f32 %v4256, %v4257
      %v4259 = vsel %vm218, %v3967, 0.0
      %v4260 = vrot.slane %v4259, 4
      %v4261 = vadd.f32 %v4259, %v4260
      %v4262 = vrot.slane %v4261, 2
      %v4263 = vadd.f32 %v4261, %v4262
      %v4264 = vrot.slane %v4263, 1
      %v4265 = vadd.f32 %v4263, %v4264
      %v4266 = vsel %vm218, %v3968, 0.0
      %v4267 = vrot.slane %v4266, 4
      %v4268 = vadd.f32 %v4266, %v4267
      %v4269 = vrot.slane %v4268, 2
      %v4270 = vadd.f32 %v4268, %v4269
      %v4271 = vrot.slane %v4270, 1
      %v4272 = vadd.f32 %v4270, %v4271
      %v4273 = vsel %vm218, %v3969, 0.0
      %v4274 = vrot.slane %v4273, 4
      %v4275 = vadd.f32 %v4273, %v4274
      %v4276 = vrot.slane %v4275, 2
      %v4277 = vadd.f32 %v4275, %v4276
      %v4278 = vrot.slane %v4277, 1
      %v4279 = vadd.f32 %v4277, %v4278
      %v4280 = vsel %vm218, %v3970, 0.0
      %v4281 = vrot.slane %v4280, 4
      %v4282 = vadd.f32 %v4280, %v4281
      %v4283 = vrot.slane %v4282, 2
      %v4284 = vadd.f32 %v4282, %v4283
      %v4285 = vrot.slane %v4284, 1
      %v4286 = vadd.f32 %v4284, %v4285
      %v4287 = vsel %vm218, %v3971, 0.0
      %v4288 = vrot.slane %v4287, 4
      %v4289 = vadd.f32 %v4287, %v4288
      %v4290 = vrot.slane %v4289, 2
      %v4291 = vadd.f32 %v4289, %v4290
      %v4292 = vrot.slane %v4291, 1
      %v4293 = vadd.f32 %v4291, %v4292
      %v4294 = vsel %vm218, %v3972, 0.0
      %v4295 = vrot.slane %v4294, 4
      %v4296 = vadd.f32 %v4294, %v4295
      %v4297 = vrot.slane %v4296, 2
      %v4298 = vadd.f32 %v4296, %v4297
      %v4299 = vrot.slane %v4298, 1
      %v4300 = vadd.f32 %v4298, %v4299
      %v4301 = vsel %vm218, %v3973, 0.0
      %v4302 = vrot.slane %v4301, 4
      %v4303 = vadd.f32 %v4301, %v4302
      %v4304 = vrot.slane %v4303, 2
      %v4305 = vadd.f32 %v4303, %v4304
      %v4306 = vrot.slane %v4305, 1
      %v4307 = vadd.f32 %v4305, %v4306
      %v4308 = vsel %vm218, %v3974, 0.0
      %v4309 = vrot.slane %v4308, 4
      %v4310 = vadd.f32 %v4308, %v4309
      %v4311 = vrot.slane %v4310, 2
      %v4312 = vadd.f32 %v4310, %v4311
      %v4313 = vrot.slane %v4312, 1
      %v4314 = vadd.f32 %v4312, %v4313
      %v4315 = vsel %vm218, %v3975, 0.0
      %v4316 = vrot.slane %v4315, 4
      %v4317 = vadd.f32 %v4315, %v4316
      %v4318 = vrot.slane %v4317, 2
      %v4319 = vadd.f32 %v4317, %v4318
      %v4320 = vrot.slane %v4319, 1
      %v4321 = vadd.f32 %v4319, %v4320
      %v4322 = vsel %vm218, %v3976, 0.0
      %v4323 = vrot.slane %v4322, 4
      %v4324 = vadd.f32 %v4322, %v4323
      %v4325 = vrot.slane %v4324, 2
      %v4326 = vadd.f32 %v4324, %v4325
      %v4327 = vrot.slane %v4326, 1
      %v4328 = vadd.f32 %v4326, %v4327
      %v4329 = vsel %vm218, %v3977, 0.0
      %v4330 = vrot.slane %v4329, 4
      %v4331 = vadd.f32 %v4329, %v4330
      %v4332 = vrot.slane %v4331, 2
      %v4333 = vadd.f32 %v4331, %v4332
      %v4334 = vrot.slane %v4333, 1
      %v4335 = vadd.f32 %v4333, %v4334
      %v4336 = vsel %vm218, %v3978, 0.0
      %v4337 = vrot.slane %v4336, 4
      %v4338 = vadd.f32 %v4336, %v4337
      %v4339 = vrot.slane %v4338, 2
      %v4340 = vadd.f32 %v4338, %v4339
      %v4341 = vrot.slane %v4340, 1
      %v4342 = vadd.f32 %v4340, %v4341
      %v4343 = vsel %vm218, %v3979, 0.0
      %v4344 = vrot.slane %v4343, 4
      %v4345 = vadd.f32 %v4343, %v4344
      %v4346 = vrot.slane %v4345, 2
      %v4347 = vadd.f32 %v4345, %v4346
      %v4348 = vrot.slane %v4347, 1
      %v4349 = vadd.f32 %v4347, %v4348
      %v4350 = vsel %vm218, %v3980, 0.0
      %v4351 = vrot.slane %v4350, 4
      %v4352 = vadd.f32 %v4350, %v4351
      %v4353 = vrot.slane %v4352, 2
      %v4354 = vadd.f32 %v4352, %v4353
      %v4355 = vrot.slane %v4354, 1
      %v4356 = vadd.f32 %v4354, %v4355
      %v4357 = vsel %vm218, %v3981, 0.0
      %v4358 = vrot.slane %v4357, 4
      %v4359 = vadd.f32 %v4357, %v4358
      %v4360 = vrot.slane %v4359, 2
      %v4361 = vadd.f32 %v4359, %v4360
      %v4362 = vrot.slane %v4361, 1
      %v4363 = vadd.f32 %v4361, %v4362
      %v4364 = vsel %vm218, %v3982, 0.0
      %v4365 = vrot.slane %v4364, 4
      %v4366 = vadd.f32 %v4364, %v4365
      %v4367 = vrot.slane %v4366, 2
      %v4368 = vadd.f32 %v4366, %v4367
      %v4369 = vrot.slane %v4368, 1
      %v4370 = vadd.f32 %v4368, %v4369
      %v4371 = vsel %vm218, %v3983, 0.0
      %v4372 = vrot.slane %v4371, 4
      %v4373 = vadd.f32 %v4371, %v4372
      %v4374 = vrot.slane %v4373, 2
      %v4375 = vadd.f32 %v4373, %v4374
      %v4376 = vrot.slane %v4375, 1
      %v4377 = vadd.f32 %v4375, %v4376
      %v4378 = vsel %vm218, %v3984, 0.0
      %v4379 = vrot.slane %v4378, 4
      %v4380 = vadd.f32 %v4378, %v4379
      %v4381 = vrot.slane %v4380, 2
      %v4382 = vadd.f32 %v4380, %v4381
      %v4383 = vrot.slane %v4382, 1
      %v4384 = vadd.f32 %v4382, %v4383
      %v4385 = vsel %vm218, %v3985, 0.0
      %v4386 = vrot.slane %v4385, 4
      %v4387 = vadd.f32 %v4385, %v4386
      %v4388 = vrot.slane %v4387, 2
      %v4389 = vadd.f32 %v4387, %v4388
      %v4390 = vrot.slane %v4389, 1
      %v4391 = vadd.f32 %v4389, %v4390
      %v4392 = vsel %vm218, %v3986, 0.0
      %v4393 = vrot.slane %v4392, 4
      %v4394 = vadd.f32 %v4392, %v4393
      %v4395 = vrot.slane %v4394, 2
      %v4396 = vadd.f32 %v4394, %v4395
      %v4397 = vrot.slane %v4396, 1
      %v4398 = vadd.f32 %v4396, %v4397
      %v4399 = vsel %vm218, %v3987, 0.0
      %v4400 = vrot.slane %v4399, 4
      %v4401 = vadd.f32 %v4399, %v4400
      %v4402 = vrot.slane %v4401, 2
      %v4403 = vadd.f32 %v4401, %v4402
      %v4404 = vrot.slane %v4403, 1
      %v4405 = vadd.f32 %v4403, %v4404
      %v4406 = vsel %vm218, %v3988, 0.0
      %v4407 = vrot.slane %v4406, 4
      %v4408 = vadd.f32 %v4406, %v4407
      %v4409 = vrot.slane %v4408, 2
      %v4410 = vadd.f32 %v4408, %v4409
      %v4411 = vrot.slane %v4410, 1
      %v4412 = vadd.f32 %v4410, %v4411
      %v4413 = vsel %vm218, %v3989, 0.0
      %v4414 = vrot.slane %v4413, 4
      %v4415 = vadd.f32 %v4413, %v4414
      %v4416 = vrot.slane %v4415, 2
      %v4417 = vadd.f32 %v4415, %v4416
      %v4418 = vrot.slane %v4417, 1
      %v4419 = vadd.f32 %v4417, %v4418
      %v4420 = vsel %vm218, %v3990, 0.0
      %v4421 = vrot.slane %v4420, 4
      %v4422 = vadd.f32 %v4420, %v4421
      %v4423 = vrot.slane %v4422, 2
      %v4424 = vadd.f32 %v4422, %v4423
      %v4425 = vrot.slane %v4424, 1
      %v4426 = vadd.f32 %v4424, %v4425
      %v4427 = vsel %vm218, %v3991, 0.0
      %v4428 = vrot.slane %v4427, 4
      %v4429 = vadd.f32 %v4427, %v4428
      %v4430 = vrot.slane %v4429, 2
      %v4431 = vadd.f32 %v4429, %v4430
      %v4432 = vrot.slane %v4431, 1
      %v4433 = vadd.f32 %v4431, %v4432
      %v4434 = vsel %vm218, %v3992, 0.0
      %v4435 = vrot.slane %v4434, 4
      %v4436 = vadd.f32 %v4434, %v4435
      %v4437 = vrot.slane %v4436, 2
      %v4438 = vadd.f32 %v4436, %v4437
      %v4439 = vrot.slane %v4438, 1
      %v4440 = vadd.f32 %v4438, %v4439
      %v4441 = vsel %vm218, %v3993, 0.0
      %v4442 = vrot.slane %v4441, 4
      %v4443 = vadd.f32 %v4441, %v4442
      %v4444 = vrot.slane %v4443, 2
      %v4445 = vadd.f32 %v4443, %v4444
      %v4446 = vrot.slane %v4445, 1
      %v4447 = vadd.f32 %v4445, %v4446
      %v4448 = vsel %vm218, %v3994, 0.0
      %v4449 = vrot.slane %v4448, 4
      %v4450 = vadd.f32 %v4448, %v4449
      %v4451 = vrot.slane %v4450, 2
      %v4452 = vadd.f32 %v4450, %v4451
      %v4453 = vrot.slane %v4452, 1
      %v4454 = vadd.f32 %v4452, %v4453
      %v4455 = vsel %vm218, %v3995, 0.0
      %v4456 = vrot.slane %v4455, 4
      %v4457 = vadd.f32 %v4455, %v4456
      %v4458 = vrot.slane %v4457, 2
      %v4459 = vadd.f32 %v4457, %v4458
      %v4460 = vrot.slane %v4459, 1
      %v4461 = vadd.f32 %v4459, %v4460
      %v4462 = vsel %vm218, %v3996, 0.0
      %v4463 = vrot.slane %v4462, 4
      %v4464 = vadd.f32 %v4462, %v4463
      %v4465 = vrot.slane %v4464, 2
      %v4466 = vadd.f32 %v4464, %v4465
      %v4467 = vrot.slane %v4466, 1
      %v4468 = vadd.f32 %v4466, %v4467
      %v4469 = vsel %vm218, %v3997, 0.0
      %v4470 = vrot.slane %v4469, 4
      %v4471 = vadd.f32 %v4469, %v4470
      %v4472 = vrot.slane %v4471, 2
      %v4473 = vadd.f32 %v4471, %v4472
      %v4474 = vrot.slane %v4473, 1
      %v4475 = vadd.f32 %v4473, %v4474
      %v4476 = vsel %vm218, %v3998, 0.0
      %v4477 = vrot.slane %v4476, 4
      %v4478 = vadd.f32 %v4476, %v4477
      %v4479 = vrot.slane %v4478, 2
      %v4480 = vadd.f32 %v4478, %v4479
      %v4481 = vrot.slane %v4480, 1
      %v4482 = vadd.f32 %v4480, %v4481
      %v4483 = vsel %vm218, %v3999, 0.0
      %v4484 = vrot.slane %v4483, 4
      %v4485 = vadd.f32 %v4483, %v4484
      %v4486 = vrot.slane %v4485, 2
      %v4487 = vadd.f32 %v4485, %v4486
      %v4488 = vrot.slane %v4487, 1
      %v4489 = vadd.f32 %v4487, %v4488
      %v4490 = vmul.f32 %v4006, 0.25
      %v4491 = vmul.f32 %v4013, 0.25
      %v4492 = vmul.f32 %v4020, 0.25
      %v4493 = vmul.f32 %v4027, 0.25
      %v4494 = vmul.f32 %v4034, 0.25
      %v4495 = vmul.f32 %v4041, 0.25
      %v4496 = vmul.f32 %v4048, 0.25
      %v4497 = vmul.f32 %v4055, 0.25
      %v4498 = vmul.f32 %v4062, 0.25
      %v4499 = vmul.f32 %v4069, 0.25
      %v4500 = vmul.f32 %v4076, 0.25
      %v4501 = vmul.f32 %v4083, 0.25
      %v4502 = vmul.f32 %v4090, 0.25
      %v4503 = vmul.f32 %v4097, 0.25
      %v4504 = vmul.f32 %v4104, 0.25
      %v4505 = vmul.f32 %v4111, 0.25
      %v4506 = vmul.f32 %v4118, 0.25
      %v4507 = vmul.f32 %v4125, 0.25
      %v4508 = vmul.f32 %v4132, 0.25
      %v4509 = vmul.f32 %v4139, 0.25
      %v4510 = vmul.f32 %v4146, 0.25
      %v4511 = vmul.f32 %v4153, 0.25
      %v4512 = vmul.f32 %v4160, 0.25
      %v4513 = vmul.f32 %v4167, 0.25
      %v4514 = vmul.f32 %v4174, 0.25
      %v4515 = vmul.f32 %v4181, 0.25
      %v4516 = vmul.f32 %v4188, 0.25
      %v4517 = vmul.f32 %v4195, 0.25
      %v4518 = vmul.f32 %v4202, 0.25
      %v4519 = vmul.f32 %v4209, 0.25
      %v4520 = vmul.f32 %v4216, 0.25
      %v4521 = vmul.f32 %v4223, 0.25
      %v4522 = vmul.f32 %v4230, 0.25
      %v4523 = vmul.f32 %v4237, 0.25
      %v4524 = vmul.f32 %v4244, 0.25
      %v4525 = vmul.f32 %v4251, 0.25
      %v4526 = vmul.f32 %v4258, 0.25
      %v4527 = vmul.f32 %v4265, 0.25
      %v4528 = vmul.f32 %v4272, 0.25
      %v4529 = vmul.f32 %v4279, 0.25
      %v4530 = vmul.f32 %v4286, 0.25
      %v4531 = vmul.f32 %v4293, 0.25
      %v4532 = vmul.f32 %v4300, 0.25
      %v4533 = vmul.f32 %v4307, 0.25
      %v4534 = vmul.f32 %v4314, 0.25
      %v4535 = vmul.f32 %v4321, 0.25
      %v4536 = vmul.f32 %v4328, 0.25
      %v4537 = vmul.f32 %v4335, 0.25
      %v4538 = vmul.f32 %v4342, 0.25
      %v4539 = vmul.f32 %v4349, 0.25
      %v4540 = vmul.f32 %v4356, 0.25
      %v4541 = vmul.f32 %v4363, 0.25
      %v4542 = vmul.f32 %v4370, 0.25
      %v4543 = vmul.f32 %v4377, 0.25
      %v4544 = vmul.f32 %v4384, 0.25
      %v4545 = vmul.f32 %v4391, 0.25
      %v4546 = vmul.f32 %v4398, 0.25
      %v4547 = vmul.f32 %v4405, 0.25
      %v4548 = vmul.f32 %v4412, 0.25
      %v4549 = vmul.f32 %v4419, 0.25
      %v4550 = vmul.f32 %v4426, 0.25
      %v4551 = vmul.f32 %v4433, 0.25
      %v4552 = vmul.f32 %v4440, 0.25
      %v4553 = vmul.f32 %v4447, 0.25
      %v4554 = vmul.f32 %v4454, 0.25
      %v4555 = vmul.f32 %v4461, 0.25
      %v4556 = vmul.f32 %v4468, 0.25
      %v4557 = vmul.f32 %v4475, 0.25
      %v4558 = vmul.f32 %v4482, 0.25
      %v4559 = vmul.f32 %v4489, 0.25
      %4560 = vst.msk [vmem:[#allocation2 + $0x3] sm:$0x1] %vm779, %v4490
      %4561 = vst.msk [vmem:[#allocation2 + $0xb] sm:$0x1] %vm779, %v4491
      %4562 = vst.msk [vmem:[#allocation2 + $0x13] sm:$0x1] %vm779, %v4492
      %4563 = vst.msk [vmem:[#allocation2 + $0x1b] sm:$0x1] %vm779, %v4493
      %4564 = vst.msk [vmem:[#allocation2 + $0x23] sm:$0x1] %vm779, %v4494
      %4565 = vst.msk [vmem:[#allocation2 + $0x2b] sm:$0x1] %vm779, %v4495
      %4566 = vst.msk [vmem:[#allocation2 + $0x33] sm:$0x1] %vm779, %v4496
      %4567 = vst.msk [vmem:[#allocation2 + $0x3b] sm:$0x1] %vm779, %v4497
      %4568 = vst.msk [vmem:[#allocation2 + $0x43] sm:$0x1] %vm779, %v4498
      %4569 = vst.msk [vmem:[#allocation2 + $0x4b] sm:$0x1] %vm779, %v4499
      %4570 = vst.msk [vmem:[#allocation2 + $0x53] sm:$0x1] %vm779, %v4500
      %4571 = vst.msk [vmem:[#allocation2 + $0x5b] sm:$0x1] %vm779, %v4501
      %4572 = vst.msk [vmem:[#allocation2 + $0x63] sm:$0x1] %vm779, %v4502
      %4573 = vst.msk [vmem:[#allocation2 + $0x6b] sm:$0x1] %vm779, %v4503
      %4574 = vst.msk [vmem:[#allocation2 + $0x73] sm:$0x1] %vm779, %v4504
      %4575 = vst.msk [vmem:[#allocation2 + $0x7b] sm:$0x1] %vm779, %v4505
      %4576 = vst.msk [vmem:[#allocation2 + $0x83] sm:$0x1] %vm779, %v4506
      %4577 = vst.msk [vmem:[#allocation2 + $0x8b] sm:$0x1] %vm779, %v4507
      %4578 = vst.msk [vmem:[#allocation2 + $0x93] sm:$0x1] %vm779, %v4508
      %4579 = vst.msk [vmem:[#allocation2 + $0x9b] sm:$0x1] %vm779, %v4509
      %4580 = vst.msk [vmem:[#allocation2 + $0xa3] sm:$0x1] %vm779, %v4510
      %4581 = vst.msk [vmem:[#allocation2 + $0xab] sm:$0x1] %vm779, %v4511
      %4582 = vst.msk [vmem:[#allocation2 + $0xb3] sm:$0x1] %vm779, %v4512
      %4583 = vst.msk [vmem:[#allocation2 + $0xbb] sm:$0x1] %vm779, %v4513
      %4584 = vst.msk [vmem:[#allocation2 + $0xc3] sm:$0x1] %vm779, %v4514
      %4585 = vst.msk [vmem:[#allocation2 + $0xcb] sm:$0x1] %vm779, %v4515
      %4586 = vst.msk [vmem:[#allocation2 + $0xd3] sm:$0x1] %vm779, %v4516
      %4587 = vst.msk [vmem:[#allocation2 + $0xdb] sm:$0x1] %vm779, %v4517
      %4588 = vst.msk [vmem:[#allocation2 + $0xe3] sm:$0x1] %vm779, %v4518
      %4589 = vst.msk [vmem:[#allocation2 + $0xeb] sm:$0x1] %vm779, %v4519
      %4590 = vst.msk [vmem:[#allocation2 + $0xf3] sm:$0x1] %vm779, %v4520
      %4591 = vst.msk [vmem:[#allocation2 + $0xfb] sm:$0x1] %vm779, %v4521
      %4592 = vst.msk [vmem:[#allocation2 + $0x103] sm:$0x1] %vm779, %v4522
      %4593 = vst.msk [vmem:[#allocation2 + $0x10b] sm:$0x1] %vm779, %v4523
      %4594 = vst.msk [vmem:[#allocation2 + $0x113] sm:$0x1] %vm779, %v4524
      %4595 = vst.msk [vmem:[#allocation2 + $0x11b] sm:$0x1] %vm779, %v4525
      %4596 = vst.msk [vmem:[#allocation2 + $0x123] sm:$0x1] %vm779, %v4526
      %4597 = vst.msk [vmem:[#allocation2 + $0x12b] sm:$0x1] %vm779, %v4527
      %4598 = vst.msk [vmem:[#allocation2 + $0x133] sm:$0x1] %vm779, %v4528
      %4599 = vst.msk [vmem:[#allocation2 + $0x13b] sm:$0x1] %vm779, %v4529
      %4600 = vst.msk [vmem:[#allocation2 + $0x143] sm:$0x1] %vm779, %v4530
      %4601 = vst.msk [vmem:[#allocation2 + $0x14b] sm:$0x1] %vm779, %v4531
      %4602 = vst.msk [vmem:[#allocation2 + $0x153] sm:$0x1] %vm779, %v4532
      %4603 = vst.msk [vmem:[#allocation2 + $0x15b] sm:$0x1] %vm779, %v4533
      %4604 = vst.msk [vmem:[#allocation2 + $0x163] sm:$0x1] %vm779, %v4534
      %4605 = vst.msk [vmem:[#allocation2 + $0x16b] sm:$0x1] %vm779, %v4535
      %4606 = vst.msk [vmem:[#allocation2 + $0x173] sm:$0x1] %vm779, %v4536
      %4607 = vst.msk [vmem:[#allocation2 + $0x17b] sm:$0x1] %vm779, %v4537
      %4608 = vst.msk [vmem:[#allocation2 + $0x183] sm:$0x1] %vm779, %v4538
      %4609 = vst.msk [vmem:[#allocation2 + $0x18b] sm:$0x1] %vm779, %v4539
      %4610 = vst.msk [vmem:[#allocation2 + $0x193] sm:$0x1] %vm779, %v4540
      %4611 = vst.msk [vmem:[#allocation2 + $0x19b] sm:$0x1] %vm779, %v4541
      %4612 = vst.msk [vmem:[#allocation2 + $0x1a3] sm:$0x1] %vm779, %v4542
      %4613 = vst.msk [vmem:[#allocation2 + $0x1ab] sm:$0x1] %vm779, %v4543
      %4614 = vst.msk [vmem:[#allocation2 + $0x1b3] sm:$0x1] %vm779, %v4544
      %4615 = vst.msk [vmem:[#allocation2 + $0x1bb] sm:$0x1] %vm779, %v4545
      %4616 = vst.msk [vmem:[#allocation2 + $0x1c3] sm:$0x1] %vm779, %v4546
      %4617 = vst.msk [vmem:[#allocation2 + $0x1cb] sm:$0x1] %vm779, %v4547
      %4618 = vst.msk [vmem:[#allocation2 + $0x1d3] sm:$0x1] %vm779, %v4548
      %4619 = vst.msk [vmem:[#allocation2 + $0x1db] sm:$0x1] %vm779, %v4549
      %4620 = vst.msk [vmem:[#allocation2 + $0x1e3] sm:$0x1] %vm779, %v4550
      %4621 = vst.msk [vmem:[#allocation2 + $0x1eb] sm:$0x1] %vm779, %v4551
      %4622 = vst.msk [vmem:[#allocation2 + $0x1f3] sm:$0x1] %vm779, %v4552
      %4623 = vst.msk [vmem:[#allocation2 + $0x1fb] sm:$0x1] %vm779, %v4553
      %4624 = vst.msk [vmem:[#allocation2 + $0x203] sm:$0x1] %vm779, %v4554
      %4625 = vst.msk [vmem:[#allocation2 + $0x20b] sm:$0x1] %vm779, %v4555
      %4626 = vst.msk [vmem:[#allocation2 + $0x213] sm:$0x1] %vm779, %v4556
      %4627 = vst.msk [vmem:[#allocation2 + $0x21b] sm:$0x1] %vm779, %v4557
      %4628 = vst.msk [vmem:[#allocation2 + $0x223] sm:$0x1] %vm779, %v4558
      %4629 = vst.msk [vmem:[#allocation2 + $0x22b] sm:$0x1] %vm779, %v4559
      %v4630 = vsel %vm218, %v3930, -inf
      %v4631 = vrot.slane %v4630, 4
      %v4632 = vmax.f32 %v4630, %v4631
      %v4633 = vrot.slane %v4632, 2
      %v4634 = vmax.f32 %v4632, %v4633
      %v4635 = vrot.slane %v4634, 1
      %v4636 = vmax.f32 %v4634, %v4635
      %v4637 = vsel %vm218, %v3931, -inf
      %v4638 = vrot.slane %v4637, 4
      %v4639 = vmax.f32 %v4637, %v4638
      %v4640 = vrot.slane %v4639, 2
      %v4641 = vmax.f32 %v4639, %v4640
      %v4642 = vrot.slane %v4641, 1
      %v4643 = vmax.f32 %v4641, %v4642
      %v4644 = vsel %vm218, %v3932, -inf
      %v4645 = vrot.slane %v4644, 4
      %v4646 = vmax.f32 %v4644, %v4645
      %v4647 = vrot.slane %v4646, 2
      %v4648 = vmax.f32 %v4646, %v4647
      %v4649 = vrot.slane %v4648, 1
      %v4650 = vmax.f32 %v4648, %v4649
      %v4651 = vsel %vm218, %v3933, -inf
      %v4652 = vrot.slane %v4651, 4
      %v4653 = vmax.f32 %v4651, %v4652
      %v4654 = vrot.slane %v4653, 2
      %v4655 = vmax.f32 %v4653, %v4654
      %v4656 = vrot.slane %v4655, 1
      %v4657 = vmax.f32 %v4655, %v4656
      %v4658 = vsel %vm218, %v3934, -inf
      %v4659 = vrot.slane %v4658, 4
      %v4660 = vmax.f32 %v4658, %v4659
      %v4661 = vrot.slane %v4660, 2
      %v4662 = vmax.f32 %v4660, %v4661
      %v4663 = vrot.slane %v4662, 1
      %v4664 = vmax.f32 %v4662, %v4663
      %v4665 = vsel %vm218, %v3935, -inf
      %v4666 = vrot.slane %v4665, 4
      %v4667 = vmax.f32 %v4665, %v4666
      %v4668 = vrot.slane %v4667, 2
      %v4669 = vmax.f32 %v4667, %v4668
      %v4670 = vrot.slane %v4669, 1
      %v4671 = vmax.f32 %v4669, %v4670
      %v4672 = vsel %vm218, %v3936, -inf
      %v4673 = vrot.slane %v4672, 4
      %v4674 = vmax.f32 %v4672, %v4673
      %v4675 = vrot.slane %v4674, 2
      %v4676 = vmax.f32 %v4674, %v4675
      %v4677 = vrot.slane %v4676, 1
      %v4678 = vmax.f32 %v4676, %v4677
      %v4679 = vsel %vm218, %v3937, -inf
      %v4680 = vrot.slane %v4679, 4
      %v4681 = vmax.f32 %v4679, %v4680
      %v4682 = vrot.slane %v4681, 2
      %v4683 = vmax.f32 %v4681, %v4682
      %v4684 = vrot.slane %v4683, 1
      %v4685 = vmax.f32 %v4683, %v4684
      %v4686 = vsel %vm218, %v3938, -inf
      %v4687 = vrot.slane %v4686, 4
      %v4688 = vmax.f32 %v4686, %v4687
      %v4689 = vrot.slane %v4688, 2
      %v4690 = vmax.f32 %v4688, %v4689
      %v4691 = vrot.slane %v4690, 1
      %v4692 = vmax.f32 %v4690, %v4691
      %v4693 = vsel %vm218, %v3939, -inf
      %v4694 = vrot.slane %v4693, 4
      %v4695 = vmax.f32 %v4693, %v4694
      %v4696 = vrot.slane %v4695, 2
      %v4697 = vmax.f32 %v4695, %v4696
      %v4698 = vrot.slane %v4697, 1
      %v4699 = vmax.f32 %v4697, %v4698
      %v4700 = vsel %vm218, %v3940, -inf
      %v4701 = vrot.slane %v4700, 4
      %v4702 = vmax.f32 %v4700, %v4701
      %v4703 = vrot.slane %v4702, 2
      %v4704 = vmax.f32 %v4702, %v4703
      %v4705 = vrot.slane %v4704, 1
      %v4706 = vmax.f32 %v4704, %v4705
      %v4707 = vsel %vm218, %v3941, -inf
      %v4708 = vrot.slane %v4707, 4
      %v4709 = vmax.f32 %v4707, %v4708
      %v4710 = vrot.slane %v4709, 2
      %v4711 = vmax.f32 %v4709, %v4710
      %v4712 = vrot.slane %v4711, 1
      %v4713 = vmax.f32 %v4711, %v4712
      %v4714 = vsel %vm218, %v3942, -inf
      %v4715 = vrot.slane %v4714, 4
      %v4716 = vmax.f32 %v4714, %v4715
      %v4717 = vrot.slane %v4716, 2
      %v4718 = vmax.f32 %v4716, %v4717
      %v4719 = vrot.slane %v4718, 1
      %v4720 = vmax.f32 %v4718, %v4719
      %v4721 = vsel %vm218, %v3943, -inf
      %v4722 = vrot.slane %v4721, 4
      %v4723 = vmax.f32 %v4721, %v4722
      %v4724 = vrot.slane %v4723, 2
      %v4725 = vmax.f32 %v4723, %v4724
      %v4726 = vrot.slane %v4725, 1
      %v4727 = vmax.f32 %v4725, %v4726
      %v4728 = vsel %vm218, %v3944, -inf
      %v4729 = vrot.slane %v4728, 4
      %v4730 = vmax.f32 %v4728, %v4729
      %v4731 = vrot.slane %v4730, 2
      %v4732 = vmax.f32 %v4730, %v4731
      %v4733 = vrot.slane %v4732, 1
      %v4734 = vmax.f32 %v4732, %v4733
      %v4735 = vsel %vm218, %v3945, -inf
      %v4736 = vrot.slane %v4735, 4
      %v4737 = vmax.f32 %v4735, %v4736
      %v4738 = vrot.slane %v4737, 2
      %v4739 = vmax.f32 %v4737, %v4738
      %v4740 = vrot.slane %v4739, 1
      %v4741 = vmax.f32 %v4739, %v4740
      %v4742 = vsel %vm218, %v3946, -inf
      %v4743 = vrot.slane %v4742, 4
      %v4744 = vmax.f32 %v4742, %v4743
      %v4745 = vrot.slane %v4744, 2
      %v4746 = vmax.f32 %v4744, %v4745
      %v4747 = vrot.slane %v4746, 1
      %v4748 = vmax.f32 %v4746, %v4747
      %v4749 = vsel %vm218, %v3947, -inf
      %v4750 = vrot.slane %v4749, 4
      %v4751 = vmax.f32 %v4749, %v4750
      %v4752 = vrot.slane %v4751, 2
      %v4753 = vmax.f32 %v4751, %v4752
      %v4754 = vrot.slane %v4753, 1
      %v4755 = vmax.f32 %v4753, %v4754
      %v4756 = vsel %vm218, %v3948, -inf
      %v4757 = vrot.slane %v4756, 4
      %v4758 = vmax.f32 %v4756, %v4757
      %v4759 = vrot.slane %v4758, 2
      %v4760 = vmax.f32 %v4758, %v4759
      %v4761 = vrot.slane %v4760, 1
      %v4762 = vmax.f32 %v4760, %v4761
      %v4763 = vsel %vm218, %v3949, -inf
      %v4764 = vrot.slane %v4763, 4
      %v4765 = vmax.f32 %v4763, %v4764
      %v4766 = vrot.slane %v4765, 2
      %v4767 = vmax.f32 %v4765, %v4766
      %v4768 = vrot.slane %v4767, 1
      %v4769 = vmax.f32 %v4767, %v4768
      %v4770 = vsel %vm218, %v3950, -inf
      %v4771 = vrot.slane %v4770, 4
      %v4772 = vmax.f32 %v4770, %v4771
      %v4773 = vrot.slane %v4772, 2
      %v4774 = vmax.f32 %v4772, %v4773
      %v4775 = vrot.slane %v4774, 1
      %v4776 = vmax.f32 %v4774, %v4775
      %v4777 = vsel %vm218, %v3951, -inf
      %v4778 = vrot.slane %v4777, 4
      %v4779 = vmax.f32 %v4777, %v4778
      %v4780 = vrot.slane %v4779, 2
      %v4781 = vmax.f32 %v4779, %v4780
      %v4782 = vrot.slane %v4781, 1
      %v4783 = vmax.f32 %v4781, %v4782
      %v4784 = vsel %vm218, %v3952, -inf
      %v4785 = vrot.slane %v4784, 4
      %v4786 = vmax.f32 %v4784, %v4785
      %v4787 = vrot.slane %v4786, 2
      %v4788 = vmax.f32 %v4786, %v4787
      %v4789 = vrot.slane %v4788, 1
      %v4790 = vmax.f32 %v4788, %v4789
      %v4791 = vsel %vm218, %v3953, -inf
      %v4792 = vrot.slane %v4791, 4
      %v4793 = vmax.f32 %v4791, %v4792
      %v4794 = vrot.slane %v4793, 2
      %v4795 = vmax.f32 %v4793, %v4794
      %v4796 = vrot.slane %v4795, 1
      %v4797 = vmax.f32 %v4795, %v4796
      %v4798 = vsel %vm218, %v3954, -inf
      %v4799 = vrot.slane %v4798, 4
      %v4800 = vmax.f32 %v4798, %v4799
      %v4801 = vrot.slane %v4800, 2
      %v4802 = vmax.f32 %v4800, %v4801
      %v4803 = vrot.slane %v4802, 1
      %v4804 = vmax.f32 %v4802, %v4803
      %v4805 = vsel %vm218, %v3955, -inf
      %v4806 = vrot.slane %v4805, 4
      %v4807 = vmax.f32 %v4805, %v4806
      %v4808 = vrot.slane %v4807, 2
      %v4809 = vmax.f32 %v4807, %v4808
      %v4810 = vrot.slane %v4809, 1
      %v4811 = vmax.f32 %v4809, %v4810
      %v4812 = vsel %vm218, %v3956, -inf
      %v4813 = vrot.slane %v4812, 4
      %v4814 = vmax.f32 %v4812, %v4813
      %v4815 = vrot.slane %v4814, 2
      %v4816 = vmax.f32 %v4814, %v4815
      %v4817 = vrot.slane %v4816, 1
      %v4818 = vmax.f32 %v4816, %v4817
      %v4819 = vsel %vm218, %v3957, -inf
      %v4820 = vrot.slane %v4819, 4
      %v4821 = vmax.f32 %v4819, %v4820
      %v4822 = vrot.slane %v4821, 2
      %v4823 = vmax.f32 %v4821, %v4822
      %v4824 = vrot.slane %v4823, 1
      %v4825 = vmax.f32 %v4823, %v4824
      %v4826 = vsel %vm218, %v3958, -inf
      %v4827 = vrot.slane %v4826, 4
      %v4828 = vmax.f32 %v4826, %v4827
      %v4829 = vrot.slane %v4828, 2
      %v4830 = vmax.f32 %v4828, %v4829
      %v4831 = vrot.slane %v4830, 1
      %v4832 = vmax.f32 %v4830, %v4831
      %v4833 = vsel %vm218, %v3959, -inf
      %v4834 = vrot.slane %v4833, 4
      %v4835 = vmax.f32 %v4833, %v4834
      %v4836 = vrot.slane %v4835, 2
      %v4837 = vmax.f32 %v4835, %v4836
      %v4838 = vrot.slane %v4837, 1
      %v4839 = vmax.f32 %v4837, %v4838
      %v4840 = vsel %vm218, %v3960, -inf
      %v4841 = vrot.slane %v4840, 4
      %v4842 = vmax.f32 %v4840, %v4841
      %v4843 = vrot.slane %v4842, 2
      %v4844 = vmax.f32 %v4842, %v4843
      %v4845 = vrot.slane %v4844, 1
      %v4846 = vmax.f32 %v4844, %v4845
      %v4847 = vsel %vm218, %v3961, -inf
      %v4848 = vrot.slane %v4847, 4
      %v4849 = vmax.f32 %v4847, %v4848
      %v4850 = vrot.slane %v4849, 2
      %v4851 = vmax.f32 %v4849, %v4850
      %v4852 = vrot.slane %v4851, 1
      %v4853 = vmax.f32 %v4851, %v4852
      %v4854 = vsel %vm218, %v3962, -inf
      %v4855 = vrot.slane %v4854, 4
      %v4856 = vmax.f32 %v4854, %v4855
      %v4857 = vrot.slane %v4856, 2
      %v4858 = vmax.f32 %v4856, %v4857
      %v4859 = vrot.slane %v4858, 1
      %v4860 = vmax.f32 %v4858, %v4859
      %v4861 = vsel %vm218, %v3963, -inf
      %v4862 = vrot.slane %v4861, 4
      %v4863 = vmax.f32 %v4861, %v4862
      %v4864 = vrot.slane %v4863, 2
      %v4865 = vmax.f32 %v4863, %v4864
      %v4866 = vrot.slane %v4865, 1
      %v4867 = vmax.f32 %v4865, %v4866
      %v4868 = vsel %vm218, %v3964, -inf
      %v4869 = vrot.slane %v4868, 4
      %v4870 = vmax.f32 %v4868, %v4869
      %v4871 = vrot.slane %v4870, 2
      %v4872 = vmax.f32 %v4870, %v4871
      %v4873 = vrot.slane %v4872, 1
      %v4874 = vmax.f32 %v4872, %v4873
      %v4875 = vsel %vm218, %v3965, -inf
      %v4876 = vrot.slane %v4875, 4
      %v4877 = vmax.f32 %v4875, %v4876
      %v4878 = vrot.slane %v4877, 2
      %v4879 = vmax.f32 %v4877, %v4878
      %v4880 = vrot.slane %v4879, 1
      %v4881 = vmax.f32 %v4879, %v4880
      %v4882 = vsel %vm218, %v3966, -inf
      %v4883 = vrot.slane %v4882, 4
      %v4884 = vmax.f32 %v4882, %v4883
      %v4885 = vrot.slane %v4884, 2
      %v4886 = vmax.f32 %v4884, %v4885
      %v4887 = vrot.slane %v4886, 1
      %v4888 = vmax.f32 %v4886, %v4887
      %v4889 = vsel %vm218, %v3967, -inf
      %v4890 = vrot.slane %v4889, 4
      %v4891 = vmax.f32 %v4889, %v4890
      %v4892 = vrot.slane %v4891, 2
      %v4893 = vmax.f32 %v4891, %v4892
      %v4894 = vrot.slane %v4893, 1
      %v4895 = vmax.f32 %v4893, %v4894
      %v4896 = vsel %vm218, %v3968, -inf
      %v4897 = vrot.slane %v4896, 4
      %v4898 = vmax.f32 %v4896, %v4897
      %v4899 = vrot.slane %v4898, 2
      %v4900 = vmax.f32 %v4898, %v4899
      %v4901 = vrot.slane %v4900, 1
      %v4902 = vmax.f32 %v4900, %v4901
      %v4903 = vsel %vm218, %v3969, -inf
      %v4904 = vrot.slane %v4903, 4
      %v4905 = vmax.f32 %v4903, %v4904
      %v4906 = vrot.slane %v4905, 2
      %v4907 = vmax.f32 %v4905, %v4906
      %v4908 = vrot.slane %v4907, 1
      %v4909 = vmax.f32 %v4907, %v4908
      %v4910 = vsel %vm218, %v3970, -inf
      %v4911 = vrot.slane %v4910, 4
      %v4912 = vmax.f32 %v4910, %v4911
      %v4913 = vrot.slane %v4912, 2
      %v4914 = vmax.f32 %v4912, %v4913
      %v4915 = vrot.slane %v4914, 1
      %v4916 = vmax.f32 %v4914, %v4915
      %v4917 = vsel %vm218, %v3971, -inf
      %v4918 = vrot.slane %v4917, 4
      %v4919 = vmax.f32 %v4917, %v4918
      %v4920 = vrot.slane %v4919, 2
      %v4921 = vmax.f32 %v4919, %v4920
      %v4922 = vrot.slane %v4921, 1
      %v4923 = vmax.f32 %v4921, %v4922
      %v4924 = vsel %vm218, %v3972, -inf
      %v4925 = vrot.slane %v4924, 4
      %v4926 = vmax.f32 %v4924, %v4925
      %v4927 = vrot.slane %v4926, 2
      %v4928 = vmax.f32 %v4926, %v4927
      %v4929 = vrot.slane %v4928, 1
      %v4930 = vmax.f32 %v4928, %v4929
      %v4931 = vsel %vm218, %v3973, -inf
      %v4932 = vrot.slane %v4931, 4
      %v4933 = vmax.f32 %v4931, %v4932
      %v4934 = vrot.slane %v4933, 2
      %v4935 = vmax.f32 %v4933, %v4934
      %v4936 = vrot.slane %v4935, 1
      %v4937 = vmax.f32 %v4935, %v4936
      %v4938 = vsel %vm218, %v3974, -inf
      %v4939 = vrot.slane %v4938, 4
      %v4940 = vmax.f32 %v4938, %v4939
      %v4941 = vrot.slane %v4940, 2
      %v4942 = vmax.f32 %v4940, %v4941
      %v4943 = vrot.slane %v4942, 1
      %v4944 = vmax.f32 %v4942, %v4943
      %v4945 = vsel %vm218, %v3975, -inf
      %v4946 = vrot.slane %v4945, 4
      %v4947 = vmax.f32 %v4945, %v4946
      %v4948 = vrot.slane %v4947, 2
      %v4949 = vmax.f32 %v4947, %v4948
      %v4950 = vrot.slane %v4949, 1
      %v4951 = vmax.f32 %v4949, %v4950
      %v4952 = vsel %vm218, %v3976, -inf
      %v4953 = vrot.slane %v4952, 4
      %v4954 = vmax.f32 %v4952, %v4953
      %v4955 = vrot.slane %v4954, 2
      %v4956 = vmax.f32 %v4954, %v4955
      %v4957 = vrot.slane %v4956, 1
      %v4958 = vmax.f32 %v4956, %v4957
      %v4959 = vsel %vm218, %v3977, -inf
      %v4960 = vrot.slane %v4959, 4
      %v4961 = vmax.f32 %v4959, %v4960
      %v4962 = vrot.slane %v4961, 2
      %v4963 = vmax.f32 %v4961, %v4962
      %v4964 = vrot.slane %v4963, 1
      %v4965 = vmax.f32 %v4963, %v4964
      %v4966 = vsel %vm218, %v3978, -inf
      %v4967 = vrot.slane %v4966, 4
      %v4968 = vmax.f32 %v4966, %v4967
      %v4969 = vrot.slane %v4968, 2
      %v4970 = vmax.f32 %v4968, %v4969
      %v4971 = vrot.slane %v4970, 1
      %v4972 = vmax.f32 %v4970, %v4971
      %v4973 = vsel %vm218, %v3979, -inf
      %v4974 = vrot.slane %v4973, 4
      %v4975 = vmax.f32 %v4973, %v4974
      %v4976 = vrot.slane %v4975, 2
      %v4977 = vmax.f32 %v4975, %v4976
      %v4978 = vrot.slane %v4977, 1
      %v4979 = vmax.f32 %v4977, %v4978
      %v4980 = vsel %vm218, %v3980, -inf
      %v4981 = vrot.slane %v4980, 4
      %v4982 = vmax.f32 %v4980, %v4981
      %v4983 = vrot.slane %v4982, 2
      %v4984 = vmax.f32 %v4982, %v4983
      %v4985 = vrot.slane %v4984, 1
      %v4986 = vmax.f32 %v4984, %v4985
      %v4987 = vsel %vm218, %v3981, -inf
      %v4988 = vrot.slane %v4987, 4
      %v4989 = vmax.f32 %v4987, %v4988
      %v4990 = vrot.slane %v4989, 2
      %v4991 = vmax.f32 %v4989, %v4990
      %v4992 = vrot.slane %v4991, 1
      %v4993 = vmax.f32 %v4991, %v4992
      %v4994 = vsel %vm218, %v3982, -inf
      %v4995 = vrot.slane %v4994, 4
      %v4996 = vmax.f32 %v4994, %v4995
      %v4997 = vrot.slane %v4996, 2
      %v4998 = vmax.f32 %v4996, %v4997
      %v4999 = vrot.slane %v4998, 1
      %v5000 = vmax.f32 %v4998, %v4999
      %v5001 = vsel %vm218, %v3983, -inf
      %v5002 = vrot.slane %v5001, 4
      %v5003 = vmax.f32 %v5001, %v5002
      %v5004 = vrot.slane %v5003, 2
      %v5005 = vmax.f32 %v5003, %v5004
      %v5006 = vrot.slane %v5005, 1
      %v5007 = vmax.f32 %v5005, %v5006
      %v5008 = vsel %vm218, %v3984, -inf
      %v5009 = vrot.slane %v5008, 4
      %v5010 = vmax.f32 %v5008, %v5009
      %v5011 = vrot.slane %v5010, 2
      %v5012 = vmax.f32 %v5010, %v5011
      %v5013 = vrot.slane %v5012, 1
      %v5014 = vmax.f32 %v5012, %v5013
      %v5015 = vsel %vm218, %v3985, -inf
      %v5016 = vrot.slane %v5015, 4
      %v5017 = vmax.f32 %v5015, %v5016
      %v5018 = vrot.slane %v5017, 2
      %v5019 = vmax.f32 %v5017, %v5018
      %v5020 = vrot.slane %v5019, 1
      %v5021 = vmax.f32 %v5019, %v5020
      %v5022 = vsel %vm218, %v3986, -inf
      %v5023 = vrot.slane %v5022, 4
      %v5024 = vmax.f32 %v5022, %v5023
      %v5025 = vrot.slane %v5024, 2
      %v5026 = vmax.f32 %v5024, %v5025
      %v5027 = vrot.slane %v5026, 1
      %v5028 = vmax.f32 %v5026, %v5027
      %v5029 = vsel %vm218, %v3987, -inf
      %v5030 = vrot.slane %v5029, 4
      %v5031 = vmax.f32 %v5029, %v5030
      %v5032 = vrot.slane %v5031, 2
      %v5033 = vmax.f32 %v5031, %v5032
      %v5034 = vrot.slane %v5033, 1
      %v5035 = vmax.f32 %v5033, %v5034
      %v5036 = vsel %vm218, %v3988, -inf
      %v5037 = vrot.slane %v5036, 4
      %v5038 = vmax.f32 %v5036, %v5037
      %v5039 = vrot.slane %v5038, 2
      %v5040 = vmax.f32 %v5038, %v5039
      %v5041 = vrot.slane %v5040, 1
      %v5042 = vmax.f32 %v5040, %v5041
      %v5043 = vsel %vm218, %v3989, -inf
      %v5044 = vrot.slane %v5043, 4
      %v5045 = vmax.f32 %v5043, %v5044
      %v5046 = vrot.slane %v5045, 2
      %v5047 = vmax.f32 %v5045, %v5046
      %v5048 = vrot.slane %v5047, 1
      %v5049 = vmax.f32 %v5047, %v5048
      %v5050 = vsel %vm218, %v3990, -inf
      %v5051 = vrot.slane %v5050, 4
      %v5052 = vmax.f32 %v5050, %v5051
      %v5053 = vrot.slane %v5052, 2
      %v5054 = vmax.f32 %v5052, %v5053
      %v5055 = vrot.slane %v5054, 1
      %v5056 = vmax.f32 %v5054, %v5055
      %v5057 = vsel %vm218, %v3991, -inf
      %v5058 = vrot.slane %v5057, 4
      %v5059 = vmax.f32 %v5057, %v5058
      %v5060 = vrot.slane %v5059, 2
      %v5061 = vmax.f32 %v5059, %v5060
      %v5062 = vrot.slane %v5061, 1
      %v5063 = vmax.f32 %v5061, %v5062
      %v5064 = vsel %vm218, %v3992, -inf
      %v5065 = vrot.slane %v5064, 4
      %v5066 = vmax.f32 %v5064, %v5065
      %v5067 = vrot.slane %v5066, 2
      %v5068 = vmax.f32 %v5066, %v5067
      %v5069 = vrot.slane %v5068, 1
      %v5070 = vmax.f32 %v5068, %v5069
      %v5071 = vsel %vm218, %v3993, -inf
      %v5072 = vrot.slane %v5071, 4
      %v5073 = vmax.f32 %v5071, %v5072
      %v5074 = vrot.slane %v5073, 2
      %v5075 = vmax.f32 %v5073, %v5074
      %v5076 = vrot.slane %v5075, 1
      %v5077 = vmax.f32 %v5075, %v5076
      %v5078 = vsel %vm218, %v3994, -inf
      %v5079 = vrot.slane %v5078, 4
      %v5080 = vmax.f32 %v5078, %v5079
      %v5081 = vrot.slane %v5080, 2
      %v5082 = vmax.f32 %v5080, %v5081
      %v5083 = vrot.slane %v5082, 1
      %v5084 = vmax.f32 %v5082, %v5083
      %v5085 = vsel %vm218, %v3995, -inf
      %v5086 = vrot.slane %v5085, 4
      %v5087 = vmax.f32 %v5085, %v5086
      %v5088 = vrot.slane %v5087, 2
      %v5089 = vmax.f32 %v5087, %v5088
      %v5090 = vrot.slane %v5089, 1
      %v5091 = vmax.f32 %v5089, %v5090
      %v5092 = vsel %vm218, %v3996, -inf
      %v5093 = vrot.slane %v5092, 4
      %v5094 = vmax.f32 %v5092, %v5093
      %v5095 = vrot.slane %v5094, 2
      %v5096 = vmax.f32 %v5094, %v5095
      %v5097 = vrot.slane %v5096, 1
      %v5098 = vmax.f32 %v5096, %v5097
      %v5099 = vsel %vm218, %v3997, -inf
      %v5100 = vrot.slane %v5099, 4
      %v5101 = vmax.f32 %v5099, %v5100
      %v5102 = vrot.slane %v5101, 2
      %v5103 = vmax.f32 %v5101, %v5102
      %v5104 = vrot.slane %v5103, 1
      %v5105 = vmax.f32 %v5103, %v5104
      %v5106 = vsel %vm218, %v3998, -inf
      %v5107 = vrot.slane %v5106, 4
      %v5108 = vmax.f32 %v5106, %v5107
      %v5109 = vrot.slane %v5108, 2
      %v5110 = vmax.f32 %v5108, %v5109
      %v5111 = vrot.slane %v5110, 1
      %v5112 = vmax.f32 %v5110, %v5111
      %v5113 = vsel %vm218, %v3999, -inf
      %v5114 = vrot.slane %v5113, 4
      %v5115 = vmax.f32 %v5113, %v5114
      %v5116 = vrot.slane %v5115, 2
      %v5117 = vmax.f32 %v5115, %v5116
      %v5118 = vrot.slane %v5117, 1
      %v5119 = vmax.f32 %v5117, %v5118
      %5120 = vst.msk [vmem:[#allocation3 + $0x3] sm:$0x1] %vm779, %v4636
      %5121 = vst.msk [vmem:[#allocation3 + $0xb] sm:$0x1] %vm779, %v4643
      %5122 = vst.msk [vmem:[#allocation3 + $0x13] sm:$0x1] %vm779, %v4650
      %5123 = vst.msk [vmem:[#allocation3 + $0x1b] sm:$0x1] %vm779, %v4657
      %5124 = vst.msk [vmem:[#allocation3 + $0x23] sm:$0x1] %vm779, %v4664
      %5125 = vst.msk [vmem:[#allocation3 + $0x2b] sm:$0x1] %vm779, %v4671
      %5126 = vst.msk [vmem:[#allocation3 + $0x33] sm:$0x1] %vm779, %v4678
      %5127 = vst.msk [vmem:[#allocation3 + $0x3b] sm:$0x1] %vm779, %v4685
      %5128 = vst.msk [vmem:[#allocation3 + $0x43] sm:$0x1] %vm779, %v4692
      %5129 = vst.msk [vmem:[#allocation3 + $0x4b] sm:$0x1] %vm779, %v4699
      %5130 = vst.msk [vmem:[#allocation3 + $0x53] sm:$0x1] %vm779, %v4706
      %5131 = vst.msk [vmem:[#allocation3 + $0x5b] sm:$0x1] %vm779, %v4713
      %5132 = vst.msk [vmem:[#allocation3 + $0x63] sm:$0x1] %vm779, %v4720
      %5133 = vst.msk [vmem:[#allocation3 + $0x6b] sm:$0x1] %vm779, %v4727
      %5134 = vst.msk [vmem:[#allocation3 + $0x73] sm:$0x1] %vm779, %v4734
      %5135 = vst.msk [vmem:[#allocation3 + $0x7b] sm:$0x1] %vm779, %v4741
      %5136 = vst.msk [vmem:[#allocation3 + $0x83] sm:$0x1] %vm779, %v4748
      %5137 = vst.msk [vmem:[#allocation3 + $0x8b] sm:$0x1] %vm779, %v4755
      %5138 = vst.msk [vmem:[#allocation3 + $0x93] sm:$0x1] %vm779, %v4762
      %5139 = vst.msk [vmem:[#allocation3 + $0x9b] sm:$0x1] %vm779, %v4769
      %5140 = vst.msk [vmem:[#allocation3 + $0xa3] sm:$0x1] %vm779, %v4776
      %5141 = vst.msk [vmem:[#allocation3 + $0xab] sm:$0x1] %vm779, %v4783
      %5142 = vst.msk [vmem:[#allocation3 + $0xb3] sm:$0x1] %vm779, %v4790
      %5143 = vst.msk [vmem:[#allocation3 + $0xbb] sm:$0x1] %vm779, %v4797
      %5144 = vst.msk [vmem:[#allocation3 + $0xc3] sm:$0x1] %vm779, %v4804
      %5145 = vst.msk [vmem:[#allocation3 + $0xcb] sm:$0x1] %vm779, %v4811
      %5146 = vst.msk [vmem:[#allocation3 + $0xd3] sm:$0x1] %vm779, %v4818
      %5147 = vst.msk [vmem:[#allocation3 + $0xdb] sm:$0x1] %vm779, %v4825
      %5148 = vst.msk [vmem:[#allocation3 + $0xe3] sm:$0x1] %vm779, %v4832
      %5149 = vst.msk [vmem:[#allocation3 + $0xeb] sm:$0x1] %vm779, %v4839
      %5150 = vst.msk [vmem:[#allocation3 + $0xf3] sm:$0x1] %vm779, %v4846
      %5151 = vst.msk [vmem:[#allocation3 + $0xfb] sm:$0x1] %vm779, %v4853
      %5152 = vst.msk [vmem:[#allocation3 + $0x103] sm:$0x1] %vm779, %v4860
      %5153 = vst.msk [vmem:[#allocation3 + $0x10b] sm:$0x1] %vm779, %v4867
      %5154 = vst.msk [vmem:[#allocation3 + $0x113] sm:$0x1] %vm779, %v4874
      %5155 = vst.msk [vmem:[#allocation3 + $0x11b] sm:$0x1] %vm779, %v4881
      %5156 = vst.msk [vmem:[#allocation3 + $0x123] sm:$0x1] %vm779, %v4888
      %5157 = vst.msk [vmem:[#allocation3 + $0x12b] sm:$0x1] %vm779, %v4895
      %5158 = vst.msk [vmem:[#allocation3 + $0x133] sm:$0x1] %vm779, %v4902
      %5159 = vst.msk [vmem:[#allocation3 + $0x13b] sm:$0x1] %vm779, %v4909
      %5160 = vst.msk [vmem:[#allocation3 + $0x143] sm:$0x1] %vm779, %v4916
      %5161 = vst.msk [vmem:[#allocation3 + $0x14b] sm:$0x1] %vm779, %v4923
      %5162 = vst.msk [vmem:[#allocation3 + $0x153] sm:$0x1] %vm779, %v4930
      %5163 = vst.msk [vmem:[#allocation3 + $0x15b] sm:$0x1] %vm779, %v4937
      %5164 = vst.msk [vmem:[#allocation3 + $0x163] sm:$0x1] %vm779, %v4944
      %5165 = vst.msk [vmem:[#allocation3 + $0x16b] sm:$0x1] %vm779, %v4951
      %5166 = vst.msk [vmem:[#allocation3 + $0x173] sm:$0x1] %vm779, %v4958
      %5167 = vst.msk [vmem:[#allocation3 + $0x17b] sm:$0x1] %vm779, %v4965
      %5168 = vst.msk [vmem:[#allocation3 + $0x183] sm:$0x1] %vm779, %v4972
      %5169 = vst.msk [vmem:[#allocation3 + $0x18b] sm:$0x1] %vm779, %v4979
      %5170 = vst.msk [vmem:[#allocation3 + $0x193] sm:$0x1] %vm779, %v4986
      %5171 = vst.msk [vmem:[#allocation3 + $0x19b] sm:$0x1] %vm779, %v4993
      %5172 = vst.msk [vmem:[#allocation3 + $0x1a3] sm:$0x1] %vm779, %v5000
      %5173 = vst.msk [vmem:[#allocation3 + $0x1ab] sm:$0x1] %vm779, %v5007
      %5174 = vst.msk [vmem:[#allocation3 + $0x1b3] sm:$0x1] %vm779, %v5014
      %5175 = vst.msk [vmem:[#allocation3 + $0x1bb] sm:$0x1] %vm779, %v5021
      %5176 = vst.msk [vmem:[#allocation3 + $0x1c3] sm:$0x1] %vm779, %v5028
      %5177 = vst.msk [vmem:[#allocation3 + $0x1cb] sm:$0x1] %vm779, %v5035
      %5178 = vst.msk [vmem:[#allocation3 + $0x1d3] sm:$0x1] %vm779, %v5042
      %5179 = vst.msk [vmem:[#allocation3 + $0x1db] sm:$0x1] %vm779, %v5049
      %5180 = vst.msk [vmem:[#allocation3 + $0x1e3] sm:$0x1] %vm779, %v5056
      %5181 = vst.msk [vmem:[#allocation3 + $0x1eb] sm:$0x1] %vm779, %v5063
      %5182 = vst.msk [vmem:[#allocation3 + $0x1f3] sm:$0x1] %vm779, %v5070
      %5183 = vst.msk [vmem:[#allocation3 + $0x1fb] sm:$0x1] %vm779, %v5077
      %5184 = vst.msk [vmem:[#allocation3 + $0x203] sm:$0x1] %vm779, %v5084
      %5185 = vst.msk [vmem:[#allocation3 + $0x20b] sm:$0x1] %vm779, %v5091
      %5186 = vst.msk [vmem:[#allocation3 + $0x213] sm:$0x1] %vm779, %v5098
      %5187 = vst.msk [vmem:[#allocation3 + $0x21b] sm:$0x1] %vm779, %v5105
      %5188 = vst.msk [vmem:[#allocation3 + $0x223] sm:$0x1] %vm779, %v5112
      %5189 = vst.msk [vmem:[#allocation3 + $0x22b] sm:$0x1] %vm779, %v5119
      %v5190 = vld [vmem:[%s139 + $0xc] sm:$0xf]
      %v5191 = vld [vmem:[%s139 + $0x1c] sm:$0xf]
      %v5192 = vld [vmem:[%s139 + $0x2c] sm:$0xf]
      %v5193 = vld [vmem:[%s139 + $0x3c] sm:$0xf]
      %v5194 = vld [vmem:[%s139 + $0x4c] sm:$0xf]
      %v5195 = vld [vmem:[%s139 + $0x5c] sm:$0xf]
      %v5196 = vld [vmem:[%s139 + $0x6c] sm:$0xf]
      %v5197 = vld [vmem:[%s139 + $0x7c] sm:$0xf]
      %v5198 = vld [vmem:[%s139 + $0x8c] sm:$0xf]
      %v5199 = vld [vmem:[%s139 + $0x9c] sm:$0xf]
      %v5200 = vld [vmem:[%s139 + $0xac] sm:$0xf]
      %v5201 = vld [vmem:[%s139 + $0xbc] sm:$0xf]
      %v5202 = vld [vmem:[%s139 + $0xcc] sm:$0xf]
      %v5203 = vld [vmem:[%s139 + $0xdc] sm:$0xf]
      %v5204 = vld [vmem:[%s139 + $0xec] sm:$0xf]
      %v5205 = vld [vmem:[%s139 + $0xfc] sm:$0xf]
      %v5206 = vld [vmem:[%s139 + $0x10c] sm:$0xf]
      %v5207 = vld [vmem:[%s139 + $0x11c] sm:$0xf]
      %v5208 = vld [vmem:[%s139 + $0x12c] sm:$0xf]
      %v5209 = vld [vmem:[%s139 + $0x13c] sm:$0xf]
      %v5210 = vld [vmem:[%s139 + $0x14c] sm:$0xf]
      %v5211 = vld [vmem:[%s139 + $0x15c] sm:$0xf]
      %v5212 = vld [vmem:[%s139 + $0x16c] sm:$0xf]
      %v5213 = vld [vmem:[%s139 + $0x17c] sm:$0xf]
      %v5214 = vld [vmem:[%s139 + $0x18c] sm:$0xf]
      %v5215 = vld [vmem:[%s139 + $0x19c] sm:$0xf]
      %v5216 = vld [vmem:[%s139 + $0x1ac] sm:$0xf]
      %v5217 = vld [vmem:[%s139 + $0x1bc] sm:$0xf]
      %v5218 = vld [vmem:[%s139 + $0x1cc] sm:$0xf]
      %v5219 = vld [vmem:[%s139 + $0x1dc] sm:$0xf]
      %v5220 = vld [vmem:[%s139 + $0x1ec] sm:$0xf]
      %v5221 = vld [vmem:[%s139 + $0x1fc] sm:$0xf]
      %v5222 = vld [vmem:[%s139 + $0x20c] sm:$0xf]
      %v5223 = vld [vmem:[%s139 + $0x21c] sm:$0xf]
      %v5224 = vld [vmem:[%s139 + $0x22c] sm:$0xf]
      %v5225 = vld [vmem:[%s139 + $0x23c] sm:$0xf]
      %v5226 = vld [vmem:[%s139 + $0x24c] sm:$0xf]
      %v5227 = vld [vmem:[%s139 + $0x25c] sm:$0xf]
      %v5228 = vld [vmem:[%s139 + $0x26c] sm:$0xf]
      %v5229 = vld [vmem:[%s139 + $0x27c] sm:$0xf]
      %v5230 = vld [vmem:[%s139 + $0x28c] sm:$0xf]
      %v5231 = vld [vmem:[%s139 + $0x29c] sm:$0xf]
      %v5232 = vld [vmem:[%s139 + $0x2ac] sm:$0xf]
      %v5233 = vld [vmem:[%s139 + $0x2bc] sm:$0xf]
      %v5234 = vld [vmem:[%s139 + $0x2cc] sm:$0xf]
      %v5235 = vld [vmem:[%s139 + $0x2dc] sm:$0xf]
      %v5236 = vld [vmem:[%s139 + $0x2ec] sm:$0xf]
      %v5237 = vld [vmem:[%s139 + $0x2fc] sm:$0xf]
      %v5238 = vld [vmem:[%s139 + $0x30c] sm:$0xf]
      %v5239 = vld [vmem:[%s139 + $0x31c] sm:$0xf]
      %v5240 = vld [vmem:[%s139 + $0x32c] sm:$0xf]
      %v5241 = vld [vmem:[%s139 + $0x33c] sm:$0xf]
      %v5242 = vld [vmem:[%s139 + $0x34c] sm:$0xf]
      %v5243 = vld [vmem:[%s139 + $0x35c] sm:$0xf]
      %v5244 = vld [vmem:[%s139 + $0x36c] sm:$0xf]
      %v5245 = vld [vmem:[%s139 + $0x37c] sm:$0xf]
      %v5246 = vld [vmem:[%s139 + $0x38c] sm:$0xf]
      %v5247 = vld [vmem:[%s139 + $0x39c] sm:$0xf]
      %v5248 = vld [vmem:[%s139 + $0x3ac] sm:$0xf]
      %v5249 = vld [vmem:[%s139 + $0x3bc] sm:$0xf]
      %v5250 = vld [vmem:[%s139 + $0x3cc] sm:$0xf]
      %v5251 = vld [vmem:[%s139 + $0x3dc] sm:$0xf]
      %v5252 = vld [vmem:[%s139 + $0x3ec] sm:$0xf]
      %v5253 = vld [vmem:[%s139 + $0x3fc] sm:$0xf]
      %v5254 = vld [vmem:[%s139 + $0x40c] sm:$0xf]
      %v5255 = vld [vmem:[%s139 + $0x41c] sm:$0xf]
      %v5256 = vld [vmem:[%s139 + $0x42c] sm:$0xf]
      %v5257 = vld [vmem:[%s139 + $0x43c] sm:$0xf]
      %v5258 = vld [vmem:[%s139 + $0x44c] sm:$0xf]
      %v5259 = vld [vmem:[%s139 + $0x45c] sm:$0xf]
      %v5260 = vsel %vm218, %v5190, 0.0
      %v5261 = vrot.slane %v5260, 4
      %v5262 = vadd.f32 %v5260, %v5261
      %v5263 = vrot.slane %v5262, 2
      %v5264 = vadd.f32 %v5262, %v5263
      %v5265 = vrot.slane %v5264, 1
      %v5266 = vadd.f32 %v5264, %v5265
      %v5267 = vsel %vm218, %v5191, 0.0
      %v5268 = vrot.slane %v5267, 4
      %v5269 = vadd.f32 %v5267, %v5268
      %v5270 = vrot.slane %v5269, 2
      %v5271 = vadd.f32 %v5269, %v5270
      %v5272 = vrot.slane %v5271, 1
      %v5273 = vadd.f32 %v5271, %v5272
      %v5274 = vsel %vm218, %v5192, 0.0
      %v5275 = vrot.slane %v5274, 4
      %v5276 = vadd.f32 %v5274, %v5275
      %v5277 = vrot.slane %v5276, 2
      %v5278 = vadd.f32 %v5276, %v5277
      %v5279 = vrot.slane %v5278, 1
      %v5280 = vadd.f32 %v5278, %v5279
      %v5281 = vsel %vm218, %v5193, 0.0
      %v5282 = vrot.slane %v5281, 4
      %v5283 = vadd.f32 %v5281, %v5282
      %v5284 = vrot.slane %v5283, 2
      %v5285 = vadd.f32 %v5283, %v5284
      %v5286 = vrot.slane %v5285, 1
      %v5287 = vadd.f32 %v5285, %v5286
      %v5288 = vsel %vm218, %v5194, 0.0
      %v5289 = vrot.slane %v5288, 4
      %v5290 = vadd.f32 %v5288, %v5289
      %v5291 = vrot.slane %v5290, 2
      %v5292 = vadd.f32 %v5290, %v5291
      %v5293 = vrot.slane %v5292, 1
      %v5294 = vadd.f32 %v5292, %v5293
      %v5295 = vsel %vm218, %v5195, 0.0
      %v5296 = vrot.slane %v5295, 4
      %v5297 = vadd.f32 %v5295, %v5296
      %v5298 = vrot.slane %v5297, 2
      %v5299 = vadd.f32 %v5297, %v5298
      %v5300 = vrot.slane %v5299, 1
      %v5301 = vadd.f32 %v5299, %v5300
      %v5302 = vsel %vm218, %v5196, 0.0
      %v5303 = vrot.slane %v5302, 4
      %v5304 = vadd.f32 %v5302, %v5303
      %v5305 = vrot.slane %v5304, 2
      %v5306 = vadd.f32 %v5304, %v5305
      %v5307 = vrot.slane %v5306, 1
      %v5308 = vadd.f32 %v5306, %v5307
      %v5309 = vsel %vm218, %v5197, 0.0
      %v5310 = vrot.slane %v5309, 4
      %v5311 = vadd.f32 %v5309, %v5310
      %v5312 = vrot.slane %v5311, 2
      %v5313 = vadd.f32 %v5311, %v5312
      %v5314 = vrot.slane %v5313, 1
      %v5315 = vadd.f32 %v5313, %v5314
      %v5316 = vsel %vm218, %v5198, 0.0
      %v5317 = vrot.slane %v5316, 4
      %v5318 = vadd.f32 %v5316, %v5317
      %v5319 = vrot.slane %v5318, 2
      %v5320 = vadd.f32 %v5318, %v5319
      %v5321 = vrot.slane %v5320, 1
      %v5322 = vadd.f32 %v5320, %v5321
      %v5323 = vsel %vm218, %v5199, 0.0
      %v5324 = vrot.slane %v5323, 4
      %v5325 = vadd.f32 %v5323, %v5324
      %v5326 = vrot.slane %v5325, 2
      %v5327 = vadd.f32 %v5325, %v5326
      %v5328 = vrot.slane %v5327, 1
      %v5329 = vadd.f32 %v5327, %v5328
      %v5330 = vsel %vm218, %v5200, 0.0
      %v5331 = vrot.slane %v5330, 4
      %v5332 = vadd.f32 %v5330, %v5331
      %v5333 = vrot.slane %v5332, 2
      %v5334 = vadd.f32 %v5332, %v5333
      %v5335 = vrot.slane %v5334, 1
      %v5336 = vadd.f32 %v5334, %v5335
      %v5337 = vsel %vm218, %v5201, 0.0
      %v5338 = vrot.slane %v5337, 4
      %v5339 = vadd.f32 %v5337, %v5338
      %v5340 = vrot.slane %v5339, 2
      %v5341 = vadd.f32 %v5339, %v5340
      %v5342 = vrot.slane %v5341, 1
      %v5343 = vadd.f32 %v5341, %v5342
      %v5344 = vsel %vm218, %v5202, 0.0
      %v5345 = vrot.slane %v5344, 4
      %v5346 = vadd.f32 %v5344, %v5345
      %v5347 = vrot.slane %v5346, 2
      %v5348 = vadd.f32 %v5346, %v5347
      %v5349 = vrot.slane %v5348, 1
      %v5350 = vadd.f32 %v5348, %v5349
      %v5351 = vsel %vm218, %v5203, 0.0
      %v5352 = vrot.slane %v5351, 4
      %v5353 = vadd.f32 %v5351, %v5352
      %v5354 = vrot.slane %v5353, 2
      %v5355 = vadd.f32 %v5353, %v5354
      %v5356 = vrot.slane %v5355, 1
      %v5357 = vadd.f32 %v5355, %v5356
      %v5358 = vsel %vm218, %v5204, 0.0
      %v5359 = vrot.slane %v5358, 4
      %v5360 = vadd.f32 %v5358, %v5359
      %v5361 = vrot.slane %v5360, 2
      %v5362 = vadd.f32 %v5360, %v5361
      %v5363 = vrot.slane %v5362, 1
      %v5364 = vadd.f32 %v5362, %v5363
      %v5365 = vsel %vm218, %v5205, 0.0
      %v5366 = vrot.slane %v5365, 4
      %v5367 = vadd.f32 %v5365, %v5366
      %v5368 = vrot.slane %v5367, 2
      %v5369 = vadd.f32 %v5367, %v5368
      %v5370 = vrot.slane %v5369, 1
      %v5371 = vadd.f32 %v5369, %v5370
      %v5372 = vsel %vm218, %v5206, 0.0
      %v5373 = vrot.slane %v5372, 4
      %v5374 = vadd.f32 %v5372, %v5373
      %v5375 = vrot.slane %v5374, 2
      %v5376 = vadd.f32 %v5374, %v5375
      %v5377 = vrot.slane %v5376, 1
      %v5378 = vadd.f32 %v5376, %v5377
      %v5379 = vsel %vm218, %v5207, 0.0
      %v5380 = vrot.slane %v5379, 4
      %v5381 = vadd.f32 %v5379, %v5380
      %v5382 = vrot.slane %v5381, 2
      %v5383 = vadd.f32 %v5381, %v5382
      %v5384 = vrot.slane %v5383, 1
      %v5385 = vadd.f32 %v5383, %v5384
      %v5386 = vsel %vm218, %v5208, 0.0
      %v5387 = vrot.slane %v5386, 4
      %v5388 = vadd.f32 %v5386, %v5387
      %v5389 = vrot.slane %v5388, 2
      %v5390 = vadd.f32 %v5388, %v5389
      %v5391 = vrot.slane %v5390, 1
      %v5392 = vadd.f32 %v5390, %v5391
      %v5393 = vsel %vm218, %v5209, 0.0
      %v5394 = vrot.slane %v5393, 4
      %v5395 = vadd.f32 %v5393, %v5394
      %v5396 = vrot.slane %v5395, 2
      %v5397 = vadd.f32 %v5395, %v5396
      %v5398 = vrot.slane %v5397, 1
      %v5399 = vadd.f32 %v5397, %v5398
      %v5400 = vsel %vm218, %v5210, 0.0
      %v5401 = vrot.slane %v5400, 4
      %v5402 = vadd.f32 %v5400, %v5401
      %v5403 = vrot.slane %v5402, 2
      %v5404 = vadd.f32 %v5402, %v5403
      %v5405 = vrot.slane %v5404, 1
      %v5406 = vadd.f32 %v5404, %v5405
      %v5407 = vsel %vm218, %v5211, 0.0
      %v5408 = vrot.slane %v5407, 4
      %v5409 = vadd.f32 %v5407, %v5408
      %v5410 = vrot.slane %v5409, 2
      %v5411 = vadd.f32 %v5409, %v5410
      %v5412 = vrot.slane %v5411, 1
      %v5413 = vadd.f32 %v5411, %v5412
      %v5414 = vsel %vm218, %v5212, 0.0
      %v5415 = vrot.slane %v5414, 4
      %v5416 = vadd.f32 %v5414, %v5415
      %v5417 = vrot.slane %v5416, 2
      %v5418 = vadd.f32 %v5416, %v5417
      %v5419 = vrot.slane %v5418, 1
      %v5420 = vadd.f32 %v5418, %v5419
      %v5421 = vsel %vm218, %v5213, 0.0
      %v5422 = vrot.slane %v5421, 4
      %v5423 = vadd.f32 %v5421, %v5422
      %v5424 = vrot.slane %v5423, 2
      %v5425 = vadd.f32 %v5423, %v5424
      %v5426 = vrot.slane %v5425, 1
      %v5427 = vadd.f32 %v5425, %v5426
      %v5428 = vsel %vm218, %v5214, 0.0
      %v5429 = vrot.slane %v5428, 4
      %v5430 = vadd.f32 %v5428, %v5429
      %v5431 = vrot.slane %v5430, 2
      %v5432 = vadd.f32 %v5430, %v5431
      %v5433 = vrot.slane %v5432, 1
      %v5434 = vadd.f32 %v5432, %v5433
      %v5435 = vsel %vm218, %v5215, 0.0
      %v5436 = vrot.slane %v5435, 4
      %v5437 = vadd.f32 %v5435, %v5436
      %v5438 = vrot.slane %v5437, 2
      %v5439 = vadd.f32 %v5437, %v5438
      %v5440 = vrot.slane %v5439, 1
      %v5441 = vadd.f32 %v5439, %v5440
      %v5442 = vsel %vm218, %v5216, 0.0
      %v5443 = vrot.slane %v5442, 4
      %v5444 = vadd.f32 %v5442, %v5443
      %v5445 = vrot.slane %v5444, 2
      %v5446 = vadd.f32 %v5444, %v5445
      %v5447 = vrot.slane %v5446, 1
      %v5448 = vadd.f32 %v5446, %v5447
      %v5449 = vsel %vm218, %v5217, 0.0
      %v5450 = vrot.slane %v5449, 4
      %v5451 = vadd.f32 %v5449, %v5450
      %v5452 = vrot.slane %v5451, 2
      %v5453 = vadd.f32 %v5451, %v5452
      %v5454 = vrot.slane %v5453, 1
      %v5455 = vadd.f32 %v5453, %v5454
      %v5456 = vsel %vm218, %v5218, 0.0
      %v5457 = vrot.slane %v5456, 4
      %v5458 = vadd.f32 %v5456, %v5457
      %v5459 = vrot.slane %v5458, 2
      %v5460 = vadd.f32 %v5458, %v5459
      %v5461 = vrot.slane %v5460, 1
      %v5462 = vadd.f32 %v5460, %v5461
      %v5463 = vsel %vm218, %v5219, 0.0
      %v5464 = vrot.slane %v5463, 4
      %v5465 = vadd.f32 %v5463, %v5464
      %v5466 = vrot.slane %v5465, 2
      %v5467 = vadd.f32 %v5465, %v5466
      %v5468 = vrot.slane %v5467, 1
      %v5469 = vadd.f32 %v5467, %v5468
      %v5470 = vsel %vm218, %v5220, 0.0
      %v5471 = vrot.slane %v5470, 4
      %v5472 = vadd.f32 %v5470, %v5471
      %v5473 = vrot.slane %v5472, 2
      %v5474 = vadd.f32 %v5472, %v5473
      %v5475 = vrot.slane %v5474, 1
      %v5476 = vadd.f32 %v5474, %v5475
      %v5477 = vsel %vm218, %v5221, 0.0
      %v5478 = vrot.slane %v5477, 4
      %v5479 = vadd.f32 %v5477, %v5478
      %v5480 = vrot.slane %v5479, 2
      %v5481 = vadd.f32 %v5479, %v5480
      %v5482 = vrot.slane %v5481, 1
      %v5483 = vadd.f32 %v5481, %v5482
      %v5484 = vsel %vm218, %v5222, 0.0
      %v5485 = vrot.slane %v5484, 4
      %v5486 = vadd.f32 %v5484, %v5485
      %v5487 = vrot.slane %v5486, 2
      %v5488 = vadd.f32 %v5486, %v5487
      %v5489 = vrot.slane %v5488, 1
      %v5490 = vadd.f32 %v5488, %v5489
      %v5491 = vsel %vm218, %v5223, 0.0
      %v5492 = vrot.slane %v5491, 4
      %v5493 = vadd.f32 %v5491, %v5492
      %v5494 = vrot.slane %v5493, 2
      %v5495 = vadd.f32 %v5493, %v5494
      %v5496 = vrot.slane %v5495, 1
      %v5497 = vadd.f32 %v5495, %v5496
      %v5498 = vsel %vm218, %v5224, 0.0
      %v5499 = vrot.slane %v5498, 4
      %v5500 = vadd.f32 %v5498, %v5499
      %v5501 = vrot.slane %v5500, 2
      %v5502 = vadd.f32 %v5500, %v5501
      %v5503 = vrot.slane %v5502, 1
      %v5504 = vadd.f32 %v5502, %v5503
      %v5505 = vsel %vm218, %v5225, 0.0
      %v5506 = vrot.slane %v5505, 4
      %v5507 = vadd.f32 %v5505, %v5506
      %v5508 = vrot.slane %v5507, 2
      %v5509 = vadd.f32 %v5507, %v5508
      %v5510 = vrot.slane %v5509, 1
      %v5511 = vadd.f32 %v5509, %v5510
      %v5512 = vsel %vm218, %v5226, 0.0
      %v5513 = vrot.slane %v5512, 4
      %v5514 = vadd.f32 %v5512, %v5513
      %v5515 = vrot.slane %v5514, 2
      %v5516 = vadd.f32 %v5514, %v5515
      %v5517 = vrot.slane %v5516, 1
      %v5518 = vadd.f32 %v5516, %v5517
      %v5519 = vsel %vm218, %v5227, 0.0
      %v5520 = vrot.slane %v5519, 4
      %v5521 = vadd.f32 %v5519, %v5520
      %v5522 = vrot.slane %v5521, 2
      %v5523 = vadd.f32 %v5521, %v5522
      %v5524 = vrot.slane %v5523, 1
      %v5525 = vadd.f32 %v5523, %v5524
      %v5526 = vsel %vm218, %v5228, 0.0
      %v5527 = vrot.slane %v5526, 4
      %v5528 = vadd.f32 %v5526, %v5527
      %v5529 = vrot.slane %v5528, 2
      %v5530 = vadd.f32 %v5528, %v5529
      %v5531 = vrot.slane %v5530, 1
      %v5532 = vadd.f32 %v5530, %v5531
      %v5533 = vsel %vm218, %v5229, 0.0
      %v5534 = vrot.slane %v5533, 4
      %v5535 = vadd.f32 %v5533, %v5534
      %v5536 = vrot.slane %v5535, 2
      %v5537 = vadd.f32 %v5535, %v5536
      %v5538 = vrot.slane %v5537, 1
      %v5539 = vadd.f32 %v5537, %v5538
      %v5540 = vsel %vm218, %v5230, 0.0
      %v5541 = vrot.slane %v5540, 4
      %v5542 = vadd.f32 %v5540, %v5541
      %v5543 = vrot.slane %v5542, 2
      %v5544 = vadd.f32 %v5542, %v5543
      %v5545 = vrot.slane %v5544, 1
      %v5546 = vadd.f32 %v5544, %v5545
      %v5547 = vsel %vm218, %v5231, 0.0
      %v5548 = vrot.slane %v5547, 4
      %v5549 = vadd.f32 %v5547, %v5548
      %v5550 = vrot.slane %v5549, 2
      %v5551 = vadd.f32 %v5549, %v5550
      %v5552 = vrot.slane %v5551, 1
      %v5553 = vadd.f32 %v5551, %v5552
      %v5554 = vsel %vm218, %v5232, 0.0
      %v5555 = vrot.slane %v5554, 4
      %v5556 = vadd.f32 %v5554, %v5555
      %v5557 = vrot.slane %v5556, 2
      %v5558 = vadd.f32 %v5556, %v5557
      %v5559 = vrot.slane %v5558, 1
      %v5560 = vadd.f32 %v5558, %v5559
      %v5561 = vsel %vm218, %v5233, 0.0
      %v5562 = vrot.slane %v5561, 4
      %v5563 = vadd.f32 %v5561, %v5562
      %v5564 = vrot.slane %v5563, 2
      %v5565 = vadd.f32 %v5563, %v5564
      %v5566 = vrot.slane %v5565, 1
      %v5567 = vadd.f32 %v5565, %v5566
      %v5568 = vsel %vm218, %v5234, 0.0
      %v5569 = vrot.slane %v5568, 4
      %v5570 = vadd.f32 %v5568, %v5569
      %v5571 = vrot.slane %v5570, 2
      %v5572 = vadd.f32 %v5570, %v5571
      %v5573 = vrot.slane %v5572, 1
      %v5574 = vadd.f32 %v5572, %v5573
      %v5575 = vsel %vm218, %v5235, 0.0
      %v5576 = vrot.slane %v5575, 4
      %v5577 = vadd.f32 %v5575, %v5576
      %v5578 = vrot.slane %v5577, 2
      %v5579 = vadd.f32 %v5577, %v5578
      %v5580 = vrot.slane %v5579, 1
      %v5581 = vadd.f32 %v5579, %v5580
      %v5582 = vsel %vm218, %v5236, 0.0
      %v5583 = vrot.slane %v5582, 4
      %v5584 = vadd.f32 %v5582, %v5583
      %v5585 = vrot.slane %v5584, 2
      %v5586 = vadd.f32 %v5584, %v5585
      %v5587 = vrot.slane %v5586, 1
      %v5588 = vadd.f32 %v5586, %v5587
      %v5589 = vsel %vm218, %v5237, 0.0
      %v5590 = vrot.slane %v5589, 4
      %v5591 = vadd.f32 %v5589, %v5590
      %v5592 = vrot.slane %v5591, 2
      %v5593 = vadd.f32 %v5591, %v5592
      %v5594 = vrot.slane %v5593, 1
      %v5595 = vadd.f32 %v5593, %v5594
      %v5596 = vsel %vm218, %v5238, 0.0
      %v5597 = vrot.slane %v5596, 4
      %v5598 = vadd.f32 %v5596, %v5597
      %v5599 = vrot.slane %v5598, 2
      %v5600 = vadd.f32 %v5598, %v5599
      %v5601 = vrot.slane %v5600, 1
      %v5602 = vadd.f32 %v5600, %v5601
      %v5603 = vsel %vm218, %v5239, 0.0
      %v5604 = vrot.slane %v5603, 4
      %v5605 = vadd.f32 %v5603, %v5604
      %v5606 = vrot.slane %v5605, 2
      %v5607 = vadd.f32 %v5605, %v5606
      %v5608 = vrot.slane %v5607, 1
      %v5609 = vadd.f32 %v5607, %v5608
      %v5610 = vsel %vm218, %v5240, 0.0
      %v5611 = vrot.slane %v5610, 4
      %v5612 = vadd.f32 %v5610, %v5611
      %v5613 = vrot.slane %v5612, 2
      %v5614 = vadd.f32 %v5612, %v5613
      %v5615 = vrot.slane %v5614, 1
      %v5616 = vadd.f32 %v5614, %v5615
      %v5617 = vsel %vm218, %v5241, 0.0
      %v5618 = vrot.slane %v5617, 4
      %v5619 = vadd.f32 %v5617, %v5618
      %v5620 = vrot.slane %v5619, 2
      %v5621 = vadd.f32 %v5619, %v5620
      %v5622 = vrot.slane %v5621, 1
      %v5623 = vadd.f32 %v5621, %v5622
      %v5624 = vsel %vm218, %v5242, 0.0
      %v5625 = vrot.slane %v5624, 4
      %v5626 = vadd.f32 %v5624, %v5625
      %v5627 = vrot.slane %v5626, 2
      %v5628 = vadd.f32 %v5626, %v5627
      %v5629 = vrot.slane %v5628, 1
      %v5630 = vadd.f32 %v5628, %v5629
      %v5631 = vsel %vm218, %v5243, 0.0
      %v5632 = vrot.slane %v5631, 4
      %v5633 = vadd.f32 %v5631, %v5632
      %v5634 = vrot.slane %v5633, 2
      %v5635 = vadd.f32 %v5633, %v5634
      %v5636 = vrot.slane %v5635, 1
      %v5637 = vadd.f32 %v5635, %v5636
      %v5638 = vsel %vm218, %v5244, 0.0
      %v5639 = vrot.slane %v5638, 4
      %v5640 = vadd.f32 %v5638, %v5639
      %v5641 = vrot.slane %v5640, 2
      %v5642 = vadd.f32 %v5640, %v5641
      %v5643 = vrot.slane %v5642, 1
      %v5644 = vadd.f32 %v5642, %v5643
      %v5645 = vsel %vm218, %v5245, 0.0
      %v5646 = vrot.slane %v5645, 4
      %v5647 = vadd.f32 %v5645, %v5646
      %v5648 = vrot.slane %v5647, 2
      %v5649 = vadd.f32 %v5647, %v5648
      %v5650 = vrot.slane %v5649, 1
      %v5651 = vadd.f32 %v5649, %v5650
      %v5652 = vsel %vm218, %v5246, 0.0
      %v5653 = vrot.slane %v5652, 4
      %v5654 = vadd.f32 %v5652, %v5653
      %v5655 = vrot.slane %v5654, 2
      %v5656 = vadd.f32 %v5654, %v5655
      %v5657 = vrot.slane %v5656, 1
      %v5658 = vadd.f32 %v5656, %v5657
      %v5659 = vsel %vm218, %v5247, 0.0
      %v5660 = vrot.slane %v5659, 4
      %v5661 = vadd.f32 %v5659, %v5660
      %v5662 = vrot.slane %v5661, 2
      %v5663 = vadd.f32 %v5661, %v5662
      %v5664 = vrot.slane %v5663, 1
      %v5665 = vadd.f32 %v5663, %v5664
      %v5666 = vsel %vm218, %v5248, 0.0
      %v5667 = vrot.slane %v5666, 4
      %v5668 = vadd.f32 %v5666, %v5667
      %v5669 = vrot.slane %v5668, 2
      %v5670 = vadd.f32 %v5668, %v5669
      %v5671 = vrot.slane %v5670, 1
      %v5672 = vadd.f32 %v5670, %v5671
      %v5673 = vsel %vm218, %v5249, 0.0
      %v5674 = vrot.slane %v5673, 4
      %v5675 = vadd.f32 %v5673, %v5674
      %v5676 = vrot.slane %v5675, 2
      %v5677 = vadd.f32 %v5675, %v5676
      %v5678 = vrot.slane %v5677, 1
      %v5679 = vadd.f32 %v5677, %v5678
      %v5680 = vsel %vm218, %v5250, 0.0
      %v5681 = vrot.slane %v5680, 4
      %v5682 = vadd.f32 %v5680, %v5681
      %v5683 = vrot.slane %v5682, 2
      %v5684 = vadd.f32 %v5682, %v5683
      %v5685 = vrot.slane %v5684, 1
      %v5686 = vadd.f32 %v5684, %v5685
      %v5687 = vsel %vm218, %v5251, 0.0
      %v5688 = vrot.slane %v5687, 4
      %v5689 = vadd.f32 %v5687, %v5688
      %v5690 = vrot.slane %v5689, 2
      %v5691 = vadd.f32 %v5689, %v5690
      %v5692 = vrot.slane %v5691, 1
      %v5693 = vadd.f32 %v5691, %v5692
      %v5694 = vsel %vm218, %v5252, 0.0
      %v5695 = vrot.slane %v5694, 4
      %v5696 = vadd.f32 %v5694, %v5695
      %v5697 = vrot.slane %v5696, 2
      %v5698 = vadd.f32 %v5696, %v5697
      %v5699 = vrot.slane %v5698, 1
      %v5700 = vadd.f32 %v5698, %v5699
      %v5701 = vsel %vm218, %v5253, 0.0
      %v5702 = vrot.slane %v5701, 4
      %v5703 = vadd.f32 %v5701, %v5702
      %v5704 = vrot.slane %v5703, 2
      %v5705 = vadd.f32 %v5703, %v5704
      %v5706 = vrot.slane %v5705, 1
      %v5707 = vadd.f32 %v5705, %v5706
      %v5708 = vsel %vm218, %v5254, 0.0
      %v5709 = vrot.slane %v5708, 4
      %v5710 = vadd.f32 %v5708, %v5709
      %v5711 = vrot.slane %v5710, 2
      %v5712 = vadd.f32 %v5710, %v5711
      %v5713 = vrot.slane %v5712, 1
      %v5714 = vadd.f32 %v5712, %v5713
      %v5715 = vsel %vm218, %v5255, 0.0
      %v5716 = vrot.slane %v5715, 4
      %v5717 = vadd.f32 %v5715, %v5716
      %v5718 = vrot.slane %v5717, 2
      %v5719 = vadd.f32 %v5717, %v5718
      %v5720 = vrot.slane %v5719, 1
      %v5721 = vadd.f32 %v5719, %v5720
      %v5722 = vsel %vm218, %v5256, 0.0
      %v5723 = vrot.slane %v5722, 4
      %v5724 = vadd.f32 %v5722, %v5723
      %v5725 = vrot.slane %v5724, 2
      %v5726 = vadd.f32 %v5724, %v5725
      %v5727 = vrot.slane %v5726, 1
      %v5728 = vadd.f32 %v5726, %v5727
      %v5729 = vsel %vm218, %v5257, 0.0
      %v5730 = vrot.slane %v5729, 4
      %v5731 = vadd.f32 %v5729, %v5730
      %v5732 = vrot.slane %v5731, 2
      %v5733 = vadd.f32 %v5731, %v5732
      %v5734 = vrot.slane %v5733, 1
      %v5735 = vadd.f32 %v5733, %v5734
      %v5736 = vsel %vm218, %v5258, 0.0
      %v5737 = vrot.slane %v5736, 4
      %v5738 = vadd.f32 %v5736, %v5737
      %v5739 = vrot.slane %v5738, 2
      %v5740 = vadd.f32 %v5738, %v5739
      %v5741 = vrot.slane %v5740, 1
      %v5742 = vadd.f32 %v5740, %v5741
      %v5743 = vsel %vm218, %v5259, 0.0
      %v5744 = vrot.slane %v5743, 4
      %v5745 = vadd.f32 %v5743, %v5744
      %v5746 = vrot.slane %v5745, 2
      %v5747 = vadd.f32 %v5745, %v5746
      %v5748 = vrot.slane %v5747, 1
      %v5749 = vadd.f32 %v5747, %v5748
      %v5750 = vmul.f32 %v5266, 0.25
      %v5751 = vmul.f32 %v5273, 0.25
      %v5752 = vmul.f32 %v5280, 0.25
      %v5753 = vmul.f32 %v5287, 0.25
      %v5754 = vmul.f32 %v5294, 0.25
      %v5755 = vmul.f32 %v5301, 0.25
      %v5756 = vmul.f32 %v5308, 0.25
      %v5757 = vmul.f32 %v5315, 0.25
      %v5758 = vmul.f32 %v5322, 0.25
      %v5759 = vmul.f32 %v5329, 0.25
      %v5760 = vmul.f32 %v5336, 0.25
      %v5761 = vmul.f32 %v5343, 0.25
      %v5762 = vmul.f32 %v5350, 0.25
      %v5763 = vmul.f32 %v5357, 0.25
      %v5764 = vmul.f32 %v5364, 0.25
      %v5765 = vmul.f32 %v5371, 0.25
      %v5766 = vmul.f32 %v5378, 0.25
      %v5767 = vmul.f32 %v5385, 0.25
      %v5768 = vmul.f32 %v5392, 0.25
      %v5769 = vmul.f32 %v5399, 0.25
      %v5770 = vmul.f32 %v5406, 0.25
      %v5771 = vmul.f32 %v5413, 0.25
      %v5772 = vmul.f32 %v5420, 0.25
      %v5773 = vmul.f32 %v5427, 0.25
      %v5774 = vmul.f32 %v5434, 0.25
      %v5775 = vmul.f32 %v5441, 0.25
      %v5776 = vmul.f32 %v5448, 0.25
      %v5777 = vmul.f32 %v5455, 0.25
      %v5778 = vmul.f32 %v5462, 0.25
      %v5779 = vmul.f32 %v5469, 0.25
      %v5780 = vmul.f32 %v5476, 0.25
      %v5781 = vmul.f32 %v5483, 0.25
      %v5782 = vmul.f32 %v5490, 0.25
      %v5783 = vmul.f32 %v5497, 0.25
      %v5784 = vmul.f32 %v5504, 0.25
      %v5785 = vmul.f32 %v5511, 0.25
      %v5786 = vmul.f32 %v5518, 0.25
      %v5787 = vmul.f32 %v5525, 0.25
      %v5788 = vmul.f32 %v5532, 0.25
      %v5789 = vmul.f32 %v5539, 0.25
      %v5790 = vmul.f32 %v5546, 0.25
      %v5791 = vmul.f32 %v5553, 0.25
      %v5792 = vmul.f32 %v5560, 0.25
      %v5793 = vmul.f32 %v5567, 0.25
      %v5794 = vmul.f32 %v5574, 0.25
      %v5795 = vmul.f32 %v5581, 0.25
      %v5796 = vmul.f32 %v5588, 0.25
      %v5797 = vmul.f32 %v5595, 0.25
      %v5798 = vmul.f32 %v5602, 0.25
      %v5799 = vmul.f32 %v5609, 0.25
      %v5800 = vmul.f32 %v5616, 0.25
      %v5801 = vmul.f32 %v5623, 0.25
      %v5802 = vmul.f32 %v5630, 0.25
      %v5803 = vmul.f32 %v5637, 0.25
      %v5804 = vmul.f32 %v5644, 0.25
      %v5805 = vmul.f32 %v5651, 0.25
      %v5806 = vmul.f32 %v5658, 0.25
      %v5807 = vmul.f32 %v5665, 0.25
      %v5808 = vmul.f32 %v5672, 0.25
      %v5809 = vmul.f32 %v5679, 0.25
      %v5810 = vmul.f32 %v5686, 0.25
      %v5811 = vmul.f32 %v5693, 0.25
      %v5812 = vmul.f32 %v5700, 0.25
      %v5813 = vmul.f32 %v5707, 0.25
      %v5814 = vmul.f32 %v5714, 0.25
      %v5815 = vmul.f32 %v5721, 0.25
      %v5816 = vmul.f32 %v5728, 0.25
      %v5817 = vmul.f32 %v5735, 0.25
      %v5818 = vmul.f32 %v5742, 0.25
      %v5819 = vmul.f32 %v5749, 0.25
      %5820 = vst.msk [vmem:[#allocation2 + $0x4] sm:$0x1] %vm779, %v5750
      %5821 = vst.msk [vmem:[#allocation2 + $0xc] sm:$0x1] %vm779, %v5751
      %5822 = vst.msk [vmem:[#allocation2 + $0x14] sm:$0x1] %vm779, %v5752
      %5823 = vst.msk [vmem:[#allocation2 + $0x1c] sm:$0x1] %vm779, %v5753
      %5824 = vst.msk [vmem:[#allocation2 + $0x24] sm:$0x1] %vm779, %v5754
      %5825 = vst.msk [vmem:[#allocation2 + $0x2c] sm:$0x1] %vm779, %v5755
      %5826 = vst.msk [vmem:[#allocation2 + $0x34] sm:$0x1] %vm779, %v5756
      %5827 = vst.msk [vmem:[#allocation2 + $0x3c] sm:$0x1] %vm779, %v5757
      %5828 = vst.msk [vmem:[#allocation2 + $0x44] sm:$0x1] %vm779, %v5758
      %5829 = vst.msk [vmem:[#allocation2 + $0x4c] sm:$0x1] %vm779, %v5759
      %5830 = vst.msk [vmem:[#allocation2 + $0x54] sm:$0x1] %vm779, %v5760
      %5831 = vst.msk [vmem:[#allocation2 + $0x5c] sm:$0x1] %vm779, %v5761
      %5832 = vst.msk [vmem:[#allocation2 + $0x64] sm:$0x1] %vm779, %v5762
      %5833 = vst.msk [vmem:[#allocation2 + $0x6c] sm:$0x1] %vm779, %v5763
      %5834 = vst.msk [vmem:[#allocation2 + $0x74] sm:$0x1] %vm779, %v5764
      %5835 = vst.msk [vmem:[#allocation2 + $0x7c] sm:$0x1] %vm779, %v5765
      %5836 = vst.msk [vmem:[#allocation2 + $0x84] sm:$0x1] %vm779, %v5766
      %5837 = vst.msk [vmem:[#allocation2 + $0x8c] sm:$0x1] %vm779, %v5767
      %5838 = vst.msk [vmem:[#allocation2 + $0x94] sm:$0x1] %vm779, %v5768
      %5839 = vst.msk [vmem:[#allocation2 + $0x9c] sm:$0x1] %vm779, %v5769
      %5840 = vst.msk [vmem:[#allocation2 + $0xa4] sm:$0x1] %vm779, %v5770
      %5841 = vst.msk [vmem:[#allocation2 + $0xac] sm:$0x1] %vm779, %v5771
      %5842 = vst.msk [vmem:[#allocation2 + $0xb4] sm:$0x1] %vm779, %v5772
      %5843 = vst.msk [vmem:[#allocation2 + $0xbc] sm:$0x1] %vm779, %v5773
      %5844 = vst.msk [vmem:[#allocation2 + $0xc4] sm:$0x1] %vm779, %v5774
      %5845 = vst.msk [vmem:[#allocation2 + $0xcc] sm:$0x1] %vm779, %v5775
      %5846 = vst.msk [vmem:[#allocation2 + $0xd4] sm:$0x1] %vm779, %v5776
      %5847 = vst.msk [vmem:[#allocation2 + $0xdc] sm:$0x1] %vm779, %v5777
      %5848 = vst.msk [vmem:[#allocation2 + $0xe4] sm:$0x1] %vm779, %v5778
      %5849 = vst.msk [vmem:[#allocation2 + $0xec] sm:$0x1] %vm779, %v5779
      %5850 = vst.msk [vmem:[#allocation2 + $0xf4] sm:$0x1] %vm779, %v5780
      %5851 = vst.msk [vmem:[#allocation2 + $0xfc] sm:$0x1] %vm779, %v5781
      %5852 = vst.msk [vmem:[#allocation2 + $0x104] sm:$0x1] %vm779, %v5782
      %5853 = vst.msk [vmem:[#allocation2 + $0x10c] sm:$0x1] %vm779, %v5783
      %5854 = vst.msk [vmem:[#allocation2 + $0x114] sm:$0x1] %vm779, %v5784
      %5855 = vst.msk [vmem:[#allocation2 + $0x11c] sm:$0x1] %vm779, %v5785
      %5856 = vst.msk [vmem:[#allocation2 + $0x124] sm:$0x1] %vm779, %v5786
      %5857 = vst.msk [vmem:[#allocation2 + $0x12c] sm:$0x1] %vm779, %v5787
      %5858 = vst.msk [vmem:[#allocation2 + $0x134] sm:$0x1] %vm779, %v5788
      %5859 = vst.msk [vmem:[#allocation2 + $0x13c] sm:$0x1] %vm779, %v5789
      %5860 = vst.msk [vmem:[#allocation2 + $0x144] sm:$0x1] %vm779, %v5790
      %5861 = vst.msk [vmem:[#allocation2 + $0x14c] sm:$0x1] %vm779, %v5791
      %5862 = vst.msk [vmem:[#allocation2 + $0x154] sm:$0x1] %vm779, %v5792
      %5863 = vst.msk [vmem:[#allocation2 + $0x15c] sm:$0x1] %vm779, %v5793
      %5864 = vst.msk [vmem:[#allocation2 + $0x164] sm:$0x1] %vm779, %v5794
      %5865 = vst.msk [vmem:[#allocation2 + $0x16c] sm:$0x1] %vm779, %v5795
      %5866 = vst.msk [vmem:[#allocation2 + $0x174] sm:$0x1] %vm779, %v5796
      %5867 = vst.msk [vmem:[#allocation2 + $0x17c] sm:$0x1] %vm779, %v5797
      %5868 = vst.msk [vmem:[#allocation2 + $0x184] sm:$0x1] %vm779, %v5798
      %5869 = vst.msk [vmem:[#allocation2 + $0x18c] sm:$0x1] %vm779, %v5799
      %5870 = vst.msk [vmem:[#allocation2 + $0x194] sm:$0x1] %vm779, %v5800
      %5871 = vst.msk [vmem:[#allocation2 + $0x19c] sm:$0x1] %vm779, %v5801
      %5872 = vst.msk [vmem:[#allocation2 + $0x1a4] sm:$0x1] %vm779, %v5802
      %5873 = vst.msk [vmem:[#allocation2 + $0x1ac] sm:$0x1] %vm779, %v5803
      %5874 = vst.msk [vmem:[#allocation2 + $0x1b4] sm:$0x1] %vm779, %v5804
      %5875 = vst.msk [vmem:[#allocation2 + $0x1bc] sm:$0x1] %vm779, %v5805
      %5876 = vst.msk [vmem:[#allocation2 + $0x1c4] sm:$0x1] %vm779, %v5806
      %5877 = vst.msk [vmem:[#allocation2 + $0x1cc] sm:$0x1] %vm779, %v5807
      %5878 = vst.msk [vmem:[#allocation2 + $0x1d4] sm:$0x1] %vm779, %v5808
      %5879 = vst.msk [vmem:[#allocation2 + $0x1dc] sm:$0x1] %vm779, %v5809
      %5880 = vst.msk [vmem:[#allocation2 + $0x1e4] sm:$0x1] %vm779, %v5810
      %5881 = vst.msk [vmem:[#allocation2 + $0x1ec] sm:$0x1] %vm779, %v5811
      %5882 = vst.msk [vmem:[#allocation2 + $0x1f4] sm:$0x1] %vm779, %v5812
      %5883 = vst.msk [vmem:[#allocation2 + $0x1fc] sm:$0x1] %vm779, %v5813
      %5884 = vst.msk [vmem:[#allocation2 + $0x204] sm:$0x1] %vm779, %v5814
      %5885 = vst.msk [vmem:[#allocation2 + $0x20c] sm:$0x1] %vm779, %v5815
      %5886 = vst.msk [vmem:[#allocation2 + $0x214] sm:$0x1] %vm779, %v5816
      %5887 = vst.msk [vmem:[#allocation2 + $0x21c] sm:$0x1] %vm779, %v5817
      %5888 = vst.msk [vmem:[#allocation2 + $0x224] sm:$0x1] %vm779, %v5818
      %5889 = vst.msk [vmem:[#allocation2 + $0x22c] sm:$0x1] %vm779, %v5819
      %v5890 = vsel %vm218, %v5190, -inf
      %v5891 = vrot.slane %v5890, 4
      %v5892 = vmax.f32 %v5890, %v5891
      %v5893 = vrot.slane %v5892, 2
      %v5894 = vmax.f32 %v5892, %v5893
      %v5895 = vrot.slane %v5894, 1
      %v5896 = vmax.f32 %v5894, %v5895
      %v5897 = vsel %vm218, %v5191, -inf
      %v5898 = vrot.slane %v5897, 4
      %v5899 = vmax.f32 %v5897, %v5898
      %v5900 = vrot.slane %v5899, 2
      %v5901 = vmax.f32 %v5899, %v5900
      %v5902 = vrot.slane %v5901, 1
      %v5903 = vmax.f32 %v5901, %v5902
      %v5904 = vsel %vm218, %v5192, -inf
      %v5905 = vrot.slane %v5904, 4
      %v5906 = vmax.f32 %v5904, %v5905
      %v5907 = vrot.slane %v5906, 2
      %v5908 = vmax.f32 %v5906, %v5907
      %v5909 = vrot.slane %v5908, 1
      %v5910 = vmax.f32 %v5908, %v5909
      %v5911 = vsel %vm218, %v5193, -inf
      %v5912 = vrot.slane %v5911, 4
      %v5913 = vmax.f32 %v5911, %v5912
      %v5914 = vrot.slane %v5913, 2
      %v5915 = vmax.f32 %v5913, %v5914
      %v5916 = vrot.slane %v5915, 1
      %v5917 = vmax.f32 %v5915, %v5916
      %v5918 = vsel %vm218, %v5194, -inf
      %v5919 = vrot.slane %v5918, 4
      %v5920 = vmax.f32 %v5918, %v5919
      %v5921 = vrot.slane %v5920, 2
      %v5922 = vmax.f32 %v5920, %v5921
      %v5923 = vrot.slane %v5922, 1
      %v5924 = vmax.f32 %v5922, %v5923
      %v5925 = vsel %vm218, %v5195, -inf
      %v5926 = vrot.slane %v5925, 4
      %v5927 = vmax.f32 %v5925, %v5926
      %v5928 = vrot.slane %v5927, 2
      %v5929 = vmax.f32 %v5927, %v5928
      %v5930 = vrot.slane %v5929, 1
      %v5931 = vmax.f32 %v5929, %v5930
      %v5932 = vsel %vm218, %v5196, -inf
      %v5933 = vrot.slane %v5932, 4
      %v5934 = vmax.f32 %v5932, %v5933
      %v5935 = vrot.slane %v5934, 2
      %v5936 = vmax.f32 %v5934, %v5935
      %v5937 = vrot.slane %v5936, 1
      %v5938 = vmax.f32 %v5936, %v5937
      %v5939 = vsel %vm218, %v5197, -inf
      %v5940 = vrot.slane %v5939, 4
      %v5941 = vmax.f32 %v5939, %v5940
      %v5942 = vrot.slane %v5941, 2
      %v5943 = vmax.f32 %v5941, %v5942
      %v5944 = vrot.slane %v5943, 1
      %v5945 = vmax.f32 %v5943, %v5944
      %v5946 = vsel %vm218, %v5198, -inf
      %v5947 = vrot.slane %v5946, 4
      %v5948 = vmax.f32 %v5946, %v5947
      %v5949 = vrot.slane %v5948, 2
      %v5950 = vmax.f32 %v5948, %v5949
      %v5951 = vrot.slane %v5950, 1
      %v5952 = vmax.f32 %v5950, %v5951
      %v5953 = vsel %vm218, %v5199, -inf
      %v5954 = vrot.slane %v5953, 4
      %v5955 = vmax.f32 %v5953, %v5954
      %v5956 = vrot.slane %v5955, 2
      %v5957 = vmax.f32 %v5955, %v5956
      %v5958 = vrot.slane %v5957, 1
      %v5959 = vmax.f32 %v5957, %v5958
      %v5960 = vsel %vm218, %v5200, -inf
      %v5961 = vrot.slane %v5960, 4
      %v5962 = vmax.f32 %v5960, %v5961
      %v5963 = vrot.slane %v5962, 2
      %v5964 = vmax.f32 %v5962, %v5963
      %v5965 = vrot.slane %v5964, 1
      %v5966 = vmax.f32 %v5964, %v5965
      %v5967 = vsel %vm218, %v5201, -inf
      %v5968 = vrot.slane %v5967, 4
      %v5969 = vmax.f32 %v5967, %v5968
      %v5970 = vrot.slane %v5969, 2
      %v5971 = vmax.f32 %v5969, %v5970
      %v5972 = vrot.slane %v5971, 1
      %v5973 = vmax.f32 %v5971, %v5972
      %v5974 = vsel %vm218, %v5202, -inf
      %v5975 = vrot.slane %v5974, 4
      %v5976 = vmax.f32 %v5974, %v5975
      %v5977 = vrot.slane %v5976, 2
      %v5978 = vmax.f32 %v5976, %v5977
      %v5979 = vrot.slane %v5978, 1
      %v5980 = vmax.f32 %v5978, %v5979
      %v5981 = vsel %vm218, %v5203, -inf
      %v5982 = vrot.slane %v5981, 4
      %v5983 = vmax.f32 %v5981, %v5982
      %v5984 = vrot.slane %v5983, 2
      %v5985 = vmax.f32 %v5983, %v5984
      %v5986 = vrot.slane %v5985, 1
      %v5987 = vmax.f32 %v5985, %v5986
      %v5988 = vsel %vm218, %v5204, -inf
      %v5989 = vrot.slane %v5988, 4
      %v5990 = vmax.f32 %v5988, %v5989
      %v5991 = vrot.slane %v5990, 2
      %v5992 = vmax.f32 %v5990, %v5991
      %v5993 = vrot.slane %v5992, 1
      %v5994 = vmax.f32 %v5992, %v5993
      %v5995 = vsel %vm218, %v5205, -inf
      %v5996 = vrot.slane %v5995, 4
      %v5997 = vmax.f32 %v5995, %v5996
      %v5998 = vrot.slane %v5997, 2
      %v5999 = vmax.f32 %v5997, %v5998
      %v6000 = vrot.slane %v5999, 1
      %v6001 = vmax.f32 %v5999, %v6000
      %v6002 = vsel %vm218, %v5206, -inf
      %v6003 = vrot.slane %v6002, 4
      %v6004 = vmax.f32 %v6002, %v6003
      %v6005 = vrot.slane %v6004, 2
      %v6006 = vmax.f32 %v6004, %v6005
      %v6007 = vrot.slane %v6006, 1
      %v6008 = vmax.f32 %v6006, %v6007
      %v6009 = vsel %vm218, %v5207, -inf
      %v6010 = vrot.slane %v6009, 4
      %v6011 = vmax.f32 %v6009, %v6010
      %v6012 = vrot.slane %v6011, 2
      %v6013 = vmax.f32 %v6011, %v6012
      %v6014 = vrot.slane %v6013, 1
      %v6015 = vmax.f32 %v6013, %v6014
      %v6016 = vsel %vm218, %v5208, -inf
      %v6017 = vrot.slane %v6016, 4
      %v6018 = vmax.f32 %v6016, %v6017
      %v6019 = vrot.slane %v6018, 2
      %v6020 = vmax.f32 %v6018, %v6019
      %v6021 = vrot.slane %v6020, 1
      %v6022 = vmax.f32 %v6020, %v6021
      %v6023 = vsel %vm218, %v5209, -inf
      %v6024 = vrot.slane %v6023, 4
      %v6025 = vmax.f32 %v6023, %v6024
      %v6026 = vrot.slane %v6025, 2
      %v6027 = vmax.f32 %v6025, %v6026
      %v6028 = vrot.slane %v6027, 1
      %v6029 = vmax.f32 %v6027, %v6028
      %v6030 = vsel %vm218, %v5210, -inf
      %v6031 = vrot.slane %v6030, 4
      %v6032 = vmax.f32 %v6030, %v6031
      %v6033 = vrot.slane %v6032, 2
      %v6034 = vmax.f32 %v6032, %v6033
      %v6035 = vrot.slane %v6034, 1
      %v6036 = vmax.f32 %v6034, %v6035
      %v6037 = vsel %vm218, %v5211, -inf
      %v6038 = vrot.slane %v6037, 4
      %v6039 = vmax.f32 %v6037, %v6038
      %v6040 = vrot.slane %v6039, 2
      %v6041 = vmax.f32 %v6039, %v6040
      %v6042 = vrot.slane %v6041, 1
      %v6043 = vmax.f32 %v6041, %v6042
      %v6044 = vsel %vm218, %v5212, -inf
      %v6045 = vrot.slane %v6044, 4
      %v6046 = vmax.f32 %v6044, %v6045
      %v6047 = vrot.slane %v6046, 2
      %v6048 = vmax.f32 %v6046, %v6047
      %v6049 = vrot.slane %v6048, 1
      %v6050 = vmax.f32 %v6048, %v6049
      %v6051 = vsel %vm218, %v5213, -inf
      %v6052 = vrot.slane %v6051, 4
      %v6053 = vmax.f32 %v6051, %v6052
      %v6054 = vrot.slane %v6053, 2
      %v6055 = vmax.f32 %v6053, %v6054
      %v6056 = vrot.slane %v6055, 1
      %v6057 = vmax.f32 %v6055, %v6056
      %v6058 = vsel %vm218, %v5214, -inf
      %v6059 = vrot.slane %v6058, 4
      %v6060 = vmax.f32 %v6058, %v6059
      %v6061 = vrot.slane %v6060, 2
      %v6062 = vmax.f32 %v6060, %v6061
      %v6063 = vrot.slane %v6062, 1
      %v6064 = vmax.f32 %v6062, %v6063
      %v6065 = vsel %vm218, %v5215, -inf
      %v6066 = vrot.slane %v6065, 4
      %v6067 = vmax.f32 %v6065, %v6066
      %v6068 = vrot.slane %v6067, 2
      %v6069 = vmax.f32 %v6067, %v6068
      %v6070 = vrot.slane %v6069, 1
      %v6071 = vmax.f32 %v6069, %v6070
      %v6072 = vsel %vm218, %v5216, -inf
      %v6073 = vrot.slane %v6072, 4
      %v6074 = vmax.f32 %v6072, %v6073
      %v6075 = vrot.slane %v6074, 2
      %v6076 = vmax.f32 %v6074, %v6075
      %v6077 = vrot.slane %v6076, 1
      %v6078 = vmax.f32 %v6076, %v6077
      %v6079 = vsel %vm218, %v5217, -inf
      %v6080 = vrot.slane %v6079, 4
      %v6081 = vmax.f32 %v6079, %v6080
      %v6082 = vrot.slane %v6081, 2
      %v6083 = vmax.f32 %v6081, %v6082
      %v6084 = vrot.slane %v6083, 1
      %v6085 = vmax.f32 %v6083, %v6084
      %v6086 = vsel %vm218, %v5218, -inf
      %v6087 = vrot.slane %v6086, 4
      %v6088 = vmax.f32 %v6086, %v6087
      %v6089 = vrot.slane %v6088, 2
      %v6090 = vmax.f32 %v6088, %v6089
      %v6091 = vrot.slane %v6090, 1
      %v6092 = vmax.f32 %v6090, %v6091
      %v6093 = vsel %vm218, %v5219, -inf
      %v6094 = vrot.slane %v6093, 4
      %v6095 = vmax.f32 %v6093, %v6094
      %v6096 = vrot.slane %v6095, 2
      %v6097 = vmax.f32 %v6095, %v6096
      %v6098 = vrot.slane %v6097, 1
      %v6099 = vmax.f32 %v6097, %v6098
      %v6100 = vsel %vm218, %v5220, -inf
      %v6101 = vrot.slane %v6100, 4
      %v6102 = vmax.f32 %v6100, %v6101
      %v6103 = vrot.slane %v6102, 2
      %v6104 = vmax.f32 %v6102, %v6103
      %v6105 = vrot.slane %v6104, 1
      %v6106 = vmax.f32 %v6104, %v6105
      %v6107 = vsel %vm218, %v5221, -inf
      %v6108 = vrot.slane %v6107, 4
      %v6109 = vmax.f32 %v6107, %v6108
      %v6110 = vrot.slane %v6109, 2
      %v6111 = vmax.f32 %v6109, %v6110
      %v6112 = vrot.slane %v6111, 1
      %v6113 = vmax.f32 %v6111, %v6112
      %v6114 = vsel %vm218, %v5222, -inf
      %v6115 = vrot.slane %v6114, 4
      %v6116 = vmax.f32 %v6114, %v6115
      %v6117 = vrot.slane %v6116, 2
      %v6118 = vmax.f32 %v6116, %v6117
      %v6119 = vrot.slane %v6118, 1
      %v6120 = vmax.f32 %v6118, %v6119
      %v6121 = vsel %vm218, %v5223, -inf
      %v6122 = vrot.slane %v6121, 4
      %v6123 = vmax.f32 %v6121, %v6122
      %v6124 = vrot.slane %v6123, 2
      %v6125 = vmax.f32 %v6123, %v6124
      %v6126 = vrot.slane %v6125, 1
      %v6127 = vmax.f32 %v6125, %v6126
      %v6128 = vsel %vm218, %v5224, -inf
      %v6129 = vrot.slane %v6128, 4
      %v6130 = vmax.f32 %v6128, %v6129
      %v6131 = vrot.slane %v6130, 2
      %v6132 = vmax.f32 %v6130, %v6131
      %v6133 = vrot.slane %v6132, 1
      %v6134 = vmax.f32 %v6132, %v6133
      %v6135 = vsel %vm218, %v5225, -inf
      %v6136 = vrot.slane %v6135, 4
      %v6137 = vmax.f32 %v6135, %v6136
      %v6138 = vrot.slane %v6137, 2
      %v6139 = vmax.f32 %v6137, %v6138
      %v6140 = vrot.slane %v6139, 1
      %v6141 = vmax.f32 %v6139, %v6140
      %v6142 = vsel %vm218, %v5226, -inf
      %v6143 = vrot.slane %v6142, 4
      %v6144 = vmax.f32 %v6142, %v6143
      %v6145 = vrot.slane %v6144, 2
      %v6146 = vmax.f32 %v6144, %v6145
      %v6147 = vrot.slane %v6146, 1
      %v6148 = vmax.f32 %v6146, %v6147
      %v6149 = vsel %vm218, %v5227, -inf
      %v6150 = vrot.slane %v6149, 4
      %v6151 = vmax.f32 %v6149, %v6150
      %v6152 = vrot.slane %v6151, 2
      %v6153 = vmax.f32 %v6151, %v6152
      %v6154 = vrot.slane %v6153, 1
      %v6155 = vmax.f32 %v6153, %v6154
      %v6156 = vsel %vm218, %v5228, -inf
      %v6157 = vrot.slane %v6156, 4
      %v6158 = vmax.f32 %v6156, %v6157
      %v6159 = vrot.slane %v6158, 2
      %v6160 = vmax.f32 %v6158, %v6159
      %v6161 = vrot.slane %v6160, 1
      %v6162 = vmax.f32 %v6160, %v6161
      %v6163 = vsel %vm218, %v5229, -inf
      %v6164 = vrot.slane %v6163, 4
      %v6165 = vmax.f32 %v6163, %v6164
      %v6166 = vrot.slane %v6165, 2
      %v6167 = vmax.f32 %v6165, %v6166
      %v6168 = vrot.slane %v6167, 1
      %v6169 = vmax.f32 %v6167, %v6168
      %v6170 = vsel %vm218, %v5230, -inf
      %v6171 = vrot.slane %v6170, 4
      %v6172 = vmax.f32 %v6170, %v6171
      %v6173 = vrot.slane %v6172, 2
      %v6174 = vmax.f32 %v6172, %v6173
      %v6175 = vrot.slane %v6174, 1
      %v6176 = vmax.f32 %v6174, %v6175
      %v6177 = vsel %vm218, %v5231, -inf
      %v6178 = vrot.slane %v6177, 4
      %v6179 = vmax.f32 %v6177, %v6178
      %v6180 = vrot.slane %v6179, 2
      %v6181 = vmax.f32 %v6179, %v6180
      %v6182 = vrot.slane %v6181, 1
      %v6183 = vmax.f32 %v6181, %v6182
      %v6184 = vsel %vm218, %v5232, -inf
      %v6185 = vrot.slane %v6184, 4
      %v6186 = vmax.f32 %v6184, %v6185
      %v6187 = vrot.slane %v6186, 2
      %v6188 = vmax.f32 %v6186, %v6187
      %v6189 = vrot.slane %v6188, 1
      %v6190 = vmax.f32 %v6188, %v6189
      %v6191 = vsel %vm218, %v5233, -inf
      %v6192 = vrot.slane %v6191, 4
      %v6193 = vmax.f32 %v6191, %v6192
      %v6194 = vrot.slane %v6193, 2
      %v6195 = vmax.f32 %v6193, %v6194
      %v6196 = vrot.slane %v6195, 1
      %v6197 = vmax.f32 %v6195, %v6196
      %v6198 = vsel %vm218, %v5234, -inf
      %v6199 = vrot.slane %v6198, 4
      %v6200 = vmax.f32 %v6198, %v6199
      %v6201 = vrot.slane %v6200, 2
      %v6202 = vmax.f32 %v6200, %v6201
      %v6203 = vrot.slane %v6202, 1
      %v6204 = vmax.f32 %v6202, %v6203
      %v6205 = vsel %vm218, %v5235, -inf
      %v6206 = vrot.slane %v6205, 4
      %v6207 = vmax.f32 %v6205, %v6206
      %v6208 = vrot.slane %v6207, 2
      %v6209 = vmax.f32 %v6207, %v6208
      %v6210 = vrot.slane %v6209, 1
      %v6211 = vmax.f32 %v6209, %v6210
      %v6212 = vsel %vm218, %v5236, -inf
      %v6213 = vrot.slane %v6212, 4
      %v6214 = vmax.f32 %v6212, %v6213
      %v6215 = vrot.slane %v6214, 2
      %v6216 = vmax.f32 %v6214, %v6215
      %v6217 = vrot.slane %v6216, 1
      %v6218 = vmax.f32 %v6216, %v6217
      %v6219 = vsel %vm218, %v5237, -inf
      %v6220 = vrot.slane %v6219, 4
      %v6221 = vmax.f32 %v6219, %v6220
      %v6222 = vrot.slane %v6221, 2
      %v6223 = vmax.f32 %v6221, %v6222
      %v6224 = vrot.slane %v6223, 1
      %v6225 = vmax.f32 %v6223, %v6224
      %v6226 = vsel %vm218, %v5238, -inf
      %v6227 = vrot.slane %v6226, 4
      %v6228 = vmax.f32 %v6226, %v6227
      %v6229 = vrot.slane %v6228, 2
      %v6230 = vmax.f32 %v6228, %v6229
      %v6231 = vrot.slane %v6230, 1
      %v6232 = vmax.f32 %v6230, %v6231
      %v6233 = vsel %vm218, %v5239, -inf
      %v6234 = vrot.slane %v6233, 4
      %v6235 = vmax.f32 %v6233, %v6234
      %v6236 = vrot.slane %v6235, 2
      %v6237 = vmax.f32 %v6235, %v6236
      %v6238 = vrot.slane %v6237, 1
      %v6239 = vmax.f32 %v6237, %v6238
      %v6240 = vsel %vm218, %v5240, -inf
      %v6241 = vrot.slane %v6240, 4
      %v6242 = vmax.f32 %v6240, %v6241
      %v6243 = vrot.slane %v6242, 2
      %v6244 = vmax.f32 %v6242, %v6243
      %v6245 = vrot.slane %v6244, 1
      %v6246 = vmax.f32 %v6244, %v6245
      %v6247 = vsel %vm218, %v5241, -inf
      %v6248 = vrot.slane %v6247, 4
      %v6249 = vmax.f32 %v6247, %v6248
      %v6250 = vrot.slane %v6249, 2
      %v6251 = vmax.f32 %v6249, %v6250
      %v6252 = vrot.slane %v6251, 1
      %v6253 = vmax.f32 %v6251, %v6252
      %v6254 = vsel %vm218, %v5242, -inf
      %v6255 = vrot.slane %v6254, 4
      %v6256 = vmax.f32 %v6254, %v6255
      %v6257 = vrot.slane %v6256, 2
      %v6258 = vmax.f32 %v6256, %v6257
      %v6259 = vrot.slane %v6258, 1
      %v6260 = vmax.f32 %v6258, %v6259
      %v6261 = vsel %vm218, %v5243, -inf
      %v6262 = vrot.slane %v6261, 4
      %v6263 = vmax.f32 %v6261, %v6262
      %v6264 = vrot.slane %v6263, 2
      %v6265 = vmax.f32 %v6263, %v6264
      %v6266 = vrot.slane %v6265, 1
      %v6267 = vmax.f32 %v6265, %v6266
      %v6268 = vsel %vm218, %v5244, -inf
      %v6269 = vrot.slane %v6268, 4
      %v6270 = vmax.f32 %v6268, %v6269
      %v6271 = vrot.slane %v6270, 2
      %v6272 = vmax.f32 %v6270, %v6271
      %v6273 = vrot.slane %v6272, 1
      %v6274 = vmax.f32 %v6272, %v6273
      %v6275 = vsel %vm218, %v5245, -inf
      %v6276 = vrot.slane %v6275, 4
      %v6277 = vmax.f32 %v6275, %v6276
      %v6278 = vrot.slane %v6277, 2
      %v6279 = vmax.f32 %v6277, %v6278
      %v6280 = vrot.slane %v6279, 1
      %v6281 = vmax.f32 %v6279, %v6280
      %v6282 = vsel %vm218, %v5246, -inf
      %v6283 = vrot.slane %v6282, 4
      %v6284 = vmax.f32 %v6282, %v6283
      %v6285 = vrot.slane %v6284, 2
      %v6286 = vmax.f32 %v6284, %v6285
      %v6287 = vrot.slane %v6286, 1
      %v6288 = vmax.f32 %v6286, %v6287
      %v6289 = vsel %vm218, %v5247, -inf
      %v6290 = vrot.slane %v6289, 4
      %v6291 = vmax.f32 %v6289, %v6290
      %v6292 = vrot.slane %v6291, 2
      %v6293 = vmax.f32 %v6291, %v6292
      %v6294 = vrot.slane %v6293, 1
      %v6295 = vmax.f32 %v6293, %v6294
      %v6296 = vsel %vm218, %v5248, -inf
      %v6297 = vrot.slane %v6296, 4
      %v6298 = vmax.f32 %v6296, %v6297
      %v6299 = vrot.slane %v6298, 2
      %v6300 = vmax.f32 %v6298, %v6299
      %v6301 = vrot.slane %v6300, 1
      %v6302 = vmax.f32 %v6300, %v6301
      %v6303 = vsel %vm218, %v5249, -inf
      %v6304 = vrot.slane %v6303, 4
      %v6305 = vmax.f32 %v6303, %v6304
      %v6306 = vrot.slane %v6305, 2
      %v6307 = vmax.f32 %v6305, %v6306
      %v6308 = vrot.slane %v6307, 1
      %v6309 = vmax.f32 %v6307, %v6308
      %v6310 = vsel %vm218, %v5250, -inf
      %v6311 = vrot.slane %v6310, 4
      %v6312 = vmax.f32 %v6310, %v6311
      %v6313 = vrot.slane %v6312, 2
      %v6314 = vmax.f32 %v6312, %v6313
      %v6315 = vrot.slane %v6314, 1
      %v6316 = vmax.f32 %v6314, %v6315
      %v6317 = vsel %vm218, %v5251, -inf
      %v6318 = vrot.slane %v6317, 4
      %v6319 = vmax.f32 %v6317, %v6318
      %v6320 = vrot.slane %v6319, 2
      %v6321 = vmax.f32 %v6319, %v6320
      %v6322 = vrot.slane %v6321, 1
      %v6323 = vmax.f32 %v6321, %v6322
      %v6324 = vsel %vm218, %v5252, -inf
      %v6325 = vrot.slane %v6324, 4
      %v6326 = vmax.f32 %v6324, %v6325
      %v6327 = vrot.slane %v6326, 2
      %v6328 = vmax.f32 %v6326, %v6327
      %v6329 = vrot.slane %v6328, 1
      %v6330 = vmax.f32 %v6328, %v6329
      %v6331 = vsel %vm218, %v5253, -inf
      %v6332 = vrot.slane %v6331, 4
      %v6333 = vmax.f32 %v6331, %v6332
      %v6334 = vrot.slane %v6333, 2
      %v6335 = vmax.f32 %v6333, %v6334
      %v6336 = vrot.slane %v6335, 1
      %v6337 = vmax.f32 %v6335, %v6336
      %v6338 = vsel %vm218, %v5254, -inf
      %v6339 = vrot.slane %v6338, 4
      %v6340 = vmax.f32 %v6338, %v6339
      %v6341 = vrot.slane %v6340, 2
      %v6342 = vmax.f32 %v6340, %v6341
      %v6343 = vrot.slane %v6342, 1
      %v6344 = vmax.f32 %v6342, %v6343
      %v6345 = vsel %vm218, %v5255, -inf
      %v6346 = vrot.slane %v6345, 4
      %v6347 = vmax.f32 %v6345, %v6346
      %v6348 = vrot.slane %v6347, 2
      %v6349 = vmax.f32 %v6347, %v6348
      %v6350 = vrot.slane %v6349, 1
      %v6351 = vmax.f32 %v6349, %v6350
      %v6352 = vsel %vm218, %v5256, -inf
      %v6353 = vrot.slane %v6352, 4
      %v6354 = vmax.f32 %v6352, %v6353
      %v6355 = vrot.slane %v6354, 2
      %v6356 = vmax.f32 %v6354, %v6355
      %v6357 = vrot.slane %v6356, 1
      %v6358 = vmax.f32 %v6356, %v6357
      %v6359 = vsel %vm218, %v5257, -inf
      %v6360 = vrot.slane %v6359, 4
      %v6361 = vmax.f32 %v6359, %v6360
      %v6362 = vrot.slane %v6361, 2
      %v6363 = vmax.f32 %v6361, %v6362
      %v6364 = vrot.slane %v6363, 1
      %v6365 = vmax.f32 %v6363, %v6364
      %v6366 = vsel %vm218, %v5258, -inf
      %v6367 = vrot.slane %v6366, 4
      %v6368 = vmax.f32 %v6366, %v6367
      %v6369 = vrot.slane %v6368, 2
      %v6370 = vmax.f32 %v6368, %v6369
      %v6371 = vrot.slane %v6370, 1
      %v6372 = vmax.f32 %v6370, %v6371
      %v6373 = vsel %vm218, %v5259, -inf
      %v6374 = vrot.slane %v6373, 4
      %v6375 = vmax.f32 %v6373, %v6374
      %v6376 = vrot.slane %v6375, 2
      %v6377 = vmax.f32 %v6375, %v6376
      %v6378 = vrot.slane %v6377, 1
      %v6379 = vmax.f32 %v6377, %v6378
      %6380 = vst.msk [vmem:[#allocation3 + $0x4] sm:$0x1] %vm779, %v5896
      %6381 = vst.msk [vmem:[#allocation3 + $0xc] sm:$0x1] %vm779, %v5903
      %6382 = vst.msk [vmem:[#allocation3 + $0x14] sm:$0x1] %vm779, %v5910
      %6383 = vst.msk [vmem:[#allocation3 + $0x1c] sm:$0x1] %vm779, %v5917
      %6384 = vst.msk [vmem:[#allocation3 + $0x24] sm:$0x1] %vm779, %v5924
      %6385 = vst.msk [vmem:[#allocation3 + $0x2c] sm:$0x1] %vm779, %v5931
      %6386 = vst.msk [vmem:[#allocation3 + $0x34] sm:$0x1] %vm779, %v5938
      %6387 = vst.msk [vmem:[#allocation3 + $0x3c] sm:$0x1] %vm779, %v5945
      %6388 = vst.msk [vmem:[#allocation3 + $0x44] sm:$0x1] %vm779, %v5952
      %6389 = vst.msk [vmem:[#allocation3 + $0x4c] sm:$0x1] %vm779, %v5959
      %6390 = vst.msk [vmem:[#allocation3 + $0x54] sm:$0x1] %vm779, %v5966
      %6391 = vst.msk [vmem:[#allocation3 + $0x5c] sm:$0x1] %vm779, %v5973
      %6392 = vst.msk [vmem:[#allocation3 + $0x64] sm:$0x1] %vm779, %v5980
      %6393 = vst.msk [vmem:[#allocation3 + $0x6c] sm:$0x1] %vm779, %v5987
      %6394 = vst.msk [vmem:[#allocation3 + $0x74] sm:$0x1] %vm779, %v5994
      %6395 = vst.msk [vmem:[#allocation3 + $0x7c] sm:$0x1] %vm779, %v6001
      %6396 = vst.msk [vmem:[#allocation3 + $0x84] sm:$0x1] %vm779, %v6008
      %6397 = vst.msk [vmem:[#allocation3 + $0x8c] sm:$0x1] %vm779, %v6015
      %6398 = vst.msk [vmem:[#allocation3 + $0x94] sm:$0x1] %vm779, %v6022
      %6399 = vst.msk [vmem:[#allocation3 + $0x9c] sm:$0x1] %vm779, %v6029
      %6400 = vst.msk [vmem:[#allocation3 + $0xa4] sm:$0x1] %vm779, %v6036
      %6401 = vst.msk [vmem:[#allocation3 + $0xac] sm:$0x1] %vm779, %v6043
      %6402 = vst.msk [vmem:[#allocation3 + $0xb4] sm:$0x1] %vm779, %v6050
      %6403 = vst.msk [vmem:[#allocation3 + $0xbc] sm:$0x1] %vm779, %v6057
      %6404 = vst.msk [vmem:[#allocation3 + $0xc4] sm:$0x1] %vm779, %v6064
      %6405 = vst.msk [vmem:[#allocation3 + $0xcc] sm:$0x1] %vm779, %v6071
      %6406 = vst.msk [vmem:[#allocation3 + $0xd4] sm:$0x1] %vm779, %v6078
      %6407 = vst.msk [vmem:[#allocation3 + $0xdc] sm:$0x1] %vm779, %v6085
      %6408 = vst.msk [vmem:[#allocation3 + $0xe4] sm:$0x1] %vm779, %v6092
      %6409 = vst.msk [vmem:[#allocation3 + $0xec] sm:$0x1] %vm779, %v6099
      %6410 = vst.msk [vmem:[#allocation3 + $0xf4] sm:$0x1] %vm779, %v6106
      %6411 = vst.msk [vmem:[#allocation3 + $0xfc] sm:$0x1] %vm779, %v6113
      %6412 = vst.msk [vmem:[#allocation3 + $0x104] sm:$0x1] %vm779, %v6120
      %6413 = vst.msk [vmem:[#allocation3 + $0x10c] sm:$0x1] %vm779, %v6127
      %6414 = vst.msk [vmem:[#allocation3 + $0x114] sm:$0x1] %vm779, %v6134
      %6415 = vst.msk [vmem:[#allocation3 + $0x11c] sm:$0x1] %vm779, %v6141
      %6416 = vst.msk [vmem:[#allocation3 + $0x124] sm:$0x1] %vm779, %v6148
      %6417 = vst.msk [vmem:[#allocation3 + $0x12c] sm:$0x1] %vm779, %v6155
      %6418 = vst.msk [vmem:[#allocation3 + $0x134] sm:$0x1] %vm779, %v6162
      %6419 = vst.msk [vmem:[#allocation3 + $0x13c] sm:$0x1] %vm779, %v6169
      %6420 = vst.msk [vmem:[#allocation3 + $0x144] sm:$0x1] %vm779, %v6176
      %6421 = vst.msk [vmem:[#allocation3 + $0x14c] sm:$0x1] %vm779, %v6183
      %6422 = vst.msk [vmem:[#allocation3 + $0x154] sm:$0x1] %vm779, %v6190
      %6423 = vst.msk [vmem:[#allocation3 + $0x15c] sm:$0x1] %vm779, %v6197
      %6424 = vst.msk [vmem:[#allocation3 + $0x164] sm:$0x1] %vm779, %v6204
      %6425 = vst.msk [vmem:[#allocation3 + $0x16c] sm:$0x1] %vm779, %v6211
      %6426 = vst.msk [vmem:[#allocation3 + $0x174] sm:$0x1] %vm779, %v6218
      %6427 = vst.msk [vmem:[#allocation3 + $0x17c] sm:$0x1] %vm779, %v6225
      %6428 = vst.msk [vmem:[#allocation3 + $0x184] sm:$0x1] %vm779, %v6232
      %6429 = vst.msk [vmem:[#allocation3 + $0x18c] sm:$0x1] %vm779, %v6239
      %6430 = vst.msk [vmem:[#allocation3 + $0x194] sm:$0x1] %vm779, %v6246
      %6431 = vst.msk [vmem:[#allocation3 + $0x19c] sm:$0x1] %vm779, %v6253
      %6432 = vst.msk [vmem:[#allocation3 + $0x1a4] sm:$0x1] %vm779, %v6260
      %6433 = vst.msk [vmem:[#allocation3 + $0x1ac] sm:$0x1] %vm779, %v6267
      %6434 = vst.msk [vmem:[#allocation3 + $0x1b4] sm:$0x1] %vm779, %v6274
      %6435 = vst.msk [vmem:[#allocation3 + $0x1bc] sm:$0x1] %vm779, %v6281
      %6436 = vst.msk [vmem:[#allocation3 + $0x1c4] sm:$0x1] %vm779, %v6288
      %6437 = vst.msk [vmem:[#allocation3 + $0x1cc] sm:$0x1] %vm779, %v6295
      %6438 = vst.msk [vmem:[#allocation3 + $0x1d4] sm:$0x1] %vm779, %v6302
      %6439 = vst.msk [vmem:[#allocation3 + $0x1dc] sm:$0x1] %vm779, %v6309
      %6440 = vst.msk [vmem:[#allocation3 + $0x1e4] sm:$0x1] %vm779, %v6316
      %6441 = vst.msk [vmem:[#allocation3 + $0x1ec] sm:$0x1] %vm779, %v6323
      %6442 = vst.msk [vmem:[#allocation3 + $0x1f4] sm:$0x1] %vm779, %v6330
      %6443 = vst.msk [vmem:[#allocation3 + $0x1fc] sm:$0x1] %vm779, %v6337
      %6444 = vst.msk [vmem:[#allocation3 + $0x204] sm:$0x1] %vm779, %v6344
      %6445 = vst.msk [vmem:[#allocation3 + $0x20c] sm:$0x1] %vm779, %v6351
      %6446 = vst.msk [vmem:[#allocation3 + $0x214] sm:$0x1] %vm779, %v6358
      %6447 = vst.msk [vmem:[#allocation3 + $0x21c] sm:$0x1] %vm779, %v6365
      %6448 = vst.msk [vmem:[#allocation3 + $0x224] sm:$0x1] %vm779, %v6372
      %6449 = vst.msk [vmem:[#allocation3 + $0x22c] sm:$0x1] %vm779, %v6379
      %v6450 = vld [vmem:[#allocation2] sm:$0x1f]
      %v6451 = vld [vmem:[#allocation2 + $0x8] sm:$0x1f]
      %v6452 = vld [vmem:[#allocation2 + $0x10] sm:$0x1f]
      %v6453 = vld [vmem:[#allocation2 + $0x50] sm:$0x1f]
      %v6454 = vld [vmem:[#allocation2 + $0x58] sm:$0x1f]
      %v6455 = vld [vmem:[#allocation2 + $0x60] sm:$0x1f]
      %v6456 = vld [vmem:[#allocation2 + $0xa0] sm:$0x1f]
      %v6457 = vld [vmem:[#allocation2 + $0xa8] sm:$0x1f]
      %v6458 = vld [vmem:[#allocation2 + $0xb0] sm:$0x1f]
      %v6459 = vld [vmem:[#allocation3] sm:$0x1f]
      %v6460 = vld [vmem:[#allocation3 + $0x8] sm:$0x1f]
      %v6461 = vld [vmem:[#allocation3 + $0x10] sm:$0x1f]
      %v6462 = vld [vmem:[#allocation3 + $0x50] sm:$0x1f]
      %v6463 = vld [vmem:[#allocation3 + $0x58] sm:$0x1f]
      %v6464 = vld [vmem:[#allocation3 + $0x60] sm:$0x1f]
      %v6465 = vld [vmem:[#allocation3 + $0xa0] sm:$0x1f]
      %v6466 = vld [vmem:[#allocation3 + $0xa8] sm:$0x1f]
      %v6467 = vld [vmem:[#allocation3 + $0xb0] sm:$0x1f]
      %vm6468 = vcmask 28672
      %v6469 = vsel %vm6468, %v6450, 0.0
      %v6470 = vsel %vm6468, %v6453, 0.0
      %v6471 = vadd.f32 %v6469, %v6470
      %v6472 = vsel %vm6468, %v6456, 0.0
      %v6473 = vadd.f32 %v6471, %v6472
      %v6474 = vsel %vm6468, %v6451, 0.0
      %v6475 = vsel %vm6468, %v6454, 0.0
      %v6476 = vadd.f32 %v6474, %v6475
      %v6477 = vsel %vm6468, %v6457, 0.0
      %v6478 = vadd.f32 %v6476, %v6477
      %v6479 = vsel %vm6468, %v6452, 0.0
      %v6480 = vsel %vm6468, %v6455, 0.0
      %v6481 = vadd.f32 %v6479, %v6480
      %v6482 = vsel %vm6468, %v6458, 0.0
      %v6483 = vadd.f32 %v6481, %v6482
      %v6484 = vsel %vm6468, %v6473, 0.0
      %v6485 = vsel %vm6468, %v6478, 0.0
      %v6486 = vadd.f32 %v6484, %v6485
      %v6487 = vsel %vm6468, %v6483, 0.0
      %v6488 = vadd.f32 %v6486, %v6487
      %v6489 = vmul.f32 %v6488, 0.11111111
      %v6490 = vsel %vm6468, %v6459, -inf
      %v6491 = vsel %vm6468, %v6462, -inf
      %v6492 = vsel %vm6468, %v6465, -inf
      %v6493 = vmax.f32 %v6490, %v6492
      %v6494 = vmax.f32 %v6493, %v6491
      %v6495 = vsel %vm6468, %v6460, -inf
      %v6496 = vsel %vm6468, %v6463, -inf
      %v6497 = vsel %vm6468, %v6466, -inf
      %v6498 = vmax.f32 %v6495, %v6497
      %v6499 = vmax.f32 %v6498, %v6496
      %v6500 = vsel %vm6468, %v6461, -inf
      %v6501 = vsel %vm6468, %v6464, -inf
      %v6502 = vsel %vm6468, %v6467, -inf
      %v6503 = vmax.f32 %v6500, %v6502
      %v6504 = vmax.f32 %v6503, %v6501
      %v6505 = vsel %vm6468, %v6494, -inf
      %v6506 = vsel %vm6468, %v6499, -inf
      %v6507 = vsel %vm6468, %v6504, -inf
      %v6508 = vmax.f32 %v6505, %v6506
      %v6509 = vmax.f32 %v6508, %v6507
      %v6510 = vadd.f32 %v6489, %v6509
      %6511 = vst.msk [vmem:[%s147] sm:$0x1f] %vm6468, %v6510
      %s6512 = scalar_lea.vmem [#allocation2], 16
      %v6513 = vld [vmem:[%s6512] sm:$0x1f]
      %v6514 = vld [vmem:[%s6512 + $0x8] sm:$0x1f]
      %v6515 = vld [vmem:[%s6512 + $0x10] sm:$0x1f]
      %v6516 = vld [vmem:[%s6512 + $0x50] sm:$0x1f]
      %v6517 = vld [vmem:[%s6512 + $0x58] sm:$0x1f]
      %v6518 = vld [vmem:[%s6512 + $0x60] sm:$0x1f]
      %v6519 = vld [vmem:[%s6512 + $0xa0] sm:$0x1f]
      %v6520 = vld [vmem:[%s6512 + $0xa8] sm:$0x1f]
      %v6521 = vld [vmem:[%s6512 + $0xb0] sm:$0x1f]
      %s6522 = scalar_lea.vmem [#allocation3], 16
      %v6523 = vld [vmem:[%s6522] sm:$0x1f]
      %v6524 = vld [vmem:[%s6522 + $0x8] sm:$0x1f]
      %v6525 = vld [vmem:[%s6522 + $0x10] sm:$0x1f]
      %v6526 = vld [vmem:[%s6522 + $0x50] sm:$0x1f]
      %v6527 = vld [vmem:[%s6522 + $0x58] sm:$0x1f]
      %v6528 = vld [vmem:[%s6522 + $0x60] sm:$0x1f]
      %v6529 = vld [vmem:[%s6522 + $0xa0] sm:$0x1f]
      %v6530 = vld [vmem:[%s6522 + $0xa8] sm:$0x1f]
      %v6531 = vld [vmem:[%s6522 + $0xb0] sm:$0x1f]
      %v6532 = vsel %vm6468, %v6513, 0.0
      %v6533 = vsel %vm6468, %v6516, 0.0
      %v6534 = vadd.f32 %v6532, %v6533
      %v6535 = vsel %vm6468, %v6519, 0.0
      %v6536 = vadd.f32 %v6534, %v6535
      %v6537 = vsel %vm6468, %v6514, 0.0
      %v6538 = vsel %vm6468, %v6517, 0.0
      %v6539 = vadd.f32 %v6537, %v6538
      %v6540 = vsel %vm6468, %v6520, 0.0
      %v6541 = vadd.f32 %v6539, %v6540
      %v6542 = vsel %vm6468, %v6515, 0.0
      %v6543 = vsel %vm6468, %v6518, 0.0
      %v6544 = vadd.f32 %v6542, %v6543
      %v6545 = vsel %vm6468, %v6521, 0.0
      %v6546 = vadd.f32 %v6544, %v6545
      %v6547 = vsel %vm6468, %v6536, 0.0
      %v6548 = vsel %vm6468, %v6541, 0.0
      %v6549 = vadd.f32 %v6547, %v6548
      %v6550 = vsel %vm6468, %v6546, 0.0
      %v6551 = vadd.f32 %v6549, %v6550
      %v6552 = vmul.f32 %v6551, 0.11111111
      %v6553 = vsel %vm6468, %v6523, -inf
      %v6554 = vsel %vm6468, %v6526, -inf
      %v6555 = vsel %vm6468, %v6529, -inf
      %v6556 = vmax.f32 %v6553, %v6555
      %v6557 = vmax.f32 %v6556, %v6554
      %v6558 = vsel %vm6468, %v6524, -inf
      %v6559 = vsel %vm6468, %v6527, -inf
      %v6560 = vsel %vm6468, %v6530, -inf
      %v6561 = vmax.f32 %v6558, %v6560
      %v6562 = vmax.f32 %v6561, %v6559
      %v6563 = vsel %vm6468, %v6525, -inf
      %v6564 = vsel %vm6468, %v6528, -inf
      %v6565 = vsel %vm6468, %v6531, -inf
      %v6566 = vmax.f32 %v6563, %v6565
      %v6567 = vmax.f32 %v6566, %v6564
      %v6568 = vsel %vm6468, %v6557, -inf
      %v6569 = vsel %vm6468, %v6562, -inf
      %v6570 = vsel %vm6468, %v6567, -inf
      %v6571 = vmax.f32 %v6568, %v6569
      %v6572 = vmax.f32 %v6571, %v6570
      %v6573 = vadd.f32 %v6552, %v6572
      %s6574 = scalar_lea.vmem %s147, 8
      %6575 = vst.msk [vmem:[%s6574] sm:$0x1f] %vm6468, %v6573
      %s6576 = scalar_lea.vmem [#allocation2], 40
      %v6577 = vld [vmem:[%s6576] sm:$0x1f]
      %v6578 = vld [vmem:[%s6576 + $0x8] sm:$0x1f]
      %v6579 = vld [vmem:[%s6576 + $0x10] sm:$0x1f]
      %v6580 = vld [vmem:[%s6576 + $0x50] sm:$0x1f]
      %v6581 = vld [vmem:[%s6576 + $0x58] sm:$0x1f]
      %v6582 = vld [vmem:[%s6576 + $0x60] sm:$0x1f]
      %v6583 = vld [vmem:[%s6576 + $0xa0] sm:$0x1f]
      %v6584 = vld [vmem:[%s6576 + $0xa8] sm:$0x1f]
      %v6585 = vld [vmem:[%s6576 + $0xb0] sm:$0x1f]
      %s6586 = scalar_lea.vmem [#allocation3], 40
      %v6587 = vld [vmem:[%s6586] sm:$0x1f]
      %v6588 = vld [vmem:[%s6586 + $0x8] sm:$0x1f]
      %v6589 = vld [vmem:[%s6586 + $0x10] sm:$0x1f]
      %v6590 = vld [vmem:[%s6586 + $0x50] sm:$0x1f]
      %v6591 = vld [vmem:[%s6586 + $0x58] sm:$0x1f]
      %v6592 = vld [vmem:[%s6586 + $0x60] sm:$0x1f]
      %v6593 = vld [vmem:[%s6586 + $0xa0] sm:$0x1f]
      %v6594 = vld [vmem:[%s6586 + $0xa8] sm:$0x1f]
      %v6595 = vld [vmem:[%s6586 + $0xb0] sm:$0x1f]
      %v6596 = vsel %vm6468, %v6577, 0.0
      %v6597 = vsel %vm6468, %v6580, 0.0
      %v6598 = vadd.f32 %v6596, %v6597
      %v6599 = vsel %vm6468, %v6583, 0.0
      %v6600 = vadd.f32 %v6598, %v6599
      %v6601 = vsel %vm6468, %v6578, 0.0
      %v6602 = vsel %vm6468, %v6581, 0.0
      %v6603 = vadd.f32 %v6601, %v6602
      %v6604 = vsel %vm6468, %v6584, 0.0
      %v6605 = vadd.f32 %v6603, %v6604
      %v6606 = vsel %vm6468, %v6579, 0.0
      %v6607 = vsel %vm6468, %v6582, 0.0
      %v6608 = vadd.f32 %v6606, %v6607
      %v6609 = vsel %vm6468, %v6585, 0.0
      %v6610 = vadd.f32 %v6608, %v6609
      %v6611 = vsel %vm6468, %v6600, 0.0
      %v6612 = vsel %vm6468, %v6605, 0.0
      %v6613 = vadd.f32 %v6611, %v6612
      %v6614 = vsel %vm6468, %v6610, 0.0
      %v6615 = vadd.f32 %v6613, %v6614
      %v6616 = vmul.f32 %v6615, 0.11111111
      %v6617 = vsel %vm6468, %v6587, -inf
      %v6618 = vsel %vm6468, %v6590, -inf
      %v6619 = vsel %vm6468, %v6593, -inf
      %v6620 = vmax.f32 %v6617, %v6619
      %v6621 = vmax.f32 %v6620, %v6618
      %v6622 = vsel %vm6468, %v6588, -inf
      %v6623 = vsel %vm6468, %v6591, -inf
      %v6624 = vsel %vm6468, %v6594, -inf
      %v6625 = vmax.f32 %v6622, %v6624
      %v6626 = vmax.f32 %v6625, %v6623
      %v6627 = vsel %vm6468, %v6589, -inf
      %v6628 = vsel %vm6468, %v6592, -inf
      %v6629 = vsel %vm6468, %v6595, -inf
      %v6630 = vmax.f32 %v6627, %v6629
      %v6631 = vmax.f32 %v6630, %v6628
      %v6632 = vsel %vm6468, %v6621, -inf
      %v6633 = vsel %vm6468, %v6626, -inf
      %v6634 = vsel %vm6468, %v6631, -inf
      %v6635 = vmax.f32 %v6632, %v6633
      %v6636 = vmax.f32 %v6635, %v6634
      %v6637 = vadd.f32 %v6616, %v6636
      %s6638 = scalar_lea.vmem %s147, 16
      %6639 = vst.msk [vmem:[%s6638] sm:$0x1f] %vm6468, %v6637
      %s6640 = scalar_lea.vmem [#allocation2], 56
      %v6641 = vld [vmem:[%s6640] sm:$0x1f]
      %v6642 = vld [vmem:[%s6640 + $0x8] sm:$0x1f]
      %v6643 = vld [vmem:[%s6640 + $0x10] sm:$0x1f]
      %v6644 = vld [vmem:[%s6640 + $0x50] sm:$0x1f]
      %v6645 = vld [vmem:[%s6640 + $0x58] sm:$0x1f]
      %v6646 = vld [vmem:[%s6640 + $0x60] sm:$0x1f]
      %v6647 = vld [vmem:[%s6640 + $0xa0] sm:$0x1f]
      %v6648 = vld [vmem:[%s6640 + $0xa8] sm:$0x1f]
      %v6649 = vld [vmem:[%s6640 + $0xb0] sm:$0x1f]
      %s6650 = scalar_lea.vmem [#allocation3], 56
      %v6651 = vld [vmem:[%s6650] sm:$0x1f]
      %v6652 = vld [vmem:[%s6650 + $0x8] sm:$0x1f]
      %v6653 = vld [vmem:[%s6650 + $0x10] sm:$0x1f]
      %v6654 = vld [vmem:[%s6650 + $0x50] sm:$0x1f]
      %v6655 = vld [vmem:[%s6650 + $0x58] sm:$0x1f]
      %v6656 = vld [vmem:[%s6650 + $0x60] sm:$0x1f]
      %v6657 = vld [vmem:[%s6650 + $0xa0] sm:$0x1f]
      %v6658 = vld [vmem:[%s6650 + $0xa8] sm:$0x1f]
      %v6659 = vld [vmem:[%s6650 + $0xb0] sm:$0x1f]
      %v6660 = vsel %vm6468, %v6641, 0.0
      %v6661 = vsel %vm6468, %v6644, 0.0
      %v6662 = vadd.f32 %v6660, %v6661
      %v6663 = vsel %vm6468, %v6647, 0.0
      %v6664 = vadd.f32 %v6662, %v6663
      %v6665 = vsel %vm6468, %v6642, 0.0
      %v6666 = vsel %vm6468, %v6645, 0.0
      %v6667 = vadd.f32 %v6665, %v6666
      %v6668 = vsel %vm6468, %v6648, 0.0
      %v6669 = vadd.f32 %v6667, %v6668
      %v6670 = vsel %vm6468, %v6643, 0.0
      %v6671 = vsel %vm6468, %v6646, 0.0
      %v6672 = vadd.f32 %v6670, %v6671
      %v6673 = vsel %vm6468, %v6649, 0.0
      %v6674 = vadd.f32 %v6672, %v6673
      %v6675 = vsel %vm6468, %v6664, 0.0
      %v6676 = vsel %vm6468, %v6669, 0.0
      %v6677 = vadd.f32 %v6675, %v6676
      %v6678 = vsel %vm6468, %v6674, 0.0
      %v6679 = vadd.f32 %v6677, %v6678
      %v6680 = vmul.f32 %v6679, 0.11111111
      %v6681 = vsel %vm6468, %v6651, -inf
      %v6682 = vsel %vm6468, %v6654, -inf
      %v6683 = vsel %vm6468, %v6657, -inf
      %v6684 = vmax.f32 %v6681, %v6683
      %v6685 = vmax.f32 %v6684, %v6682
      %v6686 = vsel %vm6468, %v6652, -inf
      %v6687 = vsel %vm6468, %v6655, -inf
      %v6688 = vsel %vm6468, %v6658, -inf
      %v6689 = vmax.f32 %v6686, %v6688
      %v6690 = vmax.f32 %v6689, %v6687
      %v6691 = vsel %vm6468, %v6653, -inf
      %v6692 = vsel %vm6468, %v6656, -inf
      %v6693 = vsel %vm6468, %v6659, -inf
      %v6694 = vmax.f32 %v6691, %v6693
      %v6695 = vmax.f32 %v6694, %v6692
      %v6696 = vsel %vm6468, %v6685, -inf
      %v6697 = vsel %vm6468, %v6690, -inf
      %v6698 = vsel %vm6468, %v6695, -inf
      %v6699 = vmax.f32 %v6696, %v6697
      %v6700 = vmax.f32 %v6699, %v6698
      %v6701 = vadd.f32 %v6680, %v6700
      %s6702 = scalar_lea.vmem %s147, 24
      %6703 = vst.msk [vmem:[%s6702] sm:$0x1f] %vm6468, %v6701
      %s6704 = scalar_lea.vmem [#allocation2], 160
      %v6705 = vld [vmem:[%s6704] sm:$0x1f]
      %v6706 = vld [vmem:[%s6704 + $0x8] sm:$0x1f]
      %v6707 = vld [vmem:[%s6704 + $0x10] sm:$0x1f]
      %v6708 = vld [vmem:[%s6704 + $0x50] sm:$0x1f]
      %v6709 = vld [vmem:[%s6704 + $0x58] sm:$0x1f]
      %v6710 = vld [vmem:[%s6704 + $0x60] sm:$0x1f]
      %v6711 = vld [vmem:[%s6704 + $0xa0] sm:$0x1f]
      %v6712 = vld [vmem:[%s6704 + $0xa8] sm:$0x1f]
      %v6713 = vld [vmem:[%s6704 + $0xb0] sm:$0x1f]
      %s6714 = scalar_lea.vmem [#allocation3], 160
      %v6715 = vld [vmem:[%s6714] sm:$0x1f]
      %v6716 = vld [vmem:[%s6714 + $0x8] sm:$0x1f]
      %v6717 = vld [vmem:[%s6714 + $0x10] sm:$0x1f]
      %v6718 = vld [vmem:[%s6714 + $0x50] sm:$0x1f]
      %v6719 = vld [vmem:[%s6714 + $0x58] sm:$0x1f]
      %v6720 = vld [vmem:[%s6714 + $0x60] sm:$0x1f]
      %v6721 = vld [vmem:[%s6714 + $0xa0] sm:$0x1f]
      %v6722 = vld [vmem:[%s6714 + $0xa8] sm:$0x1f]
      %v6723 = vld [vmem:[%s6714 + $0xb0] sm:$0x1f]
      %v6724 = vsel %vm6468, %v6705, 0.0
      %v6725 = vsel %vm6468, %v6708, 0.0
      %v6726 = vadd.f32 %v6724, %v6725
      %v6727 = vsel %vm6468, %v6711, 0.0
      %v6728 = vadd.f32 %v6726, %v6727
      %v6729 = vsel %vm6468, %v6706, 0.0
      %v6730 = vsel %vm6468, %v6709, 0.0
      %v6731 = vadd.f32 %v6729, %v6730
      %v6732 = vsel %vm6468, %v6712, 0.0
      %v6733 = vadd.f32 %v6731, %v6732
      %v6734 = vsel %vm6468, %v6707, 0.0
      %v6735 = vsel %vm6468, %v6710, 0.0
      %v6736 = vadd.f32 %v6734, %v6735
      %v6737 = vsel %vm6468, %v6713, 0.0
      %v6738 = vadd.f32 %v6736, %v6737
      %v6739 = vsel %vm6468, %v6728, 0.0
      %v6740 = vsel %vm6468, %v6733, 0.0
      %v6741 = vadd.f32 %v6739, %v6740
      %v6742 = vsel %vm6468, %v6738, 0.0
      %v6743 = vadd.f32 %v6741, %v6742
      %v6744 = vmul.f32 %v6743, 0.11111111
      %v6745 = vsel %vm6468, %v6715, -inf
      %v6746 = vsel %vm6468, %v6718, -inf
      %v6747 = vsel %vm6468, %v6721, -inf
      %v6748 = vmax.f32 %v6745, %v6747
      %v6749 = vmax.f32 %v6748, %v6746
      %v6750 = vsel %vm6468, %v6716, -inf
      %v6751 = vsel %vm6468, %v6719, -inf
      %v6752 = vsel %vm6468, %v6722, -inf
      %v6753 = vmax.f32 %v6750, %v6752
      %v6754 = vmax.f32 %v6753, %v6751
      %v6755 = vsel %vm6468, %v6717, -inf
      %v6756 = vsel %vm6468, %v6720, -inf
      %v6757 = vsel %vm6468, %v6723, -inf
      %v6758 = vmax.f32 %v6755, %v6757
      %v6759 = vmax.f32 %v6758, %v6756
      %v6760 = vsel %vm6468, %v6749, -inf
      %v6761 = vsel %vm6468, %v6754, -inf
      %v6762 = vsel %vm6468, %v6759, -inf
      %v6763 = vmax.f32 %v6760, %v6761
      %v6764 = vmax.f32 %v6763, %v6762
      %v6765 = vadd.f32 %v6744, %v6764
      %s6766 = scalar_lea.vmem %s147, 32
      %6767 = vst.msk [vmem:[%s6766] sm:$0x1f] %vm6468, %v6765
      %s6768 = scalar_lea.vmem [#allocation2], 176
      %v6769 = vld [vmem:[%s6768] sm:$0x1f]
      %v6770 = vld [vmem:[%s6768 + $0x8] sm:$0x1f]
      %v6771 = vld [vmem:[%s6768 + $0x10] sm:$0x1f]
      %v6772 = vld [vmem:[%s6768 + $0x50] sm:$0x1f]
      %v6773 = vld [vmem:[%s6768 + $0x58] sm:$0x1f]
      %v6774 = vld [vmem:[%s6768 + $0x60] sm:$0x1f]
      %v6775 = vld [vmem:[%s6768 + $0xa0] sm:$0x1f]
      %v6776 = vld [vmem:[%s6768 + $0xa8] sm:$0x1f]
      %v6777 = vld [vmem:[%s6768 + $0xb0] sm:$0x1f]
      %s6778 = scalar_lea.vmem [#allocation3], 176
      %v6779 = vld [vmem:[%s6778] sm:$0x1f]
      %v6780 = vld [vmem:[%s6778 + $0x8] sm:$0x1f]
      %v6781 = vld [vmem:[%s6778 + $0x10] sm:$0x1f]
      %v6782 = vld [vmem:[%s6778 + $0x50] sm:$0x1f]
      %v6783 = vld [vmem:[%s6778 + $0x58] sm:$0x1f]
      %v6784 = vld [vmem:[%s6778 + $0x60] sm:$0x1f]
      %v6785 = vld [vmem:[%s6778 + $0xa0] sm:$0x1f]
      %v6786 = vld [vmem:[%s6778 + $0xa8] sm:$0x1f]
      %v6787 = vld [vmem:[%s6778 + $0xb0] sm:$0x1f]
      %v6788 = vsel %vm6468, %v6769, 0.0
      %v6789 = vsel %vm6468, %v6772, 0.0
      %v6790 = vadd.f32 %v6788, %v6789
      %v6791 = vsel %vm6468, %v6775, 0.0
      %v6792 = vadd.f32 %v6790, %v6791
      %v6793 = vsel %vm6468, %v6770, 0.0
      %v6794 = vsel %vm6468, %v6773, 0.0
      %v6795 = vadd.f32 %v6793, %v6794
      %v6796 = vsel %vm6468, %v6776, 0.0
      %v6797 = vadd.f32 %v6795, %v6796
      %v6798 = vsel %vm6468, %v6771, 0.0
      %v6799 = vsel %vm6468, %v6774, 0.0
      %v6800 = vadd.f32 %v6798, %v6799
      %v6801 = vsel %vm6468, %v6777, 0.0
      %v6802 = vadd.f32 %v6800, %v6801
      %v6803 = vsel %vm6468, %v6792, 0.0
      %v6804 = vsel %vm6468, %v6797, 0.0
      %v6805 = vadd.f32 %v6803, %v6804
      %v6806 = vsel %vm6468, %v6802, 0.0
      %v6807 = vadd.f32 %v6805, %v6806
      %v6808 = vmul.f32 %v6807, 0.11111111
      %v6809 = vsel %vm6468, %v6779, -inf
      %v6810 = vsel %vm6468, %v6782, -inf
      %v6811 = vsel %vm6468, %v6785, -inf
      %v6812 = vmax.f32 %v6809, %v6811
      %v6813 = vmax.f32 %v6812, %v6810
      %v6814 = vsel %vm6468, %v6780, -inf
      %v6815 = vsel %vm6468, %v6783, -inf
      %v6816 = vsel %vm6468, %v6786, -inf
      %v6817 = vmax.f32 %v6814, %v6816
      %v6818 = vmax.f32 %v6817, %v6815
      %v6819 = vsel %vm6468, %v6781, -inf
      %v6820 = vsel %vm6468, %v6784, -inf
      %v6821 = vsel %vm6468, %v6787, -inf
      %v6822 = vmax.f32 %v6819, %v6821
      %v6823 = vmax.f32 %v6822, %v6820
      %v6824 = vsel %vm6468, %v6813, -inf
      %v6825 = vsel %vm6468, %v6818, -inf
      %v6826 = vsel %vm6468, %v6823, -inf
      %v6827 = vmax.f32 %v6824, %v6825
      %v6828 = vmax.f32 %v6827, %v6826
      %v6829 = vadd.f32 %v6808, %v6828
      %s6830 = scalar_lea.vmem %s147, 40
      %6831 = vst.msk [vmem:[%s6830] sm:$0x1f] %vm6468, %v6829
      %s6832 = scalar_lea.vmem [#allocation2], 200
      %v6833 = vld [vmem:[%s6832] sm:$0x1f]
      %v6834 = vld [vmem:[%s6832 + $0x8] sm:$0x1f]
      %v6835 = vld [vmem:[%s6832 + $0x10] sm:$0x1f]
      %v6836 = vld [vmem:[%s6832 + $0x50] sm:$0x1f]
      %v6837 = vld [vmem:[%s6832 + $0x58] sm:$0x1f]
      %v6838 = vld [vmem:[%s6832 + $0x60] sm:$0x1f]
      %v6839 = vld [vmem:[%s6832 + $0xa0] sm:$0x1f]
      %v6840 = vld [vmem:[%s6832 + $0xa8] sm:$0x1f]
      %v6841 = vld [vmem:[%s6832 + $0xb0] sm:$0x1f]
      %s6842 = scalar_lea.vmem [#allocation3], 200
      %v6843 = vld [vmem:[%s6842] sm:$0x1f]
      %v6844 = vld [vmem:[%s6842 + $0x8] sm:$0x1f]
      %v6845 = vld [vmem:[%s6842 + $0x10] sm:$0x1f]
      %v6846 = vld [vmem:[%s6842 + $0x50] sm:$0x1f]
      %v6847 = vld [vmem:[%s6842 + $0x58] sm:$0x1f]
      %v6848 = vld [vmem:[%s6842 + $0x60] sm:$0x1f]
      %v6849 = vld [vmem:[%s6842 + $0xa0] sm:$0x1f]
      %v6850 = vld [vmem:[%s6842 + $0xa8] sm:$0x1f]
      %v6851 = vld [vmem:[%s6842 + $0xb0] sm:$0x1f]
      %v6852 = vsel %vm6468, %v6833, 0.0
      %v6853 = vsel %vm6468, %v6836, 0.0
      %v6854 = vadd.f32 %v6852, %v6853
      %v6855 = vsel %vm6468, %v6839, 0.0
      %v6856 = vadd.f32 %v6854, %v6855
      %v6857 = vsel %vm6468, %v6834, 0.0
      %v6858 = vsel %vm6468, %v6837, 0.0
      %v6859 = vadd.f32 %v6857, %v6858
      %v6860 = vsel %vm6468, %v6840, 0.0
      %v6861 = vadd.f32 %v6859, %v6860
      %v6862 = vsel %vm6468, %v6835, 0.0
      %v6863 = vsel %vm6468, %v6838, 0.0
      %v6864 = vadd.f32 %v6862, %v6863
      %v6865 = vsel %vm6468, %v6841, 0.0
      %v6866 = vadd.f32 %v6864, %v6865
      %v6867 = vsel %vm6468, %v6856, 0.0
      %v6868 = vsel %vm6468, %v6861, 0.0
      %v6869 = vadd.f32 %v6867, %v6868
      %v6870 = vsel %vm6468, %v6866, 0.0
      %v6871 = vadd.f32 %v6869, %v6870
      %v6872 = vmul.f32 %v6871, 0.11111111
      %v6873 = vsel %vm6468, %v6843, -inf
      %v6874 = vsel %vm6468, %v6846, -inf
      %v6875 = vsel %vm6468, %v6849, -inf
      %v6876 = vmax.f32 %v6873, %v6875
      %v6877 = vmax.f32 %v6876, %v6874
      %v6878 = vsel %vm6468, %v6844, -inf
      %v6879 = vsel %vm6468, %v6847, -inf
      %v6880 = vsel %vm6468, %v6850, -inf
      %v6881 = vmax.f32 %v6878, %v6880
      %v6882 = vmax.f32 %v6881, %v6879
      %v6883 = vsel %vm6468, %v6845, -inf
      %v6884 = vsel %vm6468, %v6848, -inf
      %v6885 = vsel %vm6468, %v6851, -inf
      %v6886 = vmax.f32 %v6883, %v6885
      %v6887 = vmax.f32 %v6886, %v6884
      %v6888 = vsel %vm6468, %v6877, -inf
      %v6889 = vsel %vm6468, %v6882, -inf
      %v6890 = vsel %vm6468, %v6887, -inf
      %v6891 = vmax.f32 %v6888, %v6889
      %v6892 = vmax.f32 %v6891, %v6890
      %v6893 = vadd.f32 %v6872, %v6892
      %s6894 = scalar_lea.vmem %s147, 48
      %6895 = vst.msk [vmem:[%s6894] sm:$0x1f] %vm6468, %v6893
      %s6896 = scalar_lea.vmem [#allocation2], 216
      %v6897 = vld [vmem:[%s6896] sm:$0x1f]
      %v6898 = vld [vmem:[%s6896 + $0x8] sm:$0x1f]
      %v6899 = vld [vmem:[%s6896 + $0x10] sm:$0x1f]
      %v6900 = vld [vmem:[%s6896 + $0x50] sm:$0x1f]
      %v6901 = vld [vmem:[%s6896 + $0x58] sm:$0x1f]
      %v6902 = vld [vmem:[%s6896 + $0x60] sm:$0x1f]
      %v6903 = vld [vmem:[%s6896 + $0xa0] sm:$0x1f]
      %v6904 = vld [vmem:[%s6896 + $0xa8] sm:$0x1f]
      %v6905 = vld [vmem:[%s6896 + $0xb0] sm:$0x1f]
      %s6906 = scalar_lea.vmem [#allocation3], 216
      %v6907 = vld [vmem:[%s6906] sm:$0x1f]
      %v6908 = vld [vmem:[%s6906 + $0x8] sm:$0x1f]
      %v6909 = vld [vmem:[%s6906 + $0x10] sm:$0x1f]
      %v6910 = vld [vmem:[%s6906 + $0x50] sm:$0x1f]
      %v6911 = vld [vmem:[%s6906 + $0x58] sm:$0x1f]
      %v6912 = vld [vmem:[%s6906 + $0x60] sm:$0x1f]
      %v6913 = vld [vmem:[%s6906 + $0xa0] sm:$0x1f]
      %v6914 = vld [vmem:[%s6906 + $0xa8] sm:$0x1f]
      %v6915 = vld [vmem:[%s6906 + $0xb0] sm:$0x1f]
      %v6916 = vsel %vm6468, %v6897, 0.0
      %v6917 = vsel %vm6468, %v6900, 0.0
      %v6918 = vadd.f32 %v6916, %v6917
      %v6919 = vsel %vm6468, %v6903, 0.0
      %v6920 = vadd.f32 %v6918, %v6919
      %v6921 = vsel %vm6468, %v6898, 0.0
      %v6922 = vsel %vm6468, %v6901, 0.0
      %v6923 = vadd.f32 %v6921, %v6922
      %v6924 = vsel %vm6468, %v6904, 0.0
      %v6925 = vadd.f32 %v6923, %v6924
      %v6926 = vsel %vm6468, %v6899, 0.0
      %v6927 = vsel %vm6468, %v6902, 0.0
      %v6928 = vadd.f32 %v6926, %v6927
      %v6929 = vsel %vm6468, %v6905, 0.0
      %v6930 = vadd.f32 %v6928, %v6929
      %v6931 = vsel %vm6468, %v6920, 0.0
      %v6932 = vsel %vm6468, %v6925, 0.0
      %v6933 = vadd.f32 %v6931, %v6932
      %v6934 = vsel %vm6468, %v6930, 0.0
      %v6935 = vadd.f32 %v6933, %v6934
      %v6936 = vmul.f32 %v6935, 0.11111111
      %v6937 = vsel %vm6468, %v6907, -inf
      %v6938 = vsel %vm6468, %v6910, -inf
      %v6939 = vsel %vm6468, %v6913, -inf
      %v6940 = vmax.f32 %v6937, %v6939
      %v6941 = vmax.f32 %v6940, %v6938
      %v6942 = vsel %vm6468, %v6908, -inf
      %v6943 = vsel %vm6468, %v6911, -inf
      %v6944 = vsel %vm6468, %v6914, -inf
      %v6945 = vmax.f32 %v6942, %v6944
      %v6946 = vmax.f32 %v6945, %v6943
      %v6947 = vsel %vm6468, %v6909, -inf
      %v6948 = vsel %vm6468, %v6912, -inf
      %v6949 = vsel %vm6468, %v6915, -inf
      %v6950 = vmax.f32 %v6947, %v6949
      %v6951 = vmax.f32 %v6950, %v6948
      %v6952 = vsel %vm6468, %v6941, -inf
      %v6953 = vsel %vm6468, %v6946, -inf
      %v6954 = vsel %vm6468, %v6951, -inf
      %v6955 = vmax.f32 %v6952, %v6953
      %v6956 = vmax.f32 %v6955, %v6954
      %v6957 = vadd.f32 %v6936, %v6956
      %s6958 = scalar_lea.vmem %s147, 56
      %6959 = vst.msk [vmem:[%s6958] sm:$0x1f] %vm6468, %v6957
      %s6960 = scalar_lea.vmem [#allocation2], 320
      %v6961 = vld [vmem:[%s6960] sm:$0x1f]
      %v6962 = vld [vmem:[%s6960 + $0x8] sm:$0x1f]
      %v6963 = vld [vmem:[%s6960 + $0x10] sm:$0x1f]
      %v6964 = vld [vmem:[%s6960 + $0x50] sm:$0x1f]
      %v6965 = vld [vmem:[%s6960 + $0x58] sm:$0x1f]
      %v6966 = vld [vmem:[%s6960 + $0x60] sm:$0x1f]
      %v6967 = vld [vmem:[%s6960 + $0xa0] sm:$0x1f]
      %v6968 = vld [vmem:[%s6960 + $0xa8] sm:$0x1f]
      %v6969 = vld [vmem:[%s6960 + $0xb0] sm:$0x1f]
      %s6970 = scalar_lea.vmem [#allocation3], 320
      %v6971 = vld [vmem:[%s6970] sm:$0x1f]
      %v6972 = vld [vmem:[%s6970 + $0x8] sm:$0x1f]
      %v6973 = vld [vmem:[%s6970 + $0x10] sm:$0x1f]
      %v6974 = vld [vmem:[%s6970 + $0x50] sm:$0x1f]
      %v6975 = vld [vmem:[%s6970 + $0x58] sm:$0x1f]
      %v6976 = vld [vmem:[%s6970 + $0x60] sm:$0x1f]
      %v6977 = vld [vmem:[%s6970 + $0xa0] sm:$0x1f]
      %v6978 = vld [vmem:[%s6970 + $0xa8] sm:$0x1f]
      %v6979 = vld [vmem:[%s6970 + $0xb0] sm:$0x1f]
      %v6980 = vsel %vm6468, %v6961, 0.0
      %v6981 = vsel %vm6468, %v6964, 0.0
      %v6982 = vadd.f32 %v6980, %v6981
      %v6983 = vsel %vm6468, %v6967, 0.0
      %v6984 = vadd.f32 %v6982, %v6983
      %v6985 = vsel %vm6468, %v6962, 0.0
      %v6986 = vsel %vm6468, %v6965, 0.0
      %v6987 = vadd.f32 %v6985, %v6986
      %v6988 = vsel %vm6468, %v6968, 0.0
      %v6989 = vadd.f32 %v6987, %v6988
      %v6990 = vsel %vm6468, %v6963, 0.0
      %v6991 = vsel %vm6468, %v6966, 0.0
      %v6992 = vadd.f32 %v6990, %v6991
      %v6993 = vsel %vm6468, %v6969, 0.0
      %v6994 = vadd.f32 %v6992, %v6993
      %v6995 = vsel %vm6468, %v6984, 0.0
      %v6996 = vsel %vm6468, %v6989, 0.0
      %v6997 = vadd.f32 %v6995, %v6996
      %v6998 = vsel %vm6468, %v6994, 0.0
      %v6999 = vadd.f32 %v6997, %v6998
      %v7000 = vmul.f32 %v6999, 0.11111111
      %v7001 = vsel %vm6468, %v6971, -inf
      %v7002 = vsel %vm6468, %v6974, -inf
      %v7003 = vsel %vm6468, %v6977, -inf
      %v7004 = vmax.f32 %v7001, %v7003
      %v7005 = vmax.f32 %v7004, %v7002
      %v7006 = vsel %vm6468, %v6972, -inf
      %v7007 = vsel %vm6468, %v6975, -inf
      %v7008 = vsel %vm6468, %v6978, -inf
      %v7009 = vmax.f32 %v7006, %v7008
      %v7010 = vmax.f32 %v7009, %v7007
      %v7011 = vsel %vm6468, %v6973, -inf
      %v7012 = vsel %vm6468, %v6976, -inf
      %v7013 = vsel %vm6468, %v6979, -inf
      %v7014 = vmax.f32 %v7011, %v7013
      %v7015 = vmax.f32 %v7014, %v7012
      %v7016 = vsel %vm6468, %v7005, -inf
      %v7017 = vsel %vm6468, %v7010, -inf
      %v7018 = vsel %vm6468, %v7015, -inf
      %v7019 = vmax.f32 %v7016, %v7017
      %v7020 = vmax.f32 %v7019, %v7018
      %v7021 = vadd.f32 %v7000, %v7020
      %s7022 = scalar_lea.vmem %s147, 64
      %7023 = vst.msk [vmem:[%s7022] sm:$0x1f] %vm6468, %v7021
      %s7024 = scalar_lea.vmem [#allocation2], 336
      %v7025 = vld [vmem:[%s7024] sm:$0x1f]
      %v7026 = vld [vmem:[%s7024 + $0x8] sm:$0x1f]
      %v7027 = vld [vmem:[%s7024 + $0x10] sm:$0x1f]
      %v7028 = vld [vmem:[%s7024 + $0x50] sm:$0x1f]
      %v7029 = vld [vmem:[%s7024 + $0x58] sm:$0x1f]
      %v7030 = vld [vmem:[%s7024 + $0x60] sm:$0x1f]
      %v7031 = vld [vmem:[%s7024 + $0xa0] sm:$0x1f]
      %v7032 = vld [vmem:[%s7024 + $0xa8] sm:$0x1f]
      %v7033 = vld [vmem:[%s7024 + $0xb0] sm:$0x1f]
      %s7034 = scalar_lea.vmem [#allocation3], 336
      %v7035 = vld [vmem:[%s7034] sm:$0x1f]
      %v7036 = vld [vmem:[%s7034 + $0x8] sm:$0x1f]
      %v7037 = vld [vmem:[%s7034 + $0x10] sm:$0x1f]
      %v7038 = vld [vmem:[%s7034 + $0x50] sm:$0x1f]
      %v7039 = vld [vmem:[%s7034 + $0x58] sm:$0x1f]
      %v7040 = vld [vmem:[%s7034 + $0x60] sm:$0x1f]
      %v7041 = vld [vmem:[%s7034 + $0xa0] sm:$0x1f]
      %v7042 = vld [vmem:[%s7034 + $0xa8] sm:$0x1f]
      %v7043 = vld [vmem:[%s7034 + $0xb0] sm:$0x1f]
      %v7044 = vsel %vm6468, %v7025, 0.0
      %v7045 = vsel %vm6468, %v7028, 0.0
      %v7046 = vadd.f32 %v7044, %v7045
      %v7047 = vsel %vm6468, %v7031, 0.0
      %v7048 = vadd.f32 %v7046, %v7047
      %v7049 = vsel %vm6468, %v7026, 0.0
      %v7050 = vsel %vm6468, %v7029, 0.0
      %v7051 = vadd.f32 %v7049, %v7050
      %v7052 = vsel %vm6468, %v7032, 0.0
      %v7053 = vadd.f32 %v7051, %v7052
      %v7054 = vsel %vm6468, %v7027, 0.0
      %v7055 = vsel %vm6468, %v7030, 0.0
      %v7056 = vadd.f32 %v7054, %v7055
      %v7057 = vsel %vm6468, %v7033, 0.0
      %v7058 = vadd.f32 %v7056, %v7057
      %v7059 = vsel %vm6468, %v7048, 0.0
      %v7060 = vsel %vm6468, %v7053, 0.0
      %v7061 = vadd.f32 %v7059, %v7060
      %v7062 = vsel %vm6468, %v7058, 0.0
      %v7063 = vadd.f32 %v7061, %v7062
      %v7064 = vmul.f32 %v7063, 0.11111111
      %v7065 = vsel %vm6468, %v7035, -inf
      %v7066 = vsel %vm6468, %v7038, -inf
      %v7067 = vsel %vm6468, %v7041, -inf
      %v7068 = vmax.f32 %v7065, %v7067
      %v7069 = vmax.f32 %v7068, %v7066
      %v7070 = vsel %vm6468, %v7036, -inf
      %v7071 = vsel %vm6468, %v7039, -inf
      %v7072 = vsel %vm6468, %v7042, -inf
      %v7073 = vmax.f32 %v7070, %v7072
      %v7074 = vmax.f32 %v7073, %v7071
      %v7075 = vsel %vm6468, %v7037, -inf
      %v7076 = vsel %vm6468, %v7040, -inf
      %v7077 = vsel %vm6468, %v7043, -inf
      %v7078 = vmax.f32 %v7075, %v7077
      %v7079 = vmax.f32 %v7078, %v7076
      %v7080 = vsel %vm6468, %v7069, -inf
      %v7081 = vsel %vm6468, %v7074, -inf
      %v7082 = vsel %vm6468, %v7079, -inf
      %v7083 = vmax.f32 %v7080, %v7081
      %v7084 = vmax.f32 %v7083, %v7082
      %v7085 = vadd.f32 %v7064, %v7084
      %s7086 = scalar_lea.vmem %s147, 72
      %7087 = vst.msk [vmem:[%s7086] sm:$0x1f] %vm6468, %v7085
      %s7088 = scalar_lea.vmem [#allocation2], 360
      %v7089 = vld [vmem:[%s7088] sm:$0x1f]
      %v7090 = vld [vmem:[%s7088 + $0x8] sm:$0x1f]
      %v7091 = vld [vmem:[%s7088 + $0x10] sm:$0x1f]
      %v7092 = vld [vmem:[%s7088 + $0x50] sm:$0x1f]
      %v7093 = vld [vmem:[%s7088 + $0x58] sm:$0x1f]
      %v7094 = vld [vmem:[%s7088 + $0x60] sm:$0x1f]
      %v7095 = vld [vmem:[%s7088 + $0xa0] sm:$0x1f]
      %v7096 = vld [vmem:[%s7088 + $0xa8] sm:$0x1f]
      %v7097 = vld [vmem:[%s7088 + $0xb0] sm:$0x1f]
      %s7098 = scalar_lea.vmem [#allocation3], 360
      %v7099 = vld [vmem:[%s7098] sm:$0x1f]
      %v7100 = vld [vmem:[%s7098 + $0x8] sm:$0x1f]
      %v7101 = vld [vmem:[%s7098 + $0x10] sm:$0x1f]
      %v7102 = vld [vmem:[%s7098 + $0x50] sm:$0x1f]
      %v7103 = vld [vmem:[%s7098 + $0x58] sm:$0x1f]
      %v7104 = vld [vmem:[%s7098 + $0x60] sm:$0x1f]
      %v7105 = vld [vmem:[%s7098 + $0xa0] sm:$0x1f]
      %v7106 = vld [vmem:[%s7098 + $0xa8] sm:$0x1f]
      %v7107 = vld [vmem:[%s7098 + $0xb0] sm:$0x1f]
      %v7108 = vsel %vm6468, %v7089, 0.0
      %v7109 = vsel %vm6468, %v7092, 0.0
      %v7110 = vadd.f32 %v7108, %v7109
      %v7111 = vsel %vm6468, %v7095, 0.0
      %v7112 = vadd.f32 %v7110, %v7111
      %v7113 = vsel %vm6468, %v7090, 0.0
      %v7114 = vsel %vm6468, %v7093, 0.0
      %v7115 = vadd.f32 %v7113, %v7114
      %v7116 = vsel %vm6468, %v7096, 0.0
      %v7117 = vadd.f32 %v7115, %v7116
      %v7118 = vsel %vm6468, %v7091, 0.0
      %v7119 = vsel %vm6468, %v7094, 0.0
      %v7120 = vadd.f32 %v7118, %v7119
      %v7121 = vsel %vm6468, %v7097, 0.0
      %v7122 = vadd.f32 %v7120, %v7121
      %v7123 = vsel %vm6468, %v7112, 0.0
      %v7124 = vsel %vm6468, %v7117, 0.0
      %v7125 = vadd.f32 %v7123, %v7124
      %v7126 = vsel %vm6468, %v7122, 0.0
      %v7127 = vadd.f32 %v7125, %v7126
      %v7128 = vmul.f32 %v7127, 0.11111111
      %v7129 = vsel %vm6468, %v7099, -inf
      %v7130 = vsel %vm6468, %v7102, -inf
      %v7131 = vsel %vm6468, %v7105, -inf
      %v7132 = vmax.f32 %v7129, %v7131
      %v7133 = vmax.f32 %v7132, %v7130
      %v7134 = vsel %vm6468, %v7100, -inf
      %v7135 = vsel %vm6468, %v7103, -inf
      %v7136 = vsel %vm6468, %v7106, -inf
      %v7137 = vmax.f32 %v7134, %v7136
      %v7138 = vmax.f32 %v7137, %v7135
      %v7139 = vsel %vm6468, %v7101, -inf
      %v7140 = vsel %vm6468, %v7104, -inf
      %v7141 = vsel %vm6468, %v7107, -inf
      %v7142 = vmax.f32 %v7139, %v7141
      %v7143 = vmax.f32 %v7142, %v7140
      %v7144 = vsel %vm6468, %v7133, -inf
      %v7145 = vsel %vm6468, %v7138, -inf
      %v7146 = vsel %vm6468, %v7143, -inf
      %v7147 = vmax.f32 %v7144, %v7145
      %v7148 = vmax.f32 %v7147, %v7146
      %v7149 = vadd.f32 %v7128, %v7148
      %s7150 = scalar_lea.vmem %s147, 80
      %7151 = vst.msk [vmem:[%s7150] sm:$0x1f] %vm6468, %v7149
      %s7152 = scalar_lea.vmem [#allocation2], 376
      %v7153 = vld [vmem:[%s7152] sm:$0x1f]
      %v7154 = vld [vmem:[%s7152 + $0x8] sm:$0x1f]
      %v7155 = vld [vmem:[%s7152 + $0x10] sm:$0x1f]
      %v7156 = vld [vmem:[%s7152 + $0x50] sm:$0x1f]
      %v7157 = vld [vmem:[%s7152 + $0x58] sm:$0x1f]
      %v7158 = vld [vmem:[%s7152 + $0x60] sm:$0x1f]
      %v7159 = vld [vmem:[%s7152 + $0xa0] sm:$0x1f]
      %v7160 = vld [vmem:[%s7152 + $0xa8] sm:$0x1f]
      %v7161 = vld [vmem:[%s7152 + $0xb0] sm:$0x1f]
      %s7162 = scalar_lea.vmem [#allocation3], 376
      %v7163 = vld [vmem:[%s7162] sm:$0x1f]
      %v7164 = vld [vmem:[%s7162 + $0x8] sm:$0x1f]
      %v7165 = vld [vmem:[%s7162 + $0x10] sm:$0x1f]
      %v7166 = vld [vmem:[%s7162 + $0x50] sm:$0x1f]
      %v7167 = vld [vmem:[%s7162 + $0x58] sm:$0x1f]
      %v7168 = vld [vmem:[%s7162 + $0x60] sm:$0x1f]
      %v7169 = vld [vmem:[%s7162 + $0xa0] sm:$0x1f]
      %v7170 = vld [vmem:[%s7162 + $0xa8] sm:$0x1f]
      %v7171 = vld [vmem:[%s7162 + $0xb0] sm:$0x1f]
      %v7172 = vsel %vm6468, %v7153, 0.0
      %v7173 = vsel %vm6468, %v7156, 0.0
      %v7174 = vadd.f32 %v7172, %v7173
      %v7175 = vsel %vm6468, %v7159, 0.0
      %v7176 = vadd.f32 %v7174, %v7175
      %v7177 = vsel %vm6468, %v7154, 0.0
      %v7178 = vsel %vm6468, %v7157, 0.0
      %v7179 = vadd.f32 %v7177, %v7178
      %v7180 = vsel %vm6468, %v7160, 0.0
      %v7181 = vadd.f32 %v7179, %v7180
      %v7182 = vsel %vm6468, %v7155, 0.0
      %v7183 = vsel %vm6468, %v7158, 0.0
      %v7184 = vadd.f32 %v7182, %v7183
      %v7185 = vsel %vm6468, %v7161, 0.0
      %v7186 = vadd.f32 %v7184, %v7185
      %v7187 = vsel %vm6468, %v7176, 0.0
      %v7188 = vsel %vm6468, %v7181, 0.0
      %v7189 = vadd.f32 %v7187, %v7188
      %v7190 = vsel %vm6468, %v7186, 0.0
      %v7191 = vadd.f32 %v7189, %v7190
      %v7192 = vmul.f32 %v7191, 0.11111111
      %v7193 = vsel %vm6468, %v7163, -inf
      %v7194 = vsel %vm6468, %v7166, -inf
      %v7195 = vsel %vm6468, %v7169, -inf
      %v7196 = vmax.f32 %v7193, %v7195
      %v7197 = vmax.f32 %v7196, %v7194
      %v7198 = vsel %vm6468, %v7164, -inf
      %v7199 = vsel %vm6468, %v7167, -inf
      %v7200 = vsel %vm6468, %v7170, -inf
      %v7201 = vmax.f32 %v7198, %v7200
      %v7202 = vmax.f32 %v7201, %v7199
      %v7203 = vsel %vm6468, %v7165, -inf
      %v7204 = vsel %vm6468, %v7168, -inf
      %v7205 = vsel %vm6468, %v7171, -inf
      %v7206 = vmax.f32 %v7203, %v7205
      %v7207 = vmax.f32 %v7206, %v7204
      %v7208 = vsel %vm6468, %v7197, -inf
      %v7209 = vsel %vm6468, %v7202, -inf
      %v7210 = vsel %vm6468, %v7207, -inf
      %v7211 = vmax.f32 %v7208, %v7209
      %v7212 = vmax.f32 %v7211, %v7210
      %v7213 = vadd.f32 %v7192, %v7212
      %s7214 = scalar_lea.vmem %s147, 88
      %7215 = vst.msk [vmem:[%s7214] sm:$0x1f] %vm6468, %v7213
      %p7216 = scmp.lt.s32.totalorder %s16, 1
      %s7217 = scalar_select %p7216, %s16, 1
      %p7218 = scmp.lt.s32.totalorder %s17, 0
      %s7219 = scalar_select %p7218, %s17, 0
      %s7220 = smul.addr %s7217, 12
      %s7221 = sadd.s32 %s7219, %s7220
      %s7222 = smul.addr %s7221, 8
      %s7223 = scalar_lea.vmem %s1, %s7222
      // Predicated region
      $region25: #{adaptive_pool3d.1} parent=23 // pred_check
        %p7224 = pneg %p72
      $region26: #{adaptive_pool3d.1} parent=23 // pred_check_branch
        %7226 = sbr.rel (%p7224) target = $region28
      $region27: #{adaptive_pool3d.1} parent=23 // pred_region
        _
      $region28: #{adaptive_pool3d.1} parent=23 // pred_fallthru
        _
    $region24: #{adaptive_pool3d.1} parent=5 // pred_fallthru
      _
    %p7227 = scmp.le.s32.totalorder 2, %s7
    // Predicated region
    $region29: #{adaptive_pool3d.1} parent=5 // pred_check
      %p7228 = pneg %p7227
    $region30: #{adaptive_pool3d.1} parent=5 // pred_check_branch
      %7230 = sbr.rel (%p7228) target = $region32
    $region31: #{adaptive_pool3d.1} parent=5 // pred_region
      %s7231 = ssub.s32 %s7, 2
      // Predicated region
      $region33: #{adaptive_pool3d.1} parent=31 // pred_check
        %p7232 = pneg %p78
      $region34: #{adaptive_pool3d.1} parent=31 // pred_check_branch
        %7234 = sbr.rel (%p7232) target = $region36
      $region35: #{adaptive_pool3d.1} parent=31 // pred_region
        %p7235 = scmp.lt.s32.totalorder %s18, 1
        %s7236 = scalar_select %p7235, %s18, 1
        %p7237 = scmp.lt.s32.totalorder %s19, 0
        %s7238 = scalar_select %p7237, %s19, 0
        %s7239 = smul.addr %s7236, 12
        %s7240 = sadd.s32 %s7238, %s7239
        %s7241 = smul.addr %s7240, 8
        %s7242 = scalar_lea.vmem %s1, %s7241
      $region36: #{adaptive_pool3d.1} parent=31 // pred_fallthru
        _
    $region32: #{adaptive_pool3d.1} parent=5 // pred_fallthru
      _
  $region6: #{adaptive_pool3d.1} parent=0 // loop_footer
    %s11 = sadd.s32 1, %s7
  $region7: #{adaptive_pool3d.1} parent=0 // loop_footer_branch
    %6 = sbr.rel target = $region3
  $region8: #{adaptive_pool3d.1} parent=0 // loop_exit
    _

</llo_original>
